<compile_context>
chip_gen: v7x
topology: tpu7x:2x2x1
jax: 0.10.0
libtpu: 0.0.40
codegen_flags: <defaults>
</compile_context>

<pallas_src>
import jax
import jax.numpy as jnp
from jax.experimental import pallas as pl
from jax.experimental.pallas import tpu as pltpu

jax.config.update("jax_default_matmul_precision", "float32")

# ----------------------------- model config ---------------------------------
IN_CH   = 4            # input_channels
OUT_CH  = 8            # output_channles
N_CONVS = 2            # unused in forward (conv1 is never called)
KH = KW = 3
PAD = 1
B, H, W = 2, 16, 16

# FastKAN defaults for version='Fast'
G_MIN, G_MAX, NUM_GRIDS = -2.0, 2.0, 8
RBF_H = (G_MAX - G_MIN) / (NUM_GRIDS - 1)
GRID_VALS = [G_MIN + i * RBF_H for i in range(NUM_GRIDS)]
LN_EPS = 1e-5

D_PATCH = IN_CH * KH * KW            # 36 features per unfolded patch
DG = D_PATCH * NUM_GRIDS             # 288 stacked RBF features

# flattened-spatial geometry (stride-PW indexing of the zero-padded image)
PH = H + 2 * PAD                     # 18
PW = W + 2 * PAD                     # 18
XFLAT = PH * PW                      # 324  padded-input flat length
QDIM = H * PW                        # 288  flat output width (q = oh*PW + ow)
CONV_BASE = PW + PAD                 # 19   first interior flat index of ypad
CONV_SLAB = QDIM - 2 * PAD           # 286  interior positions computed in one slab
TAP_OFFS = tuple(ki * PW + kj for ki in range(KH) for kj in range(KW))
YPAD_LEN = QDIM + TAP_OFFS[-1]       # 326  max unfold read index + 1


# ------------------------------ fused kernel --------------------------------
def _fused_kernel(x_ref, dww_ref, dwb_ref, mask_ref, gam_ref, bet_ref,
                  sw_ref, bw_ref, bb_ref, o_ref, ypad_ref):
    # ---- depthwise 3x3 conv over the flattened padded image -----------------
    # ypad_ref holds the zero-padded conv output y (18x18 per channel) flattened
    # with stride PW=18, plus a small zero tail so unfold slices stay in range.
    ypad_ref[...] = jnp.zeros_like(ypad_ref)
    acc = jnp.zeros((IN_CH, CONV_SLAB), jnp.float32)
    for t, off in enumerate(TAP_OFFS):
        acc = acc + dww_ref[:, t:t + 1] * x_ref[0, :, off:off + CONV_SLAB]
    # mask zeroes the columns that fall on the horizontal padding border
    ypad_ref[:, CONV_BASE:CONV_BASE + CONV_SLAB] = \
        (acc + dwb_ref[...]) * mask_ref[...]

    # ---- unfold (im2col) as shifted slices of the flattened padded y --------
    # row (c, ki, kj) over flat output index q reads ypad[c, q + ki*PW + kj],
    # matching torch.nn.functional.unfold feature ordering c*9 + ki*3 + kj.
    rows = [ypad_ref[c:c + 1, off:off + QDIM]
            for c in range(IN_CH) for off in TAP_OFFS]
    pt = jnp.concatenate(rows, axis=0)                     # (D_PATCH, QDIM)

    # ---- FastKAN layer, transposed (features on sublanes, pixels on lanes) --
    mu = jnp.mean(pt, axis=0, keepdims=True)               # LayerNorm over D
    xc = pt - mu
    var = jnp.mean(xc * xc, axis=0, keepdims=True)
    xn = xc * jax.lax.rsqrt(var + LN_EPS)
    xn = xn * gam_ref[...] + bet_ref[...]                  # (D,1) broadcasts

    inv_h = 1.0 / RBF_H
    z = jnp.concatenate([(xn - g) * inv_h for g in GRID_VALS], axis=0)  # (DG, QDIM)
    rbf = jnp.exp(-(z * z))                                # single big exp

    silu = pt * jax.nn.sigmoid(pt)                         # base act on raw x

    out = jnp.dot(sw_ref[...], rbf, preferred_element_type=jnp.float32)
    out = out + jnp.dot(bw_ref[...], silu, preferred_element_type=jnp.float32)
    o_ref[0, :, :] = out + bb_ref[...]                     # lane-dense (8, 288)


def fused_forward(x, p):
    Bn, C, Hh, Ww = x.shape
    xpad = jnp.pad(x, ((0, 0), (0, 0), (PAD, PAD), (PAD, PAD)))
    x_flat = xpad.reshape(Bn, C, XFLAT)

    # tiny, one-time parameter re-layouts (fused/const-folded by XLA)
    dw_w = p["dw_w"]                                       # (C, 9)
    dw_b = p["dw_b"].reshape(C, 1)
    gamma = p["ln_gamma"].reshape(D_PATCH, 1)
    beta = p["ln_beta"].reshape(D_PATCH, 1)
    sw = jnp.transpose(p["spline_w"], (0, 2, 1)).reshape(OUT_CH, DG)  # col = g*D+d
    bw = p["base_w"].T                                     # (OUT_CH, D)
    bb = p["base_b"].reshape(OUT_CH, 1)

    jcol = (jnp.arange(CONV_SLAB) + CONV_BASE) % PW
    mask = ((jcol >= PAD) & (jcol < PW - PAD)).astype(jnp.float32)[None, :]

    out_flat = pl.pallas_call(
        _fused_kernel,
        out_shape=jax.ShapeDtypeStruct((Bn, OUT_CH, QDIM), jnp.float32),
        grid_spec=pltpu.PrefetchScalarGridSpec(
            num_scalar_prefetch=0,
            grid=(Bn,),
            in_specs=[
                pl.BlockSpec((1, C, XFLAT), lambda i: (i, 0, 0)),
                pl.BlockSpec((C, KH * KW), lambda i: (0, 0)),
                pl.BlockSpec((C, 1), lambda i: (0, 0)),
                pl.BlockSpec((1, CONV_SLAB), lambda i: (0, 0)),
                pl.BlockSpec((D_PATCH, 1), lambda i: (0, 0)),
                pl.BlockSpec((D_PATCH, 1), lambda i: (0, 0)),
                pl.BlockSpec((OUT_CH, DG), lambda i: (0, 0)),
                pl.BlockSpec((OUT_CH, D_PATCH), lambda i: (0, 0)),
                pl.BlockSpec((OUT_CH, 1), lambda i: (0, 0)),
            ],
            out_specs=pl.BlockSpec((1, OUT_CH, QDIM), lambda i: (i, 0, 0)),
            scratch_shapes=[pltpu.VMEM((C, YPAD_LEN), jnp.float32)],
        ),
        compiler_params=pltpu.CompilerParams(
            dimension_semantics=("parallel",)),
    )(x_flat, dw_w, dw_b, mask, gamma, beta, sw, bw, bb)

    # stride-18 flat output -> (B, OUT_CH, H, W); drop the 2 garbage columns.
    out = out_flat.reshape(Bn, OUT_CH, Hh, PW)[:, :, :, :Ww]
    return out


@jax.jit
def forward(x, p):
    return fused_forward(x, p)


# ----------------------------- params / reference ----------------------------
def init_params(key):
    ks = jax.random.split(key, 5)
    fan_dw = 1 * KH * KW
    dw_w = jax.random.uniform(ks[0], (IN_CH, KH * KW), jnp.float32,
                              -1.0, 1.0) / jnp.sqrt(fan_dw)
    dw_b = jax.random.uniform(ks[1], (IN_CH,), jnp.float32,
                              -1.0, 1.0) / jnp.sqrt(fan_dw)
    ln_gamma = jnp.ones((1, D_PATCH), jnp.float32)
    ln_beta = jnp.zeros((1, D_PATCH), jnp.float32)
    # SplineLinear weight stored PyTorch-style (OUT_CH, D, G); flatten order (d, g).
    spline_w = jax.random.normal(ks[2], (OUT_CH, D_PATCH, NUM_GRIDS),
                                 jnp.float32) * 0.1
    base_w = jax.random.uniform(ks[3], (D_PATCH, OUT_CH), jnp.float32,
                                -1.0, 1.0) / jnp.sqrt(D_PATCH)
    base_b = jax.random.uniform(ks[4], (1, OUT_CH), jnp.float32,
                                -1.0, 1.0) / jnp.sqrt(D_PATCH)
    return dict(dw_w=dw_w, dw_b=dw_b, ln_gamma=ln_gamma, ln_beta=ln_beta,
                spline_w=spline_w, base_w=base_w, base_b=base_b)


def unfold_3x3(y):
    # torch.nn.functional.unfold ordering: feature = c*9 + ki*3 + kj,
    # location = oh*W + ow; then transpose(1,2) + flatten to (B*H*W, C*9).
    Bn, C, Hh, Ww = y.shape
    yp = jnp.pad(y, ((0, 0), (0, 0), (PAD, PAD), (PAD, PAD)))
    cols = jnp.stack([yp[:, :, ki:ki + Hh, kj:kj + Ww]
                      for ki in range(KH) for kj in range(KW)], axis=2)
    patches = cols.reshape(Bn, C * KH * KW, Hh * Ww)
    patches = jnp.transpose(patches, (0, 2, 1)).reshape(Bn * Hh * Ww, C * KH * KW)
    return patches


def reference_forward(x, p):
    Bn, C, Hh, Ww = x.shape
    xpad = jnp.pad(x, ((0, 0), (0, 0), (PAD, PAD), (PAD, PAD)))
    w = p["dw_w"].reshape(C, KH, KW)
    y = jnp.zeros((Bn, C, Hh, Ww), jnp.float32)
    for ki in range(KH):
        for kj in range(KW):
            y = y + xpad[:, :, ki:ki + Hh, kj:kj + Ww] * w[:, ki, kj][None, :, None, None]
    y = y + p["dw_b"][None, :, None, None]
    patches = unfold_3x3(y)
    mu = jnp.mean(patches, -1, keepdims=True)
    xc = patches - mu
    var = jnp.mean(xc * xc, -1, keepdims=True)
    xn = xc * jax.lax.rsqrt(var + LN_EPS) * p["ln_gamma"] + p["ln_beta"]
    grid = jnp.array(GRID_VALS, jnp.float32)
    rbf = jnp.exp(-(((xn[:, :, None] - grid[None, None, :]) / RBF_H) ** 2))
    sw_flat = p["spline_w"].reshape(OUT_CH, D_PATCH * NUM_GRIDS)     # (OUT, D*G)
    spline = rbf.reshape(-1, D_PATCH * NUM_GRIDS) @ sw_flat.T
    base = (patches * jax.nn.sigmoid(patches)) @ p["base_w"] + p["base_b"]
    out = spline + base
    out = out.reshape(Bn, Hh * Ww, OUT_CH)
    return jnp.transpose(out, (0, 2, 1)).reshape(Bn, OUT_CH, Hh, Ww)


if __name__ == "__main__":
    key = jax.random.PRNGKey(0)
    pk, xk = jax.random.split(key)
    params = init_params(pk)
    x = jax.random.normal(xk, (B, IN_CH, H, W), jnp.float32)

    out = jax.block_until_ready(forward(x, params))
    assert out.shape == (B, OUT_CH, H, W), out.shape

    ref = jax.block_until_ready(reference_forward(x, params))
    assert jnp.all(jnp.isfinite(out))
    assert jnp.allclose(out, ref, atol=1e-2, rtol=1e-2), \
        float(jnp.max(jnp.abs(out - ref)))

    print("KERNEL_OK")
</pallas_src>

<mosaic_0001>
module attributes {stable_mosaic.version = 11 : i64} {
  func.func @_fused_kernel(%arg0: i32, %arg1: memref<1x4x324xf32, #tpu.memory_space<vmem>>, %arg2: memref<4x9xf32, #tpu.memory_space<vmem>>, %arg3: memref<4x1xf32, #tpu.memory_space<vmem>>, %arg4: memref<1x286xf32, #tpu.memory_space<vmem>>, %arg5: memref<36x1xf32, #tpu.memory_space<vmem>>, %arg6: memref<36x1xf32, #tpu.memory_space<vmem>>, %arg7: memref<8x288xf32, #tpu.memory_space<vmem>>, %arg8: memref<8x36xf32, #tpu.memory_space<vmem>>, %arg9: memref<8x1xf32, #tpu.memory_space<vmem>>, %arg10: memref<1x8x288xf32, #tpu.memory_space<vmem>>, %arg11: memref<4x326xf32, #tpu.memory_space<vmem>>) attributes {dimension_semantics = [#tpu.dimension_semantics<parallel>], iteration_bounds = array<i64: 2>, scalar_prefetch = 0 : i64, scratch_operands = 1 : i64, tpu.core_type = #tpu.core_type<tc>, window_params = [{transform_indices = @transform_0, window_bounds = array<i64: 1, 4, 324>}, {pipeline_mode = #tpu.pipeline_mode<synchronous>, transform_indices = @transform_1, window_bounds = array<i64: 4, 9>}, {pipeline_mode = #tpu.pipeline_mode<synchronous>, transform_indices = @transform_2, window_bounds = array<i64: 4, 1>}, {pipeline_mode = #tpu.pipeline_mode<synchronous>, transform_indices = @transform_3, window_bounds = array<i64: 1, 286>}, {pipeline_mode = #tpu.pipeline_mode<synchronous>, transform_indices = @transform_4, window_bounds = array<i64: 36, 1>}, {pipeline_mode = #tpu.pipeline_mode<synchronous>, transform_indices = @transform_5, window_bounds = array<i64: 36, 1>}, {pipeline_mode = #tpu.pipeline_mode<synchronous>, transform_indices = @transform_6, window_bounds = array<i64: 8, 288>}, {pipeline_mode = #tpu.pipeline_mode<synchronous>, transform_indices = @transform_7, window_bounds = array<i64: 8, 36>}, {pipeline_mode = #tpu.pipeline_mode<synchronous>, transform_indices = @transform_8, window_bounds = array<i64: 8, 1>}, {transform_indices = @transform_9, window_bounds = array<i64: 1, 8, 288>}]} {
    %cst = arith.constant 0.000000e+00 : f32
    %0 = vector.broadcast %cst : f32 to vector<4x326xf32>
    %c0 = arith.constant 0 : index
    %c0_0 = arith.constant 0 : index
    %1 = vector.load %arg11[%c0, %c0_0] : memref<4x326xf32, #tpu.memory_space<vmem>>, vector<4x326xf32>
    tpu.vector_store %arg11[%c0, %c0_0], %0 {strides = array<i32>} : memref<4x326xf32, #tpu.memory_space<vmem>>, vector<4x326xf32>,
    %cst_1 = arith.constant 0.000000e+00 : f32
    %2 = vector.broadcast %cst_1 : f32 to vector<4x286xf32>
    %c0_2 = arith.constant 0 : index
    %c0_3 = arith.constant 0 : index
    %3 = vector.load %arg2[%c0_2, %c0_3] : memref<4x9xf32, #tpu.memory_space<vmem>>, vector<4x1xf32>
    %c0_4 = arith.constant 0 : index
    %c0_5 = arith.constant 0 : index
    %c0_6 = arith.constant 0 : index
    %4 = vector.load %arg1[%c0_4, %c0_5, %c0_6] : memref<1x4x324xf32, #tpu.memory_space<vmem>>, vector<1x4x286xf32>
    %5 = vector.shape_cast %4 : vector<1x4x286xf32> to vector<4x286xf32>
    %6 = vector.broadcast %3 : vector<4x1xf32> to vector<4x286xf32>
    %7 = arith.mulf %6, %5 : vector<4x286xf32>
    %8 = arith.addf %2, %7 : vector<4x286xf32>
    %c0_7 = arith.constant 0 : index
    %c1 = arith.constant 1 : index
    %9 = vector.load %arg2[%c0_7, %c1] : memref<4x9xf32, #tpu.memory_space<vmem>>, vector<4x1xf32>
    %c0_8 = arith.constant 0 : index
    %c0_9 = arith.constant 0 : index
    %c1_10 = arith.constant 1 : index
    %10 = vector.load %arg1[%c0_8, %c0_9, %c1_10] : memref<1x4x324xf32, #tpu.memory_space<vmem>>, vector<1x4x286xf32>
    %11 = vector.shape_cast %10 : vector<1x4x286xf32> to vector<4x286xf32>
    %12 = vector.broadcast %9 : vector<4x1xf32> to vector<4x286xf32>
    %13 = arith.mulf %12, %11 : vector<4x286xf32>
    %14 = arith.addf %8, %13 : vector<4x286xf32>
    %c0_11 = arith.constant 0 : index
    %c2 = arith.constant 2 : index
    %15 = vector.load %arg2[%c0_11, %c2] : memref<4x9xf32, #tpu.memory_space<vmem>>, vector<4x1xf32>
    %c0_12 = arith.constant 0 : index
    %c0_13 = arith.constant 0 : index
    %c2_14 = arith.constant 2 : index
    %16 = vector.load %arg1[%c0_12, %c0_13, %c2_14] : memref<1x4x324xf32, #tpu.memory_space<vmem>>, vector<1x4x286xf32>
    %17 = vector.shape_cast %16 : vector<1x4x286xf32> to vector<4x286xf32>
    %18 = vector.broadcast %15 : vector<4x1xf32> to vector<4x286xf32>
    %19 = arith.mulf %18, %17 : vector<4x286xf32>
    %20 = arith.addf %14, %19 : vector<4x286xf32>
    %c0_15 = arith.constant 0 : index
    %c3 = arith.constant 3 : index
    %21 = vector.load %arg2[%c0_15, %c3] : memref<4x9xf32, #tpu.memory_space<vmem>>, vector<4x1xf32>
    %c0_16 = arith.constant 0 : index
    %c0_17 = arith.constant 0 : index
    %c18 = arith.constant 18 : index
    %22 = vector.load %arg1[%c0_16, %c0_17, %c18] : memref<1x4x324xf32, #tpu.memory_space<vmem>>, vector<1x4x286xf32>
    %23 = vector.shape_cast %22 : vector<1x4x286xf32> to vector<4x286xf32>
    %24 = vector.broadcast %21 : vector<4x1xf32> to vector<4x286xf32>
    %25 = arith.mulf %24, %23 : vector<4x286xf32>
    %26 = arith.addf %20, %25 : vector<4x286xf32>
    %c0_18 = arith.constant 0 : index
    %c4 = arith.constant 4 : index
    %27 = vector.load %arg2[%c0_18, %c4] : memref<4x9xf32, #tpu.memory_space<vmem>>, vector<4x1xf32>
    %c0_19 = arith.constant 0 : index
    %c0_20 = arith.constant 0 : index
    %c19 = arith.constant 19 : index
    %28 = vector.load %arg1[%c0_19, %c0_20, %c19] : memref<1x4x324xf32, #tpu.memory_space<vmem>>, vector<1x4x286xf32>
    %29 = vector.shape_cast %28 : vector<1x4x286xf32> to vector<4x286xf32>
    %30 = vector.broadcast %27 : vector<4x1xf32> to vector<4x286xf32>
    %31 = arith.mulf %30, %29 : vector<4x286xf32>
    %32 = arith.addf %26, %31 : vector<4x286xf32>
    %c0_21 = arith.constant 0 : index
    %c5 = arith.constant 5 : index
    %33 = vector.load %arg2[%c0_21, %c5] : memref<4x9xf32, #tpu.memory_space<vmem>>, vector<4x1xf32>
    %c0_22 = arith.constant 0 : index
    %c0_23 = arith.constant 0 : index
    %c20 = arith.constant 20 : index
    %34 = vector.load %arg1[%c0_22, %c0_23, %c20] : memref<1x4x324xf32, #tpu.memory_space<vmem>>, vector<1x4x286xf32>
    %35 = vector.shape_cast %34 : vector<1x4x286xf32> to vector<4x286xf32>
    %36 = vector.broadcast %33 : vector<4x1xf32> to vector<4x286xf32>
    %37 = arith.mulf %36, %35 : vector<4x286xf32>
    %38 = arith.addf %32, %37 : vector<4x286xf32>
    %c0_24 = arith.constant 0 : index
    %c6 = arith.constant 6 : index
    %39 = vector.load %arg2[%c0_24, %c6] : memref<4x9xf32, #tpu.memory_space<vmem>>, vector<4x1xf32>
    %c0_25 = arith.constant 0 : index
    %c0_26 = arith.constant 0 : index
    %c36 = arith.constant 36 : index
    %40 = vector.load %arg1[%c0_25, %c0_26, %c36] : memref<1x4x324xf32, #tpu.memory_space<vmem>>, vector<1x4x286xf32>
    %41 = vector.shape_cast %40 : vector<1x4x286xf32> to vector<4x286xf32>
    %42 = vector.broadcast %39 : vector<4x1xf32> to vector<4x286xf32>
    %43 = arith.mulf %42, %41 : vector<4x286xf32>
    %44 = arith.addf %38, %43 : vector<4x286xf32>
    %c0_27 = arith.constant 0 : index
    %c7 = arith.constant 7 : index
    %45 = vector.load %arg2[%c0_27, %c7] : memref<4x9xf32, #tpu.memory_space<vmem>>, vector<4x1xf32>
    %c0_28 = arith.constant 0 : index
    %c0_29 = arith.constant 0 : index
    %c37 = arith.constant 37 : index
    %46 = vector.load %arg1[%c0_28, %c0_29, %c37] : memref<1x4x324xf32, #tpu.memory_space<vmem>>, vector<1x4x286xf32>
    %47 = vector.shape_cast %46 : vector<1x4x286xf32> to vector<4x286xf32>
    %48 = vector.broadcast %45 : vector<4x1xf32> to vector<4x286xf32>
    %49 = arith.mulf %48, %47 : vector<4x286xf32>
    %50 = arith.addf %44, %49 : vector<4x286xf32>
    %c0_30 = arith.constant 0 : index
    %c8 = arith.constant 8 : index
    %51 = vector.load %arg2[%c0_30, %c8] : memref<4x9xf32, #tpu.memory_space<vmem>>, vector<4x1xf32>
    %c0_31 = arith.constant 0 : index
    %c0_32 = arith.constant 0 : index
    %c38 = arith.constant 38 : index
    %52 = vector.load %arg1[%c0_31, %c0_32, %c38] : memref<1x4x324xf32, #tpu.memory_space<vmem>>, vector<1x4x286xf32>
    %53 = vector.shape_cast %52 : vector<1x4x286xf32> to vector<4x286xf32>
    %54 = vector.broadcast %51 : vector<4x1xf32> to vector<4x286xf32>
    %55 = arith.mulf %54, %53 : vector<4x286xf32>
    %56 = arith.addf %50, %55 : vector<4x286xf32>
    %c0_33 = arith.constant 0 : index
    %c0_34 = arith.constant 0 : index
    %57 = vector.load %arg3[%c0_33, %c0_34] : memref<4x1xf32, #tpu.memory_space<vmem>>, vector<4x1xf32>
    %58 = vector.broadcast %57 : vector<4x1xf32> to vector<4x286xf32>
    %59 = arith.addf %56, %58 : vector<4x286xf32>
    %c0_35 = arith.constant 0 : index
    %c0_36 = arith.constant 0 : index
    %60 = vector.load %arg4[%c0_35, %c0_36] : memref<1x286xf32, #tpu.memory_space<vmem>>, vector<1x286xf32>
    %61 = vector.broadcast %60 : vector<1x286xf32> to vector<4x286xf32>
    %62 = arith.mulf %59, %61 : vector<4x286xf32>
    %c0_37 = arith.constant 0 : index
    %c19_38 = arith.constant 19 : index
    %63 = vector.load %arg11[%c0_37, %c19_38] : memref<4x326xf32, #tpu.memory_space<vmem>>, vector<4x286xf32>
    tpu.vector_store %arg11[%c0_37, %c19_38], %62 {strides = array<i32>} : memref<4x326xf32, #tpu.memory_space<vmem>>, vector<4x286xf32>,
    %c0_39 = arith.constant 0 : index
    %c0_40 = arith.constant 0 : index
    %64 = vector.load %arg11[%c0_39, %c0_40] : memref<4x326xf32, #tpu.memory_space<vmem>>, vector<1x288xf32>
    %c0_41 = arith.constant 0 : index
    %c1_42 = arith.constant 1 : index
    %65 = vector.load %arg11[%c0_41, %c1_42] : memref<4x326xf32, #tpu.memory_space<vmem>>, vector<1x288xf32>
    %c0_43 = arith.constant 0 : index
    %c2_44 = arith.constant 2 : index
    %66 = vector.load %arg11[%c0_43, %c2_44] : memref<4x326xf32, #tpu.memory_space<vmem>>, vector<1x288xf32>
    %c0_45 = arith.constant 0 : index
    %c18_46 = arith.constant 18 : index
    %67 = vector.load %arg11[%c0_45, %c18_46] : memref<4x326xf32, #tpu.memory_space<vmem>>, vector<1x288xf32>
    %c0_47 = arith.constant 0 : index
    %c19_48 = arith.constant 19 : index
    %68 = vector.load %arg11[%c0_47, %c19_48] : memref<4x326xf32, #tpu.memory_space<vmem>>, vector<1x288xf32>
    %c0_49 = arith.constant 0 : index
    %c20_50 = arith.constant 20 : index
    %69 = vector.load %arg11[%c0_49, %c20_50] : memref<4x326xf32, #tpu.memory_space<vmem>>, vector<1x288xf32>
    %c0_51 = arith.constant 0 : index
    %c36_52 = arith.constant 36 : index
    %70 = vector.load %arg11[%c0_51, %c36_52] : memref<4x326xf32, #tpu.memory_space<vmem>>, vector<1x288xf32>
    %c0_53 = arith.constant 0 : index
    %c37_54 = arith.constant 37 : index
    %71 = vector.load %arg11[%c0_53, %c37_54] : memref<4x326xf32, #tpu.memory_space<vmem>>, vector<1x288xf32>
    %c0_55 = arith.constant 0 : index
    %c38_56 = arith.constant 38 : index
    %72 = vector.load %arg11[%c0_55, %c38_56] : memref<4x326xf32, #tpu.memory_space<vmem>>, vector<1x288xf32>
    %c1_57 = arith.constant 1 : index
    %c0_58 = arith.constant 0 : index
    %73 = vector.load %arg11[%c1_57, %c0_58] : memref<4x326xf32, #tpu.memory_space<vmem>>, vector<1x288xf32>
    %c1_59 = arith.constant 1 : index
    %c1_60 = arith.constant 1 : index
    %74 = vector.load %arg11[%c1_59, %c1_60] : memref<4x326xf32, #tpu.memory_space<vmem>>, vector<1x288xf32>
    %c1_61 = arith.constant 1 : index
    %c2_62 = arith.constant 2 : index
    %75 = vector.load %arg11[%c1_61, %c2_62] : memref<4x326xf32, #tpu.memory_space<vmem>>, vector<1x288xf32>
    %c1_63 = arith.constant 1 : index
    %c18_64 = arith.constant 18 : index
    %76 = vector.load %arg11[%c1_63, %c18_64] : memref<4x326xf32, #tpu.memory_space<vmem>>, vector<1x288xf32>
    %c1_65 = arith.constant 1 : index
    %c19_66 = arith.constant 19 : index
    %77 = vector.load %arg11[%c1_65, %c19_66] : memref<4x326xf32, #tpu.memory_space<vmem>>, vector<1x288xf32>
    %c1_67 = arith.constant 1 : index
    %c20_68 = arith.constant 20 : index
    %78 = vector.load %arg11[%c1_67, %c20_68] : memref<4x326xf32, #tpu.memory_space<vmem>>, vector<1x288xf32>
    %c1_69 = arith.constant 1 : index
    %c36_70 = arith.constant 36 : index
    %79 = vector.load %arg11[%c1_69, %c36_70] : memref<4x326xf32, #tpu.memory_space<vmem>>, vector<1x288xf32>
    %c1_71 = arith.constant 1 : index
    %c37_72 = arith.constant 37 : index
    %80 = vector.load %arg11[%c1_71, %c37_72] : memref<4x326xf32, #tpu.memory_space<vmem>>, vector<1x288xf32>
    %c1_73 = arith.constant 1 : index
    %c38_74 = arith.constant 38 : index
    %81 = vector.load %arg11[%c1_73, %c38_74] : memref<4x326xf32, #tpu.memory_space<vmem>>, vector<1x288xf32>
    %c2_75 = arith.constant 2 : index
    %c0_76 = arith.constant 0 : index
    %82 = vector.load %arg11[%c2_75, %c0_76] : memref<4x326xf32, #tpu.memory_space<vmem>>, vector<1x288xf32>
    %c2_77 = arith.constant 2 : index
    %c1_78 = arith.constant 1 : index
    %83 = vector.load %arg11[%c2_77, %c1_78] : memref<4x326xf32, #tpu.memory_space<vmem>>, vector<1x288xf32>
    %c2_79 = arith.constant 2 : index
    %c2_80 = arith.constant 2 : index
    %84 = vector.load %arg11[%c2_79, %c2_80] : memref<4x326xf32, #tpu.memory_space<vmem>>, vector<1x288xf32>
    %c2_81 = arith.constant 2 : index
    %c18_82 = arith.constant 18 : index
    %85 = vector.load %arg11[%c2_81, %c18_82] : memref<4x326xf32, #tpu.memory_space<vmem>>, vector<1x288xf32>
    %c2_83 = arith.constant 2 : index
    %c19_84 = arith.constant 19 : index
    %86 = vector.load %arg11[%c2_83, %c19_84] : memref<4x326xf32, #tpu.memory_space<vmem>>, vector<1x288xf32>
    %c2_85 = arith.constant 2 : index
    %c20_86 = arith.constant 20 : index
    %87 = vector.load %arg11[%c2_85, %c20_86] : memref<4x326xf32, #tpu.memory_space<vmem>>, vector<1x288xf32>
    %c2_87 = arith.constant 2 : index
    %c36_88 = arith.constant 36 : index
    %88 = vector.load %arg11[%c2_87, %c36_88] : memref<4x326xf32, #tpu.memory_space<vmem>>, vector<1x288xf32>
    %c2_89 = arith.constant 2 : index
    %c37_90 = arith.constant 37 : index
    %89 = vector.load %arg11[%c2_89, %c37_90] : memref<4x326xf32, #tpu.memory_space<vmem>>, vector<1x288xf32>
    %c2_91 = arith.constant 2 : index
    %c38_92 = arith.constant 38 : index
    %90 = vector.load %arg11[%c2_91, %c38_92] : memref<4x326xf32, #tpu.memory_space<vmem>>, vector<1x288xf32>
    %c3_93 = arith.constant 3 : index
    %c0_94 = arith.constant 0 : index
    %91 = vector.load %arg11[%c3_93, %c0_94] : memref<4x326xf32, #tpu.memory_space<vmem>>, vector<1x288xf32>
    %c3_95 = arith.constant 3 : index
    %c1_96 = arith.constant 1 : index
    %92 = vector.load %arg11[%c3_95, %c1_96] : memref<4x326xf32, #tpu.memory_space<vmem>>, vector<1x288xf32>
    %c3_97 = arith.constant 3 : index
    %c2_98 = arith.constant 2 : index
    %93 = vector.load %arg11[%c3_97, %c2_98] : memref<4x326xf32, #tpu.memory_space<vmem>>, vector<1x288xf32>
    %c3_99 = arith.constant 3 : index
    %c18_100 = arith.constant 18 : index
    %94 = vector.load %arg11[%c3_99, %c18_100] : memref<4x326xf32, #tpu.memory_space<vmem>>, vector<1x288xf32>
    %c3_101 = arith.constant 3 : index
    %c19_102 = arith.constant 19 : index
    %95 = vector.load %arg11[%c3_101, %c19_102] : memref<4x326xf32, #tpu.memory_space<vmem>>, vector<1x288xf32>
    %c3_103 = arith.constant 3 : index
    %c20_104 = arith.constant 20 : index
    %96 = vector.load %arg11[%c3_103, %c20_104] : memref<4x326xf32, #tpu.memory_space<vmem>>, vector<1x288xf32>
    %c3_105 = arith.constant 3 : index
    %c36_106 = arith.constant 36 : index
    %97 = vector.load %arg11[%c3_105, %c36_106] : memref<4x326xf32, #tpu.memory_space<vmem>>, vector<1x288xf32>
    %c3_107 = arith.constant 3 : index
    %c37_108 = arith.constant 37 : index
    %98 = vector.load %arg11[%c3_107, %c37_108] : memref<4x326xf32, #tpu.memory_space<vmem>>, vector<1x288xf32>
    %c3_109 = arith.constant 3 : index
    %c38_110 = arith.constant 38 : index
    %99 = vector.load %arg11[%c3_109, %c38_110] : memref<4x326xf32, #tpu.memory_space<vmem>>, vector<1x288xf32>
    %100 = tpu.concatenate %64, %65, %66, %67, %68, %69, %70, %71, %72, %73, %74, %75, %76, %77, %78, %79 in 0 : vector<1x288xf32>, vector<1x288xf32>, vector<1x288xf32>, vector<1x288xf32>, vector<1x288xf32>, vector<1x288xf32>, vector<1x288xf32>, vector<1x288xf32>, vector<1x288xf32>, vector<1x288xf32>, vector<1x288xf32>, vector<1x288xf32>, vector<1x288xf32>, vector<1x288xf32>, vector<1x288xf32>, vector<1x288xf32> -> vector<16x288xf32>
    %101 = tpu.concatenate %80, %81, %82, %83, %84, %85, %86, %87, %88, %89, %90, %91, %92, %93, %94, %95 in 0 : vector<1x288xf32>, vector<1x288xf32>, vector<1x288xf32>, vector<1x288xf32>, vector<1x288xf32>, vector<1x288xf32>, vector<1x288xf32>, vector<1x288xf32>, vector<1x288xf32>, vector<1x288xf32>, vector<1x288xf32>, vector<1x288xf32>, vector<1x288xf32>, vector<1x288xf32>, vector<1x288xf32>, vector<1x288xf32> -> vector<16x288xf32>
    %102 = tpu.concatenate %96, %97, %98, %99 in 0 : vector<1x288xf32>, vector<1x288xf32>, vector<1x288xf32>, vector<1x288xf32> -> vector<4x288xf32>
    %103 = tpu.concatenate %100, %101, %102 in 0 : vector<16x288xf32>, vector<16x288xf32>, vector<4x288xf32> -> vector<36x288xf32>
    %cst_111 = arith.constant dense<0.000000e+00> : vector<288xf32>
    %104 = vector.multi_reduction <add>, %103, %cst_111 [0] : vector<36x288xf32> to vector<288xf32>
    %105 = vector.shape_cast %104 : vector<288xf32> to vector<1x288xf32>
    %cst_112 = arith.constant 3.600000e+01 : f32
    %106 = vector.broadcast %cst_112 : f32 to vector<1x288xf32>
    %107 = arith.divf %105, %106 : vector<1x288xf32>
    %108 = vector.broadcast %107 : vector<1x288xf32> to vector<36x288xf32>
    %109 = arith.subf %103, %108 : vector<36x288xf32>
    %110 = arith.mulf %109, %109 : vector<36x288xf32>
    %cst_113 = arith.constant dense<0.000000e+00> : vector<288xf32>
    %111 = vector.multi_reduction <add>, %110, %cst_113 [0] : vector<36x288xf32> to vector<288xf32>
    %112 = vector.shape_cast %111 : vector<288xf32> to vector<1x288xf32>
    %cst_114 = arith.constant 3.600000e+01 : f32
    %113 = vector.broadcast %cst_114 : f32 to vector<1x288xf32>
    %114 = arith.divf %112, %113 : vector<1x288xf32>
    %cst_115 = arith.constant 9.99999974E-6 : f32
    %115 = vector.broadcast %cst_115 : f32 to vector<1x288xf32>
    %116 = arith.addf %114, %115 : vector<1x288xf32>
    %117 = math.rsqrt %116 : vector<1x288xf32>
    %118 = vector.broadcast %117 : vector<1x288xf32> to vector<36x288xf32>
    %119 = arith.mulf %109, %118 : vector<36x288xf32>
    %c0_116 = arith.constant 0 : index
    %c0_117 = arith.constant 0 : index
    %120 = vector.load %arg5[%c0_116, %c0_117] : memref<36x1xf32, #tpu.memory_space<vmem>>, vector<36x1xf32>
    %121 = vector.broadcast %120 : vector<36x1xf32> to vector<36x288xf32>
    %122 = arith.mulf %119, %121 : vector<36x288xf32>
    %c0_118 = arith.constant 0 : index
    %c0_119 = arith.constant 0 : index
    %123 = vector.load %arg6[%c0_118, %c0_119] : memref<36x1xf32, #tpu.memory_space<vmem>>, vector<36x1xf32>
    %124 = vector.broadcast %123 : vector<36x1xf32> to vector<36x288xf32>
    %125 = arith.addf %122, %124 : vector<36x288xf32>
    %cst_120 = arith.constant -2.000000e+00 : f32
    %126 = vector.broadcast %cst_120 : f32 to vector<36x288xf32>
    %127 = arith.subf %125, %126 : vector<36x288xf32>
    %cst_121 = arith.constant 1.750000e+00 : f32
    %128 = vector.broadcast %cst_121 : f32 to vector<36x288xf32>
    %129 = arith.mulf %127, %128 : vector<36x288xf32>
    %cst_122 = arith.constant -1.42857146 : f32
    %130 = vector.broadcast %cst_122 : f32 to vector<36x288xf32>
    %131 = arith.subf %125, %130 : vector<36x288xf32>
    %cst_123 = arith.constant 1.750000e+00 : f32
    %132 = vector.broadcast %cst_123 : f32 to vector<36x288xf32>
    %133 = arith.mulf %131, %132 : vector<36x288xf32>
    %cst_124 = arith.constant -0.857142865 : f32
    %134 = vector.broadcast %cst_124 : f32 to vector<36x288xf32>
    %135 = arith.subf %125, %134 : vector<36x288xf32>
    %cst_125 = arith.constant 1.750000e+00 : f32
    %136 = vector.broadcast %cst_125 : f32 to vector<36x288xf32>
    %137 = arith.mulf %135, %136 : vector<36x288xf32>
    %cst_126 = arith.constant -0.285714298 : f32
    %138 = vector.broadcast %cst_126 : f32 to vector<36x288xf32>
    %139 = arith.subf %125, %138 : vector<36x288xf32>
    %cst_127 = arith.constant 1.750000e+00 : f32
    %140 = vector.broadcast %cst_127 : f32 to vector<36x288xf32>
    %141 = arith.mulf %139, %140 : vector<36x288xf32>
    %cst_128 = arith.constant 0.285714298 : f32
    %142 = vector.broadcast %cst_128 : f32 to vector<36x288xf32>
    %143 = arith.subf %125, %142 : vector<36x288xf32>
    %cst_129 = arith.constant 1.750000e+00 : f32
    %144 = vector.broadcast %cst_129 : f32 to vector<36x288xf32>
    %145 = arith.mulf %143, %144 : vector<36x288xf32>
    %cst_130 = arith.constant 0.857142865 : f32
    %146 = vector.broadcast %cst_130 : f32 to vector<36x288xf32>
    %147 = arith.subf %125, %146 : vector<36x288xf32>
    %cst_131 = arith.constant 1.750000e+00 : f32
    %148 = vector.broadcast %cst_131 : f32 to vector<36x288xf32>
    %149 = arith.mulf %147, %148 : vector<36x288xf32>
    %cst_132 = arith.constant 1.42857146 : f32
    %150 = vector.broadcast %cst_132 : f32 to vector<36x288xf32>
    %151 = arith.subf %125, %150 : vector<36x288xf32>
    %cst_133 = arith.constant 1.750000e+00 : f32
    %152 = vector.broadcast %cst_133 : f32 to vector<36x288xf32>
    %153 = arith.mulf %151, %152 : vector<36x288xf32>
    %cst_134 = arith.constant 2.000000e+00 : f32
    %154 = vector.broadcast %cst_134 : f32 to vector<36x288xf32>
    %155 = arith.subf %125, %154 : vector<36x288xf32>
    %cst_135 = arith.constant 1.750000e+00 : f32
    %156 = vector.broadcast %cst_135 : f32 to vector<36x288xf32>
    %157 = arith.mulf %155, %156 : vector<36x288xf32>
    %158 = tpu.concatenate %129, %133, %137, %141, %145, %149, %153, %157 in 0 : vector<36x288xf32>, vector<36x288xf32>, vector<36x288xf32>, vector<36x288xf32>, vector<36x288xf32>, vector<36x288xf32>, vector<36x288xf32>, vector<36x288xf32> -> vector<288x288xf32>
    %159 = arith.mulf %158, %158 : vector<288x288xf32>
    %cst_136 = arith.constant 0.000000e+00 : f32
    %160 = vector.broadcast %cst_136 : f32 to vector<288x288xf32>
    %161 = arith.subf %160, %159 : vector<288x288xf32>
    %162 = math.exp %161 : vector<288x288xf32>
    %163 = arith.negf %103 : vector<36x288xf32>
    %164 = math.exp %163 : vector<36x288xf32>
    %cst_137 = arith.constant 1.000000e+00 : f32
    %165 = vector.broadcast %cst_137 : f32 to vector<36x288xf32>
    %166 = arith.addf %165, %164 : vector<36x288xf32>
    %167 = arith.divf %165, %166 : vector<36x288xf32>
    %168 = arith.mulf %103, %167 : vector<36x288xf32>
    %c0_138 = arith.constant 0 : index
    %c0_139 = arith.constant 0 : index
    %169 = vector.load %arg7[%c0_138, %c0_139] : memref<8x288xf32, #tpu.memory_space<vmem>>, vector<8x288xf32>
    %cst_140 = arith.constant dense<0.000000e+00> : vector<8x288xf32>
    %170 = tpu.matmul %169, %162, %cst_140 {dimension_numbers = #tpu.dot_dimension_numbers<[1], [0], [0], [1], [0, 0, 1, 1], [], []>, precision = #tpu.contract_precision<fp32>} : vector<8x288xf32>, vector<288x288xf32>, vector<8x288xf32> -> vector<8x288xf32>
    %c0_141 = arith.constant 0 : index
    %c0_142 = arith.constant 0 : index
    %171 = vector.load %arg8[%c0_141, %c0_142] : memref<8x36xf32, #tpu.memory_space<vmem>>, vector<8x36xf32>
    %cst_143 = arith.constant dense<0.000000e+00> : vector<8x288xf32>
    %172 = tpu.matmul %171, %168, %cst_143 {dimension_numbers = #tpu.dot_dimension_numbers<[1], [0], [0], [1], [0, 0, 1, 1], [], []>, precision = #tpu.contract_precision<fp32>} : vector<8x36xf32>, vector<36x288xf32>, vector<8x288xf32> -> vector<8x288xf32>
    %173 = arith.addf %170, %172 : vector<8x288xf32>
    %c0_144 = arith.constant 0 : index
    %c0_145 = arith.constant 0 : index
    %174 = vector.load %arg9[%c0_144, %c0_145] : memref<8x1xf32, #tpu.memory_space<vmem>>, vector<8x1xf32>
    %175 = vector.broadcast %174 : vector<8x1xf32> to vector<8x288xf32>
    %176 = arith.addf %173, %175 : vector<8x288xf32>
    %c0_146 = arith.constant 0 : index
    %c0_147 = arith.constant 0 : index
    %c0_148 = arith.constant 0 : index
    %177 = vector.load %arg10[%c0_146, %c0_147, %c0_148] : memref<1x8x288xf32, #tpu.memory_space<vmem>>, vector<1x8x288xf32>
    %178 = vector.shape_cast %177 : vector<1x8x288xf32> to vector<8x288xf32>
    %179 = vector.shape_cast %176 : vector<8x288xf32> to vector<1x8x288xf32>
    tpu.vector_store %arg10[%c0_146, %c0_147, %c0_148], %179 {strides = array<i32>} : memref<1x8x288xf32, #tpu.memory_space<vmem>>, vector<1x8x288xf32>,
    return
  }
  func.func @transform_0(%arg0: i32) -> (i32, i32, i32) {
    %c0_i32 = arith.constant 0 : i32
    %c0_i32_0 = arith.constant 0 : i32
    %c0_i32_1 = arith.constant 0 : i32
    return %arg0, %c0_i32, %c0_i32_0 : i32, i32, i32
  }
  func.func @transform_1(%arg0: i32) -> (i32, i32) {
    %c0_i32 = arith.constant 0 : i32
    %c0_i32_0 = arith.constant 0 : i32
    %c0_i32_1 = arith.constant 0 : i32
    return %c0_i32, %c0_i32_0 : i32, i32
  }
  func.func @transform_2(%arg0: i32) -> (i32, i32) {
    %c0_i32 = arith.constant 0 : i32
    %c0_i32_0 = arith.constant 0 : i32
    %c0_i32_1 = arith.constant 0 : i32
    return %c0_i32, %c0_i32_0 : i32, i32
  }
  func.func @transform_3(%arg0: i32) -> (i32, i32) {
    %c0_i32 = arith.constant 0 : i32
    %c0_i32_0 = arith.constant 0 : i32
    %c0_i32_1 = arith.constant 0 : i32
    return %c0_i32, %c0_i32_0 : i32, i32
  }
  func.func @transform_4(%arg0: i32) -> (i32, i32) {
    %c0_i32 = arith.constant 0 : i32
    %c0_i32_0 = arith.constant 0 : i32
    %c0_i32_1 = arith.constant 0 : i32
    return %c0_i32, %c0_i32_0 : i32, i32
  }
  func.func @transform_5(%arg0: i32) -> (i32, i32) {
    %c0_i32 = arith.constant 0 : i32
    %c0_i32_0 = arith.constant 0 : i32
    %c0_i32_1 = arith.constant 0 : i32
    return %c0_i32, %c0_i32_0 : i32, i32
  }
  func.func @transform_6(%arg0: i32) -> (i32, i32) {
    %c0_i32 = arith.constant 0 : i32
    %c0_i32_0 = arith.constant 0 : i32
    %c0_i32_1 = arith.constant 0 : i32
    return %c0_i32, %c0_i32_0 : i32, i32
  }
  func.func @transform_7(%arg0: i32) -> (i32, i32) {
    %c0_i32 = arith.constant 0 : i32
    %c0_i32_0 = arith.constant 0 : i32
    %c0_i32_1 = arith.constant 0 : i32
    return %c0_i32, %c0_i32_0 : i32, i32
  }
  func.func @transform_8(%arg0: i32) -> (i32, i32) {
    %c0_i32 = arith.constant 0 : i32
    %c0_i32_0 = arith.constant 0 : i32
    %c0_i32_1 = arith.constant 0 : i32
    return %c0_i32, %c0_i32_0 : i32, i32
  }
  func.func @transform_9(%arg0: i32) -> (i32, i32, i32) {
    %c0_i32 = arith.constant 0 : i32
    %c0_i32_0 = arith.constant 0 : i32
    %c0_i32_1 = arith.constant 0 : i32
    return %arg0, %c0_i32, %c0_i32_0 : i32, i32, i32
  }
}

</mosaic_0001>

<llo_original>
// kernel: forward.1
$region0: #{forward.1}
  #allocation0 [shape = 'u32[]', space=smem, size = 0x4, offset = 0x4, fixed_abs, tag = 'smem constant byte address 0x4 - core index']
  #allocation1 [shape = 'u32[144,128]{1,0:T(1,128)}', space=vmem, size = 0x12000, scoped, tag = 'internal scratch']
  #allocation2 [shape = 'f32[4,326]{1,0:T(4,128)}', space=vmem, size = 0x1800, scoped, tag = 'scratch operand']
  %s0 = inlined_call_operand.vmem [shape: f32[2,4,324], index: 0, kind: input, shape index: {}]
  %s1 = inlined_call_operand.vmem [shape: f32[4,9], index: 1, kind: input, shape index: {}]
  %s2 = inlined_call_operand.vmem [shape: f32[4,1], index: 2, kind: input, shape index: {}]
  %s3 = inlined_call_operand.vmem [shape: f32[1,286], index: 3, kind: input, shape index: {}]
  %s4 = inlined_call_operand.vmem [shape: f32[36,1], index: 4, kind: input, shape index: {}]
  %s5 = inlined_call_operand.vmem [shape: f32[36,1], index: 5, kind: input, shape index: {}]
  %s6 = inlined_call_operand.vmem [shape: f32[8,288], index: 6, kind: input, shape index: {}]
  %s7 = inlined_call_operand.vmem [shape: f32[8,36], index: 7, kind: input, shape index: {}]
  %s8 = inlined_call_operand.vmem [shape: f32[8,1], index: 8, kind: input, shape index: {}]
  %s9 = inlined_call_operand.vmem [shape: f32[2,8,288], index: 9, kind: output, shape index: {}]
  %s10 = sld [smem:[#allocation0]]
  $region69: #{forward.1} parent=0
    _
  %s12 = ssub.s32 1, %s10
  %s13 = scalar_select 0, %s12, %s10
  loop: start=0, step=1, limit=4
  $region2: #{forward.1} parent=0 // loop_pre_header
    _
  $region3: #{forward.1} parent=0 // loop_header
    %s15 = sphi 0, %s19
    %p16 = scmp.ge.s32.totalorder %s15, 4
    %s25 = sphi 0, %s27
    %s28 = sphi 0, %s25
    %s29 = sphi 0, %s28
    %s45 = sphi 0, %s29
    %s49 = sphi 0, %s49
    %s51 = sphi 0, %s49
    %s52 = sphi 0, %s51
    %s66 = sphi 0, %s52
    %s70 = sphi 0, %s70
    %s72 = sphi 0, %s70
    %s73 = sphi 0, %s72
    %s87 = sphi 0, %s73
    %s91 = sphi 0, %s91
    %s93 = sphi 0, %s91
    %s94 = sphi 0, %s93
    %s108 = sphi 0, %s94
    %s112 = sphi 0, %s112
    %s114 = sphi 0, %s112
    %s115 = sphi 0, %s114
    %s129 = sphi 0, %s115
    %s133 = sphi 0, %s133
    %s135 = sphi 0, %s133
    %s136 = sphi 0, %s135
    %s150 = sphi 0, %s136
    %s154 = sphi 0, %s154
    %s156 = sphi 0, %s154
    %s157 = sphi 0, %s156
    %s171 = sphi 0, %s157
    %s175 = sphi 0, %s175
    %s177 = sphi 0, %s175
    %s178 = sphi 0, %s177
    %s192 = sphi 0, %s178
    %s196 = sphi 0, %s196
    %s198 = sphi 0, %s196
    %s199 = sphi 0, %s198
    %s213 = sphi 0, %s199
    %s219 = sphi 0, %s221
    %s222 = sphi 0, %s219
    %s223 = sphi 0, %s222
    %s239 = sphi 0, %s223
  $region4: #{forward.1} parent=0 // loop_header_branch
    %18 = sbr.rel (%p16) target = $region8
  $region5: #{forward.1} parent=0 // loop_body
    %s20 = ssub.s32 %s15, 1
    %s21 = ssub.s32 %s15, 2
    %s22 = sadd.s32 %s15, 1
    %s23 = ssub.s32 %s15, %s22
    %p24 = scmp.eq.s32.totalorder %s23, 0
    %s26 = sadd.s32 %s25, 1
    %s27 = scalar_select %p24, %s25, %s26
    %p30 = pneg %p24
    %p31 = scmp.eq.s32.totalorder %s15, 1
    %p32 = por %p30, %p31
    %p33 = scmp.ne.s32.totalorder %s25, %s28
    %p34 = scmp.eq.s32.totalorder %s15, 0
    %p35 = por %p33, %p34
    %p36 = scmp.ne.s32.totalorder %s25, %s28
    %p37 = scmp.eq.s32.totalorder %s20, 1
    %p38 = por %p36, %p37
    %p39 = scmp.ne.s32.totalorder %s28, %s29
    %p40 = scmp.eq.s32.totalorder %s20, 0
    %p41 = por %p39, %p40
    %p42 = scmp.ne.s32.totalorder %s28, %s29
    %p43 = scmp.eq.s32.totalorder %s21, 1
    %p44 = por %p42, %p43
    %p46 = scmp.ne.s32.totalorder %s29, %s45
    %p47 = scmp.eq.s32.totalorder %s21, 0
    %p48 = por %p46, %p47
    %s50 = sadd.s32 %s49, 1
    %p53 = scmp.eq.s32.totalorder %s15, 1
    %p54 = scmp.ne.s32.totalorder %s49, %s51
    %p55 = scmp.eq.s32.totalorder %s15, 0
    %p56 = por %p54, %p55
    %p57 = scmp.ne.s32.totalorder %s49, %s51
    %p58 = scmp.eq.s32.totalorder %s20, 1
    %p59 = por %p57, %p58
    %p60 = scmp.ne.s32.totalorder %s51, %s52
    %p61 = scmp.eq.s32.totalorder %s20, 0
    %p62 = por %p60, %p61
    %p63 = scmp.ne.s32.totalorder %s51, %s52
    %p64 = scmp.eq.s32.totalorder %s21, 1
    %p65 = por %p63, %p64
    %p67 = scmp.ne.s32.totalorder %s52, %s66
    %p68 = scmp.eq.s32.totalorder %s21, 0
    %p69 = por %p67, %p68
    %s71 = sadd.s32 %s70, 1
    %p74 = scmp.eq.s32.totalorder %s15, 1
    %p75 = scmp.ne.s32.totalorder %s70, %s72
    %p76 = scmp.eq.s32.totalorder %s15, 0
    %p77 = por %p75, %p76
    %p78 = scmp.ne.s32.totalorder %s70, %s72
    %p79 = scmp.eq.s32.totalorder %s20, 1
    %p80 = por %p78, %p79
    %p81 = scmp.ne.s32.totalorder %s72, %s73
    %p82 = scmp.eq.s32.totalorder %s20, 0
    %p83 = por %p81, %p82
    %p84 = scmp.ne.s32.totalorder %s72, %s73
    %p85 = scmp.eq.s32.totalorder %s21, 1
    %p86 = por %p84, %p85
    %p88 = scmp.ne.s32.totalorder %s73, %s87
    %p89 = scmp.eq.s32.totalorder %s21, 0
    %p90 = por %p88, %p89
    %s92 = sadd.s32 %s91, 1
    %p95 = scmp.eq.s32.totalorder %s15, 1
    %p96 = scmp.ne.s32.totalorder %s91, %s93
    %p97 = scmp.eq.s32.totalorder %s15, 0
    %p98 = por %p96, %p97
    %p99 = scmp.ne.s32.totalorder %s91, %s93
    %p100 = scmp.eq.s32.totalorder %s20, 1
    %p101 = por %p99, %p100
    %p102 = scmp.ne.s32.totalorder %s93, %s94
    %p103 = scmp.eq.s32.totalorder %s20, 0
    %p104 = por %p102, %p103
    %p105 = scmp.ne.s32.totalorder %s93, %s94
    %p106 = scmp.eq.s32.totalorder %s21, 1
    %p107 = por %p105, %p106
    %p109 = scmp.ne.s32.totalorder %s94, %s108
    %p110 = scmp.eq.s32.totalorder %s21, 0
    %p111 = por %p109, %p110
    %s113 = sadd.s32 %s112, 1
    %p116 = scmp.eq.s32.totalorder %s15, 1
    %p117 = scmp.ne.s32.totalorder %s112, %s114
    %p118 = scmp.eq.s32.totalorder %s15, 0
    %p119 = por %p117, %p118
    %p120 = scmp.ne.s32.totalorder %s112, %s114
    %p121 = scmp.eq.s32.totalorder %s20, 1
    %p122 = por %p120, %p121
    %p123 = scmp.ne.s32.totalorder %s114, %s115
    %p124 = scmp.eq.s32.totalorder %s20, 0
    %p125 = por %p123, %p124
    %p126 = scmp.ne.s32.totalorder %s114, %s115
    %p127 = scmp.eq.s32.totalorder %s21, 1
    %p128 = por %p126, %p127
    %p130 = scmp.ne.s32.totalorder %s115, %s129
    %p131 = scmp.eq.s32.totalorder %s21, 0
    %p132 = por %p130, %p131
    %s134 = sadd.s32 %s133, 1
    %p137 = scmp.eq.s32.totalorder %s15, 1
    %p138 = scmp.ne.s32.totalorder %s133, %s135
    %p139 = scmp.eq.s32.totalorder %s15, 0
    %p140 = por %p138, %p139
    %p141 = scmp.ne.s32.totalorder %s133, %s135
    %p142 = scmp.eq.s32.totalorder %s20, 1
    %p143 = por %p141, %p142
    %p144 = scmp.ne.s32.totalorder %s135, %s136
    %p145 = scmp.eq.s32.totalorder %s20, 0
    %p146 = por %p144, %p145
    %p147 = scmp.ne.s32.totalorder %s135, %s136
    %p148 = scmp.eq.s32.totalorder %s21, 1
    %p149 = por %p147, %p148
    %p151 = scmp.ne.s32.totalorder %s136, %s150
    %p152 = scmp.eq.s32.totalorder %s21, 0
    %p153 = por %p151, %p152
    %s155 = sadd.s32 %s154, 1
    %p158 = scmp.eq.s32.totalorder %s15, 1
    %p159 = scmp.ne.s32.totalorder %s154, %s156
    %p160 = scmp.eq.s32.totalorder %s15, 0
    %p161 = por %p159, %p160
    %p162 = scmp.ne.s32.totalorder %s154, %s156
    %p163 = scmp.eq.s32.totalorder %s20, 1
    %p164 = por %p162, %p163
    %p165 = scmp.ne.s32.totalorder %s156, %s157
    %p166 = scmp.eq.s32.totalorder %s20, 0
    %p167 = por %p165, %p166
    %p168 = scmp.ne.s32.totalorder %s156, %s157
    %p169 = scmp.eq.s32.totalorder %s21, 1
    %p170 = por %p168, %p169
    %p172 = scmp.ne.s32.totalorder %s157, %s171
    %p173 = scmp.eq.s32.totalorder %s21, 0
    %p174 = por %p172, %p173
    %s176 = sadd.s32 %s175, 1
    %p179 = scmp.eq.s32.totalorder %s15, 1
    %p180 = scmp.ne.s32.totalorder %s175, %s177
    %p181 = scmp.eq.s32.totalorder %s15, 0
    %p182 = por %p180, %p181
    %p183 = scmp.ne.s32.totalorder %s175, %s177
    %p184 = scmp.eq.s32.totalorder %s20, 1
    %p185 = por %p183, %p184
    %p186 = scmp.ne.s32.totalorder %s177, %s178
    %p187 = scmp.eq.s32.totalorder %s20, 0
    %p188 = por %p186, %p187
    %p189 = scmp.ne.s32.totalorder %s177, %s178
    %p190 = scmp.eq.s32.totalorder %s21, 1
    %p191 = por %p189, %p190
    %p193 = scmp.ne.s32.totalorder %s178, %s192
    %p194 = scmp.eq.s32.totalorder %s21, 0
    %p195 = por %p193, %p194
    %s197 = sadd.s32 %s196, 1
    %p200 = scmp.eq.s32.totalorder %s15, 1
    %p201 = scmp.ne.s32.totalorder %s196, %s198
    %p202 = scmp.eq.s32.totalorder %s15, 0
    %p203 = por %p201, %p202
    %p204 = scmp.ne.s32.totalorder %s196, %s198
    %p205 = scmp.eq.s32.totalorder %s20, 1
    %p206 = por %p204, %p205
    %p207 = scmp.ne.s32.totalorder %s198, %s199
    %p208 = scmp.eq.s32.totalorder %s20, 0
    %p209 = por %p207, %p208
    %p210 = scmp.ne.s32.totalorder %s198, %s199
    %p211 = scmp.eq.s32.totalorder %s21, 1
    %p212 = por %p210, %p211
    %p214 = scmp.ne.s32.totalorder %s199, %s213
    %p215 = scmp.eq.s32.totalorder %s21, 0
    %p216 = por %p214, %p215
    %s217 = ssub.s32 %s15, %s22
    %p218 = scmp.eq.s32.totalorder %s217, 0
    %s220 = sadd.s32 %s219, 1
    %s221 = scalar_select %p218, %s219, %s220
    %p224 = pneg %p218
    %p225 = scmp.eq.s32.totalorder %s15, 1
    %p226 = por %p224, %p225
    %p227 = scmp.ne.s32.totalorder %s219, %s222
    %p228 = scmp.eq.s32.totalorder %s15, 0
    %p229 = por %p227, %p228
    %p230 = scmp.ne.s32.totalorder %s219, %s222
    %p231 = scmp.eq.s32.totalorder %s20, 1
    %p232 = por %p230, %p231
    %p233 = scmp.ne.s32.totalorder %s222, %s223
    %p234 = scmp.eq.s32.totalorder %s20, 0
    %p235 = por %p233, %p234
    %p236 = scmp.ne.s32.totalorder %s222, %s223
    %p237 = scmp.eq.s32.totalorder %s21, 1
    %p238 = por %p236, %p237
    %p240 = scmp.ne.s32.totalorder %s223, %s239
    %p241 = scmp.eq.s32.totalorder %s21, 0
    %p242 = por %p240, %p241
    %p243 = scmp.le.s32.totalorder 1, %s15
    %p244 = scmp.lt.s32.totalorder %s15, 3
    %p245 = pnand %p243, %p244
    %p246 = pneg %p245
    // Predicated region
    $region9: #{forward.1} parent=5 // pred_check
      _
    $region10: #{forward.1} parent=5 // pred_check_branch
      %248 = sbr.rel (%p245) target = $region12
    $region11: #{forward.1} parent=5 // pred_region
      %s249 = ssub.s32 %s15, 1
      // Predicated region
      $region13: #{forward.1} parent=11 // pred_check
        %p250 = pneg %p62
      $region14: #{forward.1} parent=11 // pred_check_branch
        %252 = sbr.rel (%p250) target = $region16
      $region15: #{forward.1} parent=11 // pred_region
        _
      $region16: #{forward.1} parent=11 // pred_fallthru
        _
      // Predicated region
      $region17: #{forward.1} parent=11 // pred_check
        %p253 = pneg %p83
      $region18: #{forward.1} parent=11 // pred_check_branch
        %255 = sbr.rel (%p253) target = $region20
      $region19: #{forward.1} parent=11 // pred_region
        _
      $region20: #{forward.1} parent=11 // pred_fallthru
        _
      // Predicated region
      $region21: #{forward.1} parent=11 // pred_check
        %p256 = pneg %p104
      $region22: #{forward.1} parent=11 // pred_check_branch
        %258 = sbr.rel (%p256) target = $region24
      $region23: #{forward.1} parent=11 // pred_region
        _
      $region24: #{forward.1} parent=11 // pred_fallthru
        _
      // Predicated region
      $region25: #{forward.1} parent=11 // pred_check
        %p259 = pneg %p125
      $region26: #{forward.1} parent=11 // pred_check_branch
        %261 = sbr.rel (%p259) target = $region28
      $region27: #{forward.1} parent=11 // pred_region
        _
      $region28: #{forward.1} parent=11 // pred_fallthru
        _
      // Predicated region
      $region29: #{forward.1} parent=11 // pred_check
        %p262 = pneg %p146
      $region30: #{forward.1} parent=11 // pred_check_branch
        %264 = sbr.rel (%p262) target = $region32
      $region31: #{forward.1} parent=11 // pred_region
        _
      $region32: #{forward.1} parent=11 // pred_fallthru
        _
      // Predicated region
      $region33: #{forward.1} parent=11 // pred_check
        %p265 = pneg %p167
      $region34: #{forward.1} parent=11 // pred_check_branch
        %267 = sbr.rel (%p265) target = $region36
      $region35: #{forward.1} parent=11 // pred_region
        _
      $region36: #{forward.1} parent=11 // pred_fallthru
        _
      // Predicated region
      $region37: #{forward.1} parent=11 // pred_check
        %p268 = pneg %p188
      $region38: #{forward.1} parent=11 // pred_check_branch
        %270 = sbr.rel (%p268) target = $region40
      $region39: #{forward.1} parent=11 // pred_region
        _
      $region40: #{forward.1} parent=11 // pred_fallthru
        _
      // Predicated region
      $region41: #{forward.1} parent=11 // pred_check
        %p271 = pneg %p209
      $region42: #{forward.1} parent=11 // pred_check_branch
        %273 = sbr.rel (%p271) target = $region44
      $region43: #{forward.1} parent=11 // pred_region
        _
      $region44: #{forward.1} parent=11 // pred_fallthru
        _
    $region12: #{forward.1} parent=5 // pred_fallthru
      _
    %p274 = scmp.lt.s32.totalorder %s15, 2
    // Predicated region
    $region45: #{forward.1} parent=5 // pred_check
      %p275 = pneg %p274
    $region46: #{forward.1} parent=5 // pred_check_branch
      %277 = sbr.rel (%p275) target = $region48
    $region47: #{forward.1} parent=5 // pred_region
      // Predicated region
      $region49: #{forward.1} parent=47 // pred_check
        %p278 = pneg %p35
      $region50: #{forward.1} parent=47 // pred_check_branch
        %280 = sbr.rel (%p278) target = $region52
      $region51: #{forward.1} parent=47 // pred_region
        %p281 = scmp.lt.s32.totalorder %s15, 1
        %s282 = scalar_select %p281, %s15, 1
        %s283 = smul.addr %s282, 3
        %s284 = smul.addr %s283, 4
        %s285 = scalar_lea.vmem %s0, %s284
      $region52: #{forward.1} parent=47 // pred_fallthru
        _
    $region48: #{forward.1} parent=5 // pred_fallthru
      _
    %p286 = scmp.le.s32.totalorder 1, %s15
    %p287 = scmp.lt.s32.totalorder %s15, 3
    %p288 = pnand %p286, %p287
    %p289 = pneg %p288
    // Predicated region
    $region53: #{forward.1} parent=5 // pred_check
      _
    $region54: #{forward.1} parent=5 // pred_check_branch
      %291 = sbr.rel (%p288) target = $region56
    $region55: #{forward.1} parent=5 // pred_region
      %s292 = ssub.s32 %s15, 1
      %p293 = scmp.lt.s32.totalorder %s20, 1
      %s294 = scalar_select %p293, %s20, 1
      %s295 = smul.addr %s294, 3
      %s296 = smul.addr %s295, 4
      %s297 = scalar_lea.vmem %s0, %s296
      %p298 = pneg %p41
      %p299 = pneg %p38
      %p300 = pneg %p62
      %p301 = pneg %p59
      %p302 = pneg %p83
      %p303 = pneg %p80
      %p304 = pneg %p104
      %p305 = pneg %p101
      %p306 = pneg %p125
      %p307 = pneg %p122
      %p308 = pneg %p146
      %p309 = pneg %p143
      %p310 = pneg %p167
      %p311 = pneg %p164
      %p312 = pneg %p188
      %p313 = pneg %p185
      %p314 = pneg %p209
      %p315 = pneg %p206
      %p316 = pneg %p235
      %p317 = pneg %p232
      %p318 = scmp.lt.s32.totalorder %s20, 1
      %s319 = scalar_select %p318, %s20, 1
      %s320 = smul.addr %s319, 3
      %s321 = smul.addr %s320, 8
      %s322 = scalar_lea.vmem %s9, %s321
      %p323 = scmp.lt.s32.totalorder %s20, 1
      %s324 = scalar_select %p323, %s20, 1
      %s325 = smul.addr %s324, 3
      %s326 = smul.addr %s325, 4
      %s327 = scalar_lea.vmem %s0, %s326
      %p328 = scmp.lt.s32.totalorder %s20, 1
      %s329 = scalar_select %p328, %s20, 1
      %s330 = smul.addr %s329, 3
      %s331 = smul.addr %s330, 8
      %s332 = scalar_lea.vmem %s9, %s331
      %333 = vst [vmem:[#allocation2] sm:$0xff] 0.0
      %vm334 = vcmask 568320
      %335 = vst.msk [vmem:[#allocation2 + $0x8] sm:$0xf] %vm334, 0.0
      %v336 = vld [vmem:[%s1] sm:$0xf]
      %v337 = vld [vmem:[%s327] sm:$0xff]
      %v338 = vld [vmem:[%s327 + $0x8] sm:$0xf]
      %340 = vset.pattern.permute.xlu0 0
      %341 = vperm.xlu0 %340, %v336
      %v342 = vpop.permute.xlu0 %341
      %v345 = vcombine.high %v337, %v337
      %v347 = vmul.f32 %v342, %v337
      %v348 = vmul.f32 %v342, %v345
      %v349 = vmul.f32 %v342, %v338
      %v350 = vadd.f32 %v347, 0.0
      %v351 = vadd.f32 %v348, 0.0
      %v352 = vadd.f32 %v349, 0.0
      %v353 = vld [vmem:[%s1] sm:$0xf]
      %v354 = vld [vmem:[%s327] sm:$0xff]
      %v355 = vld [vmem:[%s327 + $0x8] sm:$0xf]
      %357 = vset.pattern.permute.xlu0 1
      %358 = vperm.xlu0 %357, %v353
      %v359 = vpop.permute.xlu0 %358
      %v363 = vcombine.high %v354, %v354
      %364 = vrot.lane.b32.xlu0 %v354, 127
      %v365 = vpop.permute.xlu0 %364
      %366 = vrot.lane.b32.xlu0 %v363, 127
      %v367 = vpop.permute.xlu0 %366
      %368 = vrot.lane.b32.xlu0 %v355, 127
      %v369 = vpop.permute.xlu0 %368
      %vm370 = vcmask 1039360
      %v371 = vsel %vm370, %v365, %v367
      %v372 = vsel %vm370, %v367, %v369
      %v376 = vmul.f32 %v359, %v371
      %v377 = vmul.f32 %v359, %v372
      %v378 = vmul.f32 %v359, %v369
      %v379 = vadd.f32 %v350, %v376
      %v380 = vadd.f32 %v351, %v377
      %v381 = vadd.f32 %v352, %v378
      %v382 = vld [vmem:[%s1] sm:$0xf]
      %v383 = vld [vmem:[%s327] sm:$0xff]
      %v384 = vld [vmem:[%s327 + $0x8] sm:$0xf]
      %386 = vset.pattern.permute.xlu0 2
      %387 = vperm.xlu0 %386, %v382
      %v388 = vpop.permute.xlu0 %387
      %v392 = vcombine.high %v383, %v383
      %393 = vrot.lane.b32.xlu0 %v383, 126
      %v394 = vpop.permute.xlu0 %393
      %395 = vrot.lane.b32.xlu0 %v392, 126
      %v396 = vpop.permute.xlu0 %395
      %397 = vrot.lane.b32.xlu0 %v384, 126
      %v398 = vpop.permute.xlu0 %397
      %vm399 = vcmask 1031168
      %v400 = vsel %vm399, %v394, %v396
      %v401 = vsel %vm399, %v396, %v398
      %v405 = vmul.f32 %v388, %v400
      %v406 = vmul.f32 %v388, %v401
      %v407 = vmul.f32 %v388, %v398
      %v408 = vadd.f32 %v379, %v405
      %v409 = vadd.f32 %v380, %v406
      %v410 = vadd.f32 %v381, %v407
      %v411 = vld [vmem:[%s1] sm:$0xf]
      %v412 = vld [vmem:[%s327] sm:$0xff]
      %v413 = vld [vmem:[%s327 + $0x8] sm:$0xf]
      %415 = vset.pattern.permute.xlu0 3
      %416 = vperm.xlu0 %415, %v411
      %v417 = vpop.permute.xlu0 %416
      %v421 = vcombine.high %v412, %v412
      %422 = vrot.lane.b32.xlu0 %v412, 110
      %v423 = vpop.permute.xlu0 %422
      %424 = vrot.lane.b32.xlu0 %v421, 110
      %v425 = vpop.permute.xlu0 %424
      %426 = vrot.lane.b32.xlu0 %v413, 110
      %v427 = vpop.permute.xlu0 %426
      %vm428 = vcmask 900096
      %v429 = vsel %vm428, %v423, %v425
      %v430 = vsel %vm428, %v425, %v427
      %v434 = vmul.f32 %v417, %v429
      %v435 = vmul.f32 %v417, %v430
      %v436 = vmul.f32 %v417, %v427
      %v437 = vadd.f32 %v408, %v434
      %v438 = vadd.f32 %v409, %v435
      %v439 = vadd.f32 %v410, %v436
      %v440 = vld [vmem:[%s1] sm:$0xf]
      %v441 = vld [vmem:[%s327] sm:$0xff]
      %v442 = vld [vmem:[%s327 + $0x8] sm:$0xf]
      %444 = vset.pattern.permute.xlu0 4
      %445 = vperm.xlu0 %444, %v440
      %v446 = vpop.permute.xlu0 %445
      %v450 = vcombine.high %v441, %v441
      %451 = vrot.lane.b32.xlu0 %v441, 109
      %v452 = vpop.permute.xlu0 %451
      %453 = vrot.lane.b32.xlu0 %v450, 109
      %v454 = vpop.permute.xlu0 %453
      %455 = vrot.lane.b32.xlu0 %v442, 109
      %v456 = vpop.permute.xlu0 %455
      %vm457 = vcmask 891904
      %v458 = vsel %vm457, %v452, %v454
      %v459 = vsel %vm457, %v454, %v456
      %v463 = vmul.f32 %v446, %v458
      %v464 = vmul.f32 %v446, %v459
      %v465 = vmul.f32 %v446, %v456
      %v466 = vadd.f32 %v437, %v463
      %v467 = vadd.f32 %v438, %v464
      %v468 = vadd.f32 %v439, %v465
      %v469 = vld [vmem:[%s1] sm:$0xf]
      %v470 = vld [vmem:[%s327] sm:$0xff]
      %v471 = vld [vmem:[%s327 + $0x8] sm:$0xf]
      %473 = vset.pattern.permute.xlu0 5
      %474 = vperm.xlu0 %473, %v469
      %v475 = vpop.permute.xlu0 %474
      %v479 = vcombine.high %v470, %v470
      %480 = vrot.lane.b32.xlu0 %v470, 108
      %v481 = vpop.permute.xlu0 %480
      %482 = vrot.lane.b32.xlu0 %v479, 108
      %v483 = vpop.permute.xlu0 %482
      %484 = vrot.lane.b32.xlu0 %v471, 108
      %v485 = vpop.permute.xlu0 %484
      %vm486 = vcmask 883712
      %v487 = vsel %vm486, %v481, %v483
      %v488 = vsel %vm486, %v483, %v485
      %v492 = vmul.f32 %v475, %v487
      %v493 = vmul.f32 %v475, %v488
      %v494 = vmul.f32 %v475, %v485
      %v495 = vadd.f32 %v466, %v492
      %v496 = vadd.f32 %v467, %v493
      %v497 = vadd.f32 %v468, %v494
      %v498 = vld [vmem:[%s1] sm:$0xf]
      %v499 = vld [vmem:[%s327] sm:$0xff]
      %v500 = vld [vmem:[%s327 + $0x8] sm:$0xf]
      %502 = vset.pattern.permute.xlu0 6
      %503 = vperm.xlu0 %502, %v498
      %v504 = vpop.permute.xlu0 %503
      %v508 = vcombine.high %v499, %v499
      %509 = vrot.lane.b32.xlu0 %v499, 92
      %v510 = vpop.permute.xlu0 %509
      %511 = vrot.lane.b32.xlu0 %v508, 92
      %v512 = vpop.permute.xlu0 %511
      %513 = vrot.lane.b32.xlu0 %v500, 92
      %v514 = vpop.permute.xlu0 %513
      %vm515 = vcmask 752640
      %v516 = vsel %vm515, %v510, %v512
      %v517 = vsel %vm515, %v512, %v514
      %v521 = vmul.f32 %v504, %v516
      %v522 = vmul.f32 %v504, %v517
      %v523 = vmul.f32 %v504, %v514
      %v524 = vadd.f32 %v495, %v521
      %v525 = vadd.f32 %v496, %v522
      %v526 = vadd.f32 %v497, %v523
      %v527 = vld [vmem:[%s1] sm:$0xf]
      %v528 = vld [vmem:[%s327] sm:$0xff]
      %v529 = vld [vmem:[%s327 + $0x8] sm:$0xf]
      %531 = vset.pattern.permute.xlu0 7
      %532 = vperm.xlu0 %531, %v527
      %v533 = vpop.permute.xlu0 %532
      %v537 = vcombine.high %v528, %v528
      %538 = vrot.lane.b32.xlu0 %v528, 91
      %v539 = vpop.permute.xlu0 %538
      %540 = vrot.lane.b32.xlu0 %v537, 91
      %v541 = vpop.permute.xlu0 %540
      %542 = vrot.lane.b32.xlu0 %v529, 91
      %v543 = vpop.permute.xlu0 %542
      %vm544 = vcmask 744448
      %v545 = vsel %vm544, %v539, %v541
      %v546 = vsel %vm544, %v541, %v543
      %v550 = vmul.f32 %v533, %v545
      %v551 = vmul.f32 %v533, %v546
      %v552 = vmul.f32 %v533, %v543
      %v553 = vadd.f32 %v524, %v550
      %v554 = vadd.f32 %v525, %v551
      %v555 = vadd.f32 %v526, %v552
      %v556 = vld [vmem:[%s1] sm:$0xf]
      %v557 = vld [vmem:[%s327] sm:$0xff]
      %v558 = vld [vmem:[%s327 + $0x8] sm:$0xf]
      %560 = vset.pattern.permute.xlu0 8
      %561 = vperm.xlu0 %560, %v556
      %v562 = vpop.permute.xlu0 %561
      %v566 = vcombine.high %v557, %v557
      %567 = vrot.lane.b32.xlu0 %v557, 90
      %v568 = vpop.permute.xlu0 %567
      %569 = vrot.lane.b32.xlu0 %v566, 90
      %v570 = vpop.permute.xlu0 %569
      %571 = vrot.lane.b32.xlu0 %v558, 90
      %v572 = vpop.permute.xlu0 %571
      %vm573 = vcmask 736256
      %v574 = vsel %vm573, %v568, %v570
      %v575 = vsel %vm573, %v570, %v572
      %v579 = vmul.f32 %v562, %v574
      %v580 = vmul.f32 %v562, %v575
      %v581 = vmul.f32 %v562, %v572
      %v582 = vadd.f32 %v553, %v579
      %v583 = vadd.f32 %v554, %v580
      %v584 = vadd.f32 %v555, %v581
      %v585 = vld [vmem:[%s2] sm:$0xf]
      %587 = vset.pattern.permute.xlu0 0
      %588 = vperm.xlu0 %587, %v585
      %v589 = vpop.permute.xlu0 %588
      %v591 = vadd.f32 %v582, %v589
      %v592 = vadd.f32 %v583, %v589
      %v593 = vadd.f32 %v584, %v589
      %v594 = vld [vmem:[%s3] sm:$0x7]
      %v596 = vlaneseq
      %v597 = vshrl.u32 %v596, 7
      %v598 = vsub.s32 0, %v597
      %v599 = vrot.slane %v594, %v598
      %v600 = vlaneseq
      %v601 = vshrl.u32 %v600, 7
      %v602 = vsub.s32 1, %v601
      %v603 = vrot.slane %v594, %v602
      %v604 = vlaneseq
      %v605 = vshrl.u32 %v604, 7
      %v606 = vsub.s32 2, %v605
      %v607 = vrot.slane %v594, %v606
      %v611 = vmul.f32 %v591, %v599
      %v612 = vmul.f32 %v592, %v603
      %v613 = vmul.f32 %v593, %v607
      %v617 = vcombine.low %v611, %v612
      %618 = vrot.lane.b32.xlu0 %v617, 19
      %v619 = vpop.permute.xlu0 %618
      %620 = vrot.lane.b32.xlu0 %v613, 19
      %v621 = vpop.permute.xlu0 %620
      %v622 = vrot.slane %v619, 4
      %vm623 = vcmask 154624
      %v624 = vsel %vm623, %v622, %v619
      %v625 = vsel %vm623, %v622, %v621
      %vm628 = vcmask 1043608
      %vm629 = vcmask 1047556
      %vm630 = vmor %vm629, %vm628
      %631 = vst.msk [vmem:[#allocation2] sm:$0xff] %vm630, %v624
      %vm632 = vcmask 396288
      %633 = vst.msk [vmem:[#allocation2 + $0x8] sm:$0xf] %vm632, %v625
      %v634 = vld [vmem:[#allocation2] ss:$4 sm:$0x7]
      %s635 = scalar_lea.vmem [#allocation2], 1
      %v636 = vld [vmem:[%s635] ss:$4 sm:$0x7]
      %s637 = scalar_lea.vmem [#allocation2], 2
      %v638 = vld [vmem:[%s637] ss:$4 sm:$0x7]
      %s639 = scalar_lea.vmem [#allocation2], 3
      %v640 = vld [vmem:[%s639] ss:$4 sm:$0x7]
      %v642 = vlaneseq
      %v643 = vshrl.u32 %v642, 7
      %v644 = vsub.s32 0, %v643
      %v645 = vrot.slane %v634, %v644
      %v646 = vlaneseq
      %v647 = vshrl.u32 %v646, 7
      %v648 = vsub.s32 1, %v647
      %v649 = vrot.slane %v634, %v648
      %v650 = vlaneseq
      %v651 = vshrl.u32 %v650, 7
      %v652 = vsub.s32 2, %v651
      %v653 = vrot.slane %v634, %v652
      %657 = vrot.lane.b32.xlu0 %v645, 127
      %v658 = vpop.permute.xlu0 %657
      %659 = vrot.lane.b32.xlu0 %v649, 127
      %v660 = vpop.permute.xlu0 %659
      %661 = vrot.lane.b32.xlu0 %v653, 127
      %v662 = vpop.permute.xlu0 %661
      %v663 = vsel %vm370, %v658, %v660
      %v664 = vsel %vm370, %v660, %v662
      %668 = vrot.lane.b32.xlu0 %v645, 126
      %v669 = vpop.permute.xlu0 %668
      %670 = vrot.lane.b32.xlu0 %v649, 126
      %v671 = vpop.permute.xlu0 %670
      %672 = vrot.lane.b32.xlu0 %v653, 126
      %v673 = vpop.permute.xlu0 %672
      %v674 = vsel %vm399, %v669, %v671
      %v675 = vsel %vm399, %v671, %v673
      %679 = vrot.lane.b32.xlu0 %v645, 110
      %v680 = vpop.permute.xlu0 %679
      %681 = vrot.lane.b32.xlu0 %v649, 110
      %v682 = vpop.permute.xlu0 %681
      %683 = vrot.lane.b32.xlu0 %v653, 110
      %v684 = vpop.permute.xlu0 %683
      %v685 = vsel %vm428, %v680, %v682
      %v686 = vsel %vm428, %v682, %v684
      %690 = vrot.lane.b32.xlu0 %v645, 109
      %v691 = vpop.permute.xlu0 %690
      %692 = vrot.lane.b32.xlu0 %v649, 109
      %v693 = vpop.permute.xlu0 %692
      %694 = vrot.lane.b32.xlu0 %v653, 109
      %v695 = vpop.permute.xlu0 %694
      %v696 = vsel %vm457, %v691, %v693
      %v697 = vsel %vm457, %v693, %v695
      %701 = vrot.lane.b32.xlu0 %v645, 108
      %v702 = vpop.permute.xlu0 %701
      %703 = vrot.lane.b32.xlu0 %v649, 108
      %v704 = vpop.permute.xlu0 %703
      %705 = vrot.lane.b32.xlu0 %v653, 108
      %v706 = vpop.permute.xlu0 %705
      %v707 = vsel %vm486, %v702, %v704
      %v708 = vsel %vm486, %v704, %v706
      %712 = vrot.lane.b32.xlu0 %v645, 92
      %v713 = vpop.permute.xlu0 %712
      %714 = vrot.lane.b32.xlu0 %v649, 92
      %v715 = vpop.permute.xlu0 %714
      %716 = vrot.lane.b32.xlu0 %v653, 92
      %v717 = vpop.permute.xlu0 %716
      %v718 = vsel %vm515, %v713, %v715
      %v719 = vsel %vm515, %v715, %v717
      %723 = vrot.lane.b32.xlu0 %v645, 91
      %v724 = vpop.permute.xlu0 %723
      %725 = vrot.lane.b32.xlu0 %v649, 91
      %v726 = vpop.permute.xlu0 %725
      %727 = vrot.lane.b32.xlu0 %v653, 91
      %v728 = vpop.permute.xlu0 %727
      %v729 = vsel %vm544, %v724, %v726
      %v730 = vsel %vm544, %v726, %v728
      %734 = vrot.lane.b32.xlu0 %v645, 90
      %v735 = vpop.permute.xlu0 %734
      %736 = vrot.lane.b32.xlu0 %v649, 90
      %v737 = vpop.permute.xlu0 %736
      %738 = vrot.lane.b32.xlu0 %v653, 90
      %v739 = vpop.permute.xlu0 %738
      %v740 = vsel %vm573, %v735, %v737
      %v741 = vsel %vm573, %v737, %v739
      %v746 = vlaneseq
      %v747 = vshrl.u32 %v746, 7
      %v748 = vsub.s32 0, %v747
      %v749 = vrot.slane %v636, %v748
      %v750 = vlaneseq
      %v751 = vshrl.u32 %v750, 7
      %v752 = vsub.s32 1, %v751
      %v753 = vrot.slane %v636, %v752
      %v754 = vlaneseq
      %v755 = vshrl.u32 %v754, 7
      %v756 = vsub.s32 2, %v755
      %v757 = vrot.slane %v636, %v756
      %761 = vrot.lane.b32.xlu0 %v749, 127
      %v762 = vpop.permute.xlu0 %761
      %763 = vrot.lane.b32.xlu0 %v753, 127
      %v764 = vpop.permute.xlu0 %763
      %765 = vrot.lane.b32.xlu0 %v757, 127
      %v766 = vpop.permute.xlu0 %765
      %v767 = vsel %vm370, %v762, %v764
      %v768 = vsel %vm370, %v764, %v766
      %772 = vrot.lane.b32.xlu0 %v749, 126
      %v773 = vpop.permute.xlu0 %772
      %774 = vrot.lane.b32.xlu0 %v753, 126
      %v775 = vpop.permute.xlu0 %774
      %776 = vrot.lane.b32.xlu0 %v757, 126
      %v777 = vpop.permute.xlu0 %776
      %v778 = vsel %vm399, %v773, %v775
      %v779 = vsel %vm399, %v775, %v777
      %783 = vrot.lane.b32.xlu0 %v749, 110
      %v784 = vpop.permute.xlu0 %783
      %785 = vrot.lane.b32.xlu0 %v753, 110
      %v786 = vpop.permute.xlu0 %785
      %787 = vrot.lane.b32.xlu0 %v757, 110
      %v788 = vpop.permute.xlu0 %787
      %v789 = vsel %vm428, %v784, %v786
      %v790 = vsel %vm428, %v786, %v788
      %794 = vrot.lane.b32.xlu0 %v749, 109
      %v795 = vpop.permute.xlu0 %794
      %796 = vrot.lane.b32.xlu0 %v753, 109
      %v797 = vpop.permute.xlu0 %796
      %798 = vrot.lane.b32.xlu0 %v757, 109
      %v799 = vpop.permute.xlu0 %798
      %v800 = vsel %vm457, %v795, %v797
      %v801 = vsel %vm457, %v797, %v799
      %805 = vrot.lane.b32.xlu0 %v749, 108
      %v806 = vpop.permute.xlu0 %805
      %807 = vrot.lane.b32.xlu0 %v753, 108
      %v808 = vpop.permute.xlu0 %807
      %809 = vrot.lane.b32.xlu0 %v757, 108
      %v810 = vpop.permute.xlu0 %809
      %v811 = vsel %vm486, %v806, %v808
      %v812 = vsel %vm486, %v808, %v810
      %816 = vrot.lane.b32.xlu0 %v749, 92
      %v817 = vpop.permute.xlu0 %816
      %818 = vrot.lane.b32.xlu0 %v753, 92
      %v819 = vpop.permute.xlu0 %818
      %820 = vrot.lane.b32.xlu0 %v757, 92
      %v821 = vpop.permute.xlu0 %820
      %v822 = vsel %vm515, %v817, %v819
      %v823 = vsel %vm515, %v819, %v821
      %vm827 = vcmask 1040384
      %v828 = vsel %vm827, %v645, %v663
      %v829 = vsel %vm827, %v649, %v664
      %v830 = vsel %vm827, %v653, %v662
      %vm831 = vcmask 1041408
      %v832 = vsel %vm831, %v828, %v674
      %v833 = vsel %vm831, %v829, %v675
      %v834 = vsel %vm831, %v830, %v673
      %vm835 = vcmask 1042432
      %v836 = vsel %vm835, %v832, %v685
      %v837 = vsel %vm835, %v833, %v686
      %v838 = vsel %vm835, %v834, %v684
      %vm839 = vcmask 1043456
      %v840 = vsel %vm839, %v836, %v696
      %v841 = vsel %vm839, %v837, %v697
      %v842 = vsel %vm839, %v838, %v695
      %vm843 = vcmask 1044480
      %v844 = vsel %vm843, %v840, %v707
      %v845 = vsel %vm843, %v841, %v708
      %v846 = vsel %vm843, %v842, %v706
      %vm847 = vcmask 1045504
      %v848 = vsel %vm847, %v844, %v718
      %v849 = vsel %vm847, %v845, %v719
      %v850 = vsel %vm847, %v846, %v717
      %vm851 = vcmask 1046528
      %v852 = vsel %vm851, %v848, %v729
      %v853 = vsel %vm851, %v849, %v730
      %v854 = vsel %vm851, %v850, %v728
      %v855 = vsel %vm827, %v740, %v749
      %v856 = vsel %vm827, %v741, %v753
      %v857 = vsel %vm827, %v739, %v757
      %v858 = vsel %vm831, %v855, %v767
      %v859 = vsel %vm831, %v856, %v768
      %v860 = vsel %vm831, %v857, %v766
      %v861 = vsel %vm835, %v858, %v778
      %v862 = vsel %vm835, %v859, %v779
      %v863 = vsel %vm835, %v860, %v777
      %v864 = vsel %vm839, %v861, %v789
      %v865 = vsel %vm839, %v862, %v790
      %v866 = vsel %vm839, %v863, %v788
      %v867 = vsel %vm843, %v864, %v800
      %v868 = vsel %vm843, %v865, %v801
      %v869 = vsel %vm843, %v866, %v799
      %v870 = vsel %vm847, %v867, %v811
      %v871 = vsel %vm847, %v868, %v812
      %v872 = vsel %vm847, %v869, %v810
      %v873 = vsel %vm851, %v870, %v822
      %v874 = vsel %vm851, %v871, %v823
      %v875 = vsel %vm851, %v872, %v821
      %v877 = vlaneseq
      %v878 = vshrl.u32 %v877, 7
      %v879 = vsub.s32 0, %v878
      %v880 = vrot.slane %v638, %v879
      %v881 = vlaneseq
      %v882 = vshrl.u32 %v881, 7
      %v883 = vsub.s32 1, %v882
      %v884 = vrot.slane %v638, %v883
      %v885 = vlaneseq
      %v886 = vshrl.u32 %v885, 7
      %v887 = vsub.s32 2, %v886
      %v888 = vrot.slane %v638, %v887
      %889 = vrot.lane.b32.xlu0 %v880, 37
      %v890 = vpop.permute.xlu0 %889
      %891 = vrot.lane.b32.xlu0 %v884, 37
      %v892 = vpop.permute.xlu0 %891
      %893 = vrot.lane.b32.xlu0 %v888, 37
      %v894 = vpop.permute.xlu0 %893
      %vm895 = vcmask 302080
      %v896 = vsel %vm895, %v890, %v892
      %v897 = vsel %vm895, %v892, %v894
      %901 = vrot.lane.b32.xlu0 %v880, 36
      %v902 = vpop.permute.xlu0 %901
      %903 = vrot.lane.b32.xlu0 %v884, 36
      %v904 = vpop.permute.xlu0 %903
      %905 = vrot.lane.b32.xlu0 %v888, 36
      %v906 = vpop.permute.xlu0 %905
      %vm907 = vcmask 293888
      %v908 = vsel %vm907, %v902, %v904
      %v909 = vsel %vm907, %v904, %v906
      %913 = vrot.lane.b32.xlu0 %v880, 35
      %v914 = vpop.permute.xlu0 %913
      %915 = vrot.lane.b32.xlu0 %v884, 35
      %v916 = vpop.permute.xlu0 %915
      %917 = vrot.lane.b32.xlu0 %v888, 35
      %v918 = vpop.permute.xlu0 %917
      %vm919 = vcmask 285696
      %v920 = vsel %vm919, %v914, %v916
      %v921 = vsel %vm919, %v916, %v918
      %925 = vrot.lane.b32.xlu0 %v880, 19
      %v926 = vpop.permute.xlu0 %925
      %927 = vrot.lane.b32.xlu0 %v884, 19
      %v928 = vpop.permute.xlu0 %927
      %929 = vrot.lane.b32.xlu0 %v888, 19
      %v930 = vpop.permute.xlu0 %929
      %v931 = vsel %vm623, %v926, %v928
      %v932 = vsel %vm623, %v928, %v930
      %936 = vrot.lane.b32.xlu0 %v880, 18
      %v937 = vpop.permute.xlu0 %936
      %938 = vrot.lane.b32.xlu0 %v884, 18
      %v939 = vpop.permute.xlu0 %938
      %940 = vrot.lane.b32.xlu0 %v888, 18
      %v941 = vpop.permute.xlu0 %940
      %vm942 = vcmask 146432
      %v943 = vsel %vm942, %v937, %v939
      %v944 = vsel %vm942, %v939, %v941
      %948 = vrot.lane.b32.xlu0 %v880, 17
      %v949 = vpop.permute.xlu0 %948
      %950 = vrot.lane.b32.xlu0 %v884, 17
      %v951 = vpop.permute.xlu0 %950
      %952 = vrot.lane.b32.xlu0 %v888, 17
      %v953 = vpop.permute.xlu0 %952
      %vm954 = vcmask 138240
      %v955 = vsel %vm954, %v949, %v951
      %v956 = vsel %vm954, %v951, %v953
      %960 = vrot.lane.b32.xlu0 %v880, 1
      %v961 = vpop.permute.xlu0 %960
      %962 = vrot.lane.b32.xlu0 %v884, 1
      %v963 = vpop.permute.xlu0 %962
      %964 = vrot.lane.b32.xlu0 %v888, 1
      %v965 = vpop.permute.xlu0 %964
      %vm966 = vcmask 7168
      %v967 = vsel %vm966, %v961, %v963
      %v968 = vsel %vm966, %v963, %v965
      %975 = vrot.lane.b32.xlu0 %v880, 127
      %v976 = vpop.permute.xlu0 %975
      %977 = vrot.lane.b32.xlu0 %v884, 127
      %v978 = vpop.permute.xlu0 %977
      %979 = vrot.lane.b32.xlu0 %v888, 127
      %v980 = vpop.permute.xlu0 %979
      %v981 = vsel %vm370, %v976, %v978
      %v982 = vsel %vm370, %v978, %v980
      %v987 = vlaneseq
      %v988 = vshrl.u32 %v987, 7
      %v989 = vsub.s32 0, %v988
      %v990 = vrot.slane %v640, %v989
      %v991 = vlaneseq
      %v992 = vshrl.u32 %v991, 7
      %v993 = vsub.s32 1, %v992
      %v994 = vrot.slane %v640, %v993
      %v995 = vlaneseq
      %v996 = vshrl.u32 %v995, 7
      %v997 = vsub.s32 2, %v996
      %v998 = vrot.slane %v640, %v997
      %999 = vrot.lane.b32.xlu0 %v990, 37
      %v1000 = vpop.permute.xlu0 %999
      %1001 = vrot.lane.b32.xlu0 %v994, 37
      %v1002 = vpop.permute.xlu0 %1001
      %1003 = vrot.lane.b32.xlu0 %v998, 37
      %v1004 = vpop.permute.xlu0 %1003
      %v1005 = vsel %vm895, %v1000, %v1002
      %v1006 = vsel %vm895, %v1002, %v1004
      %1010 = vrot.lane.b32.xlu0 %v990, 36
      %v1011 = vpop.permute.xlu0 %1010
      %1012 = vrot.lane.b32.xlu0 %v994, 36
      %v1013 = vpop.permute.xlu0 %1012
      %1014 = vrot.lane.b32.xlu0 %v998, 36
      %v1015 = vpop.permute.xlu0 %1014
      %v1016 = vsel %vm907, %v1011, %v1013
      %v1017 = vsel %vm907, %v1013, %v1015
      %1021 = vrot.lane.b32.xlu0 %v990, 35
      %v1022 = vpop.permute.xlu0 %1021
      %1023 = vrot.lane.b32.xlu0 %v994, 35
      %v1024 = vpop.permute.xlu0 %1023
      %1025 = vrot.lane.b32.xlu0 %v998, 35
      %v1026 = vpop.permute.xlu0 %1025
      %v1027 = vsel %vm919, %v1022, %v1024
      %v1028 = vsel %vm919, %v1024, %v1026
      %1032 = vrot.lane.b32.xlu0 %v990, 19
      %v1033 = vpop.permute.xlu0 %1032
      %1034 = vrot.lane.b32.xlu0 %v994, 19
      %v1035 = vpop.permute.xlu0 %1034
      %1036 = vrot.lane.b32.xlu0 %v998, 19
      %v1037 = vpop.permute.xlu0 %1036
      %v1038 = vsel %vm623, %v1033, %v1035
      %v1039 = vsel %vm623, %v1035, %v1037
      %1043 = vrot.lane.b32.xlu0 %v990, 18
      %v1044 = vpop.permute.xlu0 %1043
      %1045 = vrot.lane.b32.xlu0 %v994, 18
      %v1046 = vpop.permute.xlu0 %1045
      %1047 = vrot.lane.b32.xlu0 %v998, 18
      %v1048 = vpop.permute.xlu0 %1047
      %v1049 = vsel %vm942, %v1044, %v1046
      %v1050 = vsel %vm942, %v1046, %v1048
      %v1054 = vsel %vm827, %v749, %v767
      %v1055 = vsel %vm827, %v753, %v768
      %v1056 = vsel %vm827, %v757, %v766
      %v1057 = vsel %vm831, %v1054, %v890
      %v1058 = vsel %vm831, %v1055, %v896
      %v1059 = vsel %vm831, %v1056, %v897
      %v1060 = vsel %vm835, %v1057, %v902
      %v1061 = vsel %vm835, %v1058, %v908
      %v1062 = vsel %vm835, %v1059, %v909
      %v1063 = vsel %vm839, %v1060, %v914
      %v1064 = vsel %vm839, %v1061, %v920
      %v1065 = vsel %vm839, %v1062, %v921
      %v1066 = vsel %vm843, %v1063, %v926
      %v1067 = vsel %vm843, %v1064, %v931
      %v1068 = vsel %vm843, %v1065, %v932
      %v1069 = vsel %vm847, %v1066, %v937
      %v1070 = vsel %vm847, %v1067, %v943
      %v1071 = vsel %vm847, %v1068, %v944
      %v1072 = vsel %vm851, %v1069, %v949
      %v1073 = vsel %vm851, %v1070, %v955
      %v1074 = vsel %vm851, %v1071, %v956
      %v1075 = vsel %vm827, %v961, %v880
      %v1076 = vsel %vm827, %v967, %v884
      %v1077 = vsel %vm827, %v968, %v888
      %v1078 = vsel %vm831, %v1075, %v981
      %v1079 = vsel %vm831, %v1076, %v982
      %v1080 = vsel %vm831, %v1077, %v980
      %v1081 = vsel %vm835, %v1078, %v1000
      %v1082 = vsel %vm835, %v1079, %v1005
      %v1083 = vsel %vm835, %v1080, %v1006
      %v1084 = vsel %vm839, %v1081, %v1011
      %v1085 = vsel %vm839, %v1082, %v1016
      %v1086 = vsel %vm839, %v1083, %v1017
      %v1087 = vsel %vm843, %v1084, %v1022
      %v1088 = vsel %vm843, %v1085, %v1027
      %v1089 = vsel %vm843, %v1086, %v1028
      %v1090 = vsel %vm847, %v1087, %v1033
      %v1091 = vsel %vm847, %v1088, %v1038
      %v1092 = vsel %vm847, %v1089, %v1039
      %v1093 = vsel %vm851, %v1090, %v1044
      %v1094 = vsel %vm851, %v1091, %v1049
      %v1095 = vsel %vm851, %v1092, %v1050
      %1099 = vrot.lane.b32.xlu0 %v990, 112
      %v1100 = vpop.permute.xlu0 %1099
      %1101 = vrot.lane.b32.xlu0 %v994, 112
      %v1102 = vpop.permute.xlu0 %1101
      %1103 = vrot.lane.b32.xlu0 %v998, 112
      %v1104 = vpop.permute.xlu0 %1103
      %vm1105 = vcmask 916480
      %v1106 = vsel %vm1105, %v1100, %v1102
      %v1107 = vsel %vm1105, %v1102, %v1104
      %1111 = vrot.lane.b32.xlu0 %v990, 111
      %v1112 = vpop.permute.xlu0 %1111
      %1113 = vrot.lane.b32.xlu0 %v994, 111
      %v1114 = vpop.permute.xlu0 %1113
      %1115 = vrot.lane.b32.xlu0 %v998, 111
      %v1116 = vpop.permute.xlu0 %1115
      %vm1117 = vcmask 908288
      %v1118 = vsel %vm1117, %v1112, %v1114
      %v1119 = vsel %vm1117, %v1114, %v1116
      %1123 = vrot.lane.b32.xlu0 %v990, 110
      %v1124 = vpop.permute.xlu0 %1123
      %1125 = vrot.lane.b32.xlu0 %v994, 110
      %v1126 = vpop.permute.xlu0 %1125
      %1127 = vrot.lane.b32.xlu0 %v998, 110
      %v1128 = vpop.permute.xlu0 %1127
      %v1129 = vsel %vm428, %v1124, %v1126
      %v1130 = vsel %vm428, %v1126, %v1128
      %v1134 = vsel %vm827, %v990, %v1106
      %v1135 = vsel %vm827, %v994, %v1107
      %v1136 = vsel %vm827, %v998, %v1104
      %v1137 = vsel %vm831, %v1134, %v1118
      %v1138 = vsel %vm831, %v1135, %v1119
      %v1139 = vsel %vm831, %v1136, %v1116
      %v1140 = vsel %vm835, %v1137, %v1129
      %v1141 = vsel %vm835, %v1138, %v1130
      %v1142 = vsel %vm835, %v1139, %v1128
      %1149 = vrot.lane.b32.xlu0 %v1072, 91
      %v1150 = vpop.permute.xlu0 %1149
      %1151 = vrot.lane.b32.xlu0 %v1073, 91
      %v1152 = vpop.permute.xlu0 %1151
      %1153 = vrot.lane.b32.xlu0 %v1074, 91
      %v1154 = vpop.permute.xlu0 %1153
      %1155 = vrot.lane.b32.xlu0 %v1093, 91
      %v1156 = vpop.permute.xlu0 %1155
      %1157 = vrot.lane.b32.xlu0 %v1094, 91
      %v1158 = vpop.permute.xlu0 %1157
      %1159 = vrot.lane.b32.xlu0 %v1095, 91
      %v1160 = vpop.permute.xlu0 %1159
      %v1161 = vsel %vm544, %v1150, %v1152
      %v1162 = vsel %vm544, %v1152, %v1154
      %v1163 = vsel %vm544, %v1156, %v1158
      %v1164 = vsel %vm544, %v1158, %v1160
      %1174 = vrot.lane.b32.xlu0 %v1140, 108
      %v1175 = vpop.permute.xlu0 %1174
      %1176 = vrot.lane.b32.xlu0 %v1141, 108
      %v1177 = vpop.permute.xlu0 %1176
      %1178 = vrot.lane.b32.xlu0 %v1142, 108
      %v1179 = vpop.permute.xlu0 %1178
      %v1180 = vsel %vm486, %v1175, %v1177
      %v1181 = vsel %vm486, %v1177, %v1179
      %v1185 = vadd.f32 %v852, %v873
      %v1186 = vadd.f32 %v1185, %v1161
      %v1187 = vadd.f32 %v1186, %v1163
      %v1188 = vsel %vm839, %v1180, 0.0
      %v1189 = vadd.f32 %v1187, %v1188
      %v1190 = vrot.slane %v1189, 4
      %v1191 = vadd.f32 %v1189, %v1190
      %v1192 = vrot.slane %v1191, 2
      %v1193 = vadd.f32 %v1191, %v1192
      %v1194 = vrot.slane %v1193, 1
      %v1195 = vadd.f32 %v1193, %v1194
      %v1196 = vadd.f32 %v853, %v874
      %v1197 = vadd.f32 %v1196, %v1162
      %v1198 = vadd.f32 %v1197, %v1164
      %v1199 = vsel %vm839, %v1181, 0.0
      %v1200 = vadd.f32 %v1198, %v1199
      %v1201 = vrot.slane %v1200, 4
      %v1202 = vadd.f32 %v1200, %v1201
      %v1203 = vrot.slane %v1202, 2
      %v1204 = vadd.f32 %v1202, %v1203
      %v1205 = vrot.slane %v1204, 1
      %v1206 = vadd.f32 %v1204, %v1205
      %vm1207 = vcmask 261120
      %v1208 = vsel %vm1207, %v854, 0.0
      %v1209 = vsel %vm1207, %v875, 0.0
      %v1210 = vadd.f32 %v1208, %v1209
      %v1211 = vsel %vm1207, %v1154, 0.0
      %v1212 = vadd.f32 %v1210, %v1211
      %v1213 = vsel %vm1207, %v1160, 0.0
      %v1214 = vadd.f32 %v1212, %v1213
      %vm1215 = vcmask 257024
      %v1216 = vsel %vm1215, %v1179, 0.0
      %v1217 = vadd.f32 %v1214, %v1216
      %v1218 = vrot.slane %v1217, 4
      %v1219 = vadd.f32 %v1217, %v1218
      %v1220 = vrot.slane %v1219, 2
      %v1221 = vadd.f32 %v1219, %v1220
      %v1222 = vrot.slane %v1221, 1
      %v1223 = vadd.f32 %v1221, %v1222
      %v1224 = vrcp.pop 36.0
      %v1225 = vmul.f32 %v1195, %v1224
      %v1226 = vmul.f32 %v1206, %v1224
      %v1227 = vmul.f32 %v1223, %v1224
      %v1228 = vsub.f32 %v852, %v1225
      %v1229 = vsub.f32 %v853, %v1226
      %v1230 = vsub.f32 %v854, %v1227
      %v1231 = vsub.f32 %v873, %v1225
      %v1232 = vsub.f32 %v874, %v1226
      %v1233 = vsub.f32 %v875, %v1227
      %v1234 = vsub.f32 %v1161, %v1225
      %v1235 = vsub.f32 %v1162, %v1226
      %v1236 = vsub.f32 %v1154, %v1227
      %v1237 = vsub.f32 %v1163, %v1225
      %v1238 = vsub.f32 %v1164, %v1226
      %v1239 = vsub.f32 %v1160, %v1227
      %v1240 = vsub.f32 %v1180, %v1225
      %v1241 = vsub.f32 %v1181, %v1226
      %v1242 = vsub.f32 %v1179, %v1227
      %v1243 = vmul.f32 %v1228, %v1228
      %v1244 = vmul.f32 %v1229, %v1229
      %v1245 = vmul.f32 %v1230, %v1230
      %v1246 = vmul.f32 %v1231, %v1231
      %v1247 = vmul.f32 %v1232, %v1232
      %v1248 = vmul.f32 %v1233, %v1233
      %v1249 = vmul.f32 %v1234, %v1234
      %v1250 = vmul.f32 %v1235, %v1235
      %v1251 = vmul.f32 %v1236, %v1236
      %v1252 = vmul.f32 %v1237, %v1237
      %v1253 = vmul.f32 %v1238, %v1238
      %v1254 = vmul.f32 %v1239, %v1239
      %v1255 = vmul.f32 %v1240, %v1240
      %v1256 = vmul.f32 %v1241, %v1241
      %v1257 = vmul.f32 %v1242, %v1242
      %v1258 = vadd.f32 %v1243, %v1246
      %v1259 = vadd.f32 %v1258, %v1249
      %v1260 = vadd.f32 %v1259, %v1252
      %v1261 = vsel %vm839, %v1255, 0.0
      %v1262 = vadd.f32 %v1260, %v1261
      %v1263 = vrot.slane %v1262, 4
      %v1264 = vadd.f32 %v1262, %v1263
      %v1265 = vrot.slane %v1264, 2
      %v1266 = vadd.f32 %v1264, %v1265
      %v1267 = vrot.slane %v1266, 1
      %v1268 = vadd.f32 %v1266, %v1267
      %v1269 = vadd.f32 %v1244, %v1247
      %v1270 = vadd.f32 %v1269, %v1250
      %v1271 = vadd.f32 %v1270, %v1253
      %v1272 = vsel %vm839, %v1256, 0.0
      %v1273 = vadd.f32 %v1271, %v1272
      %v1274 = vrot.slane %v1273, 4
      %v1275 = vadd.f32 %v1273, %v1274
      %v1276 = vrot.slane %v1275, 2
      %v1277 = vadd.f32 %v1275, %v1276
      %v1278 = vrot.slane %v1277, 1
      %v1279 = vadd.f32 %v1277, %v1278
      %v1280 = vsel %vm1207, %v1245, 0.0
      %v1281 = vsel %vm1207, %v1248, 0.0
      %v1282 = vadd.f32 %v1280, %v1281
      %v1283 = vsel %vm1207, %v1251, 0.0
      %v1284 = vadd.f32 %v1282, %v1283
      %v1285 = vsel %vm1207, %v1254, 0.0
      %v1286 = vadd.f32 %v1284, %v1285
      %v1287 = vsel %vm1215, %v1257, 0.0
      %v1288 = vadd.f32 %v1286, %v1287
      %v1289 = vrot.slane %v1288, 4
      %v1290 = vadd.f32 %v1288, %v1289
      %v1291 = vrot.slane %v1290, 2
      %v1292 = vadd.f32 %v1290, %v1291
      %v1293 = vrot.slane %v1292, 1
      %v1294 = vadd.f32 %v1292, %v1293
      %v1295 = vmul.f32 %v1268, %v1224
      %v1296 = vmul.f32 %v1279, %v1224
      %v1297 = vmul.f32 %v1294, %v1224
      %v1298 = vadd.f32 %v1295, 1e-05
      %v1299 = vadd.f32 %v1296, 1e-05
      %v1300 = vadd.f32 %v1297, 1e-05
      %v1301 = vrsqrt.pop %v1298
      %v1302 = vrsqrt.pop %v1299
      %v1303 = vrsqrt.pop %v1300
      %v1304 = vmul.f32 %v1228, %v1301
      %v1305 = vmul.f32 %v1229, %v1302
      %v1306 = vmul.f32 %v1230, %v1303
      %v1307 = vmul.f32 %v1231, %v1301
      %v1308 = vmul.f32 %v1232, %v1302
      %v1309 = vmul.f32 %v1233, %v1303
      %v1310 = vmul.f32 %v1234, %v1301
      %v1311 = vmul.f32 %v1235, %v1302
      %v1312 = vmul.f32 %v1236, %v1303
      %v1313 = vmul.f32 %v1237, %v1301
      %v1314 = vmul.f32 %v1238, %v1302
      %v1315 = vmul.f32 %v1239, %v1303
      %v1316 = vmul.f32 %v1240, %v1301
      %v1317 = vmul.f32 %v1241, %v1302
      %v1318 = vmul.f32 %v1242, %v1303
      %v1319 = vld [vmem:[%s4] sm:$0xff]
      %v1320 = vld [vmem:[%s4 + $0x8] sm:$0xff]
      %v1321 = vld [vmem:[%s4 + $0x10] sm:$0xff]
      %v1322 = vld [vmem:[%s4 + $0x18] sm:$0xff]
      %v1323 = vld [vmem:[%s4 + $0x20] sm:$0xf]
      %1325 = vset.pattern.permute.xlu0 0
      %1326 = vperm.xlu0 %1325, %v1319
      %v1327 = vpop.permute.xlu0 %1326
      %1330 = vset.pattern.permute.xlu0 0
      %1331 = vperm.xlu0 %1330, %v1320
      %v1332 = vpop.permute.xlu0 %1331
      %1335 = vset.pattern.permute.xlu0 0
      %1336 = vperm.xlu0 %1335, %v1321
      %v1337 = vpop.permute.xlu0 %1336
      %1340 = vset.pattern.permute.xlu0 0
      %1341 = vperm.xlu0 %1340, %v1322
      %v1342 = vpop.permute.xlu0 %1341
      %1345 = vset.pattern.permute.xlu0 0
      %1346 = vperm.xlu0 %1345, %v1323
      %v1347 = vpop.permute.xlu0 %1346
      %v1349 = vmul.f32 %v1304, %v1327
      %v1350 = vmul.f32 %v1305, %v1327
      %v1351 = vmul.f32 %v1306, %v1327
      %v1352 = vmul.f32 %v1307, %v1332
      %v1353 = vmul.f32 %v1308, %v1332
      %v1354 = vmul.f32 %v1309, %v1332
      %v1355 = vmul.f32 %v1310, %v1337
      %v1356 = vmul.f32 %v1311, %v1337
      %v1357 = vmul.f32 %v1312, %v1337
      %v1358 = vmul.f32 %v1313, %v1342
      %v1359 = vmul.f32 %v1314, %v1342
      %v1360 = vmul.f32 %v1315, %v1342
      %v1361 = vmul.f32 %v1316, %v1347
      %v1362 = vmul.f32 %v1317, %v1347
      %v1363 = vmul.f32 %v1318, %v1347
      %v1364 = vld [vmem:[%s5] sm:$0xff]
      %v1365 = vld [vmem:[%s5 + $0x8] sm:$0xff]
      %v1366 = vld [vmem:[%s5 + $0x10] sm:$0xff]
      %v1367 = vld [vmem:[%s5 + $0x18] sm:$0xff]
      %v1368 = vld [vmem:[%s5 + $0x20] sm:$0xf]
      %1370 = vset.pattern.permute.xlu0 0
      %1371 = vperm.xlu0 %1370, %v1364
      %v1372 = vpop.permute.xlu0 %1371
      %1375 = vset.pattern.permute.xlu0 0
      %1376 = vperm.xlu0 %1375, %v1365
      %v1377 = vpop.permute.xlu0 %1376
      %1380 = vset.pattern.permute.xlu0 0
      %1381 = vperm.xlu0 %1380, %v1366
      %v1382 = vpop.permute.xlu0 %1381
      %1385 = vset.pattern.permute.xlu0 0
      %1386 = vperm.xlu0 %1385, %v1367
      %v1387 = vpop.permute.xlu0 %1386
      %1390 = vset.pattern.permute.xlu0 0
      %1391 = vperm.xlu0 %1390, %v1368
      %v1392 = vpop.permute.xlu0 %1391
      %v1394 = vadd.f32 %v1349, %v1372
      %v1395 = vadd.f32 %v1350, %v1372
      %v1396 = vadd.f32 %v1351, %v1372
      %v1397 = vadd.f32 %v1352, %v1377
      %v1398 = vadd.f32 %v1353, %v1377
      %v1399 = vadd.f32 %v1354, %v1377
      %v1400 = vadd.f32 %v1355, %v1382
      %v1401 = vadd.f32 %v1356, %v1382
      %v1402 = vadd.f32 %v1357, %v1382
      %v1403 = vadd.f32 %v1358, %v1387
      %v1404 = vadd.f32 %v1359, %v1387
      %v1405 = vadd.f32 %v1360, %v1387
      %v1406 = vadd.f32 %v1361, %v1392
      %v1407 = vadd.f32 %v1362, %v1392
      %v1408 = vadd.f32 %v1363, %v1392
      %v1409 = vsub.f32 %v1394, -2.0
      %v1410 = vsub.f32 %v1395, -2.0
      %v1411 = vsub.f32 %v1396, -2.0
      %v1412 = vsub.f32 %v1397, -2.0
      %v1413 = vsub.f32 %v1398, -2.0
      %v1414 = vsub.f32 %v1399, -2.0
      %v1415 = vsub.f32 %v1400, -2.0
      %v1416 = vsub.f32 %v1401, -2.0
      %v1417 = vsub.f32 %v1402, -2.0
      %v1418 = vsub.f32 %v1403, -2.0
      %v1419 = vsub.f32 %v1404, -2.0
      %v1420 = vsub.f32 %v1405, -2.0
      %v1421 = vsub.f32 %v1406, -2.0
      %v1422 = vsub.f32 %v1407, -2.0
      %v1423 = vsub.f32 %v1408, -2.0
      %v1424 = vmul.f32 %v1409, 1.75
      %v1425 = vmul.f32 %v1410, 1.75
      %v1426 = vmul.f32 %v1411, 1.75
      %v1427 = vmul.f32 %v1412, 1.75
      %v1428 = vmul.f32 %v1413, 1.75
      %v1429 = vmul.f32 %v1414, 1.75
      %v1430 = vmul.f32 %v1415, 1.75
      %v1431 = vmul.f32 %v1416, 1.75
      %v1432 = vmul.f32 %v1417, 1.75
      %v1433 = vmul.f32 %v1418, 1.75
      %v1434 = vmul.f32 %v1419, 1.75
      %v1435 = vmul.f32 %v1420, 1.75
      %v1436 = vmul.f32 %v1421, 1.75
      %v1437 = vmul.f32 %v1422, 1.75
      %v1438 = vmul.f32 %v1423, 1.75
      %v1439 = vsub.f32 %v1394, -1.4285715
      %v1440 = vsub.f32 %v1395, -1.4285715
      %v1441 = vsub.f32 %v1396, -1.4285715
      %v1442 = vsub.f32 %v1397, -1.4285715
      %v1443 = vsub.f32 %v1398, -1.4285715
      %v1444 = vsub.f32 %v1399, -1.4285715
      %v1445 = vsub.f32 %v1400, -1.4285715
      %v1446 = vsub.f32 %v1401, -1.4285715
      %v1447 = vsub.f32 %v1402, -1.4285715
      %v1448 = vsub.f32 %v1403, -1.4285715
      %v1449 = vsub.f32 %v1404, -1.4285715
      %v1450 = vsub.f32 %v1405, -1.4285715
      %v1451 = vsub.f32 %v1406, -1.4285715
      %v1452 = vsub.f32 %v1407, -1.4285715
      %v1453 = vsub.f32 %v1408, -1.4285715
      %v1454 = vmul.f32 %v1439, 1.75
      %v1455 = vmul.f32 %v1440, 1.75
      %v1456 = vmul.f32 %v1441, 1.75
      %v1457 = vmul.f32 %v1442, 1.75
      %v1458 = vmul.f32 %v1443, 1.75
      %v1459 = vmul.f32 %v1444, 1.75
      %v1460 = vmul.f32 %v1445, 1.75
      %v1461 = vmul.f32 %v1446, 1.75
      %v1462 = vmul.f32 %v1447, 1.75
      %v1463 = vmul.f32 %v1448, 1.75
      %v1464 = vmul.f32 %v1449, 1.75
      %v1465 = vmul.f32 %v1450, 1.75
      %v1466 = vmul.f32 %v1451, 1.75
      %v1467 = vmul.f32 %v1452, 1.75
      %v1468 = vmul.f32 %v1453, 1.75
      %v1469 = vsub.f32 %v1394, -0.85714287
      %v1470 = vsub.f32 %v1395, -0.85714287
      %v1471 = vsub.f32 %v1396, -0.85714287
      %v1472 = vsub.f32 %v1397, -0.85714287
      %v1473 = vsub.f32 %v1398, -0.85714287
      %v1474 = vsub.f32 %v1399, -0.85714287
      %v1475 = vsub.f32 %v1400, -0.85714287
      %v1476 = vsub.f32 %v1401, -0.85714287
      %v1477 = vsub.f32 %v1402, -0.85714287
      %v1478 = vsub.f32 %v1403, -0.85714287
      %v1479 = vsub.f32 %v1404, -0.85714287
      %v1480 = vsub.f32 %v1405, -0.85714287
      %v1481 = vsub.f32 %v1406, -0.85714287
      %v1482 = vsub.f32 %v1407, -0.85714287
      %v1483 = vsub.f32 %v1408, -0.85714287
      %v1484 = vmul.f32 %v1469, 1.75
      %v1485 = vmul.f32 %v1470, 1.75
      %v1486 = vmul.f32 %v1471, 1.75
      %v1487 = vmul.f32 %v1472, 1.75
      %v1488 = vmul.f32 %v1473, 1.75
      %v1489 = vmul.f32 %v1474, 1.75
      %v1490 = vmul.f32 %v1475, 1.75
      %v1491 = vmul.f32 %v1476, 1.75
      %v1492 = vmul.f32 %v1477, 1.75
      %v1493 = vmul.f32 %v1478, 1.75
      %v1494 = vmul.f32 %v1479, 1.75
      %v1495 = vmul.f32 %v1480, 1.75
      %v1496 = vmul.f32 %v1481, 1.75
      %v1497 = vmul.f32 %v1482, 1.75
      %v1498 = vmul.f32 %v1483, 1.75
      %v1499 = vsub.f32 %v1394, -0.2857143
      %v1500 = vsub.f32 %v1395, -0.2857143
      %v1501 = vsub.f32 %v1396, -0.2857143
      %v1502 = vsub.f32 %v1397, -0.2857143
      %v1503 = vsub.f32 %v1398, -0.2857143
      %v1504 = vsub.f32 %v1399, -0.2857143
      %v1505 = vsub.f32 %v1400, -0.2857143
      %v1506 = vsub.f32 %v1401, -0.2857143
      %v1507 = vsub.f32 %v1402, -0.2857143
      %v1508 = vsub.f32 %v1403, -0.2857143
      %v1509 = vsub.f32 %v1404, -0.2857143
      %v1510 = vsub.f32 %v1405, -0.2857143
      %v1511 = vsub.f32 %v1406, -0.2857143
      %v1512 = vsub.f32 %v1407, -0.2857143
      %v1513 = vsub.f32 %v1408, -0.2857143
      %v1514 = vmul.f32 %v1499, 1.75
      %v1515 = vmul.f32 %v1500, 1.75
      %v1516 = vmul.f32 %v1501, 1.75
      %v1517 = vmul.f32 %v1502, 1.75
      %v1518 = vmul.f32 %v1503, 1.75
      %v1519 = vmul.f32 %v1504, 1.75
      %v1520 = vmul.f32 %v1505, 1.75
      %v1521 = vmul.f32 %v1506, 1.75
      %v1522 = vmul.f32 %v1507, 1.75
      %v1523 = vmul.f32 %v1508, 1.75
      %v1524 = vmul.f32 %v1509, 1.75
      %v1525 = vmul.f32 %v1510, 1.75
      %v1526 = vmul.f32 %v1511, 1.75
      %v1527 = vmul.f32 %v1512, 1.75
      %v1528 = vmul.f32 %v1513, 1.75
      %v1529 = vsub.f32 %v1394, 0.2857143
      %v1530 = vsub.f32 %v1395, 0.2857143
      %v1531 = vsub.f32 %v1396, 0.2857143
      %v1532 = vsub.f32 %v1397, 0.2857143
      %v1533 = vsub.f32 %v1398, 0.2857143
      %v1534 = vsub.f32 %v1399, 0.2857143
      %v1535 = vsub.f32 %v1400, 0.2857143
      %v1536 = vsub.f32 %v1401, 0.2857143
      %v1537 = vsub.f32 %v1402, 0.2857143
      %v1538 = vsub.f32 %v1403, 0.2857143
      %v1539 = vsub.f32 %v1404, 0.2857143
      %v1540 = vsub.f32 %v1405, 0.2857143
      %v1541 = vsub.f32 %v1406, 0.2857143
      %v1542 = vsub.f32 %v1407, 0.2857143
      %v1543 = vsub.f32 %v1408, 0.2857143
      %v1544 = vmul.f32 %v1529, 1.75
      %v1545 = vmul.f32 %v1530, 1.75
      %v1546 = vmul.f32 %v1531, 1.75
      %v1547 = vmul.f32 %v1532, 1.75
      %v1548 = vmul.f32 %v1533, 1.75
      %v1549 = vmul.f32 %v1534, 1.75
      %v1550 = vmul.f32 %v1535, 1.75
      %v1551 = vmul.f32 %v1536, 1.75
      %v1552 = vmul.f32 %v1537, 1.75
      %v1553 = vmul.f32 %v1538, 1.75
      %v1554 = vmul.f32 %v1539, 1.75
      %v1555 = vmul.f32 %v1540, 1.75
      %v1556 = vmul.f32 %v1541, 1.75
      %v1557 = vmul.f32 %v1542, 1.75
      %v1558 = vmul.f32 %v1543, 1.75
      %v1559 = vsub.f32 %v1394, 0.85714287
      %v1560 = vsub.f32 %v1395, 0.85714287
      %v1561 = vsub.f32 %v1396, 0.85714287
      %v1562 = vsub.f32 %v1397, 0.85714287
      %v1563 = vsub.f32 %v1398, 0.85714287
      %v1564 = vsub.f32 %v1399, 0.85714287
      %v1565 = vsub.f32 %v1400, 0.85714287
      %v1566 = vsub.f32 %v1401, 0.85714287
      %v1567 = vsub.f32 %v1402, 0.85714287
      %v1568 = vsub.f32 %v1403, 0.85714287
      %v1569 = vsub.f32 %v1404, 0.85714287
      %v1570 = vsub.f32 %v1405, 0.85714287
      %v1571 = vsub.f32 %v1406, 0.85714287
      %v1572 = vsub.f32 %v1407, 0.85714287
      %v1573 = vsub.f32 %v1408, 0.85714287
      %v1574 = vmul.f32 %v1559, 1.75
      %v1575 = vmul.f32 %v1560, 1.75
      %v1576 = vmul.f32 %v1561, 1.75
      %v1577 = vmul.f32 %v1562, 1.75
      %v1578 = vmul.f32 %v1563, 1.75
      %v1579 = vmul.f32 %v1564, 1.75
      %v1580 = vmul.f32 %v1565, 1.75
      %v1581 = vmul.f32 %v1566, 1.75
      %v1582 = vmul.f32 %v1567, 1.75
      %v1583 = vmul.f32 %v1568, 1.75
      %v1584 = vmul.f32 %v1569, 1.75
      %v1585 = vmul.f32 %v1570, 1.75
      %v1586 = vmul.f32 %v1571, 1.75
      %v1587 = vmul.f32 %v1572, 1.75
      %v1588 = vmul.f32 %v1573, 1.75
      %v1589 = vsub.f32 %v1394, 1.4285715
      %v1590 = vsub.f32 %v1395, 1.4285715
      %v1591 = vsub.f32 %v1396, 1.4285715
      %v1592 = vsub.f32 %v1397, 1.4285715
      %v1593 = vsub.f32 %v1398, 1.4285715
      %v1594 = vsub.f32 %v1399, 1.4285715
      %v1595 = vsub.f32 %v1400, 1.4285715
      %v1596 = vsub.f32 %v1401, 1.4285715
      %v1597 = vsub.f32 %v1402, 1.4285715
      %v1598 = vsub.f32 %v1403, 1.4285715
      %v1599 = vsub.f32 %v1404, 1.4285715
      %v1600 = vsub.f32 %v1405, 1.4285715
      %v1601 = vsub.f32 %v1406, 1.4285715
      %v1602 = vsub.f32 %v1407, 1.4285715
      %v1603 = vsub.f32 %v1408, 1.4285715
      %v1604 = vmul.f32 %v1589, 1.75
      %v1605 = vmul.f32 %v1590, 1.75
      %v1606 = vmul.f32 %v1591, 1.75
      %v1607 = vmul.f32 %v1592, 1.75
      %v1608 = vmul.f32 %v1593, 1.75
      %v1609 = vmul.f32 %v1594, 1.75
      %v1610 = vmul.f32 %v1595, 1.75
      %v1611 = vmul.f32 %v1596, 1.75
      %v1612 = vmul.f32 %v1597, 1.75
      %v1613 = vmul.f32 %v1598, 1.75
      %v1614 = vmul.f32 %v1599, 1.75
      %v1615 = vmul.f32 %v1600, 1.75
      %v1616 = vmul.f32 %v1601, 1.75
      %v1617 = vmul.f32 %v1602, 1.75
      %v1618 = vmul.f32 %v1603, 1.75
      %v1619 = vsub.f32 %v1394, 2.0
      %v1620 = vsub.f32 %v1395, 2.0
      %v1621 = vsub.f32 %v1396, 2.0
      %v1622 = vsub.f32 %v1397, 2.0
      %v1623 = vsub.f32 %v1398, 2.0
      %v1624 = vsub.f32 %v1399, 2.0
      %v1625 = vsub.f32 %v1400, 2.0
      %v1626 = vsub.f32 %v1401, 2.0
      %v1627 = vsub.f32 %v1402, 2.0
      %v1628 = vsub.f32 %v1403, 2.0
      %v1629 = vsub.f32 %v1404, 2.0
      %v1630 = vsub.f32 %v1405, 2.0
      %v1631 = vsub.f32 %v1406, 2.0
      %v1632 = vsub.f32 %v1407, 2.0
      %v1633 = vsub.f32 %v1408, 2.0
      %v1634 = vmul.f32 %v1619, 1.75
      %v1635 = vmul.f32 %v1620, 1.75
      %v1636 = vmul.f32 %v1621, 1.75
      %v1637 = vmul.f32 %v1622, 1.75
      %v1638 = vmul.f32 %v1623, 1.75
      %v1639 = vmul.f32 %v1624, 1.75
      %v1640 = vmul.f32 %v1625, 1.75
      %v1641 = vmul.f32 %v1626, 1.75
      %v1642 = vmul.f32 %v1627, 1.75
      %v1643 = vmul.f32 %v1628, 1.75
      %v1644 = vmul.f32 %v1629, 1.75
      %v1645 = vmul.f32 %v1630, 1.75
      %v1646 = vmul.f32 %v1631, 1.75
      %v1647 = vmul.f32 %v1632, 1.75
      %v1648 = vmul.f32 %v1633, 1.75
      %v1664 = vrot.slane %v1454, 4
      %v1665 = vrot.slane %v1455, 4
      %v1666 = vrot.slane %v1456, 4
      %v1667 = vrot.slane %v1457, 4
      %v1668 = vsel %vm839, %v1664, %v1667
      %v1669 = vrot.slane %v1458, 4
      %v1670 = vsel %vm839, %v1665, %v1669
      %v1671 = vrot.slane %v1459, 4
      %v1672 = vsel %vm839, %v1666, %v1671
      %v1673 = vrot.slane %v1460, 4
      %v1674 = vsel %vm839, %v1667, %v1673
      %v1675 = vrot.slane %v1461, 4
      %v1676 = vsel %vm839, %v1669, %v1675
      %v1677 = vrot.slane %v1462, 4
      %v1678 = vsel %vm839, %v1671, %v1677
      %v1679 = vrot.slane %v1463, 4
      %v1680 = vsel %vm839, %v1673, %v1679
      %v1681 = vrot.slane %v1464, 4
      %v1682 = vsel %vm839, %v1675, %v1681
      %v1683 = vrot.slane %v1465, 4
      %v1684 = vsel %vm839, %v1677, %v1683
      %v1685 = vrot.slane %v1466, 4
      %v1686 = vsel %vm839, %v1679, %v1685
      %v1687 = vrot.slane %v1467, 4
      %v1688 = vsel %vm839, %v1681, %v1687
      %v1689 = vrot.slane %v1468, 4
      %v1690 = vsel %vm839, %v1683, %v1689
      %v1721 = vrot.slane %v1514, 4
      %v1722 = vrot.slane %v1515, 4
      %v1723 = vrot.slane %v1516, 4
      %v1724 = vrot.slane %v1517, 4
      %v1725 = vsel %vm839, %v1721, %v1724
      %v1726 = vrot.slane %v1518, 4
      %v1727 = vsel %vm839, %v1722, %v1726
      %v1728 = vrot.slane %v1519, 4
      %v1729 = vsel %vm839, %v1723, %v1728
      %v1730 = vrot.slane %v1520, 4
      %v1731 = vsel %vm839, %v1724, %v1730
      %v1732 = vrot.slane %v1521, 4
      %v1733 = vsel %vm839, %v1726, %v1732
      %v1734 = vrot.slane %v1522, 4
      %v1735 = vsel %vm839, %v1728, %v1734
      %v1736 = vrot.slane %v1523, 4
      %v1737 = vsel %vm839, %v1730, %v1736
      %v1738 = vrot.slane %v1524, 4
      %v1739 = vsel %vm839, %v1732, %v1738
      %v1740 = vrot.slane %v1525, 4
      %v1741 = vsel %vm839, %v1734, %v1740
      %v1742 = vrot.slane %v1526, 4
      %v1743 = vsel %vm839, %v1736, %v1742
      %v1744 = vrot.slane %v1527, 4
      %v1745 = vsel %vm839, %v1738, %v1744
      %v1746 = vrot.slane %v1528, 4
      %v1747 = vsel %vm839, %v1740, %v1746
      %v1778 = vrot.slane %v1574, 4
      %v1779 = vrot.slane %v1575, 4
      %v1780 = vrot.slane %v1576, 4
      %v1781 = vrot.slane %v1577, 4
      %v1782 = vsel %vm839, %v1778, %v1781
      %v1783 = vrot.slane %v1578, 4
      %v1784 = vsel %vm839, %v1779, %v1783
      %v1785 = vrot.slane %v1579, 4
      %v1786 = vsel %vm839, %v1780, %v1785
      %v1787 = vrot.slane %v1580, 4
      %v1788 = vsel %vm839, %v1781, %v1787
      %v1789 = vrot.slane %v1581, 4
      %v1790 = vsel %vm839, %v1783, %v1789
      %v1791 = vrot.slane %v1582, 4
      %v1792 = vsel %vm839, %v1785, %v1791
      %v1793 = vrot.slane %v1583, 4
      %v1794 = vsel %vm839, %v1787, %v1793
      %v1795 = vrot.slane %v1584, 4
      %v1796 = vsel %vm839, %v1789, %v1795
      %v1797 = vrot.slane %v1585, 4
      %v1798 = vsel %vm839, %v1791, %v1797
      %v1799 = vrot.slane %v1586, 4
      %v1800 = vsel %vm839, %v1793, %v1799
      %v1801 = vrot.slane %v1587, 4
      %v1802 = vsel %vm839, %v1795, %v1801
      %v1803 = vrot.slane %v1588, 4
      %v1804 = vsel %vm839, %v1797, %v1803
      %v1835 = vrot.slane %v1634, 4
      %v1836 = vrot.slane %v1635, 4
      %v1837 = vrot.slane %v1636, 4
      %v1838 = vrot.slane %v1637, 4
      %v1839 = vsel %vm839, %v1835, %v1838
      %v1840 = vrot.slane %v1638, 4
      %v1841 = vsel %vm839, %v1836, %v1840
      %v1842 = vrot.slane %v1639, 4
      %v1843 = vsel %vm839, %v1837, %v1842
      %v1844 = vrot.slane %v1640, 4
      %v1845 = vsel %vm839, %v1838, %v1844
      %v1846 = vrot.slane %v1641, 4
      %v1847 = vsel %vm839, %v1840, %v1846
      %v1848 = vrot.slane %v1642, 4
      %v1849 = vsel %vm839, %v1842, %v1848
      %v1850 = vrot.slane %v1643, 4
      %v1851 = vsel %vm839, %v1844, %v1850
      %v1852 = vrot.slane %v1644, 4
      %v1853 = vsel %vm839, %v1846, %v1852
      %v1854 = vrot.slane %v1645, 4
      %v1855 = vsel %vm839, %v1848, %v1854
      %v1856 = vrot.slane %v1646, 4
      %v1857 = vsel %vm839, %v1850, %v1856
      %v1858 = vrot.slane %v1647, 4
      %v1859 = vsel %vm839, %v1852, %v1858
      %v1860 = vrot.slane %v1648, 4
      %v1861 = vsel %vm839, %v1854, %v1860
      %v1877 = vsel %vm839, %v1436, %v1664
      %v1878 = vsel %vm839, %v1437, %v1665
      %v1879 = vsel %vm839, %v1438, %v1666
      %v1880 = vsel %vm839, %v1496, %v1721
      %v1881 = vsel %vm839, %v1497, %v1722
      %v1882 = vsel %vm839, %v1498, %v1723
      %v1883 = vsel %vm839, %v1556, %v1778
      %v1884 = vsel %vm839, %v1557, %v1779
      %v1885 = vsel %vm839, %v1558, %v1780
      %v1886 = vsel %vm839, %v1616, %v1835
      %v1887 = vsel %vm839, %v1617, %v1836
      %v1888 = vsel %vm839, %v1618, %v1837
      %v1889 = vmul.f32 %v1424, %v1424
      %v1890 = vmul.f32 %v1425, %v1425
      %v1891 = vmul.f32 %v1426, %v1426
      %v1892 = vmul.f32 %v1427, %v1427
      %v1893 = vmul.f32 %v1428, %v1428
      %v1894 = vmul.f32 %v1429, %v1429
      %v1895 = vmul.f32 %v1430, %v1430
      %v1896 = vmul.f32 %v1431, %v1431
      %v1897 = vmul.f32 %v1432, %v1432
      %v1898 = vmul.f32 %v1433, %v1433
      %v1899 = vmul.f32 %v1434, %v1434
      %v1900 = vmul.f32 %v1435, %v1435
      %v1901 = vmul.f32 %v1877, %v1877
      %v1902 = vmul.f32 %v1878, %v1878
      %v1903 = vmul.f32 %v1879, %v1879
      %v1904 = vmul.f32 %v1668, %v1668
      %v1905 = vmul.f32 %v1670, %v1670
      %v1906 = vmul.f32 %v1672, %v1672
      %v1907 = vmul.f32 %v1674, %v1674
      %v1908 = vmul.f32 %v1676, %v1676
      %v1909 = vmul.f32 %v1678, %v1678
      %v1910 = vmul.f32 %v1680, %v1680
      %v1911 = vmul.f32 %v1682, %v1682
      %v1912 = vmul.f32 %v1684, %v1684
      %v1913 = vmul.f32 %v1686, %v1686
      %v1914 = vmul.f32 %v1688, %v1688
      %v1915 = vmul.f32 %v1690, %v1690
      %v1916 = vmul.f32 %v1484, %v1484
      %v1917 = vmul.f32 %v1485, %v1485
      %v1918 = vmul.f32 %v1486, %v1486
      %v1919 = vmul.f32 %v1487, %v1487
      %v1920 = vmul.f32 %v1488, %v1488
      %v1921 = vmul.f32 %v1489, %v1489
      %v1922 = vmul.f32 %v1490, %v1490
      %v1923 = vmul.f32 %v1491, %v1491
      %v1924 = vmul.f32 %v1492, %v1492
      %v1925 = vmul.f32 %v1493, %v1493
      %v1926 = vmul.f32 %v1494, %v1494
      %v1927 = vmul.f32 %v1495, %v1495
      %v1928 = vmul.f32 %v1880, %v1880
      %v1929 = vmul.f32 %v1881, %v1881
      %v1930 = vmul.f32 %v1882, %v1882
      %v1931 = vmul.f32 %v1725, %v1725
      %v1932 = vmul.f32 %v1727, %v1727
      %v1933 = vmul.f32 %v1729, %v1729
      %v1934 = vmul.f32 %v1731, %v1731
      %v1935 = vmul.f32 %v1733, %v1733
      %v1936 = vmul.f32 %v1735, %v1735
      %v1937 = vmul.f32 %v1737, %v1737
      %v1938 = vmul.f32 %v1739, %v1739
      %v1939 = vmul.f32 %v1741, %v1741
      %v1940 = vmul.f32 %v1743, %v1743
      %v1941 = vmul.f32 %v1745, %v1745
      %v1942 = vmul.f32 %v1747, %v1747
      %v1943 = vmul.f32 %v1544, %v1544
      %v1944 = vmul.f32 %v1545, %v1545
      %v1945 = vmul.f32 %v1546, %v1546
      %v1946 = vmul.f32 %v1547, %v1547
      %v1947 = vmul.f32 %v1548, %v1548
      %v1948 = vmul.f32 %v1549, %v1549
      %v1949 = vmul.f32 %v1550, %v1550
      %v1950 = vmul.f32 %v1551, %v1551
      %v1951 = vmul.f32 %v1552, %v1552
      %v1952 = vmul.f32 %v1553, %v1553
      %v1953 = vmul.f32 %v1554, %v1554
      %v1954 = vmul.f32 %v1555, %v1555
      %v1955 = vmul.f32 %v1883, %v1883
      %v1956 = vmul.f32 %v1884, %v1884
      %v1957 = vmul.f32 %v1885, %v1885
      %v1958 = vmul.f32 %v1782, %v1782
      %v1959 = vmul.f32 %v1784, %v1784
      %v1960 = vmul.f32 %v1786, %v1786
      %v1961 = vmul.f32 %v1788, %v1788
      %v1962 = vmul.f32 %v1790, %v1790
      %v1963 = vmul.f32 %v1792, %v1792
      %v1964 = vmul.f32 %v1794, %v1794
      %v1965 = vmul.f32 %v1796, %v1796
      %v1966 = vmul.f32 %v1798, %v1798
      %v1967 = vmul.f32 %v1800, %v1800
      %v1968 = vmul.f32 %v1802, %v1802
      %v1969 = vmul.f32 %v1804, %v1804
      %v1970 = vmul.f32 %v1604, %v1604
      %v1971 = vmul.f32 %v1605, %v1605
      %v1972 = vmul.f32 %v1606, %v1606
      %v1973 = vmul.f32 %v1607, %v1607
      %v1974 = vmul.f32 %v1608, %v1608
      %v1975 = vmul.f32 %v1609, %v1609
      %v1976 = vmul.f32 %v1610, %v1610
      %v1977 = vmul.f32 %v1611, %v1611
      %v1978 = vmul.f32 %v1612, %v1612
      %v1979 = vmul.f32 %v1613, %v1613
      %v1980 = vmul.f32 %v1614, %v1614
      %v1981 = vmul.f32 %v1615, %v1615
      %v1982 = vmul.f32 %v1886, %v1886
      %v1983 = vmul.f32 %v1887, %v1887
      %v1984 = vmul.f32 %v1888, %v1888
      %v1985 = vmul.f32 %v1839, %v1839
      %v1986 = vmul.f32 %v1841, %v1841
      %v1987 = vmul.f32 %v1843, %v1843
      %v1988 = vmul.f32 %v1845, %v1845
      %v1989 = vmul.f32 %v1847, %v1847
      %v1990 = vmul.f32 %v1849, %v1849
      %v1991 = vmul.f32 %v1851, %v1851
      %v1992 = vmul.f32 %v1853, %v1853
      %v1993 = vmul.f32 %v1855, %v1855
      %v1994 = vmul.f32 %v1857, %v1857
      %v1995 = vmul.f32 %v1859, %v1859
      %v1996 = vmul.f32 %v1861, %v1861
      %v1997 = vsub.f32 0.0, %v1889
      %v1998 = vsub.f32 0.0, %v1890
      %v1999 = vsub.f32 0.0, %v1891
      %v2000 = vsub.f32 0.0, %v1892
      %v2001 = vsub.f32 0.0, %v1893
      %v2002 = vsub.f32 0.0, %v1894
      %v2003 = vsub.f32 0.0, %v1895
      %v2004 = vsub.f32 0.0, %v1896
      %v2005 = vsub.f32 0.0, %v1897
      %v2006 = vsub.f32 0.0, %v1898
      %v2007 = vsub.f32 0.0, %v1899
      %v2008 = vsub.f32 0.0, %v1900
      %v2009 = vsub.f32 0.0, %v1901
      %v2010 = vsub.f32 0.0, %v1902
      %v2011 = vsub.f32 0.0, %v1903
      %v2012 = vsub.f32 0.0, %v1904
      %v2013 = vsub.f32 0.0, %v1905
      %v2014 = vsub.f32 0.0, %v1906
      %v2015 = vsub.f32 0.0, %v1907
      %v2016 = vsub.f32 0.0, %v1908
      %v2017 = vsub.f32 0.0, %v1909
      %v2018 = vsub.f32 0.0, %v1910
      %v2019 = vsub.f32 0.0, %v1911
      %v2020 = vsub.f32 0.0, %v1912
      %v2021 = vsub.f32 0.0, %v1913
      %v2022 = vsub.f32 0.0, %v1914
      %v2023 = vsub.f32 0.0, %v1915
      %v2024 = vsub.f32 0.0, %v1916
      %v2025 = vsub.f32 0.0, %v1917
      %v2026 = vsub.f32 0.0, %v1918
      %v2027 = vsub.f32 0.0, %v1919
      %v2028 = vsub.f32 0.0, %v1920
      %v2029 = vsub.f32 0.0, %v1921
      %v2030 = vsub.f32 0.0, %v1922
      %v2031 = vsub.f32 0.0, %v1923
      %v2032 = vsub.f32 0.0, %v1924
      %v2033 = vsub.f32 0.0, %v1925
      %v2034 = vsub.f32 0.0, %v1926
      %v2035 = vsub.f32 0.0, %v1927
      %v2036 = vsub.f32 0.0, %v1928
      %v2037 = vsub.f32 0.0, %v1929
      %v2038 = vsub.f32 0.0, %v1930
      %v2039 = vsub.f32 0.0, %v1931
      %v2040 = vsub.f32 0.0, %v1932
      %v2041 = vsub.f32 0.0, %v1933
      %v2042 = vsub.f32 0.0, %v1934
      %v2043 = vsub.f32 0.0, %v1935
      %v2044 = vsub.f32 0.0, %v1936
      %v2045 = vsub.f32 0.0, %v1937
      %v2046 = vsub.f32 0.0, %v1938
      %v2047 = vsub.f32 0.0, %v1939
      %v2048 = vsub.f32 0.0, %v1940
      %v2049 = vsub.f32 0.0, %v1941
      %v2050 = vsub.f32 0.0, %v1942
      %v2051 = vsub.f32 0.0, %v1943
      %v2052 = vsub.f32 0.0, %v1944
      %v2053 = vsub.f32 0.0, %v1945
      %v2054 = vsub.f32 0.0, %v1946
      %v2055 = vsub.f32 0.0, %v1947
      %v2056 = vsub.f32 0.0, %v1948
      %v2057 = vsub.f32 0.0, %v1949
      %v2058 = vsub.f32 0.0, %v1950
      %v2059 = vsub.f32 0.0, %v1951
      %v2060 = vsub.f32 0.0, %v1952
      %v2061 = vsub.f32 0.0, %v1953
      %v2062 = vsub.f32 0.0, %v1954
      %v2063 = vsub.f32 0.0, %v1955
      %v2064 = vsub.f32 0.0, %v1956
      %v2065 = vsub.f32 0.0, %v1957
      %v2066 = vsub.f32 0.0, %v1958
      %v2067 = vsub.f32 0.0, %v1959
      %v2068 = vsub.f32 0.0, %v1960
      %v2069 = vsub.f32 0.0, %v1961
      %v2070 = vsub.f32 0.0, %v1962
      %v2071 = vsub.f32 0.0, %v1963
      %v2072 = vsub.f32 0.0, %v1964
      %v2073 = vsub.f32 0.0, %v1965
      %v2074 = vsub.f32 0.0, %v1966
      %v2075 = vsub.f32 0.0, %v1967
      %v2076 = vsub.f32 0.0, %v1968
      %v2077 = vsub.f32 0.0, %v1969
      %v2078 = vsub.f32 0.0, %v1970
      %v2079 = vsub.f32 0.0, %v1971
      %v2080 = vsub.f32 0.0, %v1972
      %v2081 = vsub.f32 0.0, %v1973
      %v2082 = vsub.f32 0.0, %v1974
      %v2083 = vsub.f32 0.0, %v1975
      %v2084 = vsub.f32 0.0, %v1976
      %v2085 = vsub.f32 0.0, %v1977
      %v2086 = vsub.f32 0.0, %v1978
      %v2087 = vsub.f32 0.0, %v1979
      %v2088 = vsub.f32 0.0, %v1980
      %v2089 = vsub.f32 0.0, %v1981
      %v2090 = vsub.f32 0.0, %v1982
      %v2091 = vsub.f32 0.0, %v1983
      %v2092 = vsub.f32 0.0, %v1984
      %v2093 = vsub.f32 0.0, %v1985
      %v2094 = vsub.f32 0.0, %v1986
      %v2095 = vsub.f32 0.0, %v1987
      %v2096 = vsub.f32 0.0, %v1988
      %v2097 = vsub.f32 0.0, %v1989
      %v2098 = vsub.f32 0.0, %v1990
      %v2099 = vsub.f32 0.0, %v1991
      %v2100 = vsub.f32 0.0, %v1992
      %v2101 = vsub.f32 0.0, %v1993
      %v2102 = vsub.f32 0.0, %v1994
      %v2103 = vsub.f32 0.0, %v1995
      %v2104 = vsub.f32 0.0, %v1996
      %v2105 = vmul.f32 %v1997, 1.442695
      %v2106 = vpow.pop %v2105
      %v2107 = vmul.f32 %v1998, 1.442695
      %v2108 = vpow.pop %v2107
      %v2109 = vmul.f32 %v1999, 1.442695
      %v2110 = vpow.pop %v2109
      %v2111 = vmul.f32 %v2000, 1.442695
      %v2112 = vpow.pop %v2111
      %v2113 = vmul.f32 %v2001, 1.442695
      %v2114 = vpow.pop %v2113
      %v2115 = vmul.f32 %v2002, 1.442695
      %v2116 = vpow.pop %v2115
      %v2117 = vmul.f32 %v2003, 1.442695
      %v2118 = vpow.pop %v2117
      %v2119 = vmul.f32 %v2004, 1.442695
      %v2120 = vpow.pop %v2119
      %v2121 = vmul.f32 %v2005, 1.442695
      %v2122 = vpow.pop %v2121
      %v2123 = vmul.f32 %v2006, 1.442695
      %v2124 = vpow.pop %v2123
      %v2125 = vmul.f32 %v2007, 1.442695
      %v2126 = vpow.pop %v2125
      %v2127 = vmul.f32 %v2008, 1.442695
      %v2128 = vpow.pop %v2127
      %v2129 = vmul.f32 %v2009, 1.442695
      %v2130 = vpow.pop %v2129
      %v2131 = vmul.f32 %v2010, 1.442695
      %v2132 = vpow.pop %v2131
      %v2133 = vmul.f32 %v2011, 1.442695
      %v2134 = vpow.pop %v2133
      %v2135 = vmul.f32 %v2012, 1.442695
      %v2136 = vpow.pop %v2135
      %v2137 = vmul.f32 %v2013, 1.442695
      %v2138 = vpow.pop %v2137
      %v2139 = vmul.f32 %v2014, 1.442695
      %v2140 = vpow.pop %v2139
      %v2141 = vmul.f32 %v2015, 1.442695
      %v2142 = vpow.pop %v2141
      %v2143 = vmul.f32 %v2016, 1.442695
      %v2144 = vpow.pop %v2143
      %v2145 = vmul.f32 %v2017, 1.442695
      %v2146 = vpow.pop %v2145
      %v2147 = vmul.f32 %v2018, 1.442695
      %v2148 = vpow.pop %v2147
      %v2149 = vmul.f32 %v2019, 1.442695
      %v2150 = vpow.pop %v2149
      %v2151 = vmul.f32 %v2020, 1.442695
      %v2152 = vpow.pop %v2151
      %v2153 = vmul.f32 %v2021, 1.442695
      %v2154 = vpow.pop %v2153
      %v2155 = vmul.f32 %v2022, 1.442695
      %v2156 = vpow.pop %v2155
      %v2157 = vmul.f32 %v2023, 1.442695
      %v2158 = vpow.pop %v2157
      %v2159 = vmul.f32 %v2024, 1.442695
      %v2160 = vpow.pop %v2159
      %v2161 = vmul.f32 %v2025, 1.442695
      %v2162 = vpow.pop %v2161
      %v2163 = vmul.f32 %v2026, 1.442695
      %v2164 = vpow.pop %v2163
      %v2165 = vmul.f32 %v2027, 1.442695
      %v2166 = vpow.pop %v2165
      %v2167 = vmul.f32 %v2028, 1.442695
      %v2168 = vpow.pop %v2167
      %v2169 = vmul.f32 %v2029, 1.442695
      %v2170 = vpow.pop %v2169
      %v2171 = vmul.f32 %v2030, 1.442695
      %v2172 = vpow.pop %v2171
      %v2173 = vmul.f32 %v2031, 1.442695
      %v2174 = vpow.pop %v2173
      %v2175 = vmul.f32 %v2032, 1.442695
      %v2176 = vpow.pop %v2175
      %v2177 = vmul.f32 %v2033, 1.442695
      %v2178 = vpow.pop %v2177
      %v2179 = vmul.f32 %v2034, 1.442695
      %v2180 = vpow.pop %v2179
      %v2181 = vmul.f32 %v2035, 1.442695
      %v2182 = vpow.pop %v2181
      %v2183 = vmul.f32 %v2036, 1.442695
      %v2184 = vpow.pop %v2183
      %v2185 = vmul.f32 %v2037, 1.442695
      %v2186 = vpow.pop %v2185
      %v2187 = vmul.f32 %v2038, 1.442695
      %v2188 = vpow.pop %v2187
      %v2189 = vmul.f32 %v2039, 1.442695
      %v2190 = vpow.pop %v2189
      %v2191 = vmul.f32 %v2040, 1.442695
      %v2192 = vpow.pop %v2191
      %v2193 = vmul.f32 %v2041, 1.442695
      %v2194 = vpow.pop %v2193
      %v2195 = vmul.f32 %v2042, 1.442695
      %v2196 = vpow.pop %v2195
      %v2197 = vmul.f32 %v2043, 1.442695
      %v2198 = vpow.pop %v2197
      %v2199 = vmul.f32 %v2044, 1.442695
      %v2200 = vpow.pop %v2199
      %v2201 = vmul.f32 %v2045, 1.442695
      %v2202 = vpow.pop %v2201
      %v2203 = vmul.f32 %v2046, 1.442695
      %v2204 = vpow.pop %v2203
      %v2205 = vmul.f32 %v2047, 1.442695
      %v2206 = vpow.pop %v2205
      %v2207 = vmul.f32 %v2048, 1.442695
      %v2208 = vpow.pop %v2207
      %v2209 = vmul.f32 %v2049, 1.442695
      %v2210 = vpow.pop %v2209
      %v2211 = vmul.f32 %v2050, 1.442695
      %v2212 = vpow.pop %v2211
      %v2213 = vmul.f32 %v2051, 1.442695
      %v2214 = vpow.pop %v2213
      %v2215 = vmul.f32 %v2052, 1.442695
      %v2216 = vpow.pop %v2215
      %v2217 = vmul.f32 %v2053, 1.442695
      %v2218 = vpow.pop %v2217
      %v2219 = vmul.f32 %v2054, 1.442695
      %v2220 = vpow.pop %v2219
      %v2221 = vmul.f32 %v2055, 1.442695
      %v2222 = vpow.pop %v2221
      %v2223 = vmul.f32 %v2056, 1.442695
      %v2224 = vpow.pop %v2223
      %v2225 = vmul.f32 %v2057, 1.442695
      %v2226 = vpow.pop %v2225
      %v2227 = vmul.f32 %v2058, 1.442695
      %v2228 = vpow.pop %v2227
      %v2229 = vmul.f32 %v2059, 1.442695
      %v2230 = vpow.pop %v2229
      %v2231 = vmul.f32 %v2060, 1.442695
      %v2232 = vpow.pop %v2231
      %v2233 = vmul.f32 %v2061, 1.442695
      %v2234 = vpow.pop %v2233
      %v2235 = vmul.f32 %v2062, 1.442695
      %v2236 = vpow.pop %v2235
      %v2237 = vmul.f32 %v2063, 1.442695
      %v2238 = vpow.pop %v2237
      %v2239 = vmul.f32 %v2064, 1.442695
      %v2240 = vpow.pop %v2239
      %v2241 = vmul.f32 %v2065, 1.442695
      %v2242 = vpow.pop %v2241
      %v2243 = vmul.f32 %v2066, 1.442695
      %v2244 = vpow.pop %v2243
      %v2245 = vmul.f32 %v2067, 1.442695
      %v2246 = vpow.pop %v2245
      %v2247 = vmul.f32 %v2068, 1.442695
      %v2248 = vpow.pop %v2247
      %v2249 = vmul.f32 %v2069, 1.442695
      %v2250 = vpow.pop %v2249
      %v2251 = vmul.f32 %v2070, 1.442695
      %v2252 = vpow.pop %v2251
      %v2253 = vmul.f32 %v2071, 1.442695
      %v2254 = vpow.pop %v2253
      %v2255 = vmul.f32 %v2072, 1.442695
      %v2256 = vpow.pop %v2255
      %v2257 = vmul.f32 %v2073, 1.442695
      %v2258 = vpow.pop %v2257
      %v2259 = vmul.f32 %v2074, 1.442695
      %v2260 = vpow.pop %v2259
      %v2261 = vmul.f32 %v2075, 1.442695
      %v2262 = vpow.pop %v2261
      %v2263 = vmul.f32 %v2076, 1.442695
      %v2264 = vpow.pop %v2263
      %v2265 = vmul.f32 %v2077, 1.442695
      %v2266 = vpow.pop %v2265
      %v2267 = vmul.f32 %v2078, 1.442695
      %v2268 = vpow.pop %v2267
      %v2269 = vmul.f32 %v2079, 1.442695
      %v2270 = vpow.pop %v2269
      %v2271 = vmul.f32 %v2080, 1.442695
      %v2272 = vpow.pop %v2271
      %v2273 = vmul.f32 %v2081, 1.442695
      %v2274 = vpow.pop %v2273
      %v2275 = vmul.f32 %v2082, 1.442695
      %v2276 = vpow.pop %v2275
      %v2277 = vmul.f32 %v2083, 1.442695
      %v2278 = vpow.pop %v2277
      %v2279 = vmul.f32 %v2084, 1.442695
      %v2280 = vpow.pop %v2279
      %v2281 = vmul.f32 %v2085, 1.442695
      %v2282 = vpow.pop %v2281
      %v2283 = vmul.f32 %v2086, 1.442695
      %v2284 = vpow.pop %v2283
      %v2285 = vmul.f32 %v2087, 1.442695
      %v2286 = vpow.pop %v2285
      %v2287 = vmul.f32 %v2088, 1.442695
      %v2288 = vpow.pop %v2287
      %v2289 = vmul.f32 %v2089, 1.442695
      %v2290 = vpow.pop %v2289
      %v2291 = vmul.f32 %v2090, 1.442695
      %v2292 = vpow.pop %v2291
      %v2293 = vmul.f32 %v2091, 1.442695
      %v2294 = vpow.pop %v2293
      %v2295 = vmul.f32 %v2092, 1.442695
      %v2296 = vpow.pop %v2295
      %v2297 = vmul.f32 %v2093, 1.442695
      %v2298 = vpow.pop %v2297
      %v2299 = vmul.f32 %v2094, 1.442695
      %v2300 = vpow.pop %v2299
      %v2301 = vmul.f32 %v2095, 1.442695
      %v2302 = vpow.pop %v2301
      %v2303 = vmul.f32 %v2096, 1.442695
      %v2304 = vpow.pop %v2303
      %v2305 = vmul.f32 %v2097, 1.442695
      %v2306 = vpow.pop %v2305
      %v2307 = vmul.f32 %v2098, 1.442695
      %v2308 = vpow.pop %v2307
      %v2309 = vmul.f32 %v2099, 1.442695
      %v2310 = vpow.pop %v2309
      %v2311 = vmul.f32 %v2100, 1.442695
      %v2312 = vpow.pop %v2311
      %v2313 = vmul.f32 %v2101, 1.442695
      %v2314 = vpow.pop %v2313
      %v2315 = vmul.f32 %v2102, 1.442695
      %v2316 = vpow.pop %v2315
      %v2317 = vmul.f32 %v2103, 1.442695
      %v2318 = vpow.pop %v2317
      %v2319 = vmul.f32 %v2104, 1.442695
      %v2320 = vpow.pop %v2319
      %v2321 = vxor.u32 %v852, 2147483648
      %v2322 = vxor.u32 %v853, 2147483648
      %v2323 = vxor.u32 %v854, 2147483648
      %v2324 = vxor.u32 %v873, 2147483648
      %v2325 = vxor.u32 %v874, 2147483648
      %v2326 = vxor.u32 %v875, 2147483648
      %v2327 = vxor.u32 %v1161, 2147483648
      %v2328 = vxor.u32 %v1162, 2147483648
      %v2329 = vxor.u32 %v1154, 2147483648
      %v2330 = vxor.u32 %v1163, 2147483648
      %v2331 = vxor.u32 %v1164, 2147483648
      %v2332 = vxor.u32 %v1160, 2147483648
      %v2333 = vxor.u32 %v1180, 2147483648
      %v2334 = vxor.u32 %v1181, 2147483648
      %v2335 = vxor.u32 %v1179, 2147483648
      %v2336 = vmul.f32 %v2321, 1.442695
      %v2337 = vpow.pop %v2336
      %v2338 = vmul.f32 %v2322, 1.442695
      %v2339 = vpow.pop %v2338
      %v2340 = vmul.f32 %v2323, 1.442695
      %v2341 = vpow.pop %v2340
      %v2342 = vmul.f32 %v2324, 1.442695
      %v2343 = vpow.pop %v2342
      %v2344 = vmul.f32 %v2325, 1.442695
      %v2345 = vpow.pop %v2344
      %v2346 = vmul.f32 %v2326, 1.442695
      %v2347 = vpow.pop %v2346
      %v2348 = vmul.f32 %v2327, 1.442695
      %v2349 = vpow.pop %v2348
      %v2350 = vmul.f32 %v2328, 1.442695
      %v2351 = vpow.pop %v2350
      %v2352 = vmul.f32 %v2329, 1.442695
      %v2353 = vpow.pop %v2352
      %v2354 = vmul.f32 %v2330, 1.442695
      %v2355 = vpow.pop %v2354
      %v2356 = vmul.f32 %v2331, 1.442695
      %v2357 = vpow.pop %v2356
      %v2358 = vmul.f32 %v2332, 1.442695
      %v2359 = vpow.pop %v2358
      %v2360 = vmul.f32 %v2333, 1.442695
      %v2361 = vpow.pop %v2360
      %v2362 = vmul.f32 %v2334, 1.442695
      %v2363 = vpow.pop %v2362
      %v2364 = vmul.f32 %v2335, 1.442695
      %v2365 = vpow.pop %v2364
      %v2366 = vadd.f32 %v2337, 1.0
      %v2367 = vadd.f32 %v2339, 1.0
      %v2368 = vadd.f32 %v2341, 1.0
      %v2369 = vadd.f32 %v2343, 1.0
      %v2370 = vadd.f32 %v2345, 1.0
      %v2371 = vadd.f32 %v2347, 1.0
      %v2372 = vadd.f32 %v2349, 1.0
      %v2373 = vadd.f32 %v2351, 1.0
      %v2374 = vadd.f32 %v2353, 1.0
      %v2375 = vadd.f32 %v2355, 1.0
      %v2376 = vadd.f32 %v2357, 1.0
      %v2377 = vadd.f32 %v2359, 1.0
      %v2378 = vadd.f32 %v2361, 1.0
      %v2379 = vadd.f32 %v2363, 1.0
      %v2380 = vadd.f32 %v2365, 1.0
      %v2381 = vrcp.pop %v2366
      %v2382 = vmul.f32 1.0, %v2381
      %v2383 = vrcp.pop %v2367
      %v2384 = vmul.f32 1.0, %v2383
      %v2385 = vrcp.pop %v2368
      %v2386 = vmul.f32 1.0, %v2385
      %v2387 = vrcp.pop %v2369
      %v2388 = vmul.f32 1.0, %v2387
      %v2389 = vrcp.pop %v2370
      %v2390 = vmul.f32 1.0, %v2389
      %v2391 = vrcp.pop %v2371
      %v2392 = vmul.f32 1.0, %v2391
      %v2393 = vrcp.pop %v2372
      %v2394 = vmul.f32 1.0, %v2393
      %v2395 = vrcp.pop %v2373
      %v2396 = vmul.f32 1.0, %v2395
      %v2397 = vrcp.pop %v2374
      %v2398 = vmul.f32 1.0, %v2397
      %v2399 = vrcp.pop %v2375
      %v2400 = vmul.f32 1.0, %v2399
      %v2401 = vrcp.pop %v2376
      %v2402 = vmul.f32 1.0, %v2401
      %v2403 = vrcp.pop %v2377
      %v2404 = vmul.f32 1.0, %v2403
      %v2405 = vrcp.pop %v2378
      %v2406 = vmul.f32 1.0, %v2405
      %v2407 = vrcp.pop %v2379
      %v2408 = vmul.f32 1.0, %v2407
      %v2409 = vrcp.pop %v2380
      %v2410 = vmul.f32 1.0, %v2409
      %v2411 = vmul.f32 %v852, %v2382
      %v2412 = vmul.f32 %v853, %v2384
      %v2413 = vmul.f32 %v854, %v2386
      %v2414 = vmul.f32 %v873, %v2388
      %v2415 = vmul.f32 %v874, %v2390
      %v2416 = vmul.f32 %v875, %v2392
      %v2417 = vmul.f32 %v1161, %v2394
      %v2418 = vmul.f32 %v1162, %v2396
      %v2419 = vmul.f32 %v1154, %v2398
      %v2420 = vmul.f32 %v1163, %v2400
      %v2421 = vmul.f32 %v1164, %v2402
      %v2422 = vmul.f32 %v1160, %v2404
      %v2423 = vmul.f32 %v1180, %v2406
      %v2424 = vmul.f32 %v1181, %v2408
      %v2425 = vmul.f32 %v1179, %v2410
      %v2426 = vld [vmem:[%s6] sm:$0xff]
      %v2427 = vld [vmem:[%s6 + $0x8] sm:$0xff]
      %v2428 = vld [vmem:[%s6 + $0x10] sm:$0xff]
      %v2429 = vld [vmem:[%s7] sm:$0xff]
      %v2431 = vsel %vm907, %v2429, 0
      %v2434 = vsel %vm839, %v2423, 0
      %v2437 = vsel %vm839, %v2424, 0
      %v2440 = vsel %vm839, %v2425, 0
      %v2442 = vand.u32 %v2412, 4294901760
      %2443 = vmatprep.subr.mxu0 %v2442
      %v2444 = vand.u32 %v2411, 4294901760
      %2445 = vmatpush1.msra.mxu0 %v2444
      %v2446 = vand.u32 %v2415, 4294901760
      %2447 = vmatprep.subr.mxu0 %v2446
      %v2448 = vand.u32 %v2414, 4294901760
      %2449 = vmatpush1.msra.mxu0 %v2448
      %v2450 = vand.u32 %v2418, 4294901760
      %2451 = vmatprep.subr.mxu0 %v2450
      %v2452 = vand.u32 %v2417, 4294901760
      %2453 = vmatpush1.msra.mxu0 %v2452
      %v2454 = vand.u32 %v2421, 4294901760
      %2455 = vmatprep.subr.mxu0 %v2454
      %v2456 = vand.u32 %v2420, 4294901760
      %2457 = vmatpush1.msra.mxu0 %v2456
      %v2458 = vand.u32 %v2437, 4294901760
      %2459 = vmatprep.subr.mxu0 %v2458
      %v2460 = vand.u32 %v2434, 4294901760
      %2461 = vmatpush1.msra.mxu0 %v2460
      %2462 = vmatprep.subr.mxu0 0.0
      %2463 = vmatpush1.msra.mxu0 0.0
      %2464 = vmatprep.subr.mxu0 0.0
      %2465 = vmatpush1.msra.mxu0 0.0
      %2466 = vmatprep.subr.mxu0 0.0
      %2467 = vmatpush1.msra.mxu0 0.0
      %2468 = vmatprep.subr.mxu0 0.0
      %2469 = vmatpush1.msra.mxu0 0.0
      %2470 = vmatprep.subr.mxu0 0.0
      %2471 = vmatpush1.msra.mxu0 0.0
      %2472 = vmatprep.subr.mxu0 0.0
      %2473 = vmatpush1.msra.mxu0 0.0
      %2474 = vmatprep.subr.mxu0 0.0
      %2475 = vmatpush1.msra.mxu0 0.0
      %2476 = vmatprep.subr.mxu0 0.0
      %2477 = vmatpush1.msra.mxu0 0.0
      %2478 = vmatprep.subr.mxu0 0.0
      %2479 = vmatpush1.msra.mxu0 0.0
      %2480 = vmatprep.subr.mxu0 0.0
      %2481 = vmatpush1.msra.mxu0 0.0
      %2482 = vmatprep.subr.mxu0 0.0
      %2483 = vmatpush1.msra.mxu0 0.0
      %2484 = vmatprep.subr.mxu0 0.0
      %2485 = vmatpush1.msra.mxu0 0.0
      %2486 = vmatprep.subr.mxu0 0.0
      %2487 = vmatpush1.msra.mxu0 0.0
      %2488 = vmatprep.subr.mxu0 0.0
      %2489 = vmatpush1.msra.mxu0 0.0
      %2490 = vmatprep.subr.mxu0 0.0
      %2491 = vmatpush1.msra.mxu0 0.0
      %2492 = vmatprep.subr.mxu0 0.0
      %2493 = vmatpush1.msra.mxu0 0.0
      %2494 = vmatprep.subr.mxu0 0.0
      %2495 = vmatpush1.msra.mxu0 0.0
      %2496 = vmatprep.subr.mxu0 0.0
      %2497 = vmatpush1.msra.mxu0 0.0
      %2498 = vmatprep.subr.mxu0 0.0
      %2499 = vmatpush1.msra.mxu0 0.0
      %2500 = vmatprep.subr.mxu0 0.0
      %2501 = vmatpush1.msra.mxu0 0.0
      %2502 = vmatprep.subr.mxu0 0.0
      %2503 = vmatpush1.msra.mxu0 0.0
      %2504 = vmatprep.subr.mxu0 0.0
      %2505 = vmatpush1.msra.mxu0 0.0
      %2506 = vmatprep.subr.mxu0 0.0
      %2507 = vmatpush1.msra.mxu0 0.0
      %2508 = vmatprep.subr.mxu0 0.0
      %2509 = vmatpush1.msra.mxu0 0.0
      %2510 = vmatprep.subr.mxu0 0.0
      %2511 = vmatpush1.msra.mxu0 0.0
      %2512 = vmatprep.subr.mxu0 0.0
      %2513 = vmatpush1.msra.mxu0 0.0
      %2514 = vmatprep.subr.mxu0 0.0
      %2515 = vmatpush1.msra.mxu0 0.0
      %2516 = vmatprep.mubr.f32.mxu0 0.0
      %v2517 = vand.u32 %v2431, 4294901760
      %v2518 = vsub.f32 %v2431, %v2517
      %v2519 = vand.u32 %v2518, 4294901760
      %v2520 = vsub.f32 %v2518, %v2519
      %v2521 = vand.u32 %v2520, 4294901760
      %2522 = vmatmul.mubr.f32.gmra.mrb[0].mxu0 %v2521
      %v2523 = vpop.f32.mrb[0].mxu0
      %v2524 = vadd.f32 0.0, %v2523
      %v2525 = vpop.f32.mrb[0].mxu0
      %v2526 = vadd.f32 0.0, %v2525
      %2527 = vdwg.mxu0
      %v2528 = vand.u32 %v2412, 4294901760
      %v2529 = vsub.f32 %v2412, %v2528
      %v2530 = vand.u32 %v2529, 4294901760
      %v2531 = vsub.f32 %v2529, %v2530
      %v2532 = vand.u32 %v2531, 4294901760
      %2533 = vmatprep.subr.mxu0 %v2532
      %v2534 = vand.u32 %v2411, 4294901760
      %v2535 = vsub.f32 %v2411, %v2534
      %v2536 = vand.u32 %v2535, 4294901760
      %v2537 = vsub.f32 %v2535, %v2536
      %v2538 = vand.u32 %v2537, 4294901760
      %2539 = vmatpush1.msra.mxu0 %v2538
      %v2540 = vand.u32 %v2415, 4294901760
      %v2541 = vsub.f32 %v2415, %v2540
      %v2542 = vand.u32 %v2541, 4294901760
      %v2543 = vsub.f32 %v2541, %v2542
      %v2544 = vand.u32 %v2543, 4294901760
      %2545 = vmatprep.subr.mxu0 %v2544
      %v2546 = vand.u32 %v2414, 4294901760
      %v2547 = vsub.f32 %v2414, %v2546
      %v2548 = vand.u32 %v2547, 4294901760
      %v2549 = vsub.f32 %v2547, %v2548
      %v2550 = vand.u32 %v2549, 4294901760
      %2551 = vmatpush1.msra.mxu0 %v2550
      %v2552 = vand.u32 %v2418, 4294901760
      %v2553 = vsub.f32 %v2418, %v2552
      %v2554 = vand.u32 %v2553, 4294901760
      %v2555 = vsub.f32 %v2553, %v2554
      %v2556 = vand.u32 %v2555, 4294901760
      %2557 = vmatprep.subr.mxu0 %v2556
      %v2558 = vand.u32 %v2417, 4294901760
      %v2559 = vsub.f32 %v2417, %v2558
      %v2560 = vand.u32 %v2559, 4294901760
      %v2561 = vsub.f32 %v2559, %v2560
      %v2562 = vand.u32 %v2561, 4294901760
      %2563 = vmatpush1.msra.mxu0 %v2562
      %v2564 = vand.u32 %v2421, 4294901760
      %v2565 = vsub.f32 %v2421, %v2564
      %v2566 = vand.u32 %v2565, 4294901760
      %v2567 = vsub.f32 %v2565, %v2566
      %v2568 = vand.u32 %v2567, 4294901760
      %2569 = vmatprep.subr.mxu0 %v2568
      %v2570 = vand.u32 %v2420, 4294901760
      %v2571 = vsub.f32 %v2420, %v2570
      %v2572 = vand.u32 %v2571, 4294901760
      %v2573 = vsub.f32 %v2571, %v2572
      %v2574 = vand.u32 %v2573, 4294901760
      %2575 = vmatpush1.msra.mxu0 %v2574
      %v2576 = vand.u32 %v2437, 4294901760
      %v2577 = vsub.f32 %v2437, %v2576
      %v2578 = vand.u32 %v2577, 4294901760
      %v2579 = vsub.f32 %v2577, %v2578
      %v2580 = vand.u32 %v2579, 4294901760
      %2581 = vmatprep.subr.mxu0 %v2580
      %v2582 = vand.u32 %v2434, 4294901760
      %v2583 = vsub.f32 %v2434, %v2582
      %v2584 = vand.u32 %v2583, 4294901760
      %v2585 = vsub.f32 %v2583, %v2584
      %v2586 = vand.u32 %v2585, 4294901760
      %2587 = vmatpush1.msra.mxu0 %v2586
      %2588 = vmatprep.subr.mxu0 0.0
      %2589 = vmatpush1.msra.mxu0 0.0
      %2590 = vmatprep.subr.mxu0 0.0
      %2591 = vmatpush1.msra.mxu0 0.0
      %2592 = vmatprep.subr.mxu0 0.0
      %2593 = vmatpush1.msra.mxu0 0.0
      %2594 = vmatprep.subr.mxu0 0.0
      %2595 = vmatpush1.msra.mxu0 0.0
      %2596 = vmatprep.subr.mxu0 0.0
      %2597 = vmatpush1.msra.mxu0 0.0
      %2598 = vmatprep.subr.mxu0 0.0
      %2599 = vmatpush1.msra.mxu0 0.0
      %2600 = vmatprep.subr.mxu0 0.0
      %2601 = vmatpush1.msra.mxu0 0.0
      %2602 = vmatprep.subr.mxu0 0.0
      %2603 = vmatpush1.msra.mxu0 0.0
      %2604 = vmatprep.subr.mxu0 0.0
      %2605 = vmatpush1.msra.mxu0 0.0
      %2606 = vmatprep.subr.mxu0 0.0
      %2607 = vmatpush1.msra.mxu0 0.0
      %2608 = vmatprep.subr.mxu0 0.0
      %2609 = vmatpush1.msra.mxu0 0.0
      %2610 = vmatprep.subr.mxu0 0.0
      %2611 = vmatpush1.msra.mxu0 0.0
      %2612 = vmatprep.subr.mxu0 0.0
      %2613 = vmatpush1.msra.mxu0 0.0
      %2614 = vmatprep.subr.mxu0 0.0
      %2615 = vmatpush1.msra.mxu0 0.0
      %2616 = vmatprep.subr.mxu0 0.0
      %2617 = vmatpush1.msra.mxu0 0.0
      %2618 = vmatprep.subr.mxu0 0.0
      %2619 = vmatpush1.msra.mxu0 0.0
      %2620 = vmatprep.subr.mxu0 0.0
      %2621 = vmatpush1.msra.mxu0 0.0
      %2622 = vmatprep.subr.mxu0 0.0
      %2623 = vmatpush1.msra.mxu0 0.0
      %2624 = vmatprep.subr.mxu0 0.0
      %2625 = vmatpush1.msra.mxu0 0.0
      %2626 = vmatprep.subr.mxu0 0.0
      %2627 = vmatpush1.msra.mxu0 0.0
      %2628 = vmatprep.subr.mxu0 0.0
      %2629 = vmatpush1.msra.mxu0 0.0
      %2630 = vmatprep.subr.mxu0 0.0
      %2631 = vmatpush1.msra.mxu0 0.0
      %2632 = vmatprep.subr.mxu0 0.0
      %2633 = vmatpush1.msra.mxu0 0.0
      %2634 = vmatprep.subr.mxu0 0.0
      %2635 = vmatpush1.msra.mxu0 0.0
      %2636 = vmatprep.subr.mxu0 0.0
      %2637 = vmatpush1.msra.mxu0 0.0
      %2638 = vmatprep.subr.mxu0 0.0
      %2639 = vmatpush1.msra.mxu0 0.0
      %2640 = vmatprep.subr.mxu0 0.0
      %2641 = vmatpush1.msra.mxu0 0.0
      %2642 = vmatprep.mubr.f32.mxu0 0.0
      %v2643 = vand.u32 %v2431, 4294901760
      %2644 = vmatmul.mubr.f32.gmra.mrb[0].mxu0 %v2643
      %v2645 = vpop.f32.mrb[0].mxu0
      %v2646 = vadd.f32 %v2524, %v2645
      %v2647 = vpop.f32.mrb[0].mxu0
      %v2648 = vadd.f32 %v2526, %v2647
      %2649 = vdwg.mxu0
      %v2650 = vand.u32 %v2412, 4294901760
      %v2651 = vsub.f32 %v2412, %v2650
      %2652 = vmatprep.subr.mxu0 %v2651
      %v2653 = vand.u32 %v2411, 4294901760
      %v2654 = vsub.f32 %v2411, %v2653
      %2655 = vmatpush1.msra.mxu0 %v2654
      %v2656 = vand.u32 %v2415, 4294901760
      %v2657 = vsub.f32 %v2415, %v2656
      %2658 = vmatprep.subr.mxu0 %v2657
      %v2659 = vand.u32 %v2414, 4294901760
      %v2660 = vsub.f32 %v2414, %v2659
      %2661 = vmatpush1.msra.mxu0 %v2660
      %v2662 = vand.u32 %v2418, 4294901760
      %v2663 = vsub.f32 %v2418, %v2662
      %2664 = vmatprep.subr.mxu0 %v2663
      %v2665 = vand.u32 %v2417, 4294901760
      %v2666 = vsub.f32 %v2417, %v2665
      %2667 = vmatpush1.msra.mxu0 %v2666
      %v2668 = vand.u32 %v2421, 4294901760
      %v2669 = vsub.f32 %v2421, %v2668
      %2670 = vmatprep.subr.mxu0 %v2669
      %v2671 = vand.u32 %v2420, 4294901760
      %v2672 = vsub.f32 %v2420, %v2671
      %2673 = vmatpush1.msra.mxu0 %v2672
      %v2674 = vand.u32 %v2437, 4294901760
      %v2675 = vsub.f32 %v2437, %v2674
      %2676 = vmatprep.subr.mxu0 %v2675
      %v2677 = vand.u32 %v2434, 4294901760
      %v2678 = vsub.f32 %v2434, %v2677
      %2679 = vmatpush1.msra.mxu0 %v2678
      %2680 = vmatprep.subr.mxu0 0.0
      %2681 = vmatpush1.msra.mxu0 0.0
      %2682 = vmatprep.subr.mxu0 0.0
      %2683 = vmatpush1.msra.mxu0 0.0
      %2684 = vmatprep.subr.mxu0 0.0
      %2685 = vmatpush1.msra.mxu0 0.0
      %2686 = vmatprep.subr.mxu0 0.0
      %2687 = vmatpush1.msra.mxu0 0.0
      %2688 = vmatprep.subr.mxu0 0.0
      %2689 = vmatpush1.msra.mxu0 0.0
      %2690 = vmatprep.subr.mxu0 0.0
      %2691 = vmatpush1.msra.mxu0 0.0
      %2692 = vmatprep.subr.mxu0 0.0
      %2693 = vmatpush1.msra.mxu0 0.0
      %2694 = vmatprep.subr.mxu0 0.0
      %2695 = vmatpush1.msra.mxu0 0.0
      %2696 = vmatprep.subr.mxu0 0.0
      %2697 = vmatpush1.msra.mxu0 0.0
      %2698 = vmatprep.subr.mxu0 0.0
      %2699 = vmatpush1.msra.mxu0 0.0
      %2700 = vmatprep.subr.mxu0 0.0
      %2701 = vmatpush1.msra.mxu0 0.0
      %2702 = vmatprep.subr.mxu0 0.0
      %2703 = vmatpush1.msra.mxu0 0.0
      %2704 = vmatprep.subr.mxu0 0.0
      %2705 = vmatpush1.msra.mxu0 0.0
      %2706 = vmatprep.subr.mxu0 0.0
      %2707 = vmatpush1.msra.mxu0 0.0
      %2708 = vmatprep.subr.mxu0 0.0
      %2709 = vmatpush1.msra.mxu0 0.0
      %2710 = vmatprep.subr.mxu0 0.0
      %2711 = vmatpush1.msra.mxu0 0.0
      %2712 = vmatprep.subr.mxu0 0.0
      %2713 = vmatpush1.msra.mxu0 0.0
      %2714 = vmatprep.subr.mxu0 0.0
      %2715 = vmatpush1.msra.mxu0 0.0
      %2716 = vmatprep.subr.mxu0 0.0
      %2717 = vmatpush1.msra.mxu0 0.0
      %2718 = vmatprep.subr.mxu0 0.0
      %2719 = vmatpush1.msra.mxu0 0.0
      %2720 = vmatprep.subr.mxu0 0.0
      %2721 = vmatpush1.msra.mxu0 0.0
      %2722 = vmatprep.subr.mxu0 0.0
      %2723 = vmatpush1.msra.mxu0 0.0
      %2724 = vmatprep.subr.mxu0 0.0
      %2725 = vmatpush1.msra.mxu0 0.0
      %2726 = vmatprep.subr.mxu0 0.0
      %2727 = vmatpush1.msra.mxu0 0.0
      %2728 = vmatprep.subr.mxu0 0.0
      %2729 = vmatpush1.msra.mxu0 0.0
      %2730 = vmatprep.subr.mxu0 0.0
      %2731 = vmatpush1.msra.mxu0 0.0
      %2732 = vmatprep.subr.mxu0 0.0
      %2733 = vmatpush1.msra.mxu0 0.0
      %2734 = vmatprep.mubr.f32.mxu0 0.0
      %v2735 = vand.u32 %v2431, 4294901760
      %v2736 = vsub.f32 %v2431, %v2735
      %2737 = vmatmul.mubr.f32.gmra.mrb[0].mxu0 %v2736
      %v2738 = vpop.f32.mrb[0].mxu0
      %v2739 = vadd.f32 %v2646, %v2738
      %v2740 = vpop.f32.mrb[0].mxu0
      %v2741 = vadd.f32 %v2648, %v2740
      %2742 = vdwg.mxu0
      %v2743 = vand.u32 %v2412, 4294901760
      %2744 = vmatprep.subr.mxu0 %v2743
      %v2745 = vand.u32 %v2411, 4294901760
      %2746 = vmatpush1.msra.mxu0 %v2745
      %v2747 = vand.u32 %v2415, 4294901760
      %2748 = vmatprep.subr.mxu0 %v2747
      %v2749 = vand.u32 %v2414, 4294901760
      %2750 = vmatpush1.msra.mxu0 %v2749
      %v2751 = vand.u32 %v2418, 4294901760
      %2752 = vmatprep.subr.mxu0 %v2751
      %v2753 = vand.u32 %v2417, 4294901760
      %2754 = vmatpush1.msra.mxu0 %v2753
      %v2755 = vand.u32 %v2421, 4294901760
      %2756 = vmatprep.subr.mxu0 %v2755
      %v2757 = vand.u32 %v2420, 4294901760
      %2758 = vmatpush1.msra.mxu0 %v2757
      %v2759 = vand.u32 %v2437, 4294901760
      %2760 = vmatprep.subr.mxu0 %v2759
      %v2761 = vand.u32 %v2434, 4294901760
      %2762 = vmatpush1.msra.mxu0 %v2761
      %2763 = vmatprep.subr.mxu0 0.0
      %2764 = vmatpush1.msra.mxu0 0.0
      %2765 = vmatprep.subr.mxu0 0.0
      %2766 = vmatpush1.msra.mxu0 0.0
      %2767 = vmatprep.subr.mxu0 0.0
      %2768 = vmatpush1.msra.mxu0 0.0
      %2769 = vmatprep.subr.mxu0 0.0
      %2770 = vmatpush1.msra.mxu0 0.0
      %2771 = vmatprep.subr.mxu0 0.0
      %2772 = vmatpush1.msra.mxu0 0.0
      %2773 = vmatprep.subr.mxu0 0.0
      %2774 = vmatpush1.msra.mxu0 0.0
      %2775 = vmatprep.subr.mxu0 0.0
      %2776 = vmatpush1.msra.mxu0 0.0
      %2777 = vmatprep.subr.mxu0 0.0
      %2778 = vmatpush1.msra.mxu0 0.0
      %2779 = vmatprep.subr.mxu0 0.0
      %2780 = vmatpush1.msra.mxu0 0.0
      %2781 = vmatprep.subr.mxu0 0.0
      %2782 = vmatpush1.msra.mxu0 0.0
      %2783 = vmatprep.subr.mxu0 0.0
      %2784 = vmatpush1.msra.mxu0 0.0
      %2785 = vmatprep.subr.mxu0 0.0
      %2786 = vmatpush1.msra.mxu0 0.0
      %2787 = vmatprep.subr.mxu0 0.0
      %2788 = vmatpush1.msra.mxu0 0.0
      %2789 = vmatprep.subr.mxu0 0.0
      %2790 = vmatpush1.msra.mxu0 0.0
      %2791 = vmatprep.subr.mxu0 0.0
      %2792 = vmatpush1.msra.mxu0 0.0
      %2793 = vmatprep.subr.mxu0 0.0
      %2794 = vmatpush1.msra.mxu0 0.0
      %2795 = vmatprep.subr.mxu0 0.0
      %2796 = vmatpush1.msra.mxu0 0.0
      %2797 = vmatprep.subr.mxu0 0.0
      %2798 = vmatpush1.msra.mxu0 0.0
      %2799 = vmatprep.subr.mxu0 0.0
      %2800 = vmatpush1.msra.mxu0 0.0
      %2801 = vmatprep.subr.mxu0 0.0
      %2802 = vmatpush1.msra.mxu0 0.0
      %2803 = vmatprep.subr.mxu0 0.0
      %2804 = vmatpush1.msra.mxu0 0.0
      %2805 = vmatprep.subr.mxu0 0.0
      %2806 = vmatpush1.msra.mxu0 0.0
      %2807 = vmatprep.subr.mxu0 0.0
      %2808 = vmatpush1.msra.mxu0 0.0
      %2809 = vmatprep.subr.mxu0 0.0
      %2810 = vmatpush1.msra.mxu0 0.0
      %2811 = vmatprep.subr.mxu0 0.0
      %2812 = vmatpush1.msra.mxu0 0.0
      %2813 = vmatprep.subr.mxu0 0.0
      %2814 = vmatpush1.msra.mxu0 0.0
      %2815 = vmatprep.subr.mxu0 0.0
      %2816 = vmatpush1.msra.mxu0 0.0
      %2817 = vmatprep.mubr.f32.mxu0 0.0
      %v2818 = vand.u32 %v2431, 4294901760
      %v2819 = vsub.f32 %v2431, %v2818
      %v2820 = vand.u32 %v2819, 4294901760
      %2821 = vmatmul.mubr.f32.gmra.mrb[0].mxu0 %v2820
      %v2822 = vpop.f32.mrb[0].mxu0
      %v2823 = vadd.f32 %v2739, %v2822
      %v2824 = vpop.f32.mrb[0].mxu0
      %v2825 = vadd.f32 %v2741, %v2824
      %2826 = vdwg.mxu0
      %v2827 = vand.u32 %v2412, 4294901760
      %v2828 = vsub.f32 %v2412, %v2827
      %v2829 = vand.u32 %v2828, 4294901760
      %2830 = vmatprep.subr.mxu0 %v2829
      %v2831 = vand.u32 %v2411, 4294901760
      %v2832 = vsub.f32 %v2411, %v2831
      %v2833 = vand.u32 %v2832, 4294901760
      %2834 = vmatpush1.msra.mxu0 %v2833
      %v2835 = vand.u32 %v2415, 4294901760
      %v2836 = vsub.f32 %v2415, %v2835
      %v2837 = vand.u32 %v2836, 4294901760
      %2838 = vmatprep.subr.mxu0 %v2837
      %v2839 = vand.u32 %v2414, 4294901760
      %v2840 = vsub.f32 %v2414, %v2839
      %v2841 = vand.u32 %v2840, 4294901760
      %2842 = vmatpush1.msra.mxu0 %v2841
      %v2843 = vand.u32 %v2418, 4294901760
      %v2844 = vsub.f32 %v2418, %v2843
      %v2845 = vand.u32 %v2844, 4294901760
      %2846 = vmatprep.subr.mxu0 %v2845
      %v2847 = vand.u32 %v2417, 4294901760
      %v2848 = vsub.f32 %v2417, %v2847
      %v2849 = vand.u32 %v2848, 4294901760
      %2850 = vmatpush1.msra.mxu0 %v2849
      %v2851 = vand.u32 %v2421, 4294901760
      %v2852 = vsub.f32 %v2421, %v2851
      %v2853 = vand.u32 %v2852, 4294901760
      %2854 = vmatprep.subr.mxu0 %v2853
      %v2855 = vand.u32 %v2420, 4294901760
      %v2856 = vsub.f32 %v2420, %v2855
      %v2857 = vand.u32 %v2856, 4294901760
      %2858 = vmatpush1.msra.mxu0 %v2857
      %v2859 = vand.u32 %v2437, 4294901760
      %v2860 = vsub.f32 %v2437, %v2859
      %v2861 = vand.u32 %v2860, 4294901760
      %2862 = vmatprep.subr.mxu0 %v2861
      %v2863 = vand.u32 %v2434, 4294901760
      %v2864 = vsub.f32 %v2434, %v2863
      %v2865 = vand.u32 %v2864, 4294901760
      %2866 = vmatpush1.msra.mxu0 %v2865
      %2867 = vmatprep.subr.mxu0 0.0
      %2868 = vmatpush1.msra.mxu0 0.0
      %2869 = vmatprep.subr.mxu0 0.0
      %2870 = vmatpush1.msra.mxu0 0.0
      %2871 = vmatprep.subr.mxu0 0.0
      %2872 = vmatpush1.msra.mxu0 0.0
      %2873 = vmatprep.subr.mxu0 0.0
      %2874 = vmatpush1.msra.mxu0 0.0
      %2875 = vmatprep.subr.mxu0 0.0
      %2876 = vmatpush1.msra.mxu0 0.0
      %2877 = vmatprep.subr.mxu0 0.0
      %2878 = vmatpush1.msra.mxu0 0.0
      %2879 = vmatprep.subr.mxu0 0.0
      %2880 = vmatpush1.msra.mxu0 0.0
      %2881 = vmatprep.subr.mxu0 0.0
      %2882 = vmatpush1.msra.mxu0 0.0
      %2883 = vmatprep.subr.mxu0 0.0
      %2884 = vmatpush1.msra.mxu0 0.0
      %2885 = vmatprep.subr.mxu0 0.0
      %2886 = vmatpush1.msra.mxu0 0.0
      %2887 = vmatprep.subr.mxu0 0.0
      %2888 = vmatpush1.msra.mxu0 0.0
      %2889 = vmatprep.subr.mxu0 0.0
      %2890 = vmatpush1.msra.mxu0 0.0
      %2891 = vmatprep.subr.mxu0 0.0
      %2892 = vmatpush1.msra.mxu0 0.0
      %2893 = vmatprep.subr.mxu0 0.0
      %2894 = vmatpush1.msra.mxu0 0.0
      %2895 = vmatprep.subr.mxu0 0.0
      %2896 = vmatpush1.msra.mxu0 0.0
      %2897 = vmatprep.subr.mxu0 0.0
      %2898 = vmatpush1.msra.mxu0 0.0
      %2899 = vmatprep.subr.mxu0 0.0
      %2900 = vmatpush1.msra.mxu0 0.0
      %2901 = vmatprep.subr.mxu0 0.0
      %2902 = vmatpush1.msra.mxu0 0.0
      %2903 = vmatprep.subr.mxu0 0.0
      %2904 = vmatpush1.msra.mxu0 0.0
      %2905 = vmatprep.subr.mxu0 0.0
      %2906 = vmatpush1.msra.mxu0 0.0
      %2907 = vmatprep.subr.mxu0 0.0
      %2908 = vmatpush1.msra.mxu0 0.0
      %2909 = vmatprep.subr.mxu0 0.0
      %2910 = vmatpush1.msra.mxu0 0.0
      %2911 = vmatprep.subr.mxu0 0.0
      %2912 = vmatpush1.msra.mxu0 0.0
      %2913 = vmatprep.subr.mxu0 0.0
      %2914 = vmatpush1.msra.mxu0 0.0
      %2915 = vmatprep.subr.mxu0 0.0
      %2916 = vmatpush1.msra.mxu0 0.0
      %2917 = vmatprep.subr.mxu0 0.0
      %2918 = vmatpush1.msra.mxu0 0.0
      %2919 = vmatprep.subr.mxu0 0.0
      %2920 = vmatpush1.msra.mxu0 0.0
      %2921 = vmatprep.mubr.f32.mxu0 0.0
      %v2922 = vand.u32 %v2431, 4294901760
      %2923 = vmatmul.mubr.f32.gmra.mrb[0].mxu0 %v2922
      %v2924 = vpop.f32.mrb[0].mxu0
      %v2925 = vadd.f32 %v2823, %v2924
      %v2926 = vpop.f32.mrb[0].mxu0
      %v2927 = vadd.f32 %v2825, %v2926
      %2928 = vdwg.mxu0
      %v2929 = vand.u32 %v2412, 4294901760
      %2930 = vmatprep.subr.mxu0 %v2929
      %v2931 = vand.u32 %v2411, 4294901760
      %2932 = vmatpush1.msra.mxu0 %v2931
      %v2933 = vand.u32 %v2415, 4294901760
      %2934 = vmatprep.subr.mxu0 %v2933
      %v2935 = vand.u32 %v2414, 4294901760
      %2936 = vmatpush1.msra.mxu0 %v2935
      %v2937 = vand.u32 %v2418, 4294901760
      %2938 = vmatprep.subr.mxu0 %v2937
      %v2939 = vand.u32 %v2417, 4294901760
      %2940 = vmatpush1.msra.mxu0 %v2939
      %v2941 = vand.u32 %v2421, 4294901760
      %2942 = vmatprep.subr.mxu0 %v2941
      %v2943 = vand.u32 %v2420, 4294901760
      %2944 = vmatpush1.msra.mxu0 %v2943
      %v2945 = vand.u32 %v2437, 4294901760
      %2946 = vmatprep.subr.mxu0 %v2945
      %v2947 = vand.u32 %v2434, 4294901760
      %2948 = vmatpush1.msra.mxu0 %v2947
      %2949 = vmatprep.subr.mxu0 0.0
      %2950 = vmatpush1.msra.mxu0 0.0
      %2951 = vmatprep.subr.mxu0 0.0
      %2952 = vmatpush1.msra.mxu0 0.0
      %2953 = vmatprep.subr.mxu0 0.0
      %2954 = vmatpush1.msra.mxu0 0.0
      %2955 = vmatprep.subr.mxu0 0.0
      %2956 = vmatpush1.msra.mxu0 0.0
      %2957 = vmatprep.subr.mxu0 0.0
      %2958 = vmatpush1.msra.mxu0 0.0
      %2959 = vmatprep.subr.mxu0 0.0
      %2960 = vmatpush1.msra.mxu0 0.0
      %2961 = vmatprep.subr.mxu0 0.0
      %2962 = vmatpush1.msra.mxu0 0.0
      %2963 = vmatprep.subr.mxu0 0.0
      %2964 = vmatpush1.msra.mxu0 0.0
      %2965 = vmatprep.subr.mxu0 0.0
      %2966 = vmatpush1.msra.mxu0 0.0
      %2967 = vmatprep.subr.mxu0 0.0
      %2968 = vmatpush1.msra.mxu0 0.0
      %2969 = vmatprep.subr.mxu0 0.0
      %2970 = vmatpush1.msra.mxu0 0.0
      %2971 = vmatprep.subr.mxu0 0.0
      %2972 = vmatpush1.msra.mxu0 0.0
      %2973 = vmatprep.subr.mxu0 0.0
      %2974 = vmatpush1.msra.mxu0 0.0
      %2975 = vmatprep.subr.mxu0 0.0
      %2976 = vmatpush1.msra.mxu0 0.0
      %2977 = vmatprep.subr.mxu0 0.0
      %2978 = vmatpush1.msra.mxu0 0.0
      %2979 = vmatprep.subr.mxu0 0.0
      %2980 = vmatpush1.msra.mxu0 0.0
      %2981 = vmatprep.subr.mxu0 0.0
      %2982 = vmatpush1.msra.mxu0 0.0
      %2983 = vmatprep.subr.mxu0 0.0
      %2984 = vmatpush1.msra.mxu0 0.0
      %2985 = vmatprep.subr.mxu0 0.0
      %2986 = vmatpush1.msra.mxu0 0.0
      %2987 = vmatprep.subr.mxu0 0.0
      %2988 = vmatpush1.msra.mxu0 0.0
      %2989 = vmatprep.subr.mxu0 0.0
      %2990 = vmatpush1.msra.mxu0 0.0
      %2991 = vmatprep.subr.mxu0 0.0
      %2992 = vmatpush1.msra.mxu0 0.0
      %2993 = vmatprep.subr.mxu0 0.0
      %2994 = vmatpush1.msra.mxu0 0.0
      %2995 = vmatprep.subr.mxu0 0.0
      %2996 = vmatpush1.msra.mxu0 0.0
      %2997 = vmatprep.subr.mxu0 0.0
      %2998 = vmatpush1.msra.mxu0 0.0
      %2999 = vmatprep.subr.mxu0 0.0
      %3000 = vmatpush1.msra.mxu0 0.0
      %3001 = vmatprep.subr.mxu0 0.0
      %3002 = vmatpush1.msra.mxu0 0.0
      %3003 = vmatprep.mubr.f32.mxu0 0.0
      %v3004 = vand.u32 %v2431, 4294901760
      %3005 = vmatmul.mubr.f32.gmra.mrb[0].mxu0 %v3004
      %v3006 = vpop.f32.mrb[0].mxu0
      %v3007 = vadd.f32 %v2925, %v3006
      %v3008 = vpop.f32.mrb[0].mxu0
      %v3009 = vadd.f32 %v2927, %v3008
      %3010 = vdwg.mxu0
      %3011 = vmatprep.subr.mxu0 0.0
      %v3012 = vand.u32 %v2413, 4294901760
      %3013 = vmatpush1.msra.mxu0 %v3012
      %3014 = vmatprep.subr.mxu0 0.0
      %v3015 = vand.u32 %v2416, 4294901760
      %3016 = vmatpush1.msra.mxu0 %v3015
      %3017 = vmatprep.subr.mxu0 0.0
      %v3018 = vand.u32 %v2419, 4294901760
      %3019 = vmatpush1.msra.mxu0 %v3018
      %3020 = vmatprep.subr.mxu0 0.0
      %v3021 = vand.u32 %v2422, 4294901760
      %3022 = vmatpush1.msra.mxu0 %v3021
      %3023 = vmatprep.subr.mxu0 0.0
      %v3024 = vand.u32 %v2440, 4294901760
      %3025 = vmatpush1.msra.mxu0 %v3024
      %3026 = vmatprep.subr.mxu0 0.0
      %3027 = vmatpush1.msra.mxu0 0.0
      %3028 = vmatprep.subr.mxu0 0.0
      %3029 = vmatpush1.msra.mxu0 0.0
      %3030 = vmatprep.subr.mxu0 0.0
      %3031 = vmatpush1.msra.mxu0 0.0
      %3032 = vmatprep.subr.mxu0 0.0
      %3033 = vmatpush1.msra.mxu0 0.0
      %3034 = vmatprep.subr.mxu0 0.0
      %3035 = vmatpush1.msra.mxu0 0.0
      %3036 = vmatprep.subr.mxu0 0.0
      %3037 = vmatpush1.msra.mxu0 0.0
      %3038 = vmatprep.subr.mxu0 0.0
      %3039 = vmatpush1.msra.mxu0 0.0
      %3040 = vmatprep.subr.mxu0 0.0
      %3041 = vmatpush1.msra.mxu0 0.0
      %3042 = vmatprep.subr.mxu0 0.0
      %3043 = vmatpush1.msra.mxu0 0.0
      %3044 = vmatprep.subr.mxu0 0.0
      %3045 = vmatpush1.msra.mxu0 0.0
      %3046 = vmatprep.subr.mxu0 0.0
      %3047 = vmatpush1.msra.mxu0 0.0
      %3048 = vmatprep.subr.mxu0 0.0
      %3049 = vmatpush1.msra.mxu0 0.0
      %3050 = vmatprep.subr.mxu0 0.0
      %3051 = vmatpush1.msra.mxu0 0.0
      %3052 = vmatprep.subr.mxu0 0.0
      %3053 = vmatpush1.msra.mxu0 0.0
      %3054 = vmatprep.subr.mxu0 0.0
      %3055 = vmatpush1.msra.mxu0 0.0
      %3056 = vmatprep.subr.mxu0 0.0
      %3057 = vmatpush1.msra.mxu0 0.0
      %3058 = vmatprep.subr.mxu0 0.0
      %3059 = vmatpush1.msra.mxu0 0.0
      %3060 = vmatprep.subr.mxu0 0.0
      %3061 = vmatpush1.msra.mxu0 0.0
      %3062 = vmatprep.subr.mxu0 0.0
      %3063 = vmatpush1.msra.mxu0 0.0
      %3064 = vmatprep.subr.mxu0 0.0
      %3065 = vmatpush1.msra.mxu0 0.0
      %3066 = vmatprep.subr.mxu0 0.0
      %3067 = vmatpush1.msra.mxu0 0.0
      %3068 = vmatprep.subr.mxu0 0.0
      %3069 = vmatpush1.msra.mxu0 0.0
      %3070 = vmatprep.subr.mxu0 0.0
      %3071 = vmatpush1.msra.mxu0 0.0
      %3072 = vmatprep.subr.mxu0 0.0
      %3073 = vmatpush1.msra.mxu0 0.0
      %3074 = vmatprep.subr.mxu0 0.0
      %3075 = vmatpush1.msra.mxu0 0.0
      %3076 = vmatprep.subr.mxu0 0.0
      %3077 = vmatpush1.msra.mxu0 0.0
      %3078 = vmatprep.subr.mxu0 0.0
      %3079 = vmatpush1.msra.mxu0 0.0
      %3080 = vmatprep.mubr.f32.mxu0 0.0
      %v3081 = vand.u32 %v2431, 4294901760
      %v3082 = vsub.f32 %v2431, %v3081
      %v3083 = vand.u32 %v3082, 4294901760
      %v3084 = vsub.f32 %v3082, %v3083
      %v3085 = vand.u32 %v3084, 4294901760
      %3086 = vmatmul.mubr.f32.gmra.mrb[0].mxu0 %v3085
      %v3087 = vpop.f32.mrb[0].mxu0
      %v3088 = vadd.f32 0.0, %v3087
      %v3089 = vpop.f32.mrb[0].mxu0
      %3090 = vdwg.mxu0
      %3091 = vmatprep.subr.mxu0 0.0
      %v3092 = vand.u32 %v2413, 4294901760
      %v3093 = vsub.f32 %v2413, %v3092
      %v3094 = vand.u32 %v3093, 4294901760
      %v3095 = vsub.f32 %v3093, %v3094
      %v3096 = vand.u32 %v3095, 4294901760
      %3097 = vmatpush1.msra.mxu0 %v3096
      %3098 = vmatprep.subr.mxu0 0.0
      %v3099 = vand.u32 %v2416, 4294901760
      %v3100 = vsub.f32 %v2416, %v3099
      %v3101 = vand.u32 %v3100, 4294901760
      %v3102 = vsub.f32 %v3100, %v3101
      %v3103 = vand.u32 %v3102, 4294901760
      %3104 = vmatpush1.msra.mxu0 %v3103
      %3105 = vmatprep.subr.mxu0 0.0
      %v3106 = vand.u32 %v2419, 4294901760
      %v3107 = vsub.f32 %v2419, %v3106
      %v3108 = vand.u32 %v3107, 4294901760
      %v3109 = vsub.f32 %v3107, %v3108
      %v3110 = vand.u32 %v3109, 4294901760
      %3111 = vmatpush1.msra.mxu0 %v3110
      %3112 = vmatprep.subr.mxu0 0.0
      %v3113 = vand.u32 %v2422, 4294901760
      %v3114 = vsub.f32 %v2422, %v3113
      %v3115 = vand.u32 %v3114, 4294901760
      %v3116 = vsub.f32 %v3114, %v3115
      %v3117 = vand.u32 %v3116, 4294901760
      %3118 = vmatpush1.msra.mxu0 %v3117
      %3119 = vmatprep.subr.mxu0 0.0
      %v3120 = vand.u32 %v2440, 4294901760
      %v3121 = vsub.f32 %v2440, %v3120
      %v3122 = vand.u32 %v3121, 4294901760
      %v3123 = vsub.f32 %v3121, %v3122
      %v3124 = vand.u32 %v3123, 4294901760
      %3125 = vmatpush1.msra.mxu0 %v3124
      %3126 = vmatprep.subr.mxu0 0.0
      %3127 = vmatpush1.msra.mxu0 0.0
      %3128 = vmatprep.subr.mxu0 0.0
      %3129 = vmatpush1.msra.mxu0 0.0
      %3130 = vmatprep.subr.mxu0 0.0
      %3131 = vmatpush1.msra.mxu0 0.0
      %3132 = vmatprep.subr.mxu0 0.0
      %3133 = vmatpush1.msra.mxu0 0.0
      %3134 = vmatprep.subr.mxu0 0.0
      %3135 = vmatpush1.msra.mxu0 0.0
      %3136 = vmatprep.subr.mxu0 0.0
      %3137 = vmatpush1.msra.mxu0 0.0
      %3138 = vmatprep.subr.mxu0 0.0
      %3139 = vmatpush1.msra.mxu0 0.0
      %3140 = vmatprep.subr.mxu0 0.0
      %3141 = vmatpush1.msra.mxu0 0.0
      %3142 = vmatprep.subr.mxu0 0.0
      %3143 = vmatpush1.msra.mxu0 0.0
      %3144 = vmatprep.subr.mxu0 0.0
      %3145 = vmatpush1.msra.mxu0 0.0
      %3146 = vmatprep.subr.mxu0 0.0
      %3147 = vmatpush1.msra.mxu0 0.0
      %3148 = vmatprep.subr.mxu0 0.0
      %3149 = vmatpush1.msra.mxu0 0.0
      %3150 = vmatprep.subr.mxu0 0.0
      %3151 = vmatpush1.msra.mxu0 0.0
      %3152 = vmatprep.subr.mxu0 0.0
      %3153 = vmatpush1.msra.mxu0 0.0
      %3154 = vmatprep.subr.mxu0 0.0
      %3155 = vmatpush1.msra.mxu0 0.0
      %3156 = vmatprep.subr.mxu0 0.0
      %3157 = vmatpush1.msra.mxu0 0.0
      %3158 = vmatprep.subr.mxu0 0.0
      %3159 = vmatpush1.msra.mxu0 0.0
      %3160 = vmatprep.subr.mxu0 0.0
      %3161 = vmatpush1.msra.mxu0 0.0
      %3162 = vmatprep.subr.mxu0 0.0
      %3163 = vmatpush1.msra.mxu0 0.0
      %3164 = vmatprep.subr.mxu0 0.0
      %3165 = vmatpush1.msra.mxu0 0.0
      %3166 = vmatprep.subr.mxu0 0.0
      %3167 = vmatpush1.msra.mxu0 0.0
      %3168 = vmatprep.subr.mxu0 0.0
      %3169 = vmatpush1.msra.mxu0 0.0
      %3170 = vmatprep.subr.mxu0 0.0
      %3171 = vmatpush1.msra.mxu0 0.0
      %3172 = vmatprep.subr.mxu0 0.0
      %3173 = vmatpush1.msra.mxu0 0.0
      %3174 = vmatprep.subr.mxu0 0.0
      %3175 = vmatpush1.msra.mxu0 0.0
      %3176 = vmatprep.subr.mxu0 0.0
      %3177 = vmatpush1.msra.mxu0 0.0
      %3178 = vmatprep.subr.mxu0 0.0
      %3179 = vmatpush1.msra.mxu0 0.0
      %3180 = vmatprep.mubr.f32.mxu0 0.0
      %v3181 = vand.u32 %v2431, 4294901760
      %3182 = vmatmul.mubr.f32.gmra.mrb[0].mxu0 %v3181
      %v3183 = vpop.f32.mrb[0].mxu0
      %v3184 = vadd.f32 %v3088, %v3183
      %v3185 = vpop.f32.mrb[0].mxu0
      %3186 = vdwg.mxu0
      %3187 = vmatprep.subr.mxu0 0.0
      %v3188 = vand.u32 %v2413, 4294901760
      %v3189 = vsub.f32 %v2413, %v3188
      %3190 = vmatpush1.msra.mxu0 %v3189
      %3191 = vmatprep.subr.mxu0 0.0
      %v3192 = vand.u32 %v2416, 4294901760
      %v3193 = vsub.f32 %v2416, %v3192
      %3194 = vmatpush1.msra.mxu0 %v3193
      %3195 = vmatprep.subr.mxu0 0.0
      %v3196 = vand.u32 %v2419, 4294901760
      %v3197 = vsub.f32 %v2419, %v3196
      %3198 = vmatpush1.msra.mxu0 %v3197
      %3199 = vmatprep.subr.mxu0 0.0
      %v3200 = vand.u32 %v2422, 4294901760
      %v3201 = vsub.f32 %v2422, %v3200
      %3202 = vmatpush1.msra.mxu0 %v3201
      %3203 = vmatprep.subr.mxu0 0.0
      %v3204 = vand.u32 %v2440, 4294901760
      %v3205 = vsub.f32 %v2440, %v3204
      %3206 = vmatpush1.msra.mxu0 %v3205
      %3207 = vmatprep.subr.mxu0 0.0
      %3208 = vmatpush1.msra.mxu0 0.0
      %3209 = vmatprep.subr.mxu0 0.0
      %3210 = vmatpush1.msra.mxu0 0.0
      %3211 = vmatprep.subr.mxu0 0.0
      %3212 = vmatpush1.msra.mxu0 0.0
      %3213 = vmatprep.subr.mxu0 0.0
      %3214 = vmatpush1.msra.mxu0 0.0
      %3215 = vmatprep.subr.mxu0 0.0
      %3216 = vmatpush1.msra.mxu0 0.0
      %3217 = vmatprep.subr.mxu0 0.0
      %3218 = vmatpush1.msra.mxu0 0.0
      %3219 = vmatprep.subr.mxu0 0.0
      %3220 = vmatpush1.msra.mxu0 0.0
      %3221 = vmatprep.subr.mxu0 0.0
      %3222 = vmatpush1.msra.mxu0 0.0
      %3223 = vmatprep.subr.mxu0 0.0
      %3224 = vmatpush1.msra.mxu0 0.0
      %3225 = vmatprep.subr.mxu0 0.0
      %3226 = vmatpush1.msra.mxu0 0.0
      %3227 = vmatprep.subr.mxu0 0.0
      %3228 = vmatpush1.msra.mxu0 0.0
      %3229 = vmatprep.subr.mxu0 0.0
      %3230 = vmatpush1.msra.mxu0 0.0
      %3231 = vmatprep.subr.mxu0 0.0
      %3232 = vmatpush1.msra.mxu0 0.0
      %3233 = vmatprep.subr.mxu0 0.0
      %3234 = vmatpush1.msra.mxu0 0.0
      %3235 = vmatprep.subr.mxu0 0.0
      %3236 = vmatpush1.msra.mxu0 0.0
      %3237 = vmatprep.subr.mxu0 0.0
      %3238 = vmatpush1.msra.mxu0 0.0
      %3239 = vmatprep.subr.mxu0 0.0
      %3240 = vmatpush1.msra.mxu0 0.0
      %3241 = vmatprep.subr.mxu0 0.0
      %3242 = vmatpush1.msra.mxu0 0.0
      %3243 = vmatprep.subr.mxu0 0.0
      %3244 = vmatpush1.msra.mxu0 0.0
      %3245 = vmatprep.subr.mxu0 0.0
      %3246 = vmatpush1.msra.mxu0 0.0
      %3247 = vmatprep.subr.mxu0 0.0
      %3248 = vmatpush1.msra.mxu0 0.0
      %3249 = vmatprep.subr.mxu0 0.0
      %3250 = vmatpush1.msra.mxu0 0.0
      %3251 = vmatprep.subr.mxu0 0.0
      %3252 = vmatpush1.msra.mxu0 0.0
      %3253 = vmatprep.subr.mxu0 0.0
      %3254 = vmatpush1.msra.mxu0 0.0
      %3255 = vmatprep.subr.mxu0 0.0
      %3256 = vmatpush1.msra.mxu0 0.0
      %3257 = vmatprep.subr.mxu0 0.0
      %3258 = vmatpush1.msra.mxu0 0.0
      %3259 = vmatprep.subr.mxu0 0.0
      %3260 = vmatpush1.msra.mxu0 0.0
      %3261 = vmatprep.mubr.f32.mxu0 0.0
      %v3262 = vand.u32 %v2431, 4294901760
      %v3263 = vsub.f32 %v2431, %v3262
      %3264 = vmatmul.mubr.f32.gmra.mrb[0].mxu0 %v3263
      %v3265 = vpop.f32.mrb[0].mxu0
      %v3266 = vadd.f32 %v3184, %v3265
      %v3267 = vpop.f32.mrb[0].mxu0
      %3268 = vdwg.mxu0
      %3269 = vmatprep.subr.mxu0 0.0
      %v3270 = vand.u32 %v2413, 4294901760
      %3271 = vmatpush1.msra.mxu0 %v3270
      %3272 = vmatprep.subr.mxu0 0.0
      %v3273 = vand.u32 %v2416, 4294901760
      %3274 = vmatpush1.msra.mxu0 %v3273
      %3275 = vmatprep.subr.mxu0 0.0
      %v3276 = vand.u32 %v2419, 4294901760
      %3277 = vmatpush1.msra.mxu0 %v3276
      %3278 = vmatprep.subr.mxu0 0.0
      %v3279 = vand.u32 %v2422, 4294901760
      %3280 = vmatpush1.msra.mxu0 %v3279
      %3281 = vmatprep.subr.mxu0 0.0
      %v3282 = vand.u32 %v2440, 4294901760
      %3283 = vmatpush1.msra.mxu0 %v3282
      %3284 = vmatprep.subr.mxu0 0.0
      %3285 = vmatpush1.msra.mxu0 0.0
      %3286 = vmatprep.subr.mxu0 0.0
      %3287 = vmatpush1.msra.mxu0 0.0
      %3288 = vmatprep.subr.mxu0 0.0
      %3289 = vmatpush1.msra.mxu0 0.0
      %3290 = vmatprep.subr.mxu0 0.0
      %3291 = vmatpush1.msra.mxu0 0.0
      %3292 = vmatprep.subr.mxu0 0.0
      %3293 = vmatpush1.msra.mxu0 0.0
      %3294 = vmatprep.subr.mxu0 0.0
      %3295 = vmatpush1.msra.mxu0 0.0
      %3296 = vmatprep.subr.mxu0 0.0
      %3297 = vmatpush1.msra.mxu0 0.0
      %3298 = vmatprep.subr.mxu0 0.0
      %3299 = vmatpush1.msra.mxu0 0.0
      %3300 = vmatprep.subr.mxu0 0.0
      %3301 = vmatpush1.msra.mxu0 0.0
      %3302 = vmatprep.subr.mxu0 0.0
      %3303 = vmatpush1.msra.mxu0 0.0
      %3304 = vmatprep.subr.mxu0 0.0
      %3305 = vmatpush1.msra.mxu0 0.0
      %3306 = vmatprep.subr.mxu0 0.0
      %3307 = vmatpush1.msra.mxu0 0.0
      %3308 = vmatprep.subr.mxu0 0.0
      %3309 = vmatpush1.msra.mxu0 0.0
      %3310 = vmatprep.subr.mxu0 0.0
      %3311 = vmatpush1.msra.mxu0 0.0
      %3312 = vmatprep.subr.mxu0 0.0
      %3313 = vmatpush1.msra.mxu0 0.0
      %3314 = vmatprep.subr.mxu0 0.0
      %3315 = vmatpush1.msra.mxu0 0.0
      %3316 = vmatprep.subr.mxu0 0.0
      %3317 = vmatpush1.msra.mxu0 0.0
      %3318 = vmatprep.subr.mxu0 0.0
      %3319 = vmatpush1.msra.mxu0 0.0
      %3320 = vmatprep.subr.mxu0 0.0
      %3321 = vmatpush1.msra.mxu0 0.0
      %3322 = vmatprep.subr.mxu0 0.0
      %3323 = vmatpush1.msra.mxu0 0.0
      %3324 = vmatprep.subr.mxu0 0.0
      %3325 = vmatpush1.msra.mxu0 0.0
      %3326 = vmatprep.subr.mxu0 0.0
      %3327 = vmatpush1.msra.mxu0 0.0
      %3328 = vmatprep.subr.mxu0 0.0
      %3329 = vmatpush1.msra.mxu0 0.0
      %3330 = vmatprep.subr.mxu0 0.0
      %3331 = vmatpush1.msra.mxu0 0.0
      %3332 = vmatprep.subr.mxu0 0.0
      %3333 = vmatpush1.msra.mxu0 0.0
      %3334 = vmatprep.subr.mxu0 0.0
      %3335 = vmatpush1.msra.mxu0 0.0
      %3336 = vmatprep.subr.mxu0 0.0
      %3337 = vmatpush1.msra.mxu0 0.0
      %3338 = vmatprep.mubr.f32.mxu0 0.0
      %v3339 = vand.u32 %v2431, 4294901760
      %v3340 = vsub.f32 %v2431, %v3339
      %v3341 = vand.u32 %v3340, 4294901760
      %3342 = vmatmul.mubr.f32.gmra.mrb[0].mxu0 %v3341
      %v3343 = vpop.f32.mrb[0].mxu0
      %v3344 = vadd.f32 %v3266, %v3343
      %v3345 = vpop.f32.mrb[0].mxu0
      %3346 = vdwg.mxu0
      %3347 = vmatprep.subr.mxu0 0.0
      %v3348 = vand.u32 %v2413, 4294901760
      %v3349 = vsub.f32 %v2413, %v3348
      %v3350 = vand.u32 %v3349, 4294901760
      %3351 = vmatpush1.msra.mxu0 %v3350
      %3352 = vmatprep.subr.mxu0 0.0
      %v3353 = vand.u32 %v2416, 4294901760
      %v3354 = vsub.f32 %v2416, %v3353
      %v3355 = vand.u32 %v3354, 4294901760
      %3356 = vmatpush1.msra.mxu0 %v3355
      %3357 = vmatprep.subr.mxu0 0.0
      %v3358 = vand.u32 %v2419, 4294901760
      %v3359 = vsub.f32 %v2419, %v3358
      %v3360 = vand.u32 %v3359, 4294901760
      %3361 = vmatpush1.msra.mxu0 %v3360
      %3362 = vmatprep.subr.mxu0 0.0
      %v3363 = vand.u32 %v2422, 4294901760
      %v3364 = vsub.f32 %v2422, %v3363
      %v3365 = vand.u32 %v3364, 4294901760
      %3366 = vmatpush1.msra.mxu0 %v3365
      %3367 = vmatprep.subr.mxu0 0.0
      %v3368 = vand.u32 %v2440, 4294901760
      %v3369 = vsub.f32 %v2440, %v3368
      %v3370 = vand.u32 %v3369, 4294901760
      %3371 = vmatpush1.msra.mxu0 %v3370
      %3372 = vmatprep.subr.mxu0 0.0
      %3373 = vmatpush1.msra.mxu0 0.0
      %3374 = vmatprep.subr.mxu0 0.0
      %3375 = vmatpush1.msra.mxu0 0.0
      %3376 = vmatprep.subr.mxu0 0.0
      %3377 = vmatpush1.msra.mxu0 0.0
      %3378 = vmatprep.subr.mxu0 0.0
      %3379 = vmatpush1.msra.mxu0 0.0
      %3380 = vmatprep.subr.mxu0 0.0
      %3381 = vmatpush1.msra.mxu0 0.0
      %3382 = vmatprep.subr.mxu0 0.0
      %3383 = vmatpush1.msra.mxu0 0.0
      %3384 = vmatprep.subr.mxu0 0.0
      %3385 = vmatpush1.msra.mxu0 0.0
      %3386 = vmatprep.subr.mxu0 0.0
      %3387 = vmatpush1.msra.mxu0 0.0
      %3388 = vmatprep.subr.mxu0 0.0
      %3389 = vmatpush1.msra.mxu0 0.0
      %3390 = vmatprep.subr.mxu0 0.0
      %3391 = vmatpush1.msra.mxu0 0.0
      %3392 = vmatprep.subr.mxu0 0.0
      %3393 = vmatpush1.msra.mxu0 0.0
      %3394 = vmatprep.subr.mxu0 0.0
      %3395 = vmatpush1.msra.mxu0 0.0
      %3396 = vmatprep.subr.mxu0 0.0
      %3397 = vmatpush1.msra.mxu0 0.0
      %3398 = vmatprep.subr.mxu0 0.0
      %3399 = vmatpush1.msra.mxu0 0.0
      %3400 = vmatprep.subr.mxu0 0.0
      %3401 = vmatpush1.msra.mxu0 0.0
      %3402 = vmatprep.subr.mxu0 0.0
      %3403 = vmatpush1.msra.mxu0 0.0
      %3404 = vmatprep.subr.mxu0 0.0
      %3405 = vmatpush1.msra.mxu0 0.0
      %3406 = vmatprep.subr.mxu0 0.0
      %3407 = vmatpush1.msra.mxu0 0.0
      %3408 = vmatprep.subr.mxu0 0.0
      %3409 = vmatpush1.msra.mxu0 0.0
      %3410 = vmatprep.subr.mxu0 0.0
      %3411 = vmatpush1.msra.mxu0 0.0
      %3412 = vmatprep.subr.mxu0 0.0
      %3413 = vmatpush1.msra.mxu0 0.0
      %3414 = vmatprep.subr.mxu0 0.0
      %3415 = vmatpush1.msra.mxu0 0.0
      %3416 = vmatprep.subr.mxu0 0.0
      %3417 = vmatpush1.msra.mxu0 0.0
      %3418 = vmatprep.subr.mxu0 0.0
      %3419 = vmatpush1.msra.mxu0 0.0
      %3420 = vmatprep.subr.mxu0 0.0
      %3421 = vmatpush1.msra.mxu0 0.0
      %3422 = vmatprep.subr.mxu0 0.0
      %3423 = vmatpush1.msra.mxu0 0.0
      %3424 = vmatprep.subr.mxu0 0.0
      %3425 = vmatpush1.msra.mxu0 0.0
      %3426 = vmatprep.mubr.f32.mxu0 0.0
      %v3427 = vand.u32 %v2431, 4294901760
      %3428 = vmatmul.mubr.f32.gmra.mrb[0].mxu0 %v3427
      %v3429 = vpop.f32.mrb[0].mxu0
      %v3430 = vadd.f32 %v3344, %v3429
      %v3431 = vpop.f32.mrb[0].mxu0
      %3432 = vdwg.mxu0
      %3433 = vmatprep.subr.mxu0 0.0
      %v3434 = vand.u32 %v2413, 4294901760
      %3435 = vmatpush1.msra.mxu0 %v3434
      %3436 = vmatprep.subr.mxu0 0.0
      %v3437 = vand.u32 %v2416, 4294901760
      %3438 = vmatpush1.msra.mxu0 %v3437
      %3439 = vmatprep.subr.mxu0 0.0
      %v3440 = vand.u32 %v2419, 4294901760
      %3441 = vmatpush1.msra.mxu0 %v3440
      %3442 = vmatprep.subr.mxu0 0.0
      %v3443 = vand.u32 %v2422, 4294901760
      %3444 = vmatpush1.msra.mxu0 %v3443
      %3445 = vmatprep.subr.mxu0 0.0
      %v3446 = vand.u32 %v2440, 4294901760
      %3447 = vmatpush1.msra.mxu0 %v3446
      %3448 = vmatprep.subr.mxu0 0.0
      %3449 = vmatpush1.msra.mxu0 0.0
      %3450 = vmatprep.subr.mxu0 0.0
      %3451 = vmatpush1.msra.mxu0 0.0
      %3452 = vmatprep.subr.mxu0 0.0
      %3453 = vmatpush1.msra.mxu0 0.0
      %3454 = vmatprep.subr.mxu0 0.0
      %3455 = vmatpush1.msra.mxu0 0.0
      %3456 = vmatprep.subr.mxu0 0.0
      %3457 = vmatpush1.msra.mxu0 0.0
      %3458 = vmatprep.subr.mxu0 0.0
      %3459 = vmatpush1.msra.mxu0 0.0
      %3460 = vmatprep.subr.mxu0 0.0
      %3461 = vmatpush1.msra.mxu0 0.0
      %3462 = vmatprep.subr.mxu0 0.0
      %3463 = vmatpush1.msra.mxu0 0.0
      %3464 = vmatprep.subr.mxu0 0.0
      %3465 = vmatpush1.msra.mxu0 0.0
      %3466 = vmatprep.subr.mxu0 0.0
      %3467 = vmatpush1.msra.mxu0 0.0
      %3468 = vmatprep.subr.mxu0 0.0
      %3469 = vmatpush1.msra.mxu0 0.0
      %3470 = vmatprep.subr.mxu0 0.0
      %3471 = vmatpush1.msra.mxu0 0.0
      %3472 = vmatprep.subr.mxu0 0.0
      %3473 = vmatpush1.msra.mxu0 0.0
      %3474 = vmatprep.subr.mxu0 0.0
      %3475 = vmatpush1.msra.mxu0 0.0
      %3476 = vmatprep.subr.mxu0 0.0
      %3477 = vmatpush1.msra.mxu0 0.0
      %3478 = vmatprep.subr.mxu0 0.0
      %3479 = vmatpush1.msra.mxu0 0.0
      %3480 = vmatprep.subr.mxu0 0.0
      %3481 = vmatpush1.msra.mxu0 0.0
      %3482 = vmatprep.subr.mxu0 0.0
      %3483 = vmatpush1.msra.mxu0 0.0
      %3484 = vmatprep.subr.mxu0 0.0
      %3485 = vmatpush1.msra.mxu0 0.0
      %3486 = vmatprep.subr.mxu0 0.0
      %3487 = vmatpush1.msra.mxu0 0.0
      %3488 = vmatprep.subr.mxu0 0.0
      %3489 = vmatpush1.msra.mxu0 0.0
      %3490 = vmatprep.subr.mxu0 0.0
      %3491 = vmatpush1.msra.mxu0 0.0
      %3492 = vmatprep.subr.mxu0 0.0
      %3493 = vmatpush1.msra.mxu0 0.0
      %3494 = vmatprep.subr.mxu0 0.0
      %3495 = vmatpush1.msra.mxu0 0.0
      %3496 = vmatprep.subr.mxu0 0.0
      %3497 = vmatpush1.msra.mxu0 0.0
      %3498 = vmatprep.subr.mxu0 0.0
      %3499 = vmatpush1.msra.mxu0 0.0
      %3500 = vmatprep.subr.mxu0 0.0
      %3501 = vmatpush1.msra.mxu0 0.0
      %3502 = vmatprep.mubr.f32.mxu0 0.0
      %v3503 = vand.u32 %v2431, 4294901760
      %3504 = vmatmul.mubr.f32.gmra.mrb[0].mxu0 %v3503
      %v3505 = vpop.f32.mrb[0].mxu0
      %v3506 = vadd.f32 %v3430, %v3505
      %v3507 = vpop.f32.mrb[0].mxu0
      %3508 = vdwg.mxu0
      %v3510 = vsel %vm1207, %v2428, 0
      %v3512 = vand.u32 %v2108, 4294901760
      %3513 = vmatprep.subr.mxu0 %v3512
      %v3514 = vand.u32 %v2106, 4294901760
      %3515 = vmatpush1.msra.mxu0 %v3514
      %v3516 = vand.u32 %v2114, 4294901760
      %3517 = vmatprep.subr.mxu0 %v3516
      %v3518 = vand.u32 %v2112, 4294901760
      %3519 = vmatpush1.msra.mxu0 %v3518
      %v3520 = vand.u32 %v2120, 4294901760
      %3521 = vmatprep.subr.mxu0 %v3520
      %v3522 = vand.u32 %v2118, 4294901760
      %3523 = vmatpush1.msra.mxu0 %v3522
      %v3524 = vand.u32 %v2126, 4294901760
      %3525 = vmatprep.subr.mxu0 %v3524
      %v3526 = vand.u32 %v2124, 4294901760
      %3527 = vmatpush1.msra.mxu0 %v3526
      %v3528 = vand.u32 %v2132, 4294901760
      %3529 = vmatprep.subr.mxu0 %v3528
      %v3530 = vand.u32 %v2130, 4294901760
      %3531 = vmatpush1.msra.mxu0 %v3530
      %v3532 = vand.u32 %v2138, 4294901760
      %3533 = vmatprep.subr.mxu0 %v3532
      %v3534 = vand.u32 %v2136, 4294901760
      %3535 = vmatpush1.msra.mxu0 %v3534
      %v3536 = vand.u32 %v2144, 4294901760
      %3537 = vmatprep.subr.mxu0 %v3536
      %v3538 = vand.u32 %v2142, 4294901760
      %3539 = vmatpush1.msra.mxu0 %v3538
      %v3540 = vand.u32 %v2150, 4294901760
      %3541 = vmatprep.subr.mxu0 %v3540
      %v3542 = vand.u32 %v2148, 4294901760
      %3543 = vmatpush1.msra.mxu0 %v3542
      %v3544 = vand.u32 %v2156, 4294901760
      %3545 = vmatprep.subr.mxu0 %v3544
      %v3546 = vand.u32 %v2154, 4294901760
      %3547 = vmatpush1.msra.mxu0 %v3546
      %v3548 = vand.u32 %v2162, 4294901760
      %3549 = vmatprep.subr.mxu0 %v3548
      %v3550 = vand.u32 %v2160, 4294901760
      %3551 = vmatpush1.msra.mxu0 %v3550
      %v3552 = vand.u32 %v2168, 4294901760
      %3553 = vmatprep.subr.mxu0 %v3552
      %v3554 = vand.u32 %v2166, 4294901760
      %3555 = vmatpush1.msra.mxu0 %v3554
      %v3556 = vand.u32 %v2174, 4294901760
      %3557 = vmatprep.subr.mxu0 %v3556
      %v3558 = vand.u32 %v2172, 4294901760
      %3559 = vmatpush1.msra.mxu0 %v3558
      %v3560 = vand.u32 %v2180, 4294901760
      %3561 = vmatprep.subr.mxu0 %v3560
      %v3562 = vand.u32 %v2178, 4294901760
      %3563 = vmatpush1.msra.mxu0 %v3562
      %v3564 = vand.u32 %v2186, 4294901760
      %3565 = vmatprep.subr.mxu0 %v3564
      %v3566 = vand.u32 %v2184, 4294901760
      %3567 = vmatpush1.msra.mxu0 %v3566
      %v3568 = vand.u32 %v2192, 4294901760
      %3569 = vmatprep.subr.mxu0 %v3568
      %v3570 = vand.u32 %v2190, 4294901760
      %3571 = vmatpush1.msra.mxu0 %v3570
      %v3572 = vand.u32 %v2198, 4294901760
      %3573 = vmatprep.subr.mxu0 %v3572
      %v3574 = vand.u32 %v2196, 4294901760
      %3575 = vmatpush1.msra.mxu0 %v3574
      %v3576 = vand.u32 %v2204, 4294901760
      %3577 = vmatprep.subr.mxu0 %v3576
      %v3578 = vand.u32 %v2202, 4294901760
      %3579 = vmatpush1.msra.mxu0 %v3578
      %v3580 = vand.u32 %v2210, 4294901760
      %3581 = vmatprep.subr.mxu0 %v3580
      %v3582 = vand.u32 %v2208, 4294901760
      %3583 = vmatpush1.msra.mxu0 %v3582
      %v3584 = vand.u32 %v2216, 4294901760
      %3585 = vmatprep.subr.mxu0 %v3584
      %v3586 = vand.u32 %v2214, 4294901760
      %3587 = vmatpush1.msra.mxu0 %v3586
      %v3588 = vand.u32 %v2222, 4294901760
      %3589 = vmatprep.subr.mxu0 %v3588
      %v3590 = vand.u32 %v2220, 4294901760
      %3591 = vmatpush1.msra.mxu0 %v3590
      %v3592 = vand.u32 %v2228, 4294901760
      %3593 = vmatprep.subr.mxu0 %v3592
      %v3594 = vand.u32 %v2226, 4294901760
      %3595 = vmatpush1.msra.mxu0 %v3594
      %v3596 = vand.u32 %v2234, 4294901760
      %3597 = vmatprep.subr.mxu0 %v3596
      %v3598 = vand.u32 %v2232, 4294901760
      %3599 = vmatpush1.msra.mxu0 %v3598
      %v3600 = vand.u32 %v2240, 4294901760
      %3601 = vmatprep.subr.mxu0 %v3600
      %v3602 = vand.u32 %v2238, 4294901760
      %3603 = vmatpush1.msra.mxu0 %v3602
      %v3604 = vand.u32 %v2246, 4294901760
      %3605 = vmatprep.subr.mxu0 %v3604
      %v3606 = vand.u32 %v2244, 4294901760
      %3607 = vmatpush1.msra.mxu0 %v3606
      %v3608 = vand.u32 %v2252, 4294901760
      %3609 = vmatprep.subr.mxu0 %v3608
      %v3610 = vand.u32 %v2250, 4294901760
      %3611 = vmatpush1.msra.mxu0 %v3610
      %v3612 = vand.u32 %v2258, 4294901760
      %3613 = vmatprep.subr.mxu0 %v3612
      %v3614 = vand.u32 %v2256, 4294901760
      %3615 = vmatpush1.msra.mxu0 %v3614
      %v3616 = vand.u32 %v2264, 4294901760
      %3617 = vmatprep.subr.mxu0 %v3616
      %v3618 = vand.u32 %v2262, 4294901760
      %3619 = vmatpush1.msra.mxu0 %v3618
      %v3620 = vand.u32 %v2270, 4294901760
      %3621 = vmatprep.subr.mxu0 %v3620
      %v3622 = vand.u32 %v2268, 4294901760
      %3623 = vmatpush1.msra.mxu0 %v3622
      %v3624 = vand.u32 %v2276, 4294901760
      %3625 = vmatprep.subr.mxu0 %v3624
      %v3626 = vand.u32 %v2274, 4294901760
      %3627 = vmatpush1.msra.mxu0 %v3626
      %v3628 = vand.u32 %v2282, 4294901760
      %3629 = vmatprep.subr.mxu0 %v3628
      %v3630 = vand.u32 %v2280, 4294901760
      %3631 = vmatpush1.msra.mxu0 %v3630
      %v3632 = vand.u32 %v2288, 4294901760
      %3633 = vmatprep.subr.mxu0 %v3632
      %v3634 = vand.u32 %v2286, 4294901760
      %3635 = vmatpush1.msra.mxu0 %v3634
      %v3636 = vand.u32 %v2294, 4294901760
      %3637 = vmatprep.subr.mxu0 %v3636
      %v3638 = vand.u32 %v2292, 4294901760
      %3639 = vmatpush1.msra.mxu0 %v3638
      %v3640 = vand.u32 %v2427, 4294901760
      %v3641 = vsub.f32 %v2427, %v3640
      %v3642 = vand.u32 %v3641, 4294901760
      %v3643 = vsub.f32 %v3641, %v3642
      %v3644 = vand.u32 %v3643, 4294901760
      %3645 = vmatprep.mubr.f32.mxu0 %v3644
      %v3646 = vand.u32 %v2426, 4294901760
      %v3647 = vsub.f32 %v2426, %v3646
      %v3648 = vand.u32 %v3647, 4294901760
      %v3649 = vsub.f32 %v3647, %v3648
      %v3650 = vand.u32 %v3649, 4294901760
      %3651 = vmatmul.mubr.f32.gmra.mrb[0].mxu0 %v3650
      %v3652 = vpop.f32.mrb[0].mxu0
      %v3653 = vadd.f32 %v3007, %v3652
      %v3654 = vpop.f32.mrb[0].mxu0
      %v3655 = vadd.f32 %v3009, %v3654
      %3656 = vdwg.mxu0
      %v3657 = vand.u32 %v2108, 4294901760
      %v3658 = vsub.f32 %v2108, %v3657
      %v3659 = vand.u32 %v3658, 4294901760
      %v3660 = vsub.f32 %v3658, %v3659
      %v3661 = vand.u32 %v3660, 4294901760
      %3662 = vmatprep.subr.mxu0 %v3661
      %v3663 = vand.u32 %v2106, 4294901760
      %v3664 = vsub.f32 %v2106, %v3663
      %v3665 = vand.u32 %v3664, 4294901760
      %v3666 = vsub.f32 %v3664, %v3665
      %v3667 = vand.u32 %v3666, 4294901760
      %3668 = vmatpush1.msra.mxu0 %v3667
      %v3669 = vand.u32 %v2114, 4294901760
      %v3670 = vsub.f32 %v2114, %v3669
      %v3671 = vand.u32 %v3670, 4294901760
      %v3672 = vsub.f32 %v3670, %v3671
      %v3673 = vand.u32 %v3672, 4294901760
      %3674 = vmatprep.subr.mxu0 %v3673
      %v3675 = vand.u32 %v2112, 4294901760
      %v3676 = vsub.f32 %v2112, %v3675
      %v3677 = vand.u32 %v3676, 4294901760
      %v3678 = vsub.f32 %v3676, %v3677
      %v3679 = vand.u32 %v3678, 4294901760
      %3680 = vmatpush1.msra.mxu0 %v3679
      %v3681 = vand.u32 %v2120, 4294901760
      %v3682 = vsub.f32 %v2120, %v3681
      %v3683 = vand.u32 %v3682, 4294901760
      %v3684 = vsub.f32 %v3682, %v3683
      %v3685 = vand.u32 %v3684, 4294901760
      %3686 = vmatprep.subr.mxu0 %v3685
      %v3687 = vand.u32 %v2118, 4294901760
      %v3688 = vsub.f32 %v2118, %v3687
      %v3689 = vand.u32 %v3688, 4294901760
      %v3690 = vsub.f32 %v3688, %v3689
      %v3691 = vand.u32 %v3690, 4294901760
      %3692 = vmatpush1.msra.mxu0 %v3691
      %v3693 = vand.u32 %v2126, 4294901760
      %v3694 = vsub.f32 %v2126, %v3693
      %v3695 = vand.u32 %v3694, 4294901760
      %v3696 = vsub.f32 %v3694, %v3695
      %v3697 = vand.u32 %v3696, 4294901760
      %3698 = vmatprep.subr.mxu0 %v3697
      %v3699 = vand.u32 %v2124, 4294901760
      %v3700 = vsub.f32 %v2124, %v3699
      %v3701 = vand.u32 %v3700, 4294901760
      %v3702 = vsub.f32 %v3700, %v3701
      %v3703 = vand.u32 %v3702, 4294901760
      %3704 = vmatpush1.msra.mxu0 %v3703
      %v3705 = vand.u32 %v2132, 4294901760
      %v3706 = vsub.f32 %v2132, %v3705
      %v3707 = vand.u32 %v3706, 4294901760
      %v3708 = vsub.f32 %v3706, %v3707
      %v3709 = vand.u32 %v3708, 4294901760
      %3710 = vmatprep.subr.mxu0 %v3709
      %v3711 = vand.u32 %v2130, 4294901760
      %v3712 = vsub.f32 %v2130, %v3711
      %v3713 = vand.u32 %v3712, 4294901760
      %v3714 = vsub.f32 %v3712, %v3713
      %v3715 = vand.u32 %v3714, 4294901760
      %3716 = vmatpush1.msra.mxu0 %v3715
      %v3717 = vand.u32 %v2138, 4294901760
      %v3718 = vsub.f32 %v2138, %v3717
      %v3719 = vand.u32 %v3718, 4294901760
      %v3720 = vsub.f32 %v3718, %v3719
      %v3721 = vand.u32 %v3720, 4294901760
      %3722 = vmatprep.subr.mxu0 %v3721
      %v3723 = vand.u32 %v2136, 4294901760
      %v3724 = vsub.f32 %v2136, %v3723
      %v3725 = vand.u32 %v3724, 4294901760
      %v3726 = vsub.f32 %v3724, %v3725
      %v3727 = vand.u32 %v3726, 4294901760
      %3728 = vmatpush1.msra.mxu0 %v3727
      %v3729 = vand.u32 %v2144, 4294901760
      %v3730 = vsub.f32 %v2144, %v3729
      %v3731 = vand.u32 %v3730, 4294901760
      %v3732 = vsub.f32 %v3730, %v3731
      %v3733 = vand.u32 %v3732, 4294901760
      %3734 = vmatprep.subr.mxu0 %v3733
      %v3735 = vand.u32 %v2142, 4294901760
      %v3736 = vsub.f32 %v2142, %v3735
      %v3737 = vand.u32 %v3736, 4294901760
      %v3738 = vsub.f32 %v3736, %v3737
      %v3739 = vand.u32 %v3738, 4294901760
      %3740 = vmatpush1.msra.mxu0 %v3739
      %v3741 = vand.u32 %v2150, 4294901760
      %v3742 = vsub.f32 %v2150, %v3741
      %v3743 = vand.u32 %v3742, 4294901760
      %v3744 = vsub.f32 %v3742, %v3743
      %v3745 = vand.u32 %v3744, 4294901760
      %3746 = vmatprep.subr.mxu0 %v3745
      %v3747 = vand.u32 %v2148, 4294901760
      %v3748 = vsub.f32 %v2148, %v3747
      %v3749 = vand.u32 %v3748, 4294901760
      %v3750 = vsub.f32 %v3748, %v3749
      %v3751 = vand.u32 %v3750, 4294901760
      %3752 = vmatpush1.msra.mxu0 %v3751
      %v3753 = vand.u32 %v2156, 4294901760
      %v3754 = vsub.f32 %v2156, %v3753
      %v3755 = vand.u32 %v3754, 4294901760
      %v3756 = vsub.f32 %v3754, %v3755
      %v3757 = vand.u32 %v3756, 4294901760
      %3758 = vmatprep.subr.mxu0 %v3757
      %v3759 = vand.u32 %v2154, 4294901760
      %v3760 = vsub.f32 %v2154, %v3759
      %v3761 = vand.u32 %v3760, 4294901760
      %v3762 = vsub.f32 %v3760, %v3761
      %v3763 = vand.u32 %v3762, 4294901760
      %3764 = vmatpush1.msra.mxu0 %v3763
      %v3765 = vand.u32 %v2162, 4294901760
      %v3766 = vsub.f32 %v2162, %v3765
      %v3767 = vand.u32 %v3766, 4294901760
      %v3768 = vsub.f32 %v3766, %v3767
      %v3769 = vand.u32 %v3768, 4294901760
      %3770 = vmatprep.subr.mxu0 %v3769
      %v3771 = vand.u32 %v2160, 4294901760
      %v3772 = vsub.f32 %v2160, %v3771
      %v3773 = vand.u32 %v3772, 4294901760
      %v3774 = vsub.f32 %v3772, %v3773
      %v3775 = vand.u32 %v3774, 4294901760
      %3776 = vmatpush1.msra.mxu0 %v3775
      %v3777 = vand.u32 %v2168, 4294901760
      %v3778 = vsub.f32 %v2168, %v3777
      %v3779 = vand.u32 %v3778, 4294901760
      %v3780 = vsub.f32 %v3778, %v3779
      %v3781 = vand.u32 %v3780, 4294901760
      %3782 = vmatprep.subr.mxu0 %v3781
      %v3783 = vand.u32 %v2166, 4294901760
      %v3784 = vsub.f32 %v2166, %v3783
      %v3785 = vand.u32 %v3784, 4294901760
      %v3786 = vsub.f32 %v3784, %v3785
      %v3787 = vand.u32 %v3786, 4294901760
      %3788 = vmatpush1.msra.mxu0 %v3787
      %v3789 = vand.u32 %v2174, 4294901760
      %v3790 = vsub.f32 %v2174, %v3789
      %v3791 = vand.u32 %v3790, 4294901760
      %v3792 = vsub.f32 %v3790, %v3791
      %v3793 = vand.u32 %v3792, 4294901760
      %3794 = vmatprep.subr.mxu0 %v3793
      %v3795 = vand.u32 %v2172, 4294901760
      %v3796 = vsub.f32 %v2172, %v3795
      %v3797 = vand.u32 %v3796, 4294901760
      %v3798 = vsub.f32 %v3796, %v3797
      %v3799 = vand.u32 %v3798, 4294901760
      %3800 = vmatpush1.msra.mxu0 %v3799
      %v3801 = vand.u32 %v2180, 4294901760
      %v3802 = vsub.f32 %v2180, %v3801
      %v3803 = vand.u32 %v3802, 4294901760
      %v3804 = vsub.f32 %v3802, %v3803
      %v3805 = vand.u32 %v3804, 4294901760
      %3806 = vmatprep.subr.mxu0 %v3805
      %v3807 = vand.u32 %v2178, 4294901760
      %v3808 = vsub.f32 %v2178, %v3807
      %v3809 = vand.u32 %v3808, 4294901760
      %v3810 = vsub.f32 %v3808, %v3809
      %v3811 = vand.u32 %v3810, 4294901760
      %3812 = vmatpush1.msra.mxu0 %v3811
      %v3813 = vand.u32 %v2186, 4294901760
      %v3814 = vsub.f32 %v2186, %v3813
      %v3815 = vand.u32 %v3814, 4294901760
      %v3816 = vsub.f32 %v3814, %v3815
      %v3817 = vand.u32 %v3816, 4294901760
      %3818 = vmatprep.subr.mxu0 %v3817
      %v3819 = vand.u32 %v2184, 4294901760
      %v3820 = vsub.f32 %v2184, %v3819
      %v3821 = vand.u32 %v3820, 4294901760
      %v3822 = vsub.f32 %v3820, %v3821
      %v3823 = vand.u32 %v3822, 4294901760
      %3824 = vmatpush1.msra.mxu0 %v3823
      %v3825 = vand.u32 %v2192, 4294901760
      %v3826 = vsub.f32 %v2192, %v3825
      %v3827 = vand.u32 %v3826, 4294901760
      %v3828 = vsub.f32 %v3826, %v3827
      %v3829 = vand.u32 %v3828, 4294901760
      %3830 = vmatprep.subr.mxu0 %v3829
      %v3831 = vand.u32 %v2190, 4294901760
      %v3832 = vsub.f32 %v2190, %v3831
      %v3833 = vand.u32 %v3832, 4294901760
      %v3834 = vsub.f32 %v3832, %v3833
      %v3835 = vand.u32 %v3834, 4294901760
      %3836 = vmatpush1.msra.mxu0 %v3835
      %v3837 = vand.u32 %v2198, 4294901760
      %v3838 = vsub.f32 %v2198, %v3837
      %v3839 = vand.u32 %v3838, 4294901760
      %v3840 = vsub.f32 %v3838, %v3839
      %v3841 = vand.u32 %v3840, 4294901760
      %3842 = vmatprep.subr.mxu0 %v3841
      %v3843 = vand.u32 %v2196, 4294901760
      %v3844 = vsub.f32 %v2196, %v3843
      %v3845 = vand.u32 %v3844, 4294901760
      %v3846 = vsub.f32 %v3844, %v3845
      %v3847 = vand.u32 %v3846, 4294901760
      %3848 = vmatpush1.msra.mxu0 %v3847
      %v3849 = vand.u32 %v2204, 4294901760
      %v3850 = vsub.f32 %v2204, %v3849
      %v3851 = vand.u32 %v3850, 4294901760
      %v3852 = vsub.f32 %v3850, %v3851
      %v3853 = vand.u32 %v3852, 4294901760
      %3854 = vmatprep.subr.mxu0 %v3853
      %v3855 = vand.u32 %v2202, 4294901760
      %v3856 = vsub.f32 %v2202, %v3855
      %v3857 = vand.u32 %v3856, 4294901760
      %v3858 = vsub.f32 %v3856, %v3857
      %v3859 = vand.u32 %v3858, 4294901760
      %3860 = vmatpush1.msra.mxu0 %v3859
      %v3861 = vand.u32 %v2210, 4294901760
      %v3862 = vsub.f32 %v2210, %v3861
      %v3863 = vand.u32 %v3862, 4294901760
      %v3864 = vsub.f32 %v3862, %v3863
      %v3865 = vand.u32 %v3864, 4294901760
      %3866 = vmatprep.subr.mxu0 %v3865
      %v3867 = vand.u32 %v2208, 4294901760
      %v3868 = vsub.f32 %v2208, %v3867
      %v3869 = vand.u32 %v3868, 4294901760
      %v3870 = vsub.f32 %v3868, %v3869
      %v3871 = vand.u32 %v3870, 4294901760
      %3872 = vmatpush1.msra.mxu0 %v3871
      %v3873 = vand.u32 %v2216, 4294901760
      %v3874 = vsub.f32 %v2216, %v3873
      %v3875 = vand.u32 %v3874, 4294901760
      %v3876 = vsub.f32 %v3874, %v3875
      %v3877 = vand.u32 %v3876, 4294901760
      %3878 = vmatprep.subr.mxu0 %v3877
      %v3879 = vand.u32 %v2214, 4294901760
      %v3880 = vsub.f32 %v2214, %v3879
      %v3881 = vand.u32 %v3880, 4294901760
      %v3882 = vsub.f32 %v3880, %v3881
      %v3883 = vand.u32 %v3882, 4294901760
      %3884 = vmatpush1.msra.mxu0 %v3883
      %v3885 = vand.u32 %v2222, 4294901760
      %v3886 = vsub.f32 %v2222, %v3885
      %v3887 = vand.u32 %v3886, 4294901760
      %v3888 = vsub.f32 %v3886, %v3887
      %v3889 = vand.u32 %v3888, 4294901760
      %3890 = vmatprep.subr.mxu0 %v3889
      %v3891 = vand.u32 %v2220, 4294901760
      %v3892 = vsub.f32 %v2220, %v3891
      %v3893 = vand.u32 %v3892, 4294901760
      %v3894 = vsub.f32 %v3892, %v3893
      %v3895 = vand.u32 %v3894, 4294901760
      %3896 = vmatpush1.msra.mxu0 %v3895
      %v3897 = vand.u32 %v2228, 4294901760
      %v3898 = vsub.f32 %v2228, %v3897
      %v3899 = vand.u32 %v3898, 4294901760
      %v3900 = vsub.f32 %v3898, %v3899
      %v3901 = vand.u32 %v3900, 4294901760
      %3902 = vmatprep.subr.mxu0 %v3901
      %v3903 = vand.u32 %v2226, 4294901760
      %v3904 = vsub.f32 %v2226, %v3903
      %v3905 = vand.u32 %v3904, 4294901760
      %v3906 = vsub.f32 %v3904, %v3905
      %v3907 = vand.u32 %v3906, 4294901760
      %3908 = vmatpush1.msra.mxu0 %v3907
      %v3909 = vand.u32 %v2234, 4294901760
      %v3910 = vsub.f32 %v2234, %v3909
      %v3911 = vand.u32 %v3910, 4294901760
      %v3912 = vsub.f32 %v3910, %v3911
      %v3913 = vand.u32 %v3912, 4294901760
      %3914 = vmatprep.subr.mxu0 %v3913
      %v3915 = vand.u32 %v2232, 4294901760
      %v3916 = vsub.f32 %v2232, %v3915
      %v3917 = vand.u32 %v3916, 4294901760
      %v3918 = vsub.f32 %v3916, %v3917
      %v3919 = vand.u32 %v3918, 4294901760
      %3920 = vmatpush1.msra.mxu0 %v3919
      %v3921 = vand.u32 %v2240, 4294901760
      %v3922 = vsub.f32 %v2240, %v3921
      %v3923 = vand.u32 %v3922, 4294901760
      %v3924 = vsub.f32 %v3922, %v3923
      %v3925 = vand.u32 %v3924, 4294901760
      %3926 = vmatprep.subr.mxu0 %v3925
      %v3927 = vand.u32 %v2238, 4294901760
      %v3928 = vsub.f32 %v2238, %v3927
      %v3929 = vand.u32 %v3928, 4294901760
      %v3930 = vsub.f32 %v3928, %v3929
      %v3931 = vand.u32 %v3930, 4294901760
      %3932 = vmatpush1.msra.mxu0 %v3931
      %v3933 = vand.u32 %v2246, 4294901760
      %v3934 = vsub.f32 %v2246, %v3933
      %v3935 = vand.u32 %v3934, 4294901760
      %v3936 = vsub.f32 %v3934, %v3935
      %v3937 = vand.u32 %v3936, 4294901760
      %3938 = vmatprep.subr.mxu0 %v3937
      %v3939 = vand.u32 %v2244, 4294901760
      %v3940 = vsub.f32 %v2244, %v3939
      %v3941 = vand.u32 %v3940, 4294901760
      %v3942 = vsub.f32 %v3940, %v3941
      %v3943 = vand.u32 %v3942, 4294901760
      %3944 = vmatpush1.msra.mxu0 %v3943
      %v3945 = vand.u32 %v2252, 4294901760
      %v3946 = vsub.f32 %v2252, %v3945
      %v3947 = vand.u32 %v3946, 4294901760
      %v3948 = vsub.f32 %v3946, %v3947
      %v3949 = vand.u32 %v3948, 4294901760
      %3950 = vmatprep.subr.mxu0 %v3949
      %v3951 = vand.u32 %v2250, 4294901760
      %v3952 = vsub.f32 %v2250, %v3951
      %v3953 = vand.u32 %v3952, 4294901760
      %v3954 = vsub.f32 %v3952, %v3953
      %v3955 = vand.u32 %v3954, 4294901760
      %3956 = vmatpush1.msra.mxu0 %v3955
      %v3957 = vand.u32 %v2258, 4294901760
      %v3958 = vsub.f32 %v2258, %v3957
      %v3959 = vand.u32 %v3958, 4294901760
      %v3960 = vsub.f32 %v3958, %v3959
      %v3961 = vand.u32 %v3960, 4294901760
      %3962 = vmatprep.subr.mxu0 %v3961
      %v3963 = vand.u32 %v2256, 4294901760
      %v3964 = vsub.f32 %v2256, %v3963
      %v3965 = vand.u32 %v3964, 4294901760
      %v3966 = vsub.f32 %v3964, %v3965
      %v3967 = vand.u32 %v3966, 4294901760
      %3968 = vmatpush1.msra.mxu0 %v3967
      %v3969 = vand.u32 %v2264, 4294901760
      %v3970 = vsub.f32 %v2264, %v3969
      %v3971 = vand.u32 %v3970, 4294901760
      %v3972 = vsub.f32 %v3970, %v3971
      %v3973 = vand.u32 %v3972, 4294901760
      %3974 = vmatprep.subr.mxu0 %v3973
      %v3975 = vand.u32 %v2262, 4294901760
      %v3976 = vsub.f32 %v2262, %v3975
      %v3977 = vand.u32 %v3976, 4294901760
      %v3978 = vsub.f32 %v3976, %v3977
      %v3979 = vand.u32 %v3978, 4294901760
      %3980 = vmatpush1.msra.mxu0 %v3979
      %v3981 = vand.u32 %v2270, 4294901760
      %v3982 = vsub.f32 %v2270, %v3981
      %v3983 = vand.u32 %v3982, 4294901760
      %v3984 = vsub.f32 %v3982, %v3983
      %v3985 = vand.u32 %v3984, 4294901760
      %3986 = vmatprep.subr.mxu0 %v3985
      %v3987 = vand.u32 %v2268, 4294901760
      %v3988 = vsub.f32 %v2268, %v3987
      %v3989 = vand.u32 %v3988, 4294901760
      %v3990 = vsub.f32 %v3988, %v3989
      %v3991 = vand.u32 %v3990, 4294901760
      %3992 = vmatpush1.msra.mxu0 %v3991
      %v3993 = vand.u32 %v2276, 4294901760
      %v3994 = vsub.f32 %v2276, %v3993
      %v3995 = vand.u32 %v3994, 4294901760
      %v3996 = vsub.f32 %v3994, %v3995
      %v3997 = vand.u32 %v3996, 4294901760
      %3998 = vmatprep.subr.mxu0 %v3997
      %v3999 = vand.u32 %v2274, 4294901760
      %v4000 = vsub.f32 %v2274, %v3999
      %v4001 = vand.u32 %v4000, 4294901760
      %v4002 = vsub.f32 %v4000, %v4001
      %v4003 = vand.u32 %v4002, 4294901760
      %4004 = vmatpush1.msra.mxu0 %v4003
      %v4005 = vand.u32 %v2282, 4294901760
      %v4006 = vsub.f32 %v2282, %v4005
      %v4007 = vand.u32 %v4006, 4294901760
      %v4008 = vsub.f32 %v4006, %v4007
      %v4009 = vand.u32 %v4008, 4294901760
      %4010 = vmatprep.subr.mxu0 %v4009
      %v4011 = vand.u32 %v2280, 4294901760
      %v4012 = vsub.f32 %v2280, %v4011
      %v4013 = vand.u32 %v4012, 4294901760
      %v4014 = vsub.f32 %v4012, %v4013
      %v4015 = vand.u32 %v4014, 4294901760
      %4016 = vmatpush1.msra.mxu0 %v4015
      %v4017 = vand.u32 %v2288, 4294901760
      %v4018 = vsub.f32 %v2288, %v4017
      %v4019 = vand.u32 %v4018, 4294901760
      %v4020 = vsub.f32 %v4018, %v4019
      %v4021 = vand.u32 %v4020, 4294901760
      %4022 = vmatprep.subr.mxu0 %v4021
      %v4023 = vand.u32 %v2286, 4294901760
      %v4024 = vsub.f32 %v2286, %v4023
      %v4025 = vand.u32 %v4024, 4294901760
      %v4026 = vsub.f32 %v4024, %v4025
      %v4027 = vand.u32 %v4026, 4294901760
      %4028 = vmatpush1.msra.mxu0 %v4027
      %v4029 = vand.u32 %v2294, 4294901760
      %v4030 = vsub.f32 %v2294, %v4029
      %v4031 = vand.u32 %v4030, 4294901760
      %v4032 = vsub.f32 %v4030, %v4031
      %v4033 = vand.u32 %v4032, 4294901760
      %4034 = vmatprep.subr.mxu0 %v4033
      %v4035 = vand.u32 %v2292, 4294901760
      %v4036 = vsub.f32 %v2292, %v4035
      %v4037 = vand.u32 %v4036, 4294901760
      %v4038 = vsub.f32 %v4036, %v4037
      %v4039 = vand.u32 %v4038, 4294901760
      %4040 = vmatpush1.msra.mxu0 %v4039
      %v4041 = vand.u32 %v2427, 4294901760
      %4042 = vmatprep.mubr.f32.mxu0 %v4041
      %v4043 = vand.u32 %v2426, 4294901760
      %4044 = vmatmul.mubr.f32.gmra.mrb[0].mxu0 %v4043
      %v4045 = vpop.f32.mrb[0].mxu0
      %v4046 = vadd.f32 %v3653, %v4045
      %v4047 = vpop.f32.mrb[0].mxu0
      %v4048 = vadd.f32 %v3655, %v4047
      %4049 = vdwg.mxu0
      %v4050 = vand.u32 %v2108, 4294901760
      %v4051 = vsub.f32 %v2108, %v4050
      %4052 = vmatprep.subr.mxu0 %v4051
      %v4053 = vand.u32 %v2106, 4294901760
      %v4054 = vsub.f32 %v2106, %v4053
      %4055 = vmatpush1.msra.mxu0 %v4054
      %v4056 = vand.u32 %v2114, 4294901760
      %v4057 = vsub.f32 %v2114, %v4056
      %4058 = vmatprep.subr.mxu0 %v4057
      %v4059 = vand.u32 %v2112, 4294901760
      %v4060 = vsub.f32 %v2112, %v4059
      %4061 = vmatpush1.msra.mxu0 %v4060
      %v4062 = vand.u32 %v2120, 4294901760
      %v4063 = vsub.f32 %v2120, %v4062
      %4064 = vmatprep.subr.mxu0 %v4063
      %v4065 = vand.u32 %v2118, 4294901760
      %v4066 = vsub.f32 %v2118, %v4065
      %4067 = vmatpush1.msra.mxu0 %v4066
      %v4068 = vand.u32 %v2126, 4294901760
      %v4069 = vsub.f32 %v2126, %v4068
      %4070 = vmatprep.subr.mxu0 %v4069
      %v4071 = vand.u32 %v2124, 4294901760
      %v4072 = vsub.f32 %v2124, %v4071
      %4073 = vmatpush1.msra.mxu0 %v4072
      %v4074 = vand.u32 %v2132, 4294901760
      %v4075 = vsub.f32 %v2132, %v4074
      %4076 = vmatprep.subr.mxu0 %v4075
      %v4077 = vand.u32 %v2130, 4294901760
      %v4078 = vsub.f32 %v2130, %v4077
      %4079 = vmatpush1.msra.mxu0 %v4078
      %v4080 = vand.u32 %v2138, 4294901760
      %v4081 = vsub.f32 %v2138, %v4080
      %4082 = vmatprep.subr.mxu0 %v4081
      %v4083 = vand.u32 %v2136, 4294901760
      %v4084 = vsub.f32 %v2136, %v4083
      %4085 = vmatpush1.msra.mxu0 %v4084
      %v4086 = vand.u32 %v2144, 4294901760
      %v4087 = vsub.f32 %v2144, %v4086
      %4088 = vmatprep.subr.mxu0 %v4087
      %v4089 = vand.u32 %v2142, 4294901760
      %v4090 = vsub.f32 %v2142, %v4089
      %4091 = vmatpush1.msra.mxu0 %v4090
      %v4092 = vand.u32 %v2150, 4294901760
      %v4093 = vsub.f32 %v2150, %v4092
      %4094 = vmatprep.subr.mxu0 %v4093
      %v4095 = vand.u32 %v2148, 4294901760
      %v4096 = vsub.f32 %v2148, %v4095
      %4097 = vmatpush1.msra.mxu0 %v4096
      %v4098 = vand.u32 %v2156, 4294901760
      %v4099 = vsub.f32 %v2156, %v4098
      %4100 = vmatprep.subr.mxu0 %v4099
      %v4101 = vand.u32 %v2154, 4294901760
      %v4102 = vsub.f32 %v2154, %v4101
      %4103 = vmatpush1.msra.mxu0 %v4102
      %v4104 = vand.u32 %v2162, 4294901760
      %v4105 = vsub.f32 %v2162, %v4104
      %4106 = vmatprep.subr.mxu0 %v4105
      %v4107 = vand.u32 %v2160, 4294901760
      %v4108 = vsub.f32 %v2160, %v4107
      %4109 = vmatpush1.msra.mxu0 %v4108
      %v4110 = vand.u32 %v2168, 4294901760
      %v4111 = vsub.f32 %v2168, %v4110
      %4112 = vmatprep.subr.mxu0 %v4111
      %v4113 = vand.u32 %v2166, 4294901760
      %v4114 = vsub.f32 %v2166, %v4113
      %4115 = vmatpush1.msra.mxu0 %v4114
      %v4116 = vand.u32 %v2174, 4294901760
      %v4117 = vsub.f32 %v2174, %v4116
      %4118 = vmatprep.subr.mxu0 %v4117
      %v4119 = vand.u32 %v2172, 4294901760
      %v4120 = vsub.f32 %v2172, %v4119
      %4121 = vmatpush1.msra.mxu0 %v4120
      %v4122 = vand.u32 %v2180, 4294901760
      %v4123 = vsub.f32 %v2180, %v4122
      %4124 = vmatprep.subr.mxu0 %v4123
      %v4125 = vand.u32 %v2178, 4294901760
      %v4126 = vsub.f32 %v2178, %v4125
      %4127 = vmatpush1.msra.mxu0 %v4126
      %v4128 = vand.u32 %v2186, 4294901760
      %v4129 = vsub.f32 %v2186, %v4128
      %4130 = vmatprep.subr.mxu0 %v4129
      %v4131 = vand.u32 %v2184, 4294901760
      %v4132 = vsub.f32 %v2184, %v4131
      %4133 = vmatpush1.msra.mxu0 %v4132
      %v4134 = vand.u32 %v2192, 4294901760
      %v4135 = vsub.f32 %v2192, %v4134
      %4136 = vmatprep.subr.mxu0 %v4135
      %v4137 = vand.u32 %v2190, 4294901760
      %v4138 = vsub.f32 %v2190, %v4137
      %4139 = vmatpush1.msra.mxu0 %v4138
      %v4140 = vand.u32 %v2198, 4294901760
      %v4141 = vsub.f32 %v2198, %v4140
      %4142 = vmatprep.subr.mxu0 %v4141
      %v4143 = vand.u32 %v2196, 4294901760
      %v4144 = vsub.f32 %v2196, %v4143
      %4145 = vmatpush1.msra.mxu0 %v4144
      %v4146 = vand.u32 %v2204, 4294901760
      %v4147 = vsub.f32 %v2204, %v4146
      %4148 = vmatprep.subr.mxu0 %v4147
      %v4149 = vand.u32 %v2202, 4294901760
      %v4150 = vsub.f32 %v2202, %v4149
      %4151 = vmatpush1.msra.mxu0 %v4150
      %v4152 = vand.u32 %v2210, 4294901760
      %v4153 = vsub.f32 %v2210, %v4152
      %4154 = vmatprep.subr.mxu0 %v4153
      %v4155 = vand.u32 %v2208, 4294901760
      %v4156 = vsub.f32 %v2208, %v4155
      %4157 = vmatpush1.msra.mxu0 %v4156
      %v4158 = vand.u32 %v2216, 4294901760
      %v4159 = vsub.f32 %v2216, %v4158
      %4160 = vmatprep.subr.mxu0 %v4159
      %v4161 = vand.u32 %v2214, 4294901760
      %v4162 = vsub.f32 %v2214, %v4161
      %4163 = vmatpush1.msra.mxu0 %v4162
      %v4164 = vand.u32 %v2222, 4294901760
      %v4165 = vsub.f32 %v2222, %v4164
      %4166 = vmatprep.subr.mxu0 %v4165
      %v4167 = vand.u32 %v2220, 4294901760
      %v4168 = vsub.f32 %v2220, %v4167
      %4169 = vmatpush1.msra.mxu0 %v4168
      %v4170 = vand.u32 %v2228, 4294901760
      %v4171 = vsub.f32 %v2228, %v4170
      %4172 = vmatprep.subr.mxu0 %v4171
      %v4173 = vand.u32 %v2226, 4294901760
      %v4174 = vsub.f32 %v2226, %v4173
      %4175 = vmatpush1.msra.mxu0 %v4174
      %v4176 = vand.u32 %v2234, 4294901760
      %v4177 = vsub.f32 %v2234, %v4176
      %4178 = vmatprep.subr.mxu0 %v4177
      %v4179 = vand.u32 %v2232, 4294901760
      %v4180 = vsub.f32 %v2232, %v4179
      %4181 = vmatpush1.msra.mxu0 %v4180
      %v4182 = vand.u32 %v2240, 4294901760
      %v4183 = vsub.f32 %v2240, %v4182
      %4184 = vmatprep.subr.mxu0 %v4183
      %v4185 = vand.u32 %v2238, 4294901760
      %v4186 = vsub.f32 %v2238, %v4185
      %4187 = vmatpush1.msra.mxu0 %v4186
      %v4188 = vand.u32 %v2246, 4294901760
      %v4189 = vsub.f32 %v2246, %v4188
      %4190 = vmatprep.subr.mxu0 %v4189
      %v4191 = vand.u32 %v2244, 4294901760
      %v4192 = vsub.f32 %v2244, %v4191
      %4193 = vmatpush1.msra.mxu0 %v4192
      %v4194 = vand.u32 %v2252, 4294901760
      %v4195 = vsub.f32 %v2252, %v4194
      %4196 = vmatprep.subr.mxu0 %v4195
      %v4197 = vand.u32 %v2250, 4294901760
      %v4198 = vsub.f32 %v2250, %v4197
      %4199 = vmatpush1.msra.mxu0 %v4198
      %v4200 = vand.u32 %v2258, 4294901760
      %v4201 = vsub.f32 %v2258, %v4200
      %4202 = vmatprep.subr.mxu0 %v4201
      %v4203 = vand.u32 %v2256, 4294901760
      %v4204 = vsub.f32 %v2256, %v4203
      %4205 = vmatpush1.msra.mxu0 %v4204
      %v4206 = vand.u32 %v2264, 4294901760
      %v4207 = vsub.f32 %v2264, %v4206
      %4208 = vmatprep.subr.mxu0 %v4207
      %v4209 = vand.u32 %v2262, 4294901760
      %v4210 = vsub.f32 %v2262, %v4209
      %4211 = vmatpush1.msra.mxu0 %v4210
      %v4212 = vand.u32 %v2270, 4294901760
      %v4213 = vsub.f32 %v2270, %v4212
      %4214 = vmatprep.subr.mxu0 %v4213
      %v4215 = vand.u32 %v2268, 4294901760
      %v4216 = vsub.f32 %v2268, %v4215
      %4217 = vmatpush1.msra.mxu0 %v4216
      %v4218 = vand.u32 %v2276, 4294901760
      %v4219 = vsub.f32 %v2276, %v4218
      %4220 = vmatprep.subr.mxu0 %v4219
      %v4221 = vand.u32 %v2274, 4294901760
      %v4222 = vsub.f32 %v2274, %v4221
      %4223 = vmatpush1.msra.mxu0 %v4222
      %v4224 = vand.u32 %v2282, 4294901760
      %v4225 = vsub.f32 %v2282, %v4224
      %4226 = vmatprep.subr.mxu0 %v4225
      %v4227 = vand.u32 %v2280, 4294901760
      %v4228 = vsub.f32 %v2280, %v4227
      %4229 = vmatpush1.msra.mxu0 %v4228
      %v4230 = vand.u32 %v2288, 4294901760
      %v4231 = vsub.f32 %v2288, %v4230
      %4232 = vmatprep.subr.mxu0 %v4231
      %v4233 = vand.u32 %v2286, 4294901760
      %v4234 = vsub.f32 %v2286, %v4233
      %4235 = vmatpush1.msra.mxu0 %v4234
      %v4236 = vand.u32 %v2294, 4294901760
      %v4237 = vsub.f32 %v2294, %v4236
      %4238 = vmatprep.subr.mxu0 %v4237
      %v4239 = vand.u32 %v2292, 4294901760
      %v4240 = vsub.f32 %v2292, %v4239
      %4241 = vmatpush1.msra.mxu0 %v4240
      %v4242 = vand.u32 %v2427, 4294901760
      %v4243 = vsub.f32 %v2427, %v4242
      %4244 = vmatprep.mubr.f32.mxu0 %v4243
      %v4245 = vand.u32 %v2426, 4294901760
      %v4246 = vsub.f32 %v2426, %v4245
      %4247 = vmatmul.mubr.f32.gmra.mrb[0].mxu0 %v4246
      %v4248 = vpop.f32.mrb[0].mxu0
      %v4249 = vadd.f32 %v4046, %v4248
      %v4250 = vpop.f32.mrb[0].mxu0
      %v4251 = vadd.f32 %v4048, %v4250
      %4252 = vdwg.mxu0
      %v4253 = vand.u32 %v2108, 4294901760
      %4254 = vmatprep.subr.mxu0 %v4253
      %v4255 = vand.u32 %v2106, 4294901760
      %4256 = vmatpush1.msra.mxu0 %v4255
      %v4257 = vand.u32 %v2114, 4294901760
      %4258 = vmatprep.subr.mxu0 %v4257
      %v4259 = vand.u32 %v2112, 4294901760
      %4260 = vmatpush1.msra.mxu0 %v4259
      %v4261 = vand.u32 %v2120, 4294901760
      %4262 = vmatprep.subr.mxu0 %v4261
      %v4263 = vand.u32 %v2118, 4294901760
      %4264 = vmatpush1.msra.mxu0 %v4263
      %v4265 = vand.u32 %v2126, 4294901760
      %4266 = vmatprep.subr.mxu0 %v4265
      %v4267 = vand.u32 %v2124, 4294901760
      %4268 = vmatpush1.msra.mxu0 %v4267
      %v4269 = vand.u32 %v2132, 4294901760
      %4270 = vmatprep.subr.mxu0 %v4269
      %v4271 = vand.u32 %v2130, 4294901760
      %4272 = vmatpush1.msra.mxu0 %v4271
      %v4273 = vand.u32 %v2138, 4294901760
      %4274 = vmatprep.subr.mxu0 %v4273
      %v4275 = vand.u32 %v2136, 4294901760
      %4276 = vmatpush1.msra.mxu0 %v4275
      %v4277 = vand.u32 %v2144, 4294901760
      %4278 = vmatprep.subr.mxu0 %v4277
      %v4279 = vand.u32 %v2142, 4294901760
      %4280 = vmatpush1.msra.mxu0 %v4279
      %v4281 = vand.u32 %v2150, 4294901760
      %4282 = vmatprep.subr.mxu0 %v4281
      %v4283 = vand.u32 %v2148, 4294901760
      %4284 = vmatpush1.msra.mxu0 %v4283
      %v4285 = vand.u32 %v2156, 4294901760
      %4286 = vmatprep.subr.mxu0 %v4285
      %v4287 = vand.u32 %v2154, 4294901760
      %4288 = vmatpush1.msra.mxu0 %v4287
      %v4289 = vand.u32 %v2162, 4294901760
      %4290 = vmatprep.subr.mxu0 %v4289
      %v4291 = vand.u32 %v2160, 4294901760
      %4292 = vmatpush1.msra.mxu0 %v4291
      %v4293 = vand.u32 %v2168, 4294901760
      %4294 = vmatprep.subr.mxu0 %v4293
      %v4295 = vand.u32 %v2166, 4294901760
      %4296 = vmatpush1.msra.mxu0 %v4295
      %v4297 = vand.u32 %v2174, 4294901760
      %4298 = vmatprep.subr.mxu0 %v4297
      %v4299 = vand.u32 %v2172, 4294901760
      %4300 = vmatpush1.msra.mxu0 %v4299
      %v4301 = vand.u32 %v2180, 4294901760
      %4302 = vmatprep.subr.mxu0 %v4301
      %v4303 = vand.u32 %v2178, 4294901760
      %4304 = vmatpush1.msra.mxu0 %v4303
      %v4305 = vand.u32 %v2186, 4294901760
      %4306 = vmatprep.subr.mxu0 %v4305
      %v4307 = vand.u32 %v2184, 4294901760
      %4308 = vmatpush1.msra.mxu0 %v4307
      %v4309 = vand.u32 %v2192, 4294901760
      %4310 = vmatprep.subr.mxu0 %v4309
      %v4311 = vand.u32 %v2190, 4294901760
      %4312 = vmatpush1.msra.mxu0 %v4311
      %v4313 = vand.u32 %v2198, 4294901760
      %4314 = vmatprep.subr.mxu0 %v4313
      %v4315 = vand.u32 %v2196, 4294901760
      %4316 = vmatpush1.msra.mxu0 %v4315
      %v4317 = vand.u32 %v2204, 4294901760
      %4318 = vmatprep.subr.mxu0 %v4317
      %v4319 = vand.u32 %v2202, 4294901760
      %4320 = vmatpush1.msra.mxu0 %v4319
      %v4321 = vand.u32 %v2210, 4294901760
      %4322 = vmatprep.subr.mxu0 %v4321
      %v4323 = vand.u32 %v2208, 4294901760
      %4324 = vmatpush1.msra.mxu0 %v4323
      %v4325 = vand.u32 %v2216, 4294901760
      %4326 = vmatprep.subr.mxu0 %v4325
      %v4327 = vand.u32 %v2214, 4294901760
      %4328 = vmatpush1.msra.mxu0 %v4327
      %v4329 = vand.u32 %v2222, 4294901760
      %4330 = vmatprep.subr.mxu0 %v4329
      %v4331 = vand.u32 %v2220, 4294901760
      %4332 = vmatpush1.msra.mxu0 %v4331
      %v4333 = vand.u32 %v2228, 4294901760
      %4334 = vmatprep.subr.mxu0 %v4333
      %v4335 = vand.u32 %v2226, 4294901760
      %4336 = vmatpush1.msra.mxu0 %v4335
      %v4337 = vand.u32 %v2234, 4294901760
      %4338 = vmatprep.subr.mxu0 %v4337
      %v4339 = vand.u32 %v2232, 4294901760
      %4340 = vmatpush1.msra.mxu0 %v4339
      %v4341 = vand.u32 %v2240, 4294901760
      %4342 = vmatprep.subr.mxu0 %v4341
      %v4343 = vand.u32 %v2238, 4294901760
      %4344 = vmatpush1.msra.mxu0 %v4343
      %v4345 = vand.u32 %v2246, 4294901760
      %4346 = vmatprep.subr.mxu0 %v4345
      %v4347 = vand.u32 %v2244, 4294901760
      %4348 = vmatpush1.msra.mxu0 %v4347
      %v4349 = vand.u32 %v2252, 4294901760
      %4350 = vmatprep.subr.mxu0 %v4349
      %v4351 = vand.u32 %v2250, 4294901760
      %4352 = vmatpush1.msra.mxu0 %v4351
      %v4353 = vand.u32 %v2258, 4294901760
      %4354 = vmatprep.subr.mxu0 %v4353
      %v4355 = vand.u32 %v2256, 4294901760
      %4356 = vmatpush1.msra.mxu0 %v4355
      %v4357 = vand.u32 %v2264, 4294901760
      %4358 = vmatprep.subr.mxu0 %v4357
      %v4359 = vand.u32 %v2262, 4294901760
      %4360 = vmatpush1.msra.mxu0 %v4359
      %v4361 = vand.u32 %v2270, 4294901760
      %4362 = vmatprep.subr.mxu0 %v4361
      %v4363 = vand.u32 %v2268, 4294901760
      %4364 = vmatpush1.msra.mxu0 %v4363
      %v4365 = vand.u32 %v2276, 4294901760
      %4366 = vmatprep.subr.mxu0 %v4365
      %v4367 = vand.u32 %v2274, 4294901760
      %4368 = vmatpush1.msra.mxu0 %v4367
      %v4369 = vand.u32 %v2282, 4294901760
      %4370 = vmatprep.subr.mxu0 %v4369
      %v4371 = vand.u32 %v2280, 4294901760
      %4372 = vmatpush1.msra.mxu0 %v4371
      %v4373 = vand.u32 %v2288, 4294901760
      %4374 = vmatprep.subr.mxu0 %v4373
      %v4375 = vand.u32 %v2286, 4294901760
      %4376 = vmatpush1.msra.mxu0 %v4375
      %v4377 = vand.u32 %v2294, 4294901760
      %4378 = vmatprep.subr.mxu0 %v4377
      %v4379 = vand.u32 %v2292, 4294901760
      %4380 = vmatpush1.msra.mxu0 %v4379
      %v4381 = vand.u32 %v2427, 4294901760
      %v4382 = vsub.f32 %v2427, %v4381
      %v4383 = vand.u32 %v4382, 4294901760
      %4384 = vmatprep.mubr.f32.mxu0 %v4383
      %v4385 = vand.u32 %v2426, 4294901760
      %v4386 = vsub.f32 %v2426, %v4385
      %v4387 = vand.u32 %v4386, 4294901760
      %4388 = vmatmul.mubr.f32.gmra.mrb[0].mxu0 %v4387
      %v4389 = vpop.f32.mrb[0].mxu0
      %v4390 = vadd.f32 %v4249, %v4389
      %v4391 = vpop.f32.mrb[0].mxu0
      %v4392 = vadd.f32 %v4251, %v4391
      %4393 = vdwg.mxu0
      %v4394 = vand.u32 %v2108, 4294901760
      %v4395 = vsub.f32 %v2108, %v4394
      %v4396 = vand.u32 %v4395, 4294901760
      %4397 = vmatprep.subr.mxu0 %v4396
      %v4398 = vand.u32 %v2106, 4294901760
      %v4399 = vsub.f32 %v2106, %v4398
      %v4400 = vand.u32 %v4399, 4294901760
      %4401 = vmatpush1.msra.mxu0 %v4400
      %v4402 = vand.u32 %v2114, 4294901760
      %v4403 = vsub.f32 %v2114, %v4402
      %v4404 = vand.u32 %v4403, 4294901760
      %4405 = vmatprep.subr.mxu0 %v4404
      %v4406 = vand.u32 %v2112, 4294901760
      %v4407 = vsub.f32 %v2112, %v4406
      %v4408 = vand.u32 %v4407, 4294901760
      %4409 = vmatpush1.msra.mxu0 %v4408
      %v4410 = vand.u32 %v2120, 4294901760
      %v4411 = vsub.f32 %v2120, %v4410
      %v4412 = vand.u32 %v4411, 4294901760
      %4413 = vmatprep.subr.mxu0 %v4412
      %v4414 = vand.u32 %v2118, 4294901760
      %v4415 = vsub.f32 %v2118, %v4414
      %v4416 = vand.u32 %v4415, 4294901760
      %4417 = vmatpush1.msra.mxu0 %v4416
      %v4418 = vand.u32 %v2126, 4294901760
      %v4419 = vsub.f32 %v2126, %v4418
      %v4420 = vand.u32 %v4419, 4294901760
      %4421 = vmatprep.subr.mxu0 %v4420
      %v4422 = vand.u32 %v2124, 4294901760
      %v4423 = vsub.f32 %v2124, %v4422
      %v4424 = vand.u32 %v4423, 4294901760
      %4425 = vmatpush1.msra.mxu0 %v4424
      %v4426 = vand.u32 %v2132, 4294901760
      %v4427 = vsub.f32 %v2132, %v4426
      %v4428 = vand.u32 %v4427, 4294901760
      %4429 = vmatprep.subr.mxu0 %v4428
      %v4430 = vand.u32 %v2130, 4294901760
      %v4431 = vsub.f32 %v2130, %v4430
      %v4432 = vand.u32 %v4431, 4294901760
      %4433 = vmatpush1.msra.mxu0 %v4432
      %v4434 = vand.u32 %v2138, 4294901760
      %v4435 = vsub.f32 %v2138, %v4434
      %v4436 = vand.u32 %v4435, 4294901760
      %4437 = vmatprep.subr.mxu0 %v4436
      %v4438 = vand.u32 %v2136, 4294901760
      %v4439 = vsub.f32 %v2136, %v4438
      %v4440 = vand.u32 %v4439, 4294901760
      %4441 = vmatpush1.msra.mxu0 %v4440
      %v4442 = vand.u32 %v2144, 4294901760
      %v4443 = vsub.f32 %v2144, %v4442
      %v4444 = vand.u32 %v4443, 4294901760
      %4445 = vmatprep.subr.mxu0 %v4444
      %v4446 = vand.u32 %v2142, 4294901760
      %v4447 = vsub.f32 %v2142, %v4446
      %v4448 = vand.u32 %v4447, 4294901760
      %4449 = vmatpush1.msra.mxu0 %v4448
      %v4450 = vand.u32 %v2150, 4294901760
      %v4451 = vsub.f32 %v2150, %v4450
      %v4452 = vand.u32 %v4451, 4294901760
      %4453 = vmatprep.subr.mxu0 %v4452
      %v4454 = vand.u32 %v2148, 4294901760
      %v4455 = vsub.f32 %v2148, %v4454
      %v4456 = vand.u32 %v4455, 4294901760
      %4457 = vmatpush1.msra.mxu0 %v4456
      %v4458 = vand.u32 %v2156, 4294901760
      %v4459 = vsub.f32 %v2156, %v4458
      %v4460 = vand.u32 %v4459, 4294901760
      %4461 = vmatprep.subr.mxu0 %v4460
      %v4462 = vand.u32 %v2154, 4294901760
      %v4463 = vsub.f32 %v2154, %v4462
      %v4464 = vand.u32 %v4463, 4294901760
      %4465 = vmatpush1.msra.mxu0 %v4464
      %v4466 = vand.u32 %v2162, 4294901760
      %v4467 = vsub.f32 %v2162, %v4466
      %v4468 = vand.u32 %v4467, 4294901760
      %4469 = vmatprep.subr.mxu0 %v4468
      %v4470 = vand.u32 %v2160, 4294901760
      %v4471 = vsub.f32 %v2160, %v4470
      %v4472 = vand.u32 %v4471, 4294901760
      %4473 = vmatpush1.msra.mxu0 %v4472
      %v4474 = vand.u32 %v2168, 4294901760
      %v4475 = vsub.f32 %v2168, %v4474
      %v4476 = vand.u32 %v4475, 4294901760
      %4477 = vmatprep.subr.mxu0 %v4476
      %v4478 = vand.u32 %v2166, 4294901760
      %v4479 = vsub.f32 %v2166, %v4478
      %v4480 = vand.u32 %v4479, 4294901760
      %4481 = vmatpush1.msra.mxu0 %v4480
      %v4482 = vand.u32 %v2174, 4294901760
      %v4483 = vsub.f32 %v2174, %v4482
      %v4484 = vand.u32 %v4483, 4294901760
      %4485 = vmatprep.subr.mxu0 %v4484
      %v4486 = vand.u32 %v2172, 4294901760
      %v4487 = vsub.f32 %v2172, %v4486
      %v4488 = vand.u32 %v4487, 4294901760
      %4489 = vmatpush1.msra.mxu0 %v4488
      %v4490 = vand.u32 %v2180, 4294901760
      %v4491 = vsub.f32 %v2180, %v4490
      %v4492 = vand.u32 %v4491, 4294901760
      %4493 = vmatprep.subr.mxu0 %v4492
      %v4494 = vand.u32 %v2178, 4294901760
      %v4495 = vsub.f32 %v2178, %v4494
      %v4496 = vand.u32 %v4495, 4294901760
      %4497 = vmatpush1.msra.mxu0 %v4496
      %v4498 = vand.u32 %v2186, 4294901760
      %v4499 = vsub.f32 %v2186, %v4498
      %v4500 = vand.u32 %v4499, 4294901760
      %4501 = vmatprep.subr.mxu0 %v4500
      %v4502 = vand.u32 %v2184, 4294901760
      %v4503 = vsub.f32 %v2184, %v4502
      %v4504 = vand.u32 %v4503, 4294901760
      %4505 = vmatpush1.msra.mxu0 %v4504
      %v4506 = vand.u32 %v2192, 4294901760
      %v4507 = vsub.f32 %v2192, %v4506
      %v4508 = vand.u32 %v4507, 4294901760
      %4509 = vmatprep.subr.mxu0 %v4508
      %v4510 = vand.u32 %v2190, 4294901760
      %v4511 = vsub.f32 %v2190, %v4510
      %v4512 = vand.u32 %v4511, 4294901760
      %4513 = vmatpush1.msra.mxu0 %v4512
      %v4514 = vand.u32 %v2198, 4294901760
      %v4515 = vsub.f32 %v2198, %v4514
      %v4516 = vand.u32 %v4515, 4294901760
      %4517 = vmatprep.subr.mxu0 %v4516
      %v4518 = vand.u32 %v2196, 4294901760
      %v4519 = vsub.f32 %v2196, %v4518
      %v4520 = vand.u32 %v4519, 4294901760
      %4521 = vmatpush1.msra.mxu0 %v4520
      %v4522 = vand.u32 %v2204, 4294901760
      %v4523 = vsub.f32 %v2204, %v4522
      %v4524 = vand.u32 %v4523, 4294901760
      %4525 = vmatprep.subr.mxu0 %v4524
      %v4526 = vand.u32 %v2202, 4294901760
      %v4527 = vsub.f32 %v2202, %v4526
      %v4528 = vand.u32 %v4527, 4294901760
      %4529 = vmatpush1.msra.mxu0 %v4528
      %v4530 = vand.u32 %v2210, 4294901760
      %v4531 = vsub.f32 %v2210, %v4530
      %v4532 = vand.u32 %v4531, 4294901760
      %4533 = vmatprep.subr.mxu0 %v4532
      %v4534 = vand.u32 %v2208, 4294901760
      %v4535 = vsub.f32 %v2208, %v4534
      %v4536 = vand.u32 %v4535, 4294901760
      %4537 = vmatpush1.msra.mxu0 %v4536
      %v4538 = vand.u32 %v2216, 4294901760
      %v4539 = vsub.f32 %v2216, %v4538
      %v4540 = vand.u32 %v4539, 4294901760
      %4541 = vmatprep.subr.mxu0 %v4540
      %v4542 = vand.u32 %v2214, 4294901760
      %v4543 = vsub.f32 %v2214, %v4542
      %v4544 = vand.u32 %v4543, 4294901760
      %4545 = vmatpush1.msra.mxu0 %v4544
      %v4546 = vand.u32 %v2222, 4294901760
      %v4547 = vsub.f32 %v2222, %v4546
      %v4548 = vand.u32 %v4547, 4294901760
      %4549 = vmatprep.subr.mxu0 %v4548
      %v4550 = vand.u32 %v2220, 4294901760
      %v4551 = vsub.f32 %v2220, %v4550
      %v4552 = vand.u32 %v4551, 4294901760
      %4553 = vmatpush1.msra.mxu0 %v4552
      %v4554 = vand.u32 %v2228, 4294901760
      %v4555 = vsub.f32 %v2228, %v4554
      %v4556 = vand.u32 %v4555, 4294901760
      %4557 = vmatprep.subr.mxu0 %v4556
      %v4558 = vand.u32 %v2226, 4294901760
      %v4559 = vsub.f32 %v2226, %v4558
      %v4560 = vand.u32 %v4559, 4294901760
      %4561 = vmatpush1.msra.mxu0 %v4560
      %v4562 = vand.u32 %v2234, 4294901760
      %v4563 = vsub.f32 %v2234, %v4562
      %v4564 = vand.u32 %v4563, 4294901760
      %4565 = vmatprep.subr.mxu0 %v4564
      %v4566 = vand.u32 %v2232, 4294901760
      %v4567 = vsub.f32 %v2232, %v4566
      %v4568 = vand.u32 %v4567, 4294901760
      %4569 = vmatpush1.msra.mxu0 %v4568
      %v4570 = vand.u32 %v2240, 4294901760
      %v4571 = vsub.f32 %v2240, %v4570
      %v4572 = vand.u32 %v4571, 4294901760
      %4573 = vmatprep.subr.mxu0 %v4572
      %v4574 = vand.u32 %v2238, 4294901760
      %v4575 = vsub.f32 %v2238, %v4574
      %v4576 = vand.u32 %v4575, 4294901760
      %4577 = vmatpush1.msra.mxu0 %v4576
      %v4578 = vand.u32 %v2246, 4294901760
      %v4579 = vsub.f32 %v2246, %v4578
      %v4580 = vand.u32 %v4579, 4294901760
      %4581 = vmatprep.subr.mxu0 %v4580
      %v4582 = vand.u32 %v2244, 4294901760
      %v4583 = vsub.f32 %v2244, %v4582
      %v4584 = vand.u32 %v4583, 4294901760
      %4585 = vmatpush1.msra.mxu0 %v4584
      %v4586 = vand.u32 %v2252, 4294901760
      %v4587 = vsub.f32 %v2252, %v4586
      %v4588 = vand.u32 %v4587, 4294901760
      %4589 = vmatprep.subr.mxu0 %v4588
      %v4590 = vand.u32 %v2250, 4294901760
      %v4591 = vsub.f32 %v2250, %v4590
      %v4592 = vand.u32 %v4591, 4294901760
      %4593 = vmatpush1.msra.mxu0 %v4592
      %v4594 = vand.u32 %v2258, 4294901760
      %v4595 = vsub.f32 %v2258, %v4594
      %v4596 = vand.u32 %v4595, 4294901760
      %4597 = vmatprep.subr.mxu0 %v4596
      %v4598 = vand.u32 %v2256, 4294901760
      %v4599 = vsub.f32 %v2256, %v4598
      %v4600 = vand.u32 %v4599, 4294901760
      %4601 = vmatpush1.msra.mxu0 %v4600
      %v4602 = vand.u32 %v2264, 4294901760
      %v4603 = vsub.f32 %v2264, %v4602
      %v4604 = vand.u32 %v4603, 4294901760
      %4605 = vmatprep.subr.mxu0 %v4604
      %v4606 = vand.u32 %v2262, 4294901760
      %v4607 = vsub.f32 %v2262, %v4606
      %v4608 = vand.u32 %v4607, 4294901760
      %4609 = vmatpush1.msra.mxu0 %v4608
      %v4610 = vand.u32 %v2270, 4294901760
      %v4611 = vsub.f32 %v2270, %v4610
      %v4612 = vand.u32 %v4611, 4294901760
      %4613 = vmatprep.subr.mxu0 %v4612
      %v4614 = vand.u32 %v2268, 4294901760
      %v4615 = vsub.f32 %v2268, %v4614
      %v4616 = vand.u32 %v4615, 4294901760
      %4617 = vmatpush1.msra.mxu0 %v4616
      %v4618 = vand.u32 %v2276, 4294901760
      %v4619 = vsub.f32 %v2276, %v4618
      %v4620 = vand.u32 %v4619, 4294901760
      %4621 = vmatprep.subr.mxu0 %v4620
      %v4622 = vand.u32 %v2274, 4294901760
      %v4623 = vsub.f32 %v2274, %v4622
      %v4624 = vand.u32 %v4623, 4294901760
      %4625 = vmatpush1.msra.mxu0 %v4624
      %v4626 = vand.u32 %v2282, 4294901760
      %v4627 = vsub.f32 %v2282, %v4626
      %v4628 = vand.u32 %v4627, 4294901760
      %4629 = vmatprep.subr.mxu0 %v4628
      %v4630 = vand.u32 %v2280, 4294901760
      %v4631 = vsub.f32 %v2280, %v4630
      %v4632 = vand.u32 %v4631, 4294901760
      %4633 = vmatpush1.msra.mxu0 %v4632
      %v4634 = vand.u32 %v2288, 4294901760
      %v4635 = vsub.f32 %v2288, %v4634
      %v4636 = vand.u32 %v4635, 4294901760
      %4637 = vmatprep.subr.mxu0 %v4636
      %v4638 = vand.u32 %v2286, 4294901760
      %v4639 = vsub.f32 %v2286, %v4638
      %v4640 = vand.u32 %v4639, 4294901760
      %4641 = vmatpush1.msra.mxu0 %v4640
      %v4642 = vand.u32 %v2294, 4294901760
      %v4643 = vsub.f32 %v2294, %v4642
      %v4644 = vand.u32 %v4643, 4294901760
      %4645 = vmatprep.subr.mxu0 %v4644
      %v4646 = vand.u32 %v2292, 4294901760
      %v4647 = vsub.f32 %v2292, %v4646
      %v4648 = vand.u32 %v4647, 4294901760
      %4649 = vmatpush1.msra.mxu0 %v4648
      %v4650 = vand.u32 %v2427, 4294901760
      %4651 = vmatprep.mubr.f32.mxu0 %v4650
      %v4652 = vand.u32 %v2426, 4294901760
      %4653 = vmatmul.mubr.f32.gmra.mrb[0].mxu0 %v4652
      %v4654 = vpop.f32.mrb[0].mxu0
      %v4655 = vadd.f32 %v4390, %v4654
      %v4656 = vpop.f32.mrb[0].mxu0
      %v4657 = vadd.f32 %v4392, %v4656
      %4658 = vdwg.mxu0
      %v4659 = vand.u32 %v2108, 4294901760
      %4660 = vmatprep.subr.mxu0 %v4659
      %v4661 = vand.u32 %v2106, 4294901760
      %4662 = vmatpush1.msra.mxu0 %v4661
      %v4663 = vand.u32 %v2114, 4294901760
      %4664 = vmatprep.subr.mxu0 %v4663
      %v4665 = vand.u32 %v2112, 4294901760
      %4666 = vmatpush1.msra.mxu0 %v4665
      %v4667 = vand.u32 %v2120, 4294901760
      %4668 = vmatprep.subr.mxu0 %v4667
      %v4669 = vand.u32 %v2118, 4294901760
      %4670 = vmatpush1.msra.mxu0 %v4669
      %v4671 = vand.u32 %v2126, 4294901760
      %4672 = vmatprep.subr.mxu0 %v4671
      %v4673 = vand.u32 %v2124, 4294901760
      %4674 = vmatpush1.msra.mxu0 %v4673
      %v4675 = vand.u32 %v2132, 4294901760
      %4676 = vmatprep.subr.mxu0 %v4675
      %v4677 = vand.u32 %v2130, 4294901760
      %4678 = vmatpush1.msra.mxu0 %v4677
      %v4679 = vand.u32 %v2138, 4294901760
      %4680 = vmatprep.subr.mxu0 %v4679
      %v4681 = vand.u32 %v2136, 4294901760
      %4682 = vmatpush1.msra.mxu0 %v4681
      %v4683 = vand.u32 %v2144, 4294901760
      %4684 = vmatprep.subr.mxu0 %v4683
      %v4685 = vand.u32 %v2142, 4294901760
      %4686 = vmatpush1.msra.mxu0 %v4685
      %v4687 = vand.u32 %v2150, 4294901760
      %4688 = vmatprep.subr.mxu0 %v4687
      %v4689 = vand.u32 %v2148, 4294901760
      %4690 = vmatpush1.msra.mxu0 %v4689
      %v4691 = vand.u32 %v2156, 4294901760
      %4692 = vmatprep.subr.mxu0 %v4691
      %v4693 = vand.u32 %v2154, 4294901760
      %4694 = vmatpush1.msra.mxu0 %v4693
      %v4695 = vand.u32 %v2162, 4294901760
      %4696 = vmatprep.subr.mxu0 %v4695
      %v4697 = vand.u32 %v2160, 4294901760
      %4698 = vmatpush1.msra.mxu0 %v4697
      %v4699 = vand.u32 %v2168, 4294901760
      %4700 = vmatprep.subr.mxu0 %v4699
      %v4701 = vand.u32 %v2166, 4294901760
      %4702 = vmatpush1.msra.mxu0 %v4701
      %v4703 = vand.u32 %v2174, 4294901760
      %4704 = vmatprep.subr.mxu0 %v4703
      %v4705 = vand.u32 %v2172, 4294901760
      %4706 = vmatpush1.msra.mxu0 %v4705
      %v4707 = vand.u32 %v2180, 4294901760
      %4708 = vmatprep.subr.mxu0 %v4707
      %v4709 = vand.u32 %v2178, 4294901760
      %4710 = vmatpush1.msra.mxu0 %v4709
      %v4711 = vand.u32 %v2186, 4294901760
      %4712 = vmatprep.subr.mxu0 %v4711
      %v4713 = vand.u32 %v2184, 4294901760
      %4714 = vmatpush1.msra.mxu0 %v4713
      %v4715 = vand.u32 %v2192, 4294901760
      %4716 = vmatprep.subr.mxu0 %v4715
      %v4717 = vand.u32 %v2190, 4294901760
      %4718 = vmatpush1.msra.mxu0 %v4717
      %v4719 = vand.u32 %v2198, 4294901760
      %4720 = vmatprep.subr.mxu0 %v4719
      %v4721 = vand.u32 %v2196, 4294901760
      %4722 = vmatpush1.msra.mxu0 %v4721
      %v4723 = vand.u32 %v2204, 4294901760
      %4724 = vmatprep.subr.mxu0 %v4723
      %v4725 = vand.u32 %v2202, 4294901760
      %4726 = vmatpush1.msra.mxu0 %v4725
      %v4727 = vand.u32 %v2210, 4294901760
      %4728 = vmatprep.subr.mxu0 %v4727
      %v4729 = vand.u32 %v2208, 4294901760
      %4730 = vmatpush1.msra.mxu0 %v4729
      %v4731 = vand.u32 %v2216, 4294901760
      %4732 = vmatprep.subr.mxu0 %v4731
      %v4733 = vand.u32 %v2214, 4294901760
      %4734 = vmatpush1.msra.mxu0 %v4733
      %v4735 = vand.u32 %v2222, 4294901760
      %4736 = vmatprep.subr.mxu0 %v4735
      %v4737 = vand.u32 %v2220, 4294901760
      %4738 = vmatpush1.msra.mxu0 %v4737
      %v4739 = vand.u32 %v2228, 4294901760
      %4740 = vmatprep.subr.mxu0 %v4739
      %v4741 = vand.u32 %v2226, 4294901760
      %4742 = vmatpush1.msra.mxu0 %v4741
      %v4743 = vand.u32 %v2234, 4294901760
      %4744 = vmatprep.subr.mxu0 %v4743
      %v4745 = vand.u32 %v2232, 4294901760
      %4746 = vmatpush1.msra.mxu0 %v4745
      %v4747 = vand.u32 %v2240, 4294901760
      %4748 = vmatprep.subr.mxu0 %v4747
      %v4749 = vand.u32 %v2238, 4294901760
      %4750 = vmatpush1.msra.mxu0 %v4749
      %v4751 = vand.u32 %v2246, 4294901760
      %4752 = vmatprep.subr.mxu0 %v4751
      %v4753 = vand.u32 %v2244, 4294901760
      %4754 = vmatpush1.msra.mxu0 %v4753
      %v4755 = vand.u32 %v2252, 4294901760
      %4756 = vmatprep.subr.mxu0 %v4755
      %v4757 = vand.u32 %v2250, 4294901760
      %4758 = vmatpush1.msra.mxu0 %v4757
      %v4759 = vand.u32 %v2258, 4294901760
      %4760 = vmatprep.subr.mxu0 %v4759
      %v4761 = vand.u32 %v2256, 4294901760
      %4762 = vmatpush1.msra.mxu0 %v4761
      %v4763 = vand.u32 %v2264, 4294901760
      %4764 = vmatprep.subr.mxu0 %v4763
      %v4765 = vand.u32 %v2262, 4294901760
      %4766 = vmatpush1.msra.mxu0 %v4765
      %v4767 = vand.u32 %v2270, 4294901760
      %4768 = vmatprep.subr.mxu0 %v4767
      %v4769 = vand.u32 %v2268, 4294901760
      %4770 = vmatpush1.msra.mxu0 %v4769
      %v4771 = vand.u32 %v2276, 4294901760
      %4772 = vmatprep.subr.mxu0 %v4771
      %v4773 = vand.u32 %v2274, 4294901760
      %4774 = vmatpush1.msra.mxu0 %v4773
      %v4775 = vand.u32 %v2282, 4294901760
      %4776 = vmatprep.subr.mxu0 %v4775
      %v4777 = vand.u32 %v2280, 4294901760
      %4778 = vmatpush1.msra.mxu0 %v4777
      %v4779 = vand.u32 %v2288, 4294901760
      %4780 = vmatprep.subr.mxu0 %v4779
      %v4781 = vand.u32 %v2286, 4294901760
      %4782 = vmatpush1.msra.mxu0 %v4781
      %v4783 = vand.u32 %v2294, 4294901760
      %4784 = vmatprep.subr.mxu0 %v4783
      %v4785 = vand.u32 %v2292, 4294901760
      %4786 = vmatpush1.msra.mxu0 %v4785
      %v4787 = vand.u32 %v2427, 4294901760
      %4788 = vmatprep.mubr.f32.mxu0 %v4787
      %v4789 = vand.u32 %v2426, 4294901760
      %4790 = vmatmul.mubr.f32.gmra.mrb[0].mxu0 %v4789
      %v4791 = vpop.f32.mrb[0].mxu0
      %v4792 = vadd.f32 %v4655, %v4791
      %v4793 = vpop.f32.mrb[0].mxu0
      %v4794 = vadd.f32 %v4657, %v4793
      %4795 = vdwg.mxu0
      %v4796 = vand.u32 %v2300, 4294901760
      %4797 = vmatprep.subr.mxu0 %v4796
      %v4798 = vand.u32 %v2298, 4294901760
      %4799 = vmatpush1.msra.mxu0 %v4798
      %v4800 = vand.u32 %v2306, 4294901760
      %4801 = vmatprep.subr.mxu0 %v4800
      %v4802 = vand.u32 %v2304, 4294901760
      %4803 = vmatpush1.msra.mxu0 %v4802
      %v4804 = vand.u32 %v2312, 4294901760
      %4805 = vmatprep.subr.mxu0 %v4804
      %v4806 = vand.u32 %v2310, 4294901760
      %4807 = vmatpush1.msra.mxu0 %v4806
      %v4808 = vand.u32 %v2318, 4294901760
      %4809 = vmatprep.subr.mxu0 %v4808
      %v4810 = vand.u32 %v2316, 4294901760
      %4811 = vmatpush1.msra.mxu0 %v4810
      %4812 = vmatprep.subr.mxu0 0.0
      %4813 = vmatpush1.msra.mxu0 0.0
      %4814 = vmatprep.subr.mxu0 0.0
      %4815 = vmatpush1.msra.mxu0 0.0
      %4816 = vmatprep.subr.mxu0 0.0
      %4817 = vmatpush1.msra.mxu0 0.0
      %4818 = vmatprep.subr.mxu0 0.0
      %4819 = vmatpush1.msra.mxu0 0.0
      %4820 = vmatprep.subr.mxu0 0.0
      %4821 = vmatpush1.msra.mxu0 0.0
      %4822 = vmatprep.subr.mxu0 0.0
      %4823 = vmatpush1.msra.mxu0 0.0
      %4824 = vmatprep.subr.mxu0 0.0
      %4825 = vmatpush1.msra.mxu0 0.0
      %4826 = vmatprep.subr.mxu0 0.0
      %4827 = vmatpush1.msra.mxu0 0.0
      %4828 = vmatprep.subr.mxu0 0.0
      %4829 = vmatpush1.msra.mxu0 0.0
      %4830 = vmatprep.subr.mxu0 0.0
      %4831 = vmatpush1.msra.mxu0 0.0
      %4832 = vmatprep.subr.mxu0 0.0
      %4833 = vmatpush1.msra.mxu0 0.0
      %4834 = vmatprep.subr.mxu0 0.0
      %4835 = vmatpush1.msra.mxu0 0.0
      %4836 = vmatprep.subr.mxu0 0.0
      %4837 = vmatpush1.msra.mxu0 0.0
      %4838 = vmatprep.subr.mxu0 0.0
      %4839 = vmatpush1.msra.mxu0 0.0
      %4840 = vmatprep.subr.mxu0 0.0
      %4841 = vmatpush1.msra.mxu0 0.0
      %4842 = vmatprep.subr.mxu0 0.0
      %4843 = vmatpush1.msra.mxu0 0.0
      %4844 = vmatprep.subr.mxu0 0.0
      %4845 = vmatpush1.msra.mxu0 0.0
      %4846 = vmatprep.subr.mxu0 0.0
      %4847 = vmatpush1.msra.mxu0 0.0
      %4848 = vmatprep.subr.mxu0 0.0
      %4849 = vmatpush1.msra.mxu0 0.0
      %4850 = vmatprep.subr.mxu0 0.0
      %4851 = vmatpush1.msra.mxu0 0.0
      %4852 = vmatprep.subr.mxu0 0.0
      %4853 = vmatpush1.msra.mxu0 0.0
      %4854 = vmatprep.subr.mxu0 0.0
      %4855 = vmatpush1.msra.mxu0 0.0
      %4856 = vmatprep.subr.mxu0 0.0
      %4857 = vmatpush1.msra.mxu0 0.0
      %4858 = vmatprep.subr.mxu0 0.0
      %4859 = vmatpush1.msra.mxu0 0.0
      %4860 = vmatprep.subr.mxu0 0.0
      %4861 = vmatpush1.msra.mxu0 0.0
      %4862 = vmatprep.subr.mxu0 0.0
      %4863 = vmatpush1.msra.mxu0 0.0
      %4864 = vmatprep.subr.mxu0 0.0
      %4865 = vmatpush1.msra.mxu0 0.0
      %4866 = vmatprep.subr.mxu0 0.0
      %4867 = vmatpush1.msra.mxu0 0.0
      %4868 = vmatprep.mubr.f32.mxu0 0.0
      %v4869 = vand.u32 %v3510, 4294901760
      %v4870 = vsub.f32 %v3510, %v4869
      %v4871 = vand.u32 %v4870, 4294901760
      %v4872 = vsub.f32 %v4870, %v4871
      %v4873 = vand.u32 %v4872, 4294901760
      %4874 = vmatmul.mubr.f32.gmra.mrb[0].mxu0 %v4873
      %v4875 = vpop.f32.mrb[0].mxu0
      %v4876 = vadd.f32 %v4792, %v4875
      %v4877 = vpop.f32.mrb[0].mxu0
      %v4878 = vadd.f32 %v4794, %v4877
      %4879 = vdwg.mxu0
      %v4880 = vand.u32 %v2300, 4294901760
      %v4881 = vsub.f32 %v2300, %v4880
      %v4882 = vand.u32 %v4881, 4294901760
      %v4883 = vsub.f32 %v4881, %v4882
      %v4884 = vand.u32 %v4883, 4294901760
      %4885 = vmatprep.subr.mxu0 %v4884
      %v4886 = vand.u32 %v2298, 4294901760
      %v4887 = vsub.f32 %v2298, %v4886
      %v4888 = vand.u32 %v4887, 4294901760
      %v4889 = vsub.f32 %v4887, %v4888
      %v4890 = vand.u32 %v4889, 4294901760
      %4891 = vmatpush1.msra.mxu0 %v4890
      %v4892 = vand.u32 %v2306, 4294901760
      %v4893 = vsub.f32 %v2306, %v4892
      %v4894 = vand.u32 %v4893, 4294901760
      %v4895 = vsub.f32 %v4893, %v4894
      %v4896 = vand.u32 %v4895, 4294901760
      %4897 = vmatprep.subr.mxu0 %v4896
      %v4898 = vand.u32 %v2304, 4294901760
      %v4899 = vsub.f32 %v2304, %v4898
      %v4900 = vand.u32 %v4899, 4294901760
      %v4901 = vsub.f32 %v4899, %v4900
      %v4902 = vand.u32 %v4901, 4294901760
      %4903 = vmatpush1.msra.mxu0 %v4902
      %v4904 = vand.u32 %v2312, 4294901760
      %v4905 = vsub.f32 %v2312, %v4904
      %v4906 = vand.u32 %v4905, 4294901760
      %v4907 = vsub.f32 %v4905, %v4906
      %v4908 = vand.u32 %v4907, 4294901760
      %4909 = vmatprep.subr.mxu0 %v4908
      %v4910 = vand.u32 %v2310, 4294901760
      %v4911 = vsub.f32 %v2310, %v4910
      %v4912 = vand.u32 %v4911, 4294901760
      %v4913 = vsub.f32 %v4911, %v4912
      %v4914 = vand.u32 %v4913, 4294901760
      %4915 = vmatpush1.msra.mxu0 %v4914
      %v4916 = vand.u32 %v2318, 4294901760
      %v4917 = vsub.f32 %v2318, %v4916
      %v4918 = vand.u32 %v4917, 4294901760
      %v4919 = vsub.f32 %v4917, %v4918
      %v4920 = vand.u32 %v4919, 4294901760
      %4921 = vmatprep.subr.mxu0 %v4920
      %v4922 = vand.u32 %v2316, 4294901760
      %v4923 = vsub.f32 %v2316, %v4922
      %v4924 = vand.u32 %v4923, 4294901760
      %v4925 = vsub.f32 %v4923, %v4924
      %v4926 = vand.u32 %v4925, 4294901760
      %4927 = vmatpush1.msra.mxu0 %v4926
      %4928 = vmatprep.subr.mxu0 0.0
      %4929 = vmatpush1.msra.mxu0 0.0
      %4930 = vmatprep.subr.mxu0 0.0
      %4931 = vmatpush1.msra.mxu0 0.0
      %4932 = vmatprep.subr.mxu0 0.0
      %4933 = vmatpush1.msra.mxu0 0.0
      %4934 = vmatprep.subr.mxu0 0.0
      %4935 = vmatpush1.msra.mxu0 0.0
      %4936 = vmatprep.subr.mxu0 0.0
      %4937 = vmatpush1.msra.mxu0 0.0
      %4938 = vmatprep.subr.mxu0 0.0
      %4939 = vmatpush1.msra.mxu0 0.0
      %4940 = vmatprep.subr.mxu0 0.0
      %4941 = vmatpush1.msra.mxu0 0.0
      %4942 = vmatprep.subr.mxu0 0.0
      %4943 = vmatpush1.msra.mxu0 0.0
      %4944 = vmatprep.subr.mxu0 0.0
      %4945 = vmatpush1.msra.mxu0 0.0
      %4946 = vmatprep.subr.mxu0 0.0
      %4947 = vmatpush1.msra.mxu0 0.0
      %4948 = vmatprep.subr.mxu0 0.0
      %4949 = vmatpush1.msra.mxu0 0.0
      %4950 = vmatprep.subr.mxu0 0.0
      %4951 = vmatpush1.msra.mxu0 0.0
      %4952 = vmatprep.subr.mxu0 0.0
      %4953 = vmatpush1.msra.mxu0 0.0
      %4954 = vmatprep.subr.mxu0 0.0
      %4955 = vmatpush1.msra.mxu0 0.0
      %4956 = vmatprep.subr.mxu0 0.0
      %4957 = vmatpush1.msra.mxu0 0.0
      %4958 = vmatprep.subr.mxu0 0.0
      %4959 = vmatpush1.msra.mxu0 0.0
      %4960 = vmatprep.subr.mxu0 0.0
      %4961 = vmatpush1.msra.mxu0 0.0
      %4962 = vmatprep.subr.mxu0 0.0
      %4963 = vmatpush1.msra.mxu0 0.0
      %4964 = vmatprep.subr.mxu0 0.0
      %4965 = vmatpush1.msra.mxu0 0.0
      %4966 = vmatprep.subr.mxu0 0.0
      %4967 = vmatpush1.msra.mxu0 0.0
      %4968 = vmatprep.subr.mxu0 0.0
      %4969 = vmatpush1.msra.mxu0 0.0
      %4970 = vmatprep.subr.mxu0 0.0
      %4971 = vmatpush1.msra.mxu0 0.0
      %4972 = vmatprep.subr.mxu0 0.0
      %4973 = vmatpush1.msra.mxu0 0.0
      %4974 = vmatprep.subr.mxu0 0.0
      %4975 = vmatpush1.msra.mxu0 0.0
      %4976 = vmatprep.subr.mxu0 0.0
      %4977 = vmatpush1.msra.mxu0 0.0
      %4978 = vmatprep.subr.mxu0 0.0
      %4979 = vmatpush1.msra.mxu0 0.0
      %4980 = vmatprep.subr.mxu0 0.0
      %4981 = vmatpush1.msra.mxu0 0.0
      %4982 = vmatprep.subr.mxu0 0.0
      %4983 = vmatpush1.msra.mxu0 0.0
      %4984 = vmatprep.mubr.f32.mxu0 0.0
      %v4985 = vand.u32 %v3510, 4294901760
      %4986 = vmatmul.mubr.f32.gmra.mrb[0].mxu0 %v4985
      %v4987 = vpop.f32.mrb[0].mxu0
      %v4988 = vadd.f32 %v4876, %v4987
      %v4989 = vpop.f32.mrb[0].mxu0
      %v4990 = vadd.f32 %v4878, %v4989
      %4991 = vdwg.mxu0
      %v4992 = vand.u32 %v2300, 4294901760
      %v4993 = vsub.f32 %v2300, %v4992
      %4994 = vmatprep.subr.mxu0 %v4993
      %v4995 = vand.u32 %v2298, 4294901760
      %v4996 = vsub.f32 %v2298, %v4995
      %4997 = vmatpush1.msra.mxu0 %v4996
      %v4998 = vand.u32 %v2306, 4294901760
      %v4999 = vsub.f32 %v2306, %v4998
      %5000 = vmatprep.subr.mxu0 %v4999
      %v5001 = vand.u32 %v2304, 4294901760
      %v5002 = vsub.f32 %v2304, %v5001
      %5003 = vmatpush1.msra.mxu0 %v5002
      %v5004 = vand.u32 %v2312, 4294901760
      %v5005 = vsub.f32 %v2312, %v5004
      %5006 = vmatprep.subr.mxu0 %v5005
      %v5007 = vand.u32 %v2310, 4294901760
      %v5008 = vsub.f32 %v2310, %v5007
      %5009 = vmatpush1.msra.mxu0 %v5008
      %v5010 = vand.u32 %v2318, 4294901760
      %v5011 = vsub.f32 %v2318, %v5010
      %5012 = vmatprep.subr.mxu0 %v5011
      %v5013 = vand.u32 %v2316, 4294901760
      %v5014 = vsub.f32 %v2316, %v5013
      %5015 = vmatpush1.msra.mxu0 %v5014
      %5016 = vmatprep.subr.mxu0 0.0
      %5017 = vmatpush1.msra.mxu0 0.0
      %5018 = vmatprep.subr.mxu0 0.0
      %5019 = vmatpush1.msra.mxu0 0.0
      %5020 = vmatprep.subr.mxu0 0.0
      %5021 = vmatpush1.msra.mxu0 0.0
      %5022 = vmatprep.subr.mxu0 0.0
      %5023 = vmatpush1.msra.mxu0 0.0
      %5024 = vmatprep.subr.mxu0 0.0
      %5025 = vmatpush1.msra.mxu0 0.0
      %5026 = vmatprep.subr.mxu0 0.0
      %5027 = vmatpush1.msra.mxu0 0.0
      %5028 = vmatprep.subr.mxu0 0.0
      %5029 = vmatpush1.msra.mxu0 0.0
      %5030 = vmatprep.subr.mxu0 0.0
      %5031 = vmatpush1.msra.mxu0 0.0
      %5032 = vmatprep.subr.mxu0 0.0
      %5033 = vmatpush1.msra.mxu0 0.0
      %5034 = vmatprep.subr.mxu0 0.0
      %5035 = vmatpush1.msra.mxu0 0.0
      %5036 = vmatprep.subr.mxu0 0.0
      %5037 = vmatpush1.msra.mxu0 0.0
      %5038 = vmatprep.subr.mxu0 0.0
      %5039 = vmatpush1.msra.mxu0 0.0
      %5040 = vmatprep.subr.mxu0 0.0
      %5041 = vmatpush1.msra.mxu0 0.0
      %5042 = vmatprep.subr.mxu0 0.0
      %5043 = vmatpush1.msra.mxu0 0.0
      %5044 = vmatprep.subr.mxu0 0.0
      %5045 = vmatpush1.msra.mxu0 0.0
      %5046 = vmatprep.subr.mxu0 0.0
      %5047 = vmatpush1.msra.mxu0 0.0
      %5048 = vmatprep.subr.mxu0 0.0
      %5049 = vmatpush1.msra.mxu0 0.0
      %5050 = vmatprep.subr.mxu0 0.0
      %5051 = vmatpush1.msra.mxu0 0.0
      %5052 = vmatprep.subr.mxu0 0.0
      %5053 = vmatpush1.msra.mxu0 0.0
      %5054 = vmatprep.subr.mxu0 0.0
      %5055 = vmatpush1.msra.mxu0 0.0
      %5056 = vmatprep.subr.mxu0 0.0
      %5057 = vmatpush1.msra.mxu0 0.0
      %5058 = vmatprep.subr.mxu0 0.0
      %5059 = vmatpush1.msra.mxu0 0.0
      %5060 = vmatprep.subr.mxu0 0.0
      %5061 = vmatpush1.msra.mxu0 0.0
      %5062 = vmatprep.subr.mxu0 0.0
      %5063 = vmatpush1.msra.mxu0 0.0
      %5064 = vmatprep.subr.mxu0 0.0
      %5065 = vmatpush1.msra.mxu0 0.0
      %5066 = vmatprep.subr.mxu0 0.0
      %5067 = vmatpush1.msra.mxu0 0.0
      %5068 = vmatprep.subr.mxu0 0.0
      %5069 = vmatpush1.msra.mxu0 0.0
      %5070 = vmatprep.subr.mxu0 0.0
      %5071 = vmatpush1.msra.mxu0 0.0
      %5072 = vmatprep.mubr.f32.mxu0 0.0
      %v5073 = vand.u32 %v3510, 4294901760
      %v5074 = vsub.f32 %v3510, %v5073
      %5075 = vmatmul.mubr.f32.gmra.mrb[0].mxu0 %v5074
      %v5076 = vpop.f32.mrb[0].mxu0
      %v5077 = vadd.f32 %v4988, %v5076
      %v5078 = vpop.f32.mrb[0].mxu0
      %v5079 = vadd.f32 %v4990, %v5078
      %5080 = vdwg.mxu0
      %v5081 = vand.u32 %v2300, 4294901760
      %5082 = vmatprep.subr.mxu0 %v5081
      %v5083 = vand.u32 %v2298, 4294901760
      %5084 = vmatpush1.msra.mxu0 %v5083
      %v5085 = vand.u32 %v2306, 4294901760
      %5086 = vmatprep.subr.mxu0 %v5085
      %v5087 = vand.u32 %v2304, 4294901760
      %5088 = vmatpush1.msra.mxu0 %v5087
      %v5089 = vand.u32 %v2312, 4294901760
      %5090 = vmatprep.subr.mxu0 %v5089
      %v5091 = vand.u32 %v2310, 4294901760
      %5092 = vmatpush1.msra.mxu0 %v5091
      %v5093 = vand.u32 %v2318, 4294901760
      %5094 = vmatprep.subr.mxu0 %v5093
      %v5095 = vand.u32 %v2316, 4294901760
      %5096 = vmatpush1.msra.mxu0 %v5095
      %5097 = vmatprep.subr.mxu0 0.0
      %5098 = vmatpush1.msra.mxu0 0.0
      %5099 = vmatprep.subr.mxu0 0.0
      %5100 = vmatpush1.msra.mxu0 0.0
      %5101 = vmatprep.subr.mxu0 0.0
      %5102 = vmatpush1.msra.mxu0 0.0
      %5103 = vmatprep.subr.mxu0 0.0
      %5104 = vmatpush1.msra.mxu0 0.0
      %5105 = vmatprep.subr.mxu0 0.0
      %5106 = vmatpush1.msra.mxu0 0.0
      %5107 = vmatprep.subr.mxu0 0.0
      %5108 = vmatpush1.msra.mxu0 0.0
      %5109 = vmatprep.subr.mxu0 0.0
      %5110 = vmatpush1.msra.mxu0 0.0
      %5111 = vmatprep.subr.mxu0 0.0
      %5112 = vmatpush1.msra.mxu0 0.0
      %5113 = vmatprep.subr.mxu0 0.0
      %5114 = vmatpush1.msra.mxu0 0.0
      %5115 = vmatprep.subr.mxu0 0.0
      %5116 = vmatpush1.msra.mxu0 0.0
      %5117 = vmatprep.subr.mxu0 0.0
      %5118 = vmatpush1.msra.mxu0 0.0
      %5119 = vmatprep.subr.mxu0 0.0
      %5120 = vmatpush1.msra.mxu0 0.0
      %5121 = vmatprep.subr.mxu0 0.0
      %5122 = vmatpush1.msra.mxu0 0.0
      %5123 = vmatprep.subr.mxu0 0.0
      %5124 = vmatpush1.msra.mxu0 0.0
      %5125 = vmatprep.subr.mxu0 0.0
      %5126 = vmatpush1.msra.mxu0 0.0
      %5127 = vmatprep.subr.mxu0 0.0
      %5128 = vmatpush1.msra.mxu0 0.0
      %5129 = vmatprep.subr.mxu0 0.0
      %5130 = vmatpush1.msra.mxu0 0.0
      %5131 = vmatprep.subr.mxu0 0.0
      %5132 = vmatpush1.msra.mxu0 0.0
      %5133 = vmatprep.subr.mxu0 0.0
      %5134 = vmatpush1.msra.mxu0 0.0
      %5135 = vmatprep.subr.mxu0 0.0
      %5136 = vmatpush1.msra.mxu0 0.0
      %5137 = vmatprep.subr.mxu0 0.0
      %5138 = vmatpush1.msra.mxu0 0.0
      %5139 = vmatprep.subr.mxu0 0.0
      %5140 = vmatpush1.msra.mxu0 0.0
      %5141 = vmatprep.subr.mxu0 0.0
      %5142 = vmatpush1.msra.mxu0 0.0
      %5143 = vmatprep.subr.mxu0 0.0
      %5144 = vmatpush1.msra.mxu0 0.0
      %5145 = vmatprep.subr.mxu0 0.0
      %5146 = vmatpush1.msra.mxu0 0.0
      %5147 = vmatprep.subr.mxu0 0.0
      %5148 = vmatpush1.msra.mxu0 0.0
      %5149 = vmatprep.subr.mxu0 0.0
      %5150 = vmatpush1.msra.mxu0 0.0
      %5151 = vmatprep.subr.mxu0 0.0
      %5152 = vmatpush1.msra.mxu0 0.0
      %5153 = vmatprep.mubr.f32.mxu0 0.0
      %v5154 = vand.u32 %v3510, 4294901760
      %v5155 = vsub.f32 %v3510, %v5154
      %v5156 = vand.u32 %v5155, 4294901760
      %5157 = vmatmul.mubr.f32.gmra.mrb[0].mxu0 %v5156
      %v5158 = vpop.f32.mrb[0].mxu0
      %v5159 = vadd.f32 %v5077, %v5158
      %v5160 = vpop.f32.mrb[0].mxu0
      %v5161 = vadd.f32 %v5079, %v5160
      %5162 = vdwg.mxu0
      %v5163 = vand.u32 %v2300, 4294901760
      %v5164 = vsub.f32 %v2300, %v5163
      %v5165 = vand.u32 %v5164, 4294901760
      %5166 = vmatprep.subr.mxu0 %v5165
      %v5167 = vand.u32 %v2298, 4294901760
      %v5168 = vsub.f32 %v2298, %v5167
      %v5169 = vand.u32 %v5168, 4294901760
      %5170 = vmatpush1.msra.mxu0 %v5169
      %v5171 = vand.u32 %v2306, 4294901760
      %v5172 = vsub.f32 %v2306, %v5171
      %v5173 = vand.u32 %v5172, 4294901760
      %5174 = vmatprep.subr.mxu0 %v5173
      %v5175 = vand.u32 %v2304, 4294901760
      %v5176 = vsub.f32 %v2304, %v5175
      %v5177 = vand.u32 %v5176, 4294901760
      %5178 = vmatpush1.msra.mxu0 %v5177
      %v5179 = vand.u32 %v2312, 4294901760
      %v5180 = vsub.f32 %v2312, %v5179
      %v5181 = vand.u32 %v5180, 4294901760
      %5182 = vmatprep.subr.mxu0 %v5181
      %v5183 = vand.u32 %v2310, 4294901760
      %v5184 = vsub.f32 %v2310, %v5183
      %v5185 = vand.u32 %v5184, 4294901760
      %5186 = vmatpush1.msra.mxu0 %v5185
      %v5187 = vand.u32 %v2318, 4294901760
      %v5188 = vsub.f32 %v2318, %v5187
      %v5189 = vand.u32 %v5188, 4294901760
      %5190 = vmatprep.subr.mxu0 %v5189
      %v5191 = vand.u32 %v2316, 4294901760
      %v5192 = vsub.f32 %v2316, %v5191
      %v5193 = vand.u32 %v5192, 4294901760
      %5194 = vmatpush1.msra.mxu0 %v5193
      %5195 = vmatprep.subr.mxu0 0.0
      %5196 = vmatpush1.msra.mxu0 0.0
      %5197 = vmatprep.subr.mxu0 0.0
      %5198 = vmatpush1.msra.mxu0 0.0
      %5199 = vmatprep.subr.mxu0 0.0
      %5200 = vmatpush1.msra.mxu0 0.0
      %5201 = vmatprep.subr.mxu0 0.0
      %5202 = vmatpush1.msra.mxu0 0.0
      %5203 = vmatprep.subr.mxu0 0.0
      %5204 = vmatpush1.msra.mxu0 0.0
      %5205 = vmatprep.subr.mxu0 0.0
      %5206 = vmatpush1.msra.mxu0 0.0
      %5207 = vmatprep.subr.mxu0 0.0
      %5208 = vmatpush1.msra.mxu0 0.0
      %5209 = vmatprep.subr.mxu0 0.0
      %5210 = vmatpush1.msra.mxu0 0.0
      %5211 = vmatprep.subr.mxu0 0.0
      %5212 = vmatpush1.msra.mxu0 0.0
      %5213 = vmatprep.subr.mxu0 0.0
      %5214 = vmatpush1.msra.mxu0 0.0
      %5215 = vmatprep.subr.mxu0 0.0
      %5216 = vmatpush1.msra.mxu0 0.0
      %5217 = vmatprep.subr.mxu0 0.0
      %5218 = vmatpush1.msra.mxu0 0.0
      %5219 = vmatprep.subr.mxu0 0.0
      %5220 = vmatpush1.msra.mxu0 0.0
      %5221 = vmatprep.subr.mxu0 0.0
      %5222 = vmatpush1.msra.mxu0 0.0
      %5223 = vmatprep.subr.mxu0 0.0
      %5224 = vmatpush1.msra.mxu0 0.0
      %5225 = vmatprep.subr.mxu0 0.0
      %5226 = vmatpush1.msra.mxu0 0.0
      %5227 = vmatprep.subr.mxu0 0.0
      %5228 = vmatpush1.msra.mxu0 0.0
      %5229 = vmatprep.subr.mxu0 0.0
      %5230 = vmatpush1.msra.mxu0 0.0
      %5231 = vmatprep.subr.mxu0 0.0
      %5232 = vmatpush1.msra.mxu0 0.0
      %5233 = vmatprep.subr.mxu0 0.0
      %5234 = vmatpush1.msra.mxu0 0.0
      %5235 = vmatprep.subr.mxu0 0.0
      %5236 = vmatpush1.msra.mxu0 0.0
      %5237 = vmatprep.subr.mxu0 0.0
      %5238 = vmatpush1.msra.mxu0 0.0
      %5239 = vmatprep.subr.mxu0 0.0
      %5240 = vmatpush1.msra.mxu0 0.0
      %5241 = vmatprep.subr.mxu0 0.0
      %5242 = vmatpush1.msra.mxu0 0.0
      %5243 = vmatprep.subr.mxu0 0.0
      %5244 = vmatpush1.msra.mxu0 0.0
      %5245 = vmatprep.subr.mxu0 0.0
      %5246 = vmatpush1.msra.mxu0 0.0
      %5247 = vmatprep.subr.mxu0 0.0
      %5248 = vmatpush1.msra.mxu0 0.0
      %5249 = vmatprep.subr.mxu0 0.0
      %5250 = vmatpush1.msra.mxu0 0.0
      %5251 = vmatprep.mubr.f32.mxu0 0.0
      %v5252 = vand.u32 %v3510, 4294901760
      %5253 = vmatmul.mubr.f32.gmra.mrb[0].mxu0 %v5252
      %v5254 = vpop.f32.mrb[0].mxu0
      %v5255 = vadd.f32 %v5159, %v5254
      %v5256 = vpop.f32.mrb[0].mxu0
      %v5257 = vadd.f32 %v5161, %v5256
      %5258 = vdwg.mxu0
      %v5259 = vand.u32 %v2300, 4294901760
      %5260 = vmatprep.subr.mxu0 %v5259
      %v5261 = vand.u32 %v2298, 4294901760
      %5262 = vmatpush1.msra.mxu0 %v5261
      %v5263 = vand.u32 %v2306, 4294901760
      %5264 = vmatprep.subr.mxu0 %v5263
      %v5265 = vand.u32 %v2304, 4294901760
      %5266 = vmatpush1.msra.mxu0 %v5265
      %v5267 = vand.u32 %v2312, 4294901760
      %5268 = vmatprep.subr.mxu0 %v5267
      %v5269 = vand.u32 %v2310, 4294901760
      %5270 = vmatpush1.msra.mxu0 %v5269
      %v5271 = vand.u32 %v2318, 4294901760
      %5272 = vmatprep.subr.mxu0 %v5271
      %v5273 = vand.u32 %v2316, 4294901760
      %5274 = vmatpush1.msra.mxu0 %v5273
      %5275 = vmatprep.subr.mxu0 0.0
      %5276 = vmatpush1.msra.mxu0 0.0
      %5277 = vmatprep.subr.mxu0 0.0
      %5278 = vmatpush1.msra.mxu0 0.0
      %5279 = vmatprep.subr.mxu0 0.0
      %5280 = vmatpush1.msra.mxu0 0.0
      %5281 = vmatprep.subr.mxu0 0.0
      %5282 = vmatpush1.msra.mxu0 0.0
      %5283 = vmatprep.subr.mxu0 0.0
      %5284 = vmatpush1.msra.mxu0 0.0
      %5285 = vmatprep.subr.mxu0 0.0
      %5286 = vmatpush1.msra.mxu0 0.0
      %5287 = vmatprep.subr.mxu0 0.0
      %5288 = vmatpush1.msra.mxu0 0.0
      %5289 = vmatprep.subr.mxu0 0.0
      %5290 = vmatpush1.msra.mxu0 0.0
      %5291 = vmatprep.subr.mxu0 0.0
      %5292 = vmatpush1.msra.mxu0 0.0
      %5293 = vmatprep.subr.mxu0 0.0
      %5294 = vmatpush1.msra.mxu0 0.0
      %5295 = vmatprep.subr.mxu0 0.0
      %5296 = vmatpush1.msra.mxu0 0.0
      %5297 = vmatprep.subr.mxu0 0.0
      %5298 = vmatpush1.msra.mxu0 0.0
      %5299 = vmatprep.subr.mxu0 0.0
      %5300 = vmatpush1.msra.mxu0 0.0
      %5301 = vmatprep.subr.mxu0 0.0
      %5302 = vmatpush1.msra.mxu0 0.0
      %5303 = vmatprep.subr.mxu0 0.0
      %5304 = vmatpush1.msra.mxu0 0.0
      %5305 = vmatprep.subr.mxu0 0.0
      %5306 = vmatpush1.msra.mxu0 0.0
      %5307 = vmatprep.subr.mxu0 0.0
      %5308 = vmatpush1.msra.mxu0 0.0
      %5309 = vmatprep.subr.mxu0 0.0
      %5310 = vmatpush1.msra.mxu0 0.0
      %5311 = vmatprep.subr.mxu0 0.0
      %5312 = vmatpush1.msra.mxu0 0.0
      %5313 = vmatprep.subr.mxu0 0.0
      %5314 = vmatpush1.msra.mxu0 0.0
      %5315 = vmatprep.subr.mxu0 0.0
      %5316 = vmatpush1.msra.mxu0 0.0
      %5317 = vmatprep.subr.mxu0 0.0
      %5318 = vmatpush1.msra.mxu0 0.0
      %5319 = vmatprep.subr.mxu0 0.0
      %5320 = vmatpush1.msra.mxu0 0.0
      %5321 = vmatprep.subr.mxu0 0.0
      %5322 = vmatpush1.msra.mxu0 0.0
      %5323 = vmatprep.subr.mxu0 0.0
      %5324 = vmatpush1.msra.mxu0 0.0
      %5325 = vmatprep.subr.mxu0 0.0
      %5326 = vmatpush1.msra.mxu0 0.0
      %5327 = vmatprep.subr.mxu0 0.0
      %5328 = vmatpush1.msra.mxu0 0.0
      %5329 = vmatprep.subr.mxu0 0.0
      %5330 = vmatpush1.msra.mxu0 0.0
      %5331 = vmatprep.mubr.f32.mxu0 0.0
      %v5332 = vand.u32 %v3510, 4294901760
      %5333 = vmatmul.mubr.f32.gmra.mrb[0].mxu0 %v5332
      %v5334 = vpop.f32.mrb[0].mxu0
      %v5335 = vadd.f32 %v5255, %v5334
      %v5336 = vpop.f32.mrb[0].mxu0
      %v5337 = vadd.f32 %v5257, %v5336
      %5338 = vdwg.mxu0
      %5339 = vmatprep.subr.mxu0 0.0
      %v5340 = vand.u32 %v2110, 4294901760
      %5341 = vmatpush1.msra.mxu0 %v5340
      %5342 = vmatprep.subr.mxu0 0.0
      %v5343 = vand.u32 %v2116, 4294901760
      %5344 = vmatpush1.msra.mxu0 %v5343
      %5345 = vmatprep.subr.mxu0 0.0
      %v5346 = vand.u32 %v2122, 4294901760
      %5347 = vmatpush1.msra.mxu0 %v5346
      %5348 = vmatprep.subr.mxu0 0.0
      %v5349 = vand.u32 %v2128, 4294901760
      %5350 = vmatpush1.msra.mxu0 %v5349
      %5351 = vmatprep.subr.mxu0 0.0
      %v5352 = vand.u32 %v2134, 4294901760
      %5353 = vmatpush1.msra.mxu0 %v5352
      %5354 = vmatprep.subr.mxu0 0.0
      %v5355 = vand.u32 %v2140, 4294901760
      %5356 = vmatpush1.msra.mxu0 %v5355
      %5357 = vmatprep.subr.mxu0 0.0
      %v5358 = vand.u32 %v2146, 4294901760
      %5359 = vmatpush1.msra.mxu0 %v5358
      %5360 = vmatprep.subr.mxu0 0.0
      %v5361 = vand.u32 %v2152, 4294901760
      %5362 = vmatpush1.msra.mxu0 %v5361
      %5363 = vmatprep.subr.mxu0 0.0
      %v5364 = vand.u32 %v2158, 4294901760
      %5365 = vmatpush1.msra.mxu0 %v5364
      %5366 = vmatprep.subr.mxu0 0.0
      %v5367 = vand.u32 %v2164, 4294901760
      %5368 = vmatpush1.msra.mxu0 %v5367
      %5369 = vmatprep.subr.mxu0 0.0
      %v5370 = vand.u32 %v2170, 4294901760
      %5371 = vmatpush1.msra.mxu0 %v5370
      %5372 = vmatprep.subr.mxu0 0.0
      %v5373 = vand.u32 %v2176, 4294901760
      %5374 = vmatpush1.msra.mxu0 %v5373
      %5375 = vmatprep.subr.mxu0 0.0
      %v5376 = vand.u32 %v2182, 4294901760
      %5377 = vmatpush1.msra.mxu0 %v5376
      %5378 = vmatprep.subr.mxu0 0.0
      %v5379 = vand.u32 %v2188, 4294901760
      %5380 = vmatpush1.msra.mxu0 %v5379
      %5381 = vmatprep.subr.mxu0 0.0
      %v5382 = vand.u32 %v2194, 4294901760
      %5383 = vmatpush1.msra.mxu0 %v5382
      %5384 = vmatprep.subr.mxu0 0.0
      %v5385 = vand.u32 %v2200, 4294901760
      %5386 = vmatpush1.msra.mxu0 %v5385
      %5387 = vmatprep.subr.mxu0 0.0
      %v5388 = vand.u32 %v2206, 4294901760
      %5389 = vmatpush1.msra.mxu0 %v5388
      %5390 = vmatprep.subr.mxu0 0.0
      %v5391 = vand.u32 %v2212, 4294901760
      %5392 = vmatpush1.msra.mxu0 %v5391
      %5393 = vmatprep.subr.mxu0 0.0
      %v5394 = vand.u32 %v2218, 4294901760
      %5395 = vmatpush1.msra.mxu0 %v5394
      %5396 = vmatprep.subr.mxu0 0.0
      %v5397 = vand.u32 %v2224, 4294901760
      %5398 = vmatpush1.msra.mxu0 %v5397
      %5399 = vmatprep.subr.mxu0 0.0
      %v5400 = vand.u32 %v2230, 4294901760
      %5401 = vmatpush1.msra.mxu0 %v5400
      %5402 = vmatprep.subr.mxu0 0.0
      %v5403 = vand.u32 %v2236, 4294901760
      %5404 = vmatpush1.msra.mxu0 %v5403
      %5405 = vmatprep.subr.mxu0 0.0
      %v5406 = vand.u32 %v2242, 4294901760
      %5407 = vmatpush1.msra.mxu0 %v5406
      %5408 = vmatprep.subr.mxu0 0.0
      %v5409 = vand.u32 %v2248, 4294901760
      %5410 = vmatpush1.msra.mxu0 %v5409
      %5411 = vmatprep.subr.mxu0 0.0
      %v5412 = vand.u32 %v2254, 4294901760
      %5413 = vmatpush1.msra.mxu0 %v5412
      %5414 = vmatprep.subr.mxu0 0.0
      %v5415 = vand.u32 %v2260, 4294901760
      %5416 = vmatpush1.msra.mxu0 %v5415
      %5417 = vmatprep.subr.mxu0 0.0
      %v5418 = vand.u32 %v2266, 4294901760
      %5419 = vmatpush1.msra.mxu0 %v5418
      %5420 = vmatprep.subr.mxu0 0.0
      %v5421 = vand.u32 %v2272, 4294901760
      %5422 = vmatpush1.msra.mxu0 %v5421
      %5423 = vmatprep.subr.mxu0 0.0
      %v5424 = vand.u32 %v2278, 4294901760
      %5425 = vmatpush1.msra.mxu0 %v5424
      %5426 = vmatprep.subr.mxu0 0.0
      %v5427 = vand.u32 %v2284, 4294901760
      %5428 = vmatpush1.msra.mxu0 %v5427
      %5429 = vmatprep.subr.mxu0 0.0
      %v5430 = vand.u32 %v2290, 4294901760
      %5431 = vmatpush1.msra.mxu0 %v5430
      %5432 = vmatprep.subr.mxu0 0.0
      %v5433 = vand.u32 %v2296, 4294901760
      %5434 = vmatpush1.msra.mxu0 %v5433
      %v5435 = vand.u32 %v2427, 4294901760
      %v5436 = vsub.f32 %v2427, %v5435
      %v5437 = vand.u32 %v5436, 4294901760
      %v5438 = vsub.f32 %v5436, %v5437
      %v5439 = vand.u32 %v5438, 4294901760
      %5440 = vmatprep.mubr.f32.mxu0 %v5439
      %v5441 = vand.u32 %v2426, 4294901760
      %v5442 = vsub.f32 %v2426, %v5441
      %v5443 = vand.u32 %v5442, 4294901760
      %v5444 = vsub.f32 %v5442, %v5443
      %v5445 = vand.u32 %v5444, 4294901760
      %5446 = vmatmul.mubr.f32.gmra.mrb[0].mxu0 %v5445
      %v5447 = vpop.f32.mrb[0].mxu0
      %v5448 = vadd.f32 %v3506, %v5447
      %v5449 = vpop.f32.mrb[0].mxu0
      %5450 = vdwg.mxu0
      %5451 = vmatprep.subr.mxu0 0.0
      %v5452 = vand.u32 %v2110, 4294901760
      %v5453 = vsub.f32 %v2110, %v5452
      %v5454 = vand.u32 %v5453, 4294901760
      %v5455 = vsub.f32 %v5453, %v5454
      %v5456 = vand.u32 %v5455, 4294901760
      %5457 = vmatpush1.msra.mxu0 %v5456
      %5458 = vmatprep.subr.mxu0 0.0
      %v5459 = vand.u32 %v2116, 4294901760
      %v5460 = vsub.f32 %v2116, %v5459
      %v5461 = vand.u32 %v5460, 4294901760
      %v5462 = vsub.f32 %v5460, %v5461
      %v5463 = vand.u32 %v5462, 4294901760
      %5464 = vmatpush1.msra.mxu0 %v5463
      %5465 = vmatprep.subr.mxu0 0.0
      %v5466 = vand.u32 %v2122, 4294901760
      %v5467 = vsub.f32 %v2122, %v5466
      %v5468 = vand.u32 %v5467, 4294901760
      %v5469 = vsub.f32 %v5467, %v5468
      %v5470 = vand.u32 %v5469, 4294901760
      %5471 = vmatpush1.msra.mxu0 %v5470
      %5472 = vmatprep.subr.mxu0 0.0
      %v5473 = vand.u32 %v2128, 4294901760
      %v5474 = vsub.f32 %v2128, %v5473
      %v5475 = vand.u32 %v5474, 4294901760
      %v5476 = vsub.f32 %v5474, %v5475
      %v5477 = vand.u32 %v5476, 4294901760
      %5478 = vmatpush1.msra.mxu0 %v5477
      %5479 = vmatprep.subr.mxu0 0.0
      %v5480 = vand.u32 %v2134, 4294901760
      %v5481 = vsub.f32 %v2134, %v5480
      %v5482 = vand.u32 %v5481, 4294901760
      %v5483 = vsub.f32 %v5481, %v5482
      %v5484 = vand.u32 %v5483, 4294901760
      %5485 = vmatpush1.msra.mxu0 %v5484
      %5486 = vmatprep.subr.mxu0 0.0
      %v5487 = vand.u32 %v2140, 4294901760
      %v5488 = vsub.f32 %v2140, %v5487
      %v5489 = vand.u32 %v5488, 4294901760
      %v5490 = vsub.f32 %v5488, %v5489
      %v5491 = vand.u32 %v5490, 4294901760
      %5492 = vmatpush1.msra.mxu0 %v5491
      %5493 = vmatprep.subr.mxu0 0.0
      %v5494 = vand.u32 %v2146, 4294901760
      %v5495 = vsub.f32 %v2146, %v5494
      %v5496 = vand.u32 %v5495, 4294901760
      %v5497 = vsub.f32 %v5495, %v5496
      %v5498 = vand.u32 %v5497, 4294901760
      %5499 = vmatpush1.msra.mxu0 %v5498
      %5500 = vmatprep.subr.mxu0 0.0
      %v5501 = vand.u32 %v2152, 4294901760
      %v5502 = vsub.f32 %v2152, %v5501
      %v5503 = vand.u32 %v5502, 4294901760
      %v5504 = vsub.f32 %v5502, %v5503
      %v5505 = vand.u32 %v5504, 4294901760
      %5506 = vmatpush1.msra.mxu0 %v5505
      %5507 = vmatprep.subr.mxu0 0.0
      %v5508 = vand.u32 %v2158, 4294901760
      %v5509 = vsub.f32 %v2158, %v5508
      %v5510 = vand.u32 %v5509, 4294901760
      %v5511 = vsub.f32 %v5509, %v5510
      %v5512 = vand.u32 %v5511, 4294901760
      %5513 = vmatpush1.msra.mxu0 %v5512
      %5514 = vmatprep.subr.mxu0 0.0
      %v5515 = vand.u32 %v2164, 4294901760
      %v5516 = vsub.f32 %v2164, %v5515
      %v5517 = vand.u32 %v5516, 4294901760
      %v5518 = vsub.f32 %v5516, %v5517
      %v5519 = vand.u32 %v5518, 4294901760
      %5520 = vmatpush1.msra.mxu0 %v5519
      %5521 = vmatprep.subr.mxu0 0.0
      %v5522 = vand.u32 %v2170, 4294901760
      %v5523 = vsub.f32 %v2170, %v5522
      %v5524 = vand.u32 %v5523, 4294901760
      %v5525 = vsub.f32 %v5523, %v5524
      %v5526 = vand.u32 %v5525, 4294901760
      %5527 = vmatpush1.msra.mxu0 %v5526
      %5528 = vmatprep.subr.mxu0 0.0
      %v5529 = vand.u32 %v2176, 4294901760
      %v5530 = vsub.f32 %v2176, %v5529
      %v5531 = vand.u32 %v5530, 4294901760
      %v5532 = vsub.f32 %v5530, %v5531
      %v5533 = vand.u32 %v5532, 4294901760
      %5534 = vmatpush1.msra.mxu0 %v5533
      %5535 = vmatprep.subr.mxu0 0.0
      %v5536 = vand.u32 %v2182, 4294901760
      %v5537 = vsub.f32 %v2182, %v5536
      %v5538 = vand.u32 %v5537, 4294901760
      %v5539 = vsub.f32 %v5537, %v5538
      %v5540 = vand.u32 %v5539, 4294901760
      %5541 = vmatpush1.msra.mxu0 %v5540
      %5542 = vmatprep.subr.mxu0 0.0
      %v5543 = vand.u32 %v2188, 4294901760
      %v5544 = vsub.f32 %v2188, %v5543
      %v5545 = vand.u32 %v5544, 4294901760
      %v5546 = vsub.f32 %v5544, %v5545
      %v5547 = vand.u32 %v5546, 4294901760
      %5548 = vmatpush1.msra.mxu0 %v5547
      %5549 = vmatprep.subr.mxu0 0.0
      %v5550 = vand.u32 %v2194, 4294901760
      %v5551 = vsub.f32 %v2194, %v5550
      %v5552 = vand.u32 %v5551, 4294901760
      %v5553 = vsub.f32 %v5551, %v5552
      %v5554 = vand.u32 %v5553, 4294901760
      %5555 = vmatpush1.msra.mxu0 %v5554
      %5556 = vmatprep.subr.mxu0 0.0
      %v5557 = vand.u32 %v2200, 4294901760
      %v5558 = vsub.f32 %v2200, %v5557
      %v5559 = vand.u32 %v5558, 4294901760
      %v5560 = vsub.f32 %v5558, %v5559
      %v5561 = vand.u32 %v5560, 4294901760
      %5562 = vmatpush1.msra.mxu0 %v5561
      %5563 = vmatprep.subr.mxu0 0.0
      %v5564 = vand.u32 %v2206, 4294901760
      %v5565 = vsub.f32 %v2206, %v5564
      %v5566 = vand.u32 %v5565, 4294901760
      %v5567 = vsub.f32 %v5565, %v5566
      %v5568 = vand.u32 %v5567, 4294901760
      %5569 = vmatpush1.msra.mxu0 %v5568
      %5570 = vmatprep.subr.mxu0 0.0
      %v5571 = vand.u32 %v2212, 4294901760
      %v5572 = vsub.f32 %v2212, %v5571
      %v5573 = vand.u32 %v5572, 4294901760
      %v5574 = vsub.f32 %v5572, %v5573
      %v5575 = vand.u32 %v5574, 4294901760
      %5576 = vmatpush1.msra.mxu0 %v5575
      %5577 = vmatprep.subr.mxu0 0.0
      %v5578 = vand.u32 %v2218, 4294901760
      %v5579 = vsub.f32 %v2218, %v5578
      %v5580 = vand.u32 %v5579, 4294901760
      %v5581 = vsub.f32 %v5579, %v5580
      %v5582 = vand.u32 %v5581, 4294901760
      %5583 = vmatpush1.msra.mxu0 %v5582
      %5584 = vmatprep.subr.mxu0 0.0
      %v5585 = vand.u32 %v2224, 4294901760
      %v5586 = vsub.f32 %v2224, %v5585
      %v5587 = vand.u32 %v5586, 4294901760
      %v5588 = vsub.f32 %v5586, %v5587
      %v5589 = vand.u32 %v5588, 4294901760
      %5590 = vmatpush1.msra.mxu0 %v5589
      %5591 = vmatprep.subr.mxu0 0.0
      %v5592 = vand.u32 %v2230, 4294901760
      %v5593 = vsub.f32 %v2230, %v5592
      %v5594 = vand.u32 %v5593, 4294901760
      %v5595 = vsub.f32 %v5593, %v5594
      %v5596 = vand.u32 %v5595, 4294901760
      %5597 = vmatpush1.msra.mxu0 %v5596
      %5598 = vmatprep.subr.mxu0 0.0
      %v5599 = vand.u32 %v2236, 4294901760
      %v5600 = vsub.f32 %v2236, %v5599
      %v5601 = vand.u32 %v5600, 4294901760
      %v5602 = vsub.f32 %v5600, %v5601
      %v5603 = vand.u32 %v5602, 4294901760
      %5604 = vmatpush1.msra.mxu0 %v5603
      %5605 = vmatprep.subr.mxu0 0.0
      %v5606 = vand.u32 %v2242, 4294901760
      %v5607 = vsub.f32 %v2242, %v5606
      %v5608 = vand.u32 %v5607, 4294901760
      %v5609 = vsub.f32 %v5607, %v5608
      %v5610 = vand.u32 %v5609, 4294901760
      %5611 = vmatpush1.msra.mxu0 %v5610
      %5612 = vmatprep.subr.mxu0 0.0
      %v5613 = vand.u32 %v2248, 4294901760
      %v5614 = vsub.f32 %v2248, %v5613
      %v5615 = vand.u32 %v5614, 4294901760
      %v5616 = vsub.f32 %v5614, %v5615
      %v5617 = vand.u32 %v5616, 4294901760
      %5618 = vmatpush1.msra.mxu0 %v5617
      %5619 = vmatprep.subr.mxu0 0.0
      %v5620 = vand.u32 %v2254, 4294901760
      %v5621 = vsub.f32 %v2254, %v5620
      %v5622 = vand.u32 %v5621, 4294901760
      %v5623 = vsub.f32 %v5621, %v5622
      %v5624 = vand.u32 %v5623, 4294901760
      %5625 = vmatpush1.msra.mxu0 %v5624
      %5626 = vmatprep.subr.mxu0 0.0
      %v5627 = vand.u32 %v2260, 4294901760
      %v5628 = vsub.f32 %v2260, %v5627
      %v5629 = vand.u32 %v5628, 4294901760
      %v5630 = vsub.f32 %v5628, %v5629
      %v5631 = vand.u32 %v5630, 4294901760
      %5632 = vmatpush1.msra.mxu0 %v5631
      %5633 = vmatprep.subr.mxu0 0.0
      %v5634 = vand.u32 %v2266, 4294901760
      %v5635 = vsub.f32 %v2266, %v5634
      %v5636 = vand.u32 %v5635, 4294901760
      %v5637 = vsub.f32 %v5635, %v5636
      %v5638 = vand.u32 %v5637, 4294901760
      %5639 = vmatpush1.msra.mxu0 %v5638
      %5640 = vmatprep.subr.mxu0 0.0
      %v5641 = vand.u32 %v2272, 4294901760
      %v5642 = vsub.f32 %v2272, %v5641
      %v5643 = vand.u32 %v5642, 4294901760
      %v5644 = vsub.f32 %v5642, %v5643
      %v5645 = vand.u32 %v5644, 4294901760
      %5646 = vmatpush1.msra.mxu0 %v5645
      %5647 = vmatprep.subr.mxu0 0.0
      %v5648 = vand.u32 %v2278, 4294901760
      %v5649 = vsub.f32 %v2278, %v5648
      %v5650 = vand.u32 %v5649, 4294901760
      %v5651 = vsub.f32 %v5649, %v5650
      %v5652 = vand.u32 %v5651, 4294901760
      %5653 = vmatpush1.msra.mxu0 %v5652
      %5654 = vmatprep.subr.mxu0 0.0
      %v5655 = vand.u32 %v2284, 4294901760
      %v5656 = vsub.f32 %v2284, %v5655
      %v5657 = vand.u32 %v5656, 4294901760
      %v5658 = vsub.f32 %v5656, %v5657
      %v5659 = vand.u32 %v5658, 4294901760
      %5660 = vmatpush1.msra.mxu0 %v5659
      %5661 = vmatprep.subr.mxu0 0.0
      %v5662 = vand.u32 %v2290, 4294901760
      %v5663 = vsub.f32 %v2290, %v5662
      %v5664 = vand.u32 %v5663, 4294901760
      %v5665 = vsub.f32 %v5663, %v5664
      %v5666 = vand.u32 %v5665, 4294901760
      %5667 = vmatpush1.msra.mxu0 %v5666
      %5668 = vmatprep.subr.mxu0 0.0
      %v5669 = vand.u32 %v2296, 4294901760
      %v5670 = vsub.f32 %v2296, %v5669
      %v5671 = vand.u32 %v5670, 4294901760
      %v5672 = vsub.f32 %v5670, %v5671
      %v5673 = vand.u32 %v5672, 4294901760
      %5674 = vmatpush1.msra.mxu0 %v5673
      %v5675 = vand.u32 %v2427, 4294901760
      %5676 = vmatprep.mubr.f32.mxu0 %v5675
      %v5677 = vand.u32 %v2426, 4294901760
      %5678 = vmatmul.mubr.f32.gmra.mrb[0].mxu0 %v5677
      %v5679 = vpop.f32.mrb[0].mxu0
      %v5680 = vadd.f32 %v5448, %v5679
      %v5681 = vpop.f32.mrb[0].mxu0
      %5682 = vdwg.mxu0
      %5683 = vmatprep.subr.mxu0 0.0
      %v5684 = vand.u32 %v2110, 4294901760
      %v5685 = vsub.f32 %v2110, %v5684
      %5686 = vmatpush1.msra.mxu0 %v5685
      %5687 = vmatprep.subr.mxu0 0.0
      %v5688 = vand.u32 %v2116, 4294901760
      %v5689 = vsub.f32 %v2116, %v5688
      %5690 = vmatpush1.msra.mxu0 %v5689
      %5691 = vmatprep.subr.mxu0 0.0
      %v5692 = vand.u32 %v2122, 4294901760
      %v5693 = vsub.f32 %v2122, %v5692
      %5694 = vmatpush1.msra.mxu0 %v5693
      %5695 = vmatprep.subr.mxu0 0.0
      %v5696 = vand.u32 %v2128, 4294901760
      %v5697 = vsub.f32 %v2128, %v5696
      %5698 = vmatpush1.msra.mxu0 %v5697
      %5699 = vmatprep.subr.mxu0 0.0
      %v5700 = vand.u32 %v2134, 4294901760
      %v5701 = vsub.f32 %v2134, %v5700
      %5702 = vmatpush1.msra.mxu0 %v5701
      %5703 = vmatprep.subr.mxu0 0.0
      %v5704 = vand.u32 %v2140, 4294901760
      %v5705 = vsub.f32 %v2140, %v5704
      %5706 = vmatpush1.msra.mxu0 %v5705
      %5707 = vmatprep.subr.mxu0 0.0
      %v5708 = vand.u32 %v2146, 4294901760
      %v5709 = vsub.f32 %v2146, %v5708
      %5710 = vmatpush1.msra.mxu0 %v5709
      %5711 = vmatprep.subr.mxu0 0.0
      %v5712 = vand.u32 %v2152, 4294901760
      %v5713 = vsub.f32 %v2152, %v5712
      %5714 = vmatpush1.msra.mxu0 %v5713
      %5715 = vmatprep.subr.mxu0 0.0
      %v5716 = vand.u32 %v2158, 4294901760
      %v5717 = vsub.f32 %v2158, %v5716
      %5718 = vmatpush1.msra.mxu0 %v5717
      %5719 = vmatprep.subr.mxu0 0.0
      %v5720 = vand.u32 %v2164, 4294901760
      %v5721 = vsub.f32 %v2164, %v5720
      %5722 = vmatpush1.msra.mxu0 %v5721
      %5723 = vmatprep.subr.mxu0 0.0
      %v5724 = vand.u32 %v2170, 4294901760
      %v5725 = vsub.f32 %v2170, %v5724
      %5726 = vmatpush1.msra.mxu0 %v5725
      %5727 = vmatprep.subr.mxu0 0.0
      %v5728 = vand.u32 %v2176, 4294901760
      %v5729 = vsub.f32 %v2176, %v5728
      %5730 = vmatpush1.msra.mxu0 %v5729
      %5731 = vmatprep.subr.mxu0 0.0
      %v5732 = vand.u32 %v2182, 4294901760
      %v5733 = vsub.f32 %v2182, %v5732
      %5734 = vmatpush1.msra.mxu0 %v5733
      %5735 = vmatprep.subr.mxu0 0.0
      %v5736 = vand.u32 %v2188, 4294901760
      %v5737 = vsub.f32 %v2188, %v5736
      %5738 = vmatpush1.msra.mxu0 %v5737
      %5739 = vmatprep.subr.mxu0 0.0
      %v5740 = vand.u32 %v2194, 4294901760
      %v5741 = vsub.f32 %v2194, %v5740
      %5742 = vmatpush1.msra.mxu0 %v5741
      %5743 = vmatprep.subr.mxu0 0.0
      %v5744 = vand.u32 %v2200, 4294901760
      %v5745 = vsub.f32 %v2200, %v5744
      %5746 = vmatpush1.msra.mxu0 %v5745
      %5747 = vmatprep.subr.mxu0 0.0
      %v5748 = vand.u32 %v2206, 4294901760
      %v5749 = vsub.f32 %v2206, %v5748
      %5750 = vmatpush1.msra.mxu0 %v5749
      %5751 = vmatprep.subr.mxu0 0.0
      %v5752 = vand.u32 %v2212, 4294901760
      %v5753 = vsub.f32 %v2212, %v5752
      %5754 = vmatpush1.msra.mxu0 %v5753
      %5755 = vmatprep.subr.mxu0 0.0
      %v5756 = vand.u32 %v2218, 4294901760
      %v5757 = vsub.f32 %v2218, %v5756
      %5758 = vmatpush1.msra.mxu0 %v5757
      %5759 = vmatprep.subr.mxu0 0.0
      %v5760 = vand.u32 %v2224, 4294901760
      %v5761 = vsub.f32 %v2224, %v5760
      %5762 = vmatpush1.msra.mxu0 %v5761
      %5763 = vmatprep.subr.mxu0 0.0
      %v5764 = vand.u32 %v2230, 4294901760
      %v5765 = vsub.f32 %v2230, %v5764
      %5766 = vmatpush1.msra.mxu0 %v5765
      %5767 = vmatprep.subr.mxu0 0.0
      %v5768 = vand.u32 %v2236, 4294901760
      %v5769 = vsub.f32 %v2236, %v5768
      %5770 = vmatpush1.msra.mxu0 %v5769
      %5771 = vmatprep.subr.mxu0 0.0
      %v5772 = vand.u32 %v2242, 4294901760
      %v5773 = vsub.f32 %v2242, %v5772
      %5774 = vmatpush1.msra.mxu0 %v5773
      %5775 = vmatprep.subr.mxu0 0.0
      %v5776 = vand.u32 %v2248, 4294901760
      %v5777 = vsub.f32 %v2248, %v5776
      %5778 = vmatpush1.msra.mxu0 %v5777
      %5779 = vmatprep.subr.mxu0 0.0
      %v5780 = vand.u32 %v2254, 4294901760
      %v5781 = vsub.f32 %v2254, %v5780
      %5782 = vmatpush1.msra.mxu0 %v5781
      %5783 = vmatprep.subr.mxu0 0.0
      %v5784 = vand.u32 %v2260, 4294901760
      %v5785 = vsub.f32 %v2260, %v5784
      %5786 = vmatpush1.msra.mxu0 %v5785
      %5787 = vmatprep.subr.mxu0 0.0
      %v5788 = vand.u32 %v2266, 4294901760
      %v5789 = vsub.f32 %v2266, %v5788
      %5790 = vmatpush1.msra.mxu0 %v5789
      %5791 = vmatprep.subr.mxu0 0.0
      %v5792 = vand.u32 %v2272, 4294901760
      %v5793 = vsub.f32 %v2272, %v5792
      %5794 = vmatpush1.msra.mxu0 %v5793
      %5795 = vmatprep.subr.mxu0 0.0
      %v5796 = vand.u32 %v2278, 4294901760
      %v5797 = vsub.f32 %v2278, %v5796
      %5798 = vmatpush1.msra.mxu0 %v5797
      %5799 = vmatprep.subr.mxu0 0.0
      %v5800 = vand.u32 %v2284, 4294901760
      %v5801 = vsub.f32 %v2284, %v5800
      %5802 = vmatpush1.msra.mxu0 %v5801
      %5803 = vmatprep.subr.mxu0 0.0
      %v5804 = vand.u32 %v2290, 4294901760
      %v5805 = vsub.f32 %v2290, %v5804
      %5806 = vmatpush1.msra.mxu0 %v5805
      %5807 = vmatprep.subr.mxu0 0.0
      %v5808 = vand.u32 %v2296, 4294901760
      %v5809 = vsub.f32 %v2296, %v5808
      %5810 = vmatpush1.msra.mxu0 %v5809
      %v5811 = vand.u32 %v2427, 4294901760
      %v5812 = vsub.f32 %v2427, %v5811
      %5813 = vmatprep.mubr.f32.mxu0 %v5812
      %v5814 = vand.u32 %v2426, 4294901760
      %v5815 = vsub.f32 %v2426, %v5814
      %5816 = vmatmul.mubr.f32.gmra.mrb[0].mxu0 %v5815
      %v5817 = vpop.f32.mrb[0].mxu0
      %v5818 = vadd.f32 %v5680, %v5817
      %v5819 = vpop.f32.mrb[0].mxu0
      %5820 = vdwg.mxu0
      %5821 = vmatprep.subr.mxu0 0.0
      %v5822 = vand.u32 %v2110, 4294901760
      %5823 = vmatpush1.msra.mxu0 %v5822
      %5824 = vmatprep.subr.mxu0 0.0
      %v5825 = vand.u32 %v2116, 4294901760
      %5826 = vmatpush1.msra.mxu0 %v5825
      %5827 = vmatprep.subr.mxu0 0.0
      %v5828 = vand.u32 %v2122, 4294901760
      %5829 = vmatpush1.msra.mxu0 %v5828
      %5830 = vmatprep.subr.mxu0 0.0
      %v5831 = vand.u32 %v2128, 4294901760
      %5832 = vmatpush1.msra.mxu0 %v5831
      %5833 = vmatprep.subr.mxu0 0.0
      %v5834 = vand.u32 %v2134, 4294901760
      %5835 = vmatpush1.msra.mxu0 %v5834
      %5836 = vmatprep.subr.mxu0 0.0
      %v5837 = vand.u32 %v2140, 4294901760
      %5838 = vmatpush1.msra.mxu0 %v5837
      %5839 = vmatprep.subr.mxu0 0.0
      %v5840 = vand.u32 %v2146, 4294901760
      %5841 = vmatpush1.msra.mxu0 %v5840
      %5842 = vmatprep.subr.mxu0 0.0
      %v5843 = vand.u32 %v2152, 4294901760
      %5844 = vmatpush1.msra.mxu0 %v5843
      %5845 = vmatprep.subr.mxu0 0.0
      %v5846 = vand.u32 %v2158, 4294901760
      %5847 = vmatpush1.msra.mxu0 %v5846
      %5848 = vmatprep.subr.mxu0 0.0
      %v5849 = vand.u32 %v2164, 4294901760
      %5850 = vmatpush1.msra.mxu0 %v5849
      %5851 = vmatprep.subr.mxu0 0.0
      %v5852 = vand.u32 %v2170, 4294901760
      %5853 = vmatpush1.msra.mxu0 %v5852
      %5854 = vmatprep.subr.mxu0 0.0
      %v5855 = vand.u32 %v2176, 4294901760
      %5856 = vmatpush1.msra.mxu0 %v5855
      %5857 = vmatprep.subr.mxu0 0.0
      %v5858 = vand.u32 %v2182, 4294901760
      %5859 = vmatpush1.msra.mxu0 %v5858
      %5860 = vmatprep.subr.mxu0 0.0
      %v5861 = vand.u32 %v2188, 4294901760
      %5862 = vmatpush1.msra.mxu0 %v5861
      %5863 = vmatprep.subr.mxu0 0.0
      %v5864 = vand.u32 %v2194, 4294901760
      %5865 = vmatpush1.msra.mxu0 %v5864
      %5866 = vmatprep.subr.mxu0 0.0
      %v5867 = vand.u32 %v2200, 4294901760
      %5868 = vmatpush1.msra.mxu0 %v5867
      %5869 = vmatprep.subr.mxu0 0.0
      %v5870 = vand.u32 %v2206, 4294901760
      %5871 = vmatpush1.msra.mxu0 %v5870
      %5872 = vmatprep.subr.mxu0 0.0
      %v5873 = vand.u32 %v2212, 4294901760
      %5874 = vmatpush1.msra.mxu0 %v5873
      %5875 = vmatprep.subr.mxu0 0.0
      %v5876 = vand.u32 %v2218, 4294901760
      %5877 = vmatpush1.msra.mxu0 %v5876
      %5878 = vmatprep.subr.mxu0 0.0
      %v5879 = vand.u32 %v2224, 4294901760
      %5880 = vmatpush1.msra.mxu0 %v5879
      %5881 = vmatprep.subr.mxu0 0.0
      %v5882 = vand.u32 %v2230, 4294901760
      %5883 = vmatpush1.msra.mxu0 %v5882
      %5884 = vmatprep.subr.mxu0 0.0
      %v5885 = vand.u32 %v2236, 4294901760
      %5886 = vmatpush1.msra.mxu0 %v5885
      %5887 = vmatprep.subr.mxu0 0.0
      %v5888 = vand.u32 %v2242, 4294901760
      %5889 = vmatpush1.msra.mxu0 %v5888
      %5890 = vmatprep.subr.mxu0 0.0
      %v5891 = vand.u32 %v2248, 4294901760
      %5892 = vmatpush1.msra.mxu0 %v5891
      %5893 = vmatprep.subr.mxu0 0.0
      %v5894 = vand.u32 %v2254, 4294901760
      %5895 = vmatpush1.msra.mxu0 %v5894
      %5896 = vmatprep.subr.mxu0 0.0
      %v5897 = vand.u32 %v2260, 4294901760
      %5898 = vmatpush1.msra.mxu0 %v5897
      %5899 = vmatprep.subr.mxu0 0.0
      %v5900 = vand.u32 %v2266, 4294901760
      %5901 = vmatpush1.msra.mxu0 %v5900
      %5902 = vmatprep.subr.mxu0 0.0
      %v5903 = vand.u32 %v2272, 4294901760
      %5904 = vmatpush1.msra.mxu0 %v5903
      %5905 = vmatprep.subr.mxu0 0.0
      %v5906 = vand.u32 %v2278, 4294901760
      %5907 = vmatpush1.msra.mxu0 %v5906
      %5908 = vmatprep.subr.mxu0 0.0
      %v5909 = vand.u32 %v2284, 4294901760
      %5910 = vmatpush1.msra.mxu0 %v5909
      %5911 = vmatprep.subr.mxu0 0.0
      %v5912 = vand.u32 %v2290, 4294901760
      %5913 = vmatpush1.msra.mxu0 %v5912
      %5914 = vmatprep.subr.mxu0 0.0
      %v5915 = vand.u32 %v2296, 4294901760
      %5916 = vmatpush1.msra.mxu0 %v5915
      %v5917 = vand.u32 %v2427, 4294901760
      %v5918 = vsub.f32 %v2427, %v5917
      %v5919 = vand.u32 %v5918, 4294901760
      %5920 = vmatprep.mubr.f32.mxu0 %v5919
      %v5921 = vand.u32 %v2426, 4294901760
      %v5922 = vsub.f32 %v2426, %v5921
      %v5923 = vand.u32 %v5922, 4294901760
      %5924 = vmatmul.mubr.f32.gmra.mrb[0].mxu0 %v5923
      %v5925 = vpop.f32.mrb[0].mxu0
      %v5926 = vadd.f32 %v5818, %v5925
      %v5927 = vpop.f32.mrb[0].mxu0
      %5928 = vdwg.mxu0
      %5929 = vmatprep.subr.mxu0 0.0
      %v5930 = vand.u32 %v2110, 4294901760
      %v5931 = vsub.f32 %v2110, %v5930
      %v5932 = vand.u32 %v5931, 4294901760
      %5933 = vmatpush1.msra.mxu0 %v5932
      %5934 = vmatprep.subr.mxu0 0.0
      %v5935 = vand.u32 %v2116, 4294901760
      %v5936 = vsub.f32 %v2116, %v5935
      %v5937 = vand.u32 %v5936, 4294901760
      %5938 = vmatpush1.msra.mxu0 %v5937
      %5939 = vmatprep.subr.mxu0 0.0
      %v5940 = vand.u32 %v2122, 4294901760
      %v5941 = vsub.f32 %v2122, %v5940
      %v5942 = vand.u32 %v5941, 4294901760
      %5943 = vmatpush1.msra.mxu0 %v5942
      %5944 = vmatprep.subr.mxu0 0.0
      %v5945 = vand.u32 %v2128, 4294901760
      %v5946 = vsub.f32 %v2128, %v5945
      %v5947 = vand.u32 %v5946, 4294901760
      %5948 = vmatpush1.msra.mxu0 %v5947
      %5949 = vmatprep.subr.mxu0 0.0
      %v5950 = vand.u32 %v2134, 4294901760
      %v5951 = vsub.f32 %v2134, %v5950
      %v5952 = vand.u32 %v5951, 4294901760
      %5953 = vmatpush1.msra.mxu0 %v5952
      %5954 = vmatprep.subr.mxu0 0.0
      %v5955 = vand.u32 %v2140, 4294901760
      %v5956 = vsub.f32 %v2140, %v5955
      %v5957 = vand.u32 %v5956, 4294901760
      %5958 = vmatpush1.msra.mxu0 %v5957
      %5959 = vmatprep.subr.mxu0 0.0
      %v5960 = vand.u32 %v2146, 4294901760
      %v5961 = vsub.f32 %v2146, %v5960
      %v5962 = vand.u32 %v5961, 4294901760
      %5963 = vmatpush1.msra.mxu0 %v5962
      %5964 = vmatprep.subr.mxu0 0.0
      %v5965 = vand.u32 %v2152, 4294901760
      %v5966 = vsub.f32 %v2152, %v5965
      %v5967 = vand.u32 %v5966, 4294901760
      %5968 = vmatpush1.msra.mxu0 %v5967
      %5969 = vmatprep.subr.mxu0 0.0
      %v5970 = vand.u32 %v2158, 4294901760
      %v5971 = vsub.f32 %v2158, %v5970
      %v5972 = vand.u32 %v5971, 4294901760
      %5973 = vmatpush1.msra.mxu0 %v5972
      %5974 = vmatprep.subr.mxu0 0.0
      %v5975 = vand.u32 %v2164, 4294901760
      %v5976 = vsub.f32 %v2164, %v5975
      %v5977 = vand.u32 %v5976, 4294901760
      %5978 = vmatpush1.msra.mxu0 %v5977
      %5979 = vmatprep.subr.mxu0 0.0
      %v5980 = vand.u32 %v2170, 4294901760
      %v5981 = vsub.f32 %v2170, %v5980
      %v5982 = vand.u32 %v5981, 4294901760
      %5983 = vmatpush1.msra.mxu0 %v5982
      %5984 = vmatprep.subr.mxu0 0.0
      %v5985 = vand.u32 %v2176, 4294901760
      %v5986 = vsub.f32 %v2176, %v5985
      %v5987 = vand.u32 %v5986, 4294901760
      %5988 = vmatpush1.msra.mxu0 %v5987
      %5989 = vmatprep.subr.mxu0 0.0
      %v5990 = vand.u32 %v2182, 4294901760
      %v5991 = vsub.f32 %v2182, %v5990
      %v5992 = vand.u32 %v5991, 4294901760
      %5993 = vmatpush1.msra.mxu0 %v5992
      %5994 = vmatprep.subr.mxu0 0.0
      %v5995 = vand.u32 %v2188, 4294901760
      %v5996 = vsub.f32 %v2188, %v5995
      %v5997 = vand.u32 %v5996, 4294901760
      %5998 = vmatpush1.msra.mxu0 %v5997
      %5999 = vmatprep.subr.mxu0 0.0
      %v6000 = vand.u32 %v2194, 4294901760
      %v6001 = vsub.f32 %v2194, %v6000
      %v6002 = vand.u32 %v6001, 4294901760
      %6003 = vmatpush1.msra.mxu0 %v6002
      %6004 = vmatprep.subr.mxu0 0.0
      %v6005 = vand.u32 %v2200, 4294901760
      %v6006 = vsub.f32 %v2200, %v6005
      %v6007 = vand.u32 %v6006, 4294901760
      %6008 = vmatpush1.msra.mxu0 %v6007
      %6009 = vmatprep.subr.mxu0 0.0
      %v6010 = vand.u32 %v2206, 4294901760
      %v6011 = vsub.f32 %v2206, %v6010
      %v6012 = vand.u32 %v6011, 4294901760
      %6013 = vmatpush1.msra.mxu0 %v6012
      %6014 = vmatprep.subr.mxu0 0.0
      %v6015 = vand.u32 %v2212, 4294901760
      %v6016 = vsub.f32 %v2212, %v6015
      %v6017 = vand.u32 %v6016, 4294901760
      %6018 = vmatpush1.msra.mxu0 %v6017
      %6019 = vmatprep.subr.mxu0 0.0
      %v6020 = vand.u32 %v2218, 4294901760
      %v6021 = vsub.f32 %v2218, %v6020
      %v6022 = vand.u32 %v6021, 4294901760
      %6023 = vmatpush1.msra.mxu0 %v6022
      %6024 = vmatprep.subr.mxu0 0.0
      %v6025 = vand.u32 %v2224, 4294901760
      %v6026 = vsub.f32 %v2224, %v6025
      %v6027 = vand.u32 %v6026, 4294901760
      %6028 = vmatpush1.msra.mxu0 %v6027
      %6029 = vmatprep.subr.mxu0 0.0
      %v6030 = vand.u32 %v2230, 4294901760
      %v6031 = vsub.f32 %v2230, %v6030
      %v6032 = vand.u32 %v6031, 4294901760
      %6033 = vmatpush1.msra.mxu0 %v6032
      %6034 = vmatprep.subr.mxu0 0.0
      %v6035 = vand.u32 %v2236, 4294901760
      %v6036 = vsub.f32 %v2236, %v6035
      %v6037 = vand.u32 %v6036, 4294901760
      %6038 = vmatpush1.msra.mxu0 %v6037
      %6039 = vmatprep.subr.mxu0 0.0
      %v6040 = vand.u32 %v2242, 4294901760
      %v6041 = vsub.f32 %v2242, %v6040
      %v6042 = vand.u32 %v6041, 4294901760
      %6043 = vmatpush1.msra.mxu0 %v6042
      %6044 = vmatprep.subr.mxu0 0.0
      %v6045 = vand.u32 %v2248, 4294901760
      %v6046 = vsub.f32 %v2248, %v6045
      %v6047 = vand.u32 %v6046, 4294901760
      %6048 = vmatpush1.msra.mxu0 %v6047
      %6049 = vmatprep.subr.mxu0 0.0
      %v6050 = vand.u32 %v2254, 4294901760
      %v6051 = vsub.f32 %v2254, %v6050
      %v6052 = vand.u32 %v6051, 4294901760
      %6053 = vmatpush1.msra.mxu0 %v6052
      %6054 = vmatprep.subr.mxu0 0.0
      %v6055 = vand.u32 %v2260, 4294901760
      %v6056 = vsub.f32 %v2260, %v6055
      %v6057 = vand.u32 %v6056, 4294901760
      %6058 = vmatpush1.msra.mxu0 %v6057
      %6059 = vmatprep.subr.mxu0 0.0
      %v6060 = vand.u32 %v2266, 4294901760
      %v6061 = vsub.f32 %v2266, %v6060
      %v6062 = vand.u32 %v6061, 4294901760
      %6063 = vmatpush1.msra.mxu0 %v6062
      %6064 = vmatprep.subr.mxu0 0.0
      %v6065 = vand.u32 %v2272, 4294901760
      %v6066 = vsub.f32 %v2272, %v6065
      %v6067 = vand.u32 %v6066, 4294901760
      %6068 = vmatpush1.msra.mxu0 %v6067
      %6069 = vmatprep.subr.mxu0 0.0
      %v6070 = vand.u32 %v2278, 4294901760
      %v6071 = vsub.f32 %v2278, %v6070
      %v6072 = vand.u32 %v6071, 4294901760
      %6073 = vmatpush1.msra.mxu0 %v6072
      %6074 = vmatprep.subr.mxu0 0.0
      %v6075 = vand.u32 %v2284, 4294901760
      %v6076 = vsub.f32 %v2284, %v6075
      %v6077 = vand.u32 %v6076, 4294901760
      %6078 = vmatpush1.msra.mxu0 %v6077
      %6079 = vmatprep.subr.mxu0 0.0
      %v6080 = vand.u32 %v2290, 4294901760
      %v6081 = vsub.f32 %v2290, %v6080
      %v6082 = vand.u32 %v6081, 4294901760
      %6083 = vmatpush1.msra.mxu0 %v6082
      %6084 = vmatprep.subr.mxu0 0.0
      %v6085 = vand.u32 %v2296, 4294901760
      %v6086 = vsub.f32 %v2296, %v6085
      %v6087 = vand.u32 %v6086, 4294901760
      %6088 = vmatpush1.msra.mxu0 %v6087
      %v6089 = vand.u32 %v2427, 4294901760
      %6090 = vmatprep.mubr.f32.mxu0 %v6089
      %v6091 = vand.u32 %v2426, 4294901760
      %6092 = vmatmul.mubr.f32.gmra.mrb[0].mxu0 %v6091
      %v6093 = vpop.f32.mrb[0].mxu0
      %v6094 = vadd.f32 %v5926, %v6093
      %v6095 = vpop.f32.mrb[0].mxu0
      %6096 = vdwg.mxu0
      %6097 = vmatprep.subr.mxu0 0.0
      %v6098 = vand.u32 %v2110, 4294901760
      %6099 = vmatpush1.msra.mxu0 %v6098
      %6100 = vmatprep.subr.mxu0 0.0
      %v6101 = vand.u32 %v2116, 4294901760
      %6102 = vmatpush1.msra.mxu0 %v6101
      %6103 = vmatprep.subr.mxu0 0.0
      %v6104 = vand.u32 %v2122, 4294901760
      %6105 = vmatpush1.msra.mxu0 %v6104
      %6106 = vmatprep.subr.mxu0 0.0
      %v6107 = vand.u32 %v2128, 4294901760
      %6108 = vmatpush1.msra.mxu0 %v6107
      %6109 = vmatprep.subr.mxu0 0.0
      %v6110 = vand.u32 %v2134, 4294901760
      %6111 = vmatpush1.msra.mxu0 %v6110
      %6112 = vmatprep.subr.mxu0 0.0
      %v6113 = vand.u32 %v2140, 4294901760
      %6114 = vmatpush1.msra.mxu0 %v6113
      %6115 = vmatprep.subr.mxu0 0.0
      %v6116 = vand.u32 %v2146, 4294901760
      %6117 = vmatpush1.msra.mxu0 %v6116
      %6118 = vmatprep.subr.mxu0 0.0
      %v6119 = vand.u32 %v2152, 4294901760
      %6120 = vmatpush1.msra.mxu0 %v6119
      %6121 = vmatprep.subr.mxu0 0.0
      %v6122 = vand.u32 %v2158, 4294901760
      %6123 = vmatpush1.msra.mxu0 %v6122
      %6124 = vmatprep.subr.mxu0 0.0
      %v6125 = vand.u32 %v2164, 4294901760
      %6126 = vmatpush1.msra.mxu0 %v6125
      %6127 = vmatprep.subr.mxu0 0.0
      %v6128 = vand.u32 %v2170, 4294901760
      %6129 = vmatpush1.msra.mxu0 %v6128
      %6130 = vmatprep.subr.mxu0 0.0
      %v6131 = vand.u32 %v2176, 4294901760
      %6132 = vmatpush1.msra.mxu0 %v6131
      %6133 = vmatprep.subr.mxu0 0.0
      %v6134 = vand.u32 %v2182, 4294901760
      %6135 = vmatpush1.msra.mxu0 %v6134
      %6136 = vmatprep.subr.mxu0 0.0
      %v6137 = vand.u32 %v2188, 4294901760
      %6138 = vmatpush1.msra.mxu0 %v6137
      %6139 = vmatprep.subr.mxu0 0.0
      %v6140 = vand.u32 %v2194, 4294901760
      %6141 = vmatpush1.msra.mxu0 %v6140
      %6142 = vmatprep.subr.mxu0 0.0
      %v6143 = vand.u32 %v2200, 4294901760
      %6144 = vmatpush1.msra.mxu0 %v6143
      %6145 = vmatprep.subr.mxu0 0.0
      %v6146 = vand.u32 %v2206, 4294901760
      %6147 = vmatpush1.msra.mxu0 %v6146
      %6148 = vmatprep.subr.mxu0 0.0
      %v6149 = vand.u32 %v2212, 4294901760
      %6150 = vmatpush1.msra.mxu0 %v6149
      %6151 = vmatprep.subr.mxu0 0.0
      %v6152 = vand.u32 %v2218, 4294901760
      %6153 = vmatpush1.msra.mxu0 %v6152
      %6154 = vmatprep.subr.mxu0 0.0
      %v6155 = vand.u32 %v2224, 4294901760
      %6156 = vmatpush1.msra.mxu0 %v6155
      %6157 = vmatprep.subr.mxu0 0.0
      %v6158 = vand.u32 %v2230, 4294901760
      %6159 = vmatpush1.msra.mxu0 %v6158
      %6160 = vmatprep.subr.mxu0 0.0
      %v6161 = vand.u32 %v2236, 4294901760
      %6162 = vmatpush1.msra.mxu0 %v6161
      %6163 = vmatprep.subr.mxu0 0.0
      %v6164 = vand.u32 %v2242, 4294901760
      %6165 = vmatpush1.msra.mxu0 %v6164
      %6166 = vmatprep.subr.mxu0 0.0
      %v6167 = vand.u32 %v2248, 4294901760
      %6168 = vmatpush1.msra.mxu0 %v6167
      %6169 = vmatprep.subr.mxu0 0.0
      %v6170 = vand.u32 %v2254, 4294901760
      %6171 = vmatpush1.msra.mxu0 %v6170
      %6172 = vmatprep.subr.mxu0 0.0
      %v6173 = vand.u32 %v2260, 4294901760
      %6174 = vmatpush1.msra.mxu0 %v6173
      %6175 = vmatprep.subr.mxu0 0.0
      %v6176 = vand.u32 %v2266, 4294901760
      %6177 = vmatpush1.msra.mxu0 %v6176
      %6178 = vmatprep.subr.mxu0 0.0
      %v6179 = vand.u32 %v2272, 4294901760
      %6180 = vmatpush1.msra.mxu0 %v6179
      %6181 = vmatprep.subr.mxu0 0.0
      %v6182 = vand.u32 %v2278, 4294901760
      %6183 = vmatpush1.msra.mxu0 %v6182
      %6184 = vmatprep.subr.mxu0 0.0
      %v6185 = vand.u32 %v2284, 4294901760
      %6186 = vmatpush1.msra.mxu0 %v6185
      %6187 = vmatprep.subr.mxu0 0.0
      %v6188 = vand.u32 %v2290, 4294901760
      %6189 = vmatpush1.msra.mxu0 %v6188
      %6190 = vmatprep.subr.mxu0 0.0
      %v6191 = vand.u32 %v2296, 4294901760
      %6192 = vmatpush1.msra.mxu0 %v6191
      %v6193 = vand.u32 %v2427, 4294901760
      %6194 = vmatprep.mubr.f32.mxu0 %v6193
      %v6195 = vand.u32 %v2426, 4294901760
      %6196 = vmatmul.mubr.f32.gmra.mrb[0].mxu0 %v6195
      %v6197 = vpop.f32.mrb[0].mxu0
      %v6198 = vadd.f32 %v6094, %v6197
      %v6199 = vpop.f32.mrb[0].mxu0
      %6200 = vdwg.mxu0
      %6201 = vmatprep.subr.mxu0 0.0
      %v6202 = vand.u32 %v2302, 4294901760
      %6203 = vmatpush1.msra.mxu0 %v6202
      %6204 = vmatprep.subr.mxu0 0.0
      %v6205 = vand.u32 %v2308, 4294901760
      %6206 = vmatpush1.msra.mxu0 %v6205
      %6207 = vmatprep.subr.mxu0 0.0
      %v6208 = vand.u32 %v2314, 4294901760
      %6209 = vmatpush1.msra.mxu0 %v6208
      %6210 = vmatprep.subr.mxu0 0.0
      %v6211 = vand.u32 %v2320, 4294901760
      %6212 = vmatpush1.msra.mxu0 %v6211
      %6213 = vmatprep.subr.mxu0 0.0
      %6214 = vmatpush1.msra.mxu0 0.0
      %6215 = vmatprep.subr.mxu0 0.0
      %6216 = vmatpush1.msra.mxu0 0.0
      %6217 = vmatprep.subr.mxu0 0.0
      %6218 = vmatpush1.msra.mxu0 0.0
      %6219 = vmatprep.subr.mxu0 0.0
      %6220 = vmatpush1.msra.mxu0 0.0
      %6221 = vmatprep.subr.mxu0 0.0
      %6222 = vmatpush1.msra.mxu0 0.0
      %6223 = vmatprep.subr.mxu0 0.0
      %6224 = vmatpush1.msra.mxu0 0.0
      %6225 = vmatprep.subr.mxu0 0.0
      %6226 = vmatpush1.msra.mxu0 0.0
      %6227 = vmatprep.subr.mxu0 0.0
      %6228 = vmatpush1.msra.mxu0 0.0
      %6229 = vmatprep.subr.mxu0 0.0
      %6230 = vmatpush1.msra.mxu0 0.0
      %6231 = vmatprep.subr.mxu0 0.0
      %6232 = vmatpush1.msra.mxu0 0.0
      %6233 = vmatprep.subr.mxu0 0.0
      %6234 = vmatpush1.msra.mxu0 0.0
      %6235 = vmatprep.subr.mxu0 0.0
      %6236 = vmatpush1.msra.mxu0 0.0
      %6237 = vmatprep.subr.mxu0 0.0
      %6238 = vmatpush1.msra.mxu0 0.0
      %6239 = vmatprep.subr.mxu0 0.0
      %6240 = vmatpush1.msra.mxu0 0.0
      %6241 = vmatprep.subr.mxu0 0.0
      %6242 = vmatpush1.msra.mxu0 0.0
      %6243 = vmatprep.subr.mxu0 0.0
      %6244 = vmatpush1.msra.mxu0 0.0
      %6245 = vmatprep.subr.mxu0 0.0
      %6246 = vmatpush1.msra.mxu0 0.0
      %6247 = vmatprep.subr.mxu0 0.0
      %6248 = vmatpush1.msra.mxu0 0.0
      %6249 = vmatprep.subr.mxu0 0.0
      %6250 = vmatpush1.msra.mxu0 0.0
      %6251 = vmatprep.subr.mxu0 0.0
      %6252 = vmatpush1.msra.mxu0 0.0
      %6253 = vmatprep.subr.mxu0 0.0
      %6254 = vmatpush1.msra.mxu0 0.0
      %6255 = vmatprep.subr.mxu0 0.0
      %6256 = vmatpush1.msra.mxu0 0.0
      %6257 = vmatprep.subr.mxu0 0.0
      %6258 = vmatpush1.msra.mxu0 0.0
      %6259 = vmatprep.subr.mxu0 0.0
      %6260 = vmatpush1.msra.mxu0 0.0
      %6261 = vmatprep.subr.mxu0 0.0
      %6262 = vmatpush1.msra.mxu0 0.0
      %6263 = vmatprep.subr.mxu0 0.0
      %6264 = vmatpush1.msra.mxu0 0.0
      %6265 = vmatprep.subr.mxu0 0.0
      %6266 = vmatpush1.msra.mxu0 0.0
      %6267 = vmatprep.subr.mxu0 0.0
      %6268 = vmatpush1.msra.mxu0 0.0
      %6269 = vmatprep.mubr.f32.mxu0 0.0
      %v6270 = vand.u32 %v3510, 4294901760
      %v6271 = vsub.f32 %v3510, %v6270
      %v6272 = vand.u32 %v6271, 4294901760
      %v6273 = vsub.f32 %v6271, %v6272
      %v6274 = vand.u32 %v6273, 4294901760
      %6275 = vmatmul.mubr.f32.gmra.mrb[0].mxu0 %v6274
      %v6276 = vpop.f32.mrb[0].mxu0
      %v6277 = vadd.f32 %v6198, %v6276
      %v6278 = vpop.f32.mrb[0].mxu0
      %6279 = vdwg.mxu0
      %6280 = vmatprep.subr.mxu0 0.0
      %v6281 = vand.u32 %v2302, 4294901760
      %v6282 = vsub.f32 %v2302, %v6281
      %v6283 = vand.u32 %v6282, 4294901760
      %v6284 = vsub.f32 %v6282, %v6283
      %v6285 = vand.u32 %v6284, 4294901760
      %6286 = vmatpush1.msra.mxu0 %v6285
      %6287 = vmatprep.subr.mxu0 0.0
      %v6288 = vand.u32 %v2308, 4294901760
      %v6289 = vsub.f32 %v2308, %v6288
      %v6290 = vand.u32 %v6289, 4294901760
      %v6291 = vsub.f32 %v6289, %v6290
      %v6292 = vand.u32 %v6291, 4294901760
      %6293 = vmatpush1.msra.mxu0 %v6292
      %6294 = vmatprep.subr.mxu0 0.0
      %v6295 = vand.u32 %v2314, 4294901760
      %v6296 = vsub.f32 %v2314, %v6295
      %v6297 = vand.u32 %v6296, 4294901760
      %v6298 = vsub.f32 %v6296, %v6297
      %v6299 = vand.u32 %v6298, 4294901760
      %6300 = vmatpush1.msra.mxu0 %v6299
      %6301 = vmatprep.subr.mxu0 0.0
      %v6302 = vand.u32 %v2320, 4294901760
      %v6303 = vsub.f32 %v2320, %v6302
      %v6304 = vand.u32 %v6303, 4294901760
      %v6305 = vsub.f32 %v6303, %v6304
      %v6306 = vand.u32 %v6305, 4294901760
      %6307 = vmatpush1.msra.mxu0 %v6306
      %6308 = vmatprep.subr.mxu0 0.0
      %6309 = vmatpush1.msra.mxu0 0.0
      %6310 = vmatprep.subr.mxu0 0.0
      %6311 = vmatpush1.msra.mxu0 0.0
      %6312 = vmatprep.subr.mxu0 0.0
      %6313 = vmatpush1.msra.mxu0 0.0
      %6314 = vmatprep.subr.mxu0 0.0
      %6315 = vmatpush1.msra.mxu0 0.0
      %6316 = vmatprep.subr.mxu0 0.0
      %6317 = vmatpush1.msra.mxu0 0.0
      %6318 = vmatprep.subr.mxu0 0.0
      %6319 = vmatpush1.msra.mxu0 0.0
      %6320 = vmatprep.subr.mxu0 0.0
      %6321 = vmatpush1.msra.mxu0 0.0
      %6322 = vmatprep.subr.mxu0 0.0
      %6323 = vmatpush1.msra.mxu0 0.0
      %6324 = vmatprep.subr.mxu0 0.0
      %6325 = vmatpush1.msra.mxu0 0.0
      %6326 = vmatprep.subr.mxu0 0.0
      %6327 = vmatpush1.msra.mxu0 0.0
      %6328 = vmatprep.subr.mxu0 0.0
      %6329 = vmatpush1.msra.mxu0 0.0
      %6330 = vmatprep.subr.mxu0 0.0
      %6331 = vmatpush1.msra.mxu0 0.0
      %6332 = vmatprep.subr.mxu0 0.0
      %6333 = vmatpush1.msra.mxu0 0.0
      %6334 = vmatprep.subr.mxu0 0.0
      %6335 = vmatpush1.msra.mxu0 0.0
      %6336 = vmatprep.subr.mxu0 0.0
      %6337 = vmatpush1.msra.mxu0 0.0
      %6338 = vmatprep.subr.mxu0 0.0
      %6339 = vmatpush1.msra.mxu0 0.0
      %6340 = vmatprep.subr.mxu0 0.0
      %6341 = vmatpush1.msra.mxu0 0.0
      %6342 = vmatprep.subr.mxu0 0.0
      %6343 = vmatpush1.msra.mxu0 0.0
      %6344 = vmatprep.subr.mxu0 0.0
      %6345 = vmatpush1.msra.mxu0 0.0
      %6346 = vmatprep.subr.mxu0 0.0
      %6347 = vmatpush1.msra.mxu0 0.0
      %6348 = vmatprep.subr.mxu0 0.0
      %6349 = vmatpush1.msra.mxu0 0.0
      %6350 = vmatprep.subr.mxu0 0.0
      %6351 = vmatpush1.msra.mxu0 0.0
      %6352 = vmatprep.subr.mxu0 0.0
      %6353 = vmatpush1.msra.mxu0 0.0
      %6354 = vmatprep.subr.mxu0 0.0
      %6355 = vmatpush1.msra.mxu0 0.0
      %6356 = vmatprep.subr.mxu0 0.0
      %6357 = vmatpush1.msra.mxu0 0.0
      %6358 = vmatprep.subr.mxu0 0.0
      %6359 = vmatpush1.msra.mxu0 0.0
      %6360 = vmatprep.subr.mxu0 0.0
      %6361 = vmatpush1.msra.mxu0 0.0
      %6362 = vmatprep.subr.mxu0 0.0
      %6363 = vmatpush1.msra.mxu0 0.0
      %6364 = vmatprep.mubr.f32.mxu0 0.0
      %v6365 = vand.u32 %v3510, 4294901760
      %6366 = vmatmul.mubr.f32.gmra.mrb[0].mxu0 %v6365
      %v6367 = vpop.f32.mrb[0].mxu0
      %v6368 = vadd.f32 %v6277, %v6367
      %v6369 = vpop.f32.mrb[0].mxu0
      %6370 = vdwg.mxu0
      %6371 = vmatprep.subr.mxu0 0.0
      %v6372 = vand.u32 %v2302, 4294901760
      %v6373 = vsub.f32 %v2302, %v6372
      %6374 = vmatpush1.msra.mxu0 %v6373
      %6375 = vmatprep.subr.mxu0 0.0
      %v6376 = vand.u32 %v2308, 4294901760
      %v6377 = vsub.f32 %v2308, %v6376
      %6378 = vmatpush1.msra.mxu0 %v6377
      %6379 = vmatprep.subr.mxu0 0.0
      %v6380 = vand.u32 %v2314, 4294901760
      %v6381 = vsub.f32 %v2314, %v6380
      %6382 = vmatpush1.msra.mxu0 %v6381
      %6383 = vmatprep.subr.mxu0 0.0
      %v6384 = vand.u32 %v2320, 4294901760
      %v6385 = vsub.f32 %v2320, %v6384
      %6386 = vmatpush1.msra.mxu0 %v6385
      %6387 = vmatprep.subr.mxu0 0.0
      %6388 = vmatpush1.msra.mxu0 0.0
      %6389 = vmatprep.subr.mxu0 0.0
      %6390 = vmatpush1.msra.mxu0 0.0
      %6391 = vmatprep.subr.mxu0 0.0
      %6392 = vmatpush1.msra.mxu0 0.0
      %6393 = vmatprep.subr.mxu0 0.0
      %6394 = vmatpush1.msra.mxu0 0.0
      %6395 = vmatprep.subr.mxu0 0.0
      %6396 = vmatpush1.msra.mxu0 0.0
      %6397 = vmatprep.subr.mxu0 0.0
      %6398 = vmatpush1.msra.mxu0 0.0
      %6399 = vmatprep.subr.mxu0 0.0
      %6400 = vmatpush1.msra.mxu0 0.0
      %6401 = vmatprep.subr.mxu0 0.0
      %6402 = vmatpush1.msra.mxu0 0.0
      %6403 = vmatprep.subr.mxu0 0.0
      %6404 = vmatpush1.msra.mxu0 0.0
      %6405 = vmatprep.subr.mxu0 0.0
      %6406 = vmatpush1.msra.mxu0 0.0
      %6407 = vmatprep.subr.mxu0 0.0
      %6408 = vmatpush1.msra.mxu0 0.0
      %6409 = vmatprep.subr.mxu0 0.0
      %6410 = vmatpush1.msra.mxu0 0.0
      %6411 = vmatprep.subr.mxu0 0.0
      %6412 = vmatpush1.msra.mxu0 0.0
      %6413 = vmatprep.subr.mxu0 0.0
      %6414 = vmatpush1.msra.mxu0 0.0
      %6415 = vmatprep.subr.mxu0 0.0
      %6416 = vmatpush1.msra.mxu0 0.0
      %6417 = vmatprep.subr.mxu0 0.0
      %6418 = vmatpush1.msra.mxu0 0.0
      %6419 = vmatprep.subr.mxu0 0.0
      %6420 = vmatpush1.msra.mxu0 0.0
      %6421 = vmatprep.subr.mxu0 0.0
      %6422 = vmatpush1.msra.mxu0 0.0
      %6423 = vmatprep.subr.mxu0 0.0
      %6424 = vmatpush1.msra.mxu0 0.0
      %6425 = vmatprep.subr.mxu0 0.0
      %6426 = vmatpush1.msra.mxu0 0.0
      %6427 = vmatprep.subr.mxu0 0.0
      %6428 = vmatpush1.msra.mxu0 0.0
      %6429 = vmatprep.subr.mxu0 0.0
      %6430 = vmatpush1.msra.mxu0 0.0
      %6431 = vmatprep.subr.mxu0 0.0
      %6432 = vmatpush1.msra.mxu0 0.0
      %6433 = vmatprep.subr.mxu0 0.0
      %6434 = vmatpush1.msra.mxu0 0.0
      %6435 = vmatprep.subr.mxu0 0.0
      %6436 = vmatpush1.msra.mxu0 0.0
      %6437 = vmatprep.subr.mxu0 0.0
      %6438 = vmatpush1.msra.mxu0 0.0
      %6439 = vmatprep.subr.mxu0 0.0
      %6440 = vmatpush1.msra.mxu0 0.0
      %6441 = vmatprep.subr.mxu0 0.0
      %6442 = vmatpush1.msra.mxu0 0.0
      %6443 = vmatprep.mubr.f32.mxu0 0.0
      %v6444 = vand.u32 %v3510, 4294901760
      %v6445 = vsub.f32 %v3510, %v6444
      %6446 = vmatmul.mubr.f32.gmra.mrb[0].mxu0 %v6445
      %v6447 = vpop.f32.mrb[0].mxu0
      %v6448 = vadd.f32 %v6368, %v6447
      %v6449 = vpop.f32.mrb[0].mxu0
      %6450 = vdwg.mxu0
      %6451 = vmatprep.subr.mxu0 0.0
      %v6452 = vand.u32 %v2302, 4294901760
      %6453 = vmatpush1.msra.mxu0 %v6452
      %6454 = vmatprep.subr.mxu0 0.0
      %v6455 = vand.u32 %v2308, 4294901760
      %6456 = vmatpush1.msra.mxu0 %v6455
      %6457 = vmatprep.subr.mxu0 0.0
      %v6458 = vand.u32 %v2314, 4294901760
      %6459 = vmatpush1.msra.mxu0 %v6458
      %6460 = vmatprep.subr.mxu0 0.0
      %v6461 = vand.u32 %v2320, 4294901760
      %6462 = vmatpush1.msra.mxu0 %v6461
      %6463 = vmatprep.subr.mxu0 0.0
      %6464 = vmatpush1.msra.mxu0 0.0
      %6465 = vmatprep.subr.mxu0 0.0
      %6466 = vmatpush1.msra.mxu0 0.0
      %6467 = vmatprep.subr.mxu0 0.0
      %6468 = vmatpush1.msra.mxu0 0.0
      %6469 = vmatprep.subr.mxu0 0.0
      %6470 = vmatpush1.msra.mxu0 0.0
      %6471 = vmatprep.subr.mxu0 0.0
      %6472 = vmatpush1.msra.mxu0 0.0
      %6473 = vmatprep.subr.mxu0 0.0
      %6474 = vmatpush1.msra.mxu0 0.0
      %6475 = vmatprep.subr.mxu0 0.0
      %6476 = vmatpush1.msra.mxu0 0.0
      %6477 = vmatprep.subr.mxu0 0.0
      %6478 = vmatpush1.msra.mxu0 0.0
      %6479 = vmatprep.subr.mxu0 0.0
      %6480 = vmatpush1.msra.mxu0 0.0
      %6481 = vmatprep.subr.mxu0 0.0
      %6482 = vmatpush1.msra.mxu0 0.0
      %6483 = vmatprep.subr.mxu0 0.0
      %6484 = vmatpush1.msra.mxu0 0.0
      %6485 = vmatprep.subr.mxu0 0.0
      %6486 = vmatpush1.msra.mxu0 0.0
      %6487 = vmatprep.subr.mxu0 0.0
      %6488 = vmatpush1.msra.mxu0 0.0
      %6489 = vmatprep.subr.mxu0 0.0
      %6490 = vmatpush1.msra.mxu0 0.0
      %6491 = vmatprep.subr.mxu0 0.0
      %6492 = vmatpush1.msra.mxu0 0.0
      %6493 = vmatprep.subr.mxu0 0.0
      %6494 = vmatpush1.msra.mxu0 0.0
      %6495 = vmatprep.subr.mxu0 0.0
      %6496 = vmatpush1.msra.mxu0 0.0
      %6497 = vmatprep.subr.mxu0 0.0
      %6498 = vmatpush1.msra.mxu0 0.0
      %6499 = vmatprep.subr.mxu0 0.0
      %6500 = vmatpush1.msra.mxu0 0.0
      %6501 = vmatprep.subr.mxu0 0.0
      %6502 = vmatpush1.msra.mxu0 0.0
      %6503 = vmatprep.subr.mxu0 0.0
      %6504 = vmatpush1.msra.mxu0 0.0
      %6505 = vmatprep.subr.mxu0 0.0
      %6506 = vmatpush1.msra.mxu0 0.0
      %6507 = vmatprep.subr.mxu0 0.0
      %6508 = vmatpush1.msra.mxu0 0.0
      %6509 = vmatprep.subr.mxu0 0.0
      %6510 = vmatpush1.msra.mxu0 0.0
      %6511 = vmatprep.subr.mxu0 0.0
      %6512 = vmatpush1.msra.mxu0 0.0
      %6513 = vmatprep.subr.mxu0 0.0
      %6514 = vmatpush1.msra.mxu0 0.0
      %6515 = vmatprep.subr.mxu0 0.0
      %6516 = vmatpush1.msra.mxu0 0.0
      %6517 = vmatprep.subr.mxu0 0.0
      %6518 = vmatpush1.msra.mxu0 0.0
      %6519 = vmatprep.mubr.f32.mxu0 0.0
      %v6520 = vand.u32 %v3510, 4294901760
      %v6521 = vsub.f32 %v3510, %v6520
      %v6522 = vand.u32 %v6521, 4294901760
      %6523 = vmatmul.mubr.f32.gmra.mrb[0].mxu0 %v6522
      %v6524 = vpop.f32.mrb[0].mxu0
      %v6525 = vadd.f32 %v6448, %v6524
      %v6526 = vpop.f32.mrb[0].mxu0
      %6527 = vdwg.mxu0
      %6528 = vmatprep.subr.mxu0 0.0
      %v6529 = vand.u32 %v2302, 4294901760
      %v6530 = vsub.f32 %v2302, %v6529
      %v6531 = vand.u32 %v6530, 4294901760
      %6532 = vmatpush1.msra.mxu0 %v6531
      %6533 = vmatprep.subr.mxu0 0.0
      %v6534 = vand.u32 %v2308, 4294901760
      %v6535 = vsub.f32 %v2308, %v6534
      %v6536 = vand.u32 %v6535, 4294901760
      %6537 = vmatpush1.msra.mxu0 %v6536
      %6538 = vmatprep.subr.mxu0 0.0
      %v6539 = vand.u32 %v2314, 4294901760
      %v6540 = vsub.f32 %v2314, %v6539
      %v6541 = vand.u32 %v6540, 4294901760
      %6542 = vmatpush1.msra.mxu0 %v6541
      %6543 = vmatprep.subr.mxu0 0.0
      %v6544 = vand.u32 %v2320, 4294901760
      %v6545 = vsub.f32 %v2320, %v6544
      %v6546 = vand.u32 %v6545, 4294901760
      %6547 = vmatpush1.msra.mxu0 %v6546
      %6548 = vmatprep.subr.mxu0 0.0
      %6549 = vmatpush1.msra.mxu0 0.0
      %6550 = vmatprep.subr.mxu0 0.0
      %6551 = vmatpush1.msra.mxu0 0.0
      %6552 = vmatprep.subr.mxu0 0.0
      %6553 = vmatpush1.msra.mxu0 0.0
      %6554 = vmatprep.subr.mxu0 0.0
      %6555 = vmatpush1.msra.mxu0 0.0
      %6556 = vmatprep.subr.mxu0 0.0
      %6557 = vmatpush1.msra.mxu0 0.0
      %6558 = vmatprep.subr.mxu0 0.0
      %6559 = vmatpush1.msra.mxu0 0.0
      %6560 = vmatprep.subr.mxu0 0.0
      %6561 = vmatpush1.msra.mxu0 0.0
      %6562 = vmatprep.subr.mxu0 0.0
      %6563 = vmatpush1.msra.mxu0 0.0
      %6564 = vmatprep.subr.mxu0 0.0
      %6565 = vmatpush1.msra.mxu0 0.0
      %6566 = vmatprep.subr.mxu0 0.0
      %6567 = vmatpush1.msra.mxu0 0.0
      %6568 = vmatprep.subr.mxu0 0.0
      %6569 = vmatpush1.msra.mxu0 0.0
      %6570 = vmatprep.subr.mxu0 0.0
      %6571 = vmatpush1.msra.mxu0 0.0
      %6572 = vmatprep.subr.mxu0 0.0
      %6573 = vmatpush1.msra.mxu0 0.0
      %6574 = vmatprep.subr.mxu0 0.0
      %6575 = vmatpush1.msra.mxu0 0.0
      %6576 = vmatprep.subr.mxu0 0.0
      %6577 = vmatpush1.msra.mxu0 0.0
      %6578 = vmatprep.subr.mxu0 0.0
      %6579 = vmatpush1.msra.mxu0 0.0
      %6580 = vmatprep.subr.mxu0 0.0
      %6581 = vmatpush1.msra.mxu0 0.0
      %6582 = vmatprep.subr.mxu0 0.0
      %6583 = vmatpush1.msra.mxu0 0.0
      %6584 = vmatprep.subr.mxu0 0.0
      %6585 = vmatpush1.msra.mxu0 0.0
      %6586 = vmatprep.subr.mxu0 0.0
      %6587 = vmatpush1.msra.mxu0 0.0
      %6588 = vmatprep.subr.mxu0 0.0
      %6589 = vmatpush1.msra.mxu0 0.0
      %6590 = vmatprep.subr.mxu0 0.0
      %6591 = vmatpush1.msra.mxu0 0.0
      %6592 = vmatprep.subr.mxu0 0.0
      %6593 = vmatpush1.msra.mxu0 0.0
      %6594 = vmatprep.subr.mxu0 0.0
      %6595 = vmatpush1.msra.mxu0 0.0
      %6596 = vmatprep.subr.mxu0 0.0
      %6597 = vmatpush1.msra.mxu0 0.0
      %6598 = vmatprep.subr.mxu0 0.0
      %6599 = vmatpush1.msra.mxu0 0.0
      %6600 = vmatprep.subr.mxu0 0.0
      %6601 = vmatpush1.msra.mxu0 0.0
      %6602 = vmatprep.subr.mxu0 0.0
      %6603 = vmatpush1.msra.mxu0 0.0
      %6604 = vmatprep.mubr.f32.mxu0 0.0
      %v6605 = vand.u32 %v3510, 4294901760
      %6606 = vmatmul.mubr.f32.gmra.mrb[0].mxu0 %v6605
      %v6607 = vpop.f32.mrb[0].mxu0
      %v6608 = vadd.f32 %v6525, %v6607
      %v6609 = vpop.f32.mrb[0].mxu0
      %6610 = vdwg.mxu0
      %6611 = vmatprep.subr.mxu0 0.0
      %v6612 = vand.u32 %v2302, 4294901760
      %6613 = vmatpush1.msra.mxu0 %v6612
      %6614 = vmatprep.subr.mxu0 0.0
      %v6615 = vand.u32 %v2308, 4294901760
      %6616 = vmatpush1.msra.mxu0 %v6615
      %6617 = vmatprep.subr.mxu0 0.0
      %v6618 = vand.u32 %v2314, 4294901760
      %6619 = vmatpush1.msra.mxu0 %v6618
      %6620 = vmatprep.subr.mxu0 0.0
      %v6621 = vand.u32 %v2320, 4294901760
      %6622 = vmatpush1.msra.mxu0 %v6621
      %6623 = vmatprep.subr.mxu0 0.0
      %6624 = vmatpush1.msra.mxu0 0.0
      %6625 = vmatprep.subr.mxu0 0.0
      %6626 = vmatpush1.msra.mxu0 0.0
      %6627 = vmatprep.subr.mxu0 0.0
      %6628 = vmatpush1.msra.mxu0 0.0
      %6629 = vmatprep.subr.mxu0 0.0
      %6630 = vmatpush1.msra.mxu0 0.0
      %6631 = vmatprep.subr.mxu0 0.0
      %6632 = vmatpush1.msra.mxu0 0.0
      %6633 = vmatprep.subr.mxu0 0.0
      %6634 = vmatpush1.msra.mxu0 0.0
      %6635 = vmatprep.subr.mxu0 0.0
      %6636 = vmatpush1.msra.mxu0 0.0
      %6637 = vmatprep.subr.mxu0 0.0
      %6638 = vmatpush1.msra.mxu0 0.0
      %6639 = vmatprep.subr.mxu0 0.0
      %6640 = vmatpush1.msra.mxu0 0.0
      %6641 = vmatprep.subr.mxu0 0.0
      %6642 = vmatpush1.msra.mxu0 0.0
      %6643 = vmatprep.subr.mxu0 0.0
      %6644 = vmatpush1.msra.mxu0 0.0
      %6645 = vmatprep.subr.mxu0 0.0
      %6646 = vmatpush1.msra.mxu0 0.0
      %6647 = vmatprep.subr.mxu0 0.0
      %6648 = vmatpush1.msra.mxu0 0.0
      %6649 = vmatprep.subr.mxu0 0.0
      %6650 = vmatpush1.msra.mxu0 0.0
      %6651 = vmatprep.subr.mxu0 0.0
      %6652 = vmatpush1.msra.mxu0 0.0
      %6653 = vmatprep.subr.mxu0 0.0
      %6654 = vmatpush1.msra.mxu0 0.0
      %6655 = vmatprep.subr.mxu0 0.0
      %6656 = vmatpush1.msra.mxu0 0.0
      %6657 = vmatprep.subr.mxu0 0.0
      %6658 = vmatpush1.msra.mxu0 0.0
      %6659 = vmatprep.subr.mxu0 0.0
      %6660 = vmatpush1.msra.mxu0 0.0
      %6661 = vmatprep.subr.mxu0 0.0
      %6662 = vmatpush1.msra.mxu0 0.0
      %6663 = vmatprep.subr.mxu0 0.0
      %6664 = vmatpush1.msra.mxu0 0.0
      %6665 = vmatprep.subr.mxu0 0.0
      %6666 = vmatpush1.msra.mxu0 0.0
      %6667 = vmatprep.subr.mxu0 0.0
      %6668 = vmatpush1.msra.mxu0 0.0
      %6669 = vmatprep.subr.mxu0 0.0
      %6670 = vmatpush1.msra.mxu0 0.0
      %6671 = vmatprep.subr.mxu0 0.0
      %6672 = vmatpush1.msra.mxu0 0.0
      %6673 = vmatprep.subr.mxu0 0.0
      %6674 = vmatpush1.msra.mxu0 0.0
      %6675 = vmatprep.subr.mxu0 0.0
      %6676 = vmatpush1.msra.mxu0 0.0
      %6677 = vmatprep.subr.mxu0 0.0
      %6678 = vmatpush1.msra.mxu0 0.0
      %6679 = vmatprep.mubr.f32.mxu0 0.0
      %v6680 = vand.u32 %v3510, 4294901760
      %6681 = vmatmul.mubr.f32.gmra.mrb[0].mxu0 %v6680
      %v6682 = vpop.f32.mrb[0].mxu0
      %v6683 = vadd.f32 %v6608, %v6682
      %v6684 = vpop.f32.mrb[0].mxu0
      %6685 = vdwg.mxu0
      %v6686 = vld [vmem:[%s8] sm:$0xff]
      %6688 = vset.pattern.permute.xlu0 0
      %6689 = vperm.xlu0 %6688, %v6686
      %v6690 = vpop.permute.xlu0 %6689
      %v6692 = vadd.f32 %v5335, %v6690
      %v6693 = vadd.f32 %v5337, %v6690
      %v6694 = vadd.f32 %v6683, %v6690
      %6695 = vst [vmem:[%s332] sm:$0xff] %v6692
      %6696 = vst [vmem:[%s332 + $0x8] sm:$0xff] %v6693
      %6697 = vst.msk [vmem:[%s332 + $0x10] sm:$0xff] %vm1207, %v6694
      %p6698 = scmp.lt.s32.totalorder %s20, 1
      %s6699 = scalar_select %p6698, %s20, 1
      %s6700 = smul.addr %s6699, 3
      %s6701 = smul.addr %s6700, 8
      %s6702 = scalar_lea.vmem %s9, %s6701
      // Predicated region
      $region57: #{forward.1} parent=55 // pred_check
        %p6703 = pneg %p232
      $region58: #{forward.1} parent=55 // pred_check_branch
        %6705 = sbr.rel (%p6703) target = $region60
      $region59: #{forward.1} parent=55 // pred_region
        _
      $region60: #{forward.1} parent=55 // pred_fallthru
        _
    $region56: #{forward.1} parent=5 // pred_fallthru
      _
    %p6706 = scmp.le.s32.totalorder 2, %s15
    // Predicated region
    $region61: #{forward.1} parent=5 // pred_check
      %p6707 = pneg %p6706
    $region62: #{forward.1} parent=5 // pred_check_branch
      %6709 = sbr.rel (%p6707) target = $region64
    $region63: #{forward.1} parent=5 // pred_region
      %s6710 = ssub.s32 %s15, 2
      // Predicated region
      $region65: #{forward.1} parent=63 // pred_check
        %p6711 = pneg %p238
      $region66: #{forward.1} parent=63 // pred_check_branch
        %6713 = sbr.rel (%p6711) target = $region68
      $region67: #{forward.1} parent=63 // pred_region
        %p6714 = scmp.lt.s32.totalorder %s21, 1
        %s6715 = scalar_select %p6714, %s21, 1
        %s6716 = smul.addr %s6715, 3
        %s6717 = smul.addr %s6716, 8
        %s6718 = scalar_lea.vmem %s9, %s6717
      $region68: #{forward.1} parent=63 // pred_fallthru
        _
    $region64: #{forward.1} parent=5 // pred_fallthru
      _
  $region6: #{forward.1} parent=0 // loop_footer
    %s19 = sadd.s32 1, %s15
  $region7: #{forward.1} parent=0 // loop_footer_branch
    %14 = sbr.rel target = $region3
  $region8: #{forward.1} parent=0 // loop_exit
    _

</llo_original>
